<compile_context>
chip_gen: v7x
topology: tpu7x:2x2x1
jax: 0.10.0
libtpu: 0.0.40
codegen_flags: <defaults>
</compile_context>

<pallas_src>
import functools

import jax
import jax.numpy as jnp
from jax import lax
from jax.experimental import pallas as pl
from jax.experimental.pallas import tpu as pltpu


# Dilations of the 10 highway layers: HCs_1 = 3**i for i in chain(range(4),
# range(4)), HCs_2 = two layers with dilation 3.
DILATIONS = tuple(3 ** i for i in range(4)) * 2 + (3, 3)


def _layer_norm(h, g, beta, eps=1e-5):
    """LayerNorm over the channel (last) axis, f32 math."""
    m = jnp.mean(h, axis=-1, keepdims=True)
    v = jnp.mean(jnp.square(h - m), axis=-1, keepdims=True)
    return (h - m) * lax.rsqrt(v + eps) * g + beta


# ----------------------------------------------------------------------------
# Kernel A: fused C_1 -> C_2 -> C_3 (all kernel_size=1 causal convs)
# Works on flat (rows, channels) tiles; rows = B*T (1x1 conv mixes no time).
# ----------------------------------------------------------------------------
def _conv_stack_kernel(x_ref,
                       w1_ref, b1_ref, g1_ref, be1_ref,
                       w2_ref, b2_ref, g2_ref, be2_ref,
                       w3_ref, b3_ref, g3_ref, be3_ref,
                       o_ref):
    def stage(h_f32, w_ref, b_ref, g_ref, be_ref, relu):
        acc = jnp.dot(h_f32.astype(jnp.bfloat16), w_ref[...],
                      preferred_element_type=jnp.float32) + b_ref[...]
        y = _layer_norm(acc, g_ref[...], be_ref[...])
        return jnp.maximum(y, 0.0) if relu else y

    h = stage(x_ref[...], w1_ref, b1_ref, g1_ref, be1_ref, relu=True)   # C_1
    h = stage(h, w2_ref, b2_ref, g2_ref, be2_ref, relu=True)            # C_2
    h = stage(h, w3_ref, b3_ref, g3_ref, be3_ref, relu=False)           # C_3
    o_ref[...] = h.astype(o_ref.dtype)


def conv_stack(x_2d, cs, *, row_tile=512):
    """x_2d: (B*T, n_mels) f32 -> (B*T, d) bf16."""
    rows, cin = x_2d.shape
    d = cs["w3"].shape[1]

    tile = min(row_tile, rows)
    if tile != rows and tile % 8 != 0:          # sublane constraint
        tile = max(8, (tile // 8) * 8)
    grid = (pl.cdiv(rows, tile),)

    row_map = lambda i: (i, 0)
    const2 = lambda i: (0, 0)                   # weights stay VMEM-resident

    flat_params = []
    in_specs = [pl.BlockSpec((tile, cin), row_map)]
    for i in (1, 2, 3):
        for name in ("w", "b", "g", "be"):
            p = cs[f"{name}{i}"]
            flat_params.append(p)
            in_specs.append(pl.BlockSpec(p.shape, const2))

    return pl.pallas_call(
        _conv_stack_kernel,
        out_shape=jax.ShapeDtypeStruct((rows, d), jnp.bfloat16),
        grid=grid,
        in_specs=in_specs,
        out_specs=pl.BlockSpec((tile, d), row_map),
        compiler_params=pltpu.CompilerParams(
            dimension_semantics=("parallel",)),
    )(x_2d, *flat_params)


# ----------------------------------------------------------------------------
# Kernel B: all 10 HighwayConv layers fused; activation resident in VMEM.
# Grid over batch (parallel).  Scratch layout: rows [0, PMAX) are the causal
# zero halo, rows [PMAX, PMAX+T) hold the current activation in f32.
# ----------------------------------------------------------------------------
def _highway_chain_kernel(x_ref, w_ref, b_ref, g1_ref, be1_ref, g2_ref,
                          be2_ref, o_ref, act_ref, *, dilations, pmax):
    _, T, C = o_ref.shape
    K = w_ref.shape[1]

    act_ref[0:pmax, :] = jnp.zeros((pmax, C), jnp.float32)   # causal zero halo
    act_ref[pmax:, :] = x_ref[0].astype(jnp.float32)

    for l, dil in enumerate(dilations):          # static unroll over 10 layers
        x_in = act_ref[pmax:, :]                 # (T, C) layer input (f32)
        acc = jnp.zeros((T, 2 * C), jnp.float32)
        for k in range(K):                       # static unroll over taps
            shift = (K - 1 - k) * dil            # causal shift, static
            tap = act_ref[pmax - shift: pmax - shift + T, :]
            acc = acc + jnp.dot(tap.astype(jnp.bfloat16), w_ref[l, k],
                                preferred_element_type=jnp.float32)
        acc = acc + b_ref[l]

        h1 = _layer_norm(acc[:, :C], g1_ref[l], be1_ref[l])
        h2 = _layer_norm(acc[:, C:], g2_ref[l], be2_ref[l])
        gate = jax.nn.sigmoid(h1)
        act_ref[pmax:, :] = gate * h2 + (1.0 - gate) * x_in   # highway gate

    o_ref[0] = act_ref[pmax:, :].astype(o_ref.dtype)


def highway_chain(x_btc, hp, dilations):
    """x_btc: (B, T, C) bf16 -> (B, T, C) f32 after 10 highway layers."""
    B, T, C = x_btc.shape
    K = hp["w"].shape[1]
    pmax = (K - 1) * max(dilations)

    kern = functools.partial(_highway_chain_kernel,
                             dilations=tuple(dilations), pmax=pmax)
    bmap = lambda b: (b, 0, 0)
    const3 = lambda b: (0, 0, 0)
    const4 = lambda b: (0, 0, 0, 0)

    return pl.pallas_call(
        kern,
        out_shape=jax.ShapeDtypeStruct((B, T, C), jnp.float32),
        grid=(B,),
        in_specs=[
            pl.BlockSpec((1, T, C), bmap),
            pl.BlockSpec(hp["w"].shape, const4),
            pl.BlockSpec(hp["b"].shape, const3),
            pl.BlockSpec(hp["g1"].shape, const3),
            pl.BlockSpec(hp["be1"].shape, const3),
            pl.BlockSpec(hp["g2"].shape, const3),
            pl.BlockSpec(hp["be2"].shape, const3),
        ],
        out_specs=pl.BlockSpec((1, T, C), bmap),
        scratch_shapes=[pltpu.VMEM((pmax + T, C), jnp.float32)],
        compiler_params=pltpu.CompilerParams(
            dimension_semantics=("parallel",)),
    )(x_btc, hp["w"], hp["b"], hp["g1"], hp["be1"], hp["g2"], hp["be2"])


# ----------------------------------------------------------------------------
# Deterministic synthetic parameters (no checkpoint).  Weights bf16, affine
# and LayerNorm parameters f32.
# ----------------------------------------------------------------------------
def init_audio_enc_params(key, n_mels, d, n_hc_layers=10, k_hc=3):
    ks = jax.random.split(key, 8)

    def dense_w(k, cin, cout):
        return (0.05 * jax.random.normal(k, (cin, cout),
                                         jnp.float32)).astype(jnp.bfloat16)

    def affine(k, cout):
        kb, kg, kbe = jax.random.split(k, 3)
        b = 0.1 * jax.random.normal(kb, (1, cout), jnp.float32)
        g = 1.0 + 0.1 * jax.random.normal(kg, (1, cout), jnp.float32)
        be = 0.1 * jax.random.normal(kbe, (1, cout), jnp.float32)
        return b, g, be

    cs = {}
    cins = (n_mels, d, d)
    for i in range(3):
        b, g, be = affine(ks[i + 3], d)
        cs[f"w{i + 1}"] = dense_w(ks[i], cins[i], d)
        cs[f"b{i + 1}"] = b
        cs[f"g{i + 1}"] = g
        cs[f"be{i + 1}"] = be

    kw, kb, kg1, kbe1, kg2, kbe2 = jax.random.split(ks[6], 6)
    hc = {
        "w": (0.05 * jax.random.normal(
            kw, (n_hc_layers, k_hc, d, 2 * d), jnp.float32)).astype(jnp.bfloat16),
        "b": 0.1 * jax.random.normal(kb, (n_hc_layers, 1, 2 * d), jnp.float32),
        "g1": 1.0 + 0.1 * jax.random.normal(kg1, (n_hc_layers, 1, d), jnp.float32),
        "be1": 0.1 * jax.random.normal(kbe1, (n_hc_layers, 1, d), jnp.float32),
        "g2": 1.0 + 0.1 * jax.random.normal(kg2, (n_hc_layers, 1, d), jnp.float32),
        "be2": 0.1 * jax.random.normal(kbe2, (n_hc_layers, 1, d), jnp.float32),
    }
    return {"conv_stack": cs, "hc": hc}


# ----------------------------------------------------------------------------
# Full AudioEnc forward (PyTorch layout in / out: (B, C, T))
# ----------------------------------------------------------------------------
def audio_enc_forward(params, x_bct, *, row_tile=512):
    B, _, T = x_bct.shape
    x = jnp.transpose(x_bct, (0, 2, 1))                 # (B, T, n_mels)
    h = conv_stack(x.reshape(B * T, -1), params["conv_stack"],
                   row_tile=row_tile)                   # (B*T, d) bf16
    h = h.reshape(B, T, -1)
    y = highway_chain(h, params["hc"], DILATIONS)       # (B, T, d) f32
    return jnp.transpose(y, (0, 2, 1))                  # (B, d, T)


# ----------------------------------------------------------------------------
# Pure-JAX reference mirroring the kernels' precision policy (for self-check)
# ----------------------------------------------------------------------------
def audio_enc_reference(params, x_bct):
    cs, hp = params["conv_stack"], params["hc"]
    h = jnp.transpose(x_bct, (0, 2, 1)).astype(jnp.float32)
    for i, relu in ((1, True), (2, True), (3, False)):
        acc = jnp.einsum("btc,cd->btd", h.astype(jnp.bfloat16), cs[f"w{i}"],
                         preferred_element_type=jnp.float32) + cs[f"b{i}"]
        h = _layer_norm(acc, cs[f"g{i}"], cs[f"be{i}"])
        if relu:
            h = jnp.maximum(h, 0.0)
    h = h.astype(jnp.bfloat16).astype(jnp.float32)      # bf16 HBM hand-off
    B, T, C = h.shape
    K = hp["w"].shape[1]
    for l, dil in enumerate(DILATIONS):
        P = (K - 1) * dil
        xpad = jnp.pad(h, ((0, 0), (P, 0), (0, 0)))
        acc = jnp.zeros((B, T, 2 * C), jnp.float32)
        for k in range(K):
            tap = xpad[:, k * dil: k * dil + T, :]
            acc = acc + jnp.einsum("btc,cd->btd", tap.astype(jnp.bfloat16),
                                   hp["w"][l, k],
                                   preferred_element_type=jnp.float32)
        acc = acc + hp["b"][l]
        h1 = _layer_norm(acc[..., :C], hp["g1"][l], hp["be1"][l])
        h2 = _layer_norm(acc[..., C:], hp["g2"][l], hp["be2"][l])
        gate = jax.nn.sigmoid(h1)
        h = gate * h2 + (1.0 - gate) * h
    return jnp.transpose(h, (0, 2, 1))


# ----------------------------------------------------------------------------
if __name__ == "__main__":
    B, N_MELS, HIDDEN, T = 2, 16, 32, 16   # small demo shapes (real DCTTS: d>=128)

    key = jax.random.PRNGKey(0)
    k_params, k_x = jax.random.split(key)
    params = init_audio_enc_params(k_params, N_MELS, HIDDEN)
    # mel spectrogram input, PyTorch convention: (Batch, n_mels, Time)
    x = jax.random.normal(k_x, (B, N_MELS, T), jnp.float32)

    # small row_tile so the demo actually exercises the row grid (B*T=32 -> 4 steps)
    fwd = jax.jit(functools.partial(audio_enc_forward, row_tile=8))
    out = jax.block_until_ready(fwd(params, x))

    assert out.shape == (B, HIDDEN, T), out.shape
    assert bool(jnp.all(jnp.isfinite(out)))

    ref = audio_enc_reference(params, x)
    err = float(jnp.max(jnp.abs(out - ref)))
    assert err < 3e-2, f"max abs error vs reference: {err}"

    print("KERNEL_OK")
</pallas_src>

<mosaic_0001>
module attributes {stable_mosaic.version = 11 : i64} {
  func.func @_conv_stack_kernel(%arg0: i32, %arg1: memref<8x16xf32, #tpu.memory_space<vmem>>, %arg2: memref<16x32xbf16, #tpu.memory_space<vmem>>, %arg3: memref<1x32xf32, #tpu.memory_space<vmem>>, %arg4: memref<1x32xf32, #tpu.memory_space<vmem>>, %arg5: memref<1x32xf32, #tpu.memory_space<vmem>>, %arg6: memref<32x32xbf16, #tpu.memory_space<vmem>>, %arg7: memref<1x32xf32, #tpu.memory_space<vmem>>, %arg8: memref<1x32xf32, #tpu.memory_space<vmem>>, %arg9: memref<1x32xf32, #tpu.memory_space<vmem>>, %arg10: memref<32x32xbf16, #tpu.memory_space<vmem>>, %arg11: memref<1x32xf32, #tpu.memory_space<vmem>>, %arg12: memref<1x32xf32, #tpu.memory_space<vmem>>, %arg13: memref<1x32xf32, #tpu.memory_space<vmem>>, %arg14: memref<8x32xbf16, #tpu.memory_space<vmem>>) attributes {dimension_semantics = [#tpu.dimension_semantics<parallel>], iteration_bounds = array<i64: 4>, scalar_prefetch = 0 : i64, scratch_operands = 0 : i64, tpu.core_type = #tpu.core_type<tc>, window_params = [{transform_indices = @transform_0, window_bounds = array<i64: 8, 16>}, {pipeline_mode = #tpu.pipeline_mode<synchronous>, transform_indices = @transform_1, window_bounds = array<i64: 16, 32>}, {pipeline_mode = #tpu.pipeline_mode<synchronous>, transform_indices = @transform_2, window_bounds = array<i64: 1, 32>}, {pipeline_mode = #tpu.pipeline_mode<synchronous>, transform_indices = @transform_3, window_bounds = array<i64: 1, 32>}, {pipeline_mode = #tpu.pipeline_mode<synchronous>, transform_indices = @transform_4, window_bounds = array<i64: 1, 32>}, {pipeline_mode = #tpu.pipeline_mode<synchronous>, transform_indices = @transform_5, window_bounds = array<i64: 32, 32>}, {pipeline_mode = #tpu.pipeline_mode<synchronous>, transform_indices = @transform_6, window_bounds = array<i64: 1, 32>}, {pipeline_mode = #tpu.pipeline_mode<synchronous>, transform_indices = @transform_7, window_bounds = array<i64: 1, 32>}, {pipeline_mode = #tpu.pipeline_mode<synchronous>, transform_indices = @transform_8, window_bounds = array<i64: 1, 32>}, {pipeline_mode = #tpu.pipeline_mode<synchronous>, transform_indices = @transform_9, window_bounds = array<i64: 32, 32>}, {pipeline_mode = #tpu.pipeline_mode<synchronous>, transform_indices = @transform_10, window_bounds = array<i64: 1, 32>}, {pipeline_mode = #tpu.pipeline_mode<synchronous>, transform_indices = @transform_11, window_bounds = array<i64: 1, 32>}, {pipeline_mode = #tpu.pipeline_mode<synchronous>, transform_indices = @transform_12, window_bounds = array<i64: 1, 32>}, {transform_indices = @transform_13, window_bounds = array<i64: 8, 32>}]} {
    %c0 = arith.constant 0 : index
    %c0_0 = arith.constant 0 : index
    %0 = vector.load %arg1[%c0, %c0_0] : memref<8x16xf32, #tpu.memory_space<vmem>>, vector<8x16xf32>
    %1 = arith.truncf %0 : vector<8x16xf32> to vector<8x16xbf16>
    %c0_1 = arith.constant 0 : index
    %c0_2 = arith.constant 0 : index
    %2 = vector.load %arg2[%c0_1, %c0_2] : memref<16x32xbf16, #tpu.memory_space<vmem>>, vector<16x32xbf16>
    %cst = arith.constant dense<0.000000e+00> : vector<8x32xf32>
    %3 = tpu.matmul %1, %2, %cst {dimension_numbers = #tpu.dot_dimension_numbers<[1], [0], [0], [1], [0, 0, 1, 1], [], []>} : vector<8x16xbf16>, vector<16x32xbf16>, vector<8x32xf32> -> vector<8x32xf32>
    %c0_3 = arith.constant 0 : index
    %c0_4 = arith.constant 0 : index
    %4 = vector.load %arg3[%c0_3, %c0_4] : memref<1x32xf32, #tpu.memory_space<vmem>>, vector<1x32xf32>
    %5 = vector.broadcast %4 : vector<1x32xf32> to vector<8x32xf32>
    %6 = arith.addf %3, %5 : vector<8x32xf32>
    %c0_5 = arith.constant 0 : index
    %c0_6 = arith.constant 0 : index
    %7 = vector.load %arg4[%c0_5, %c0_6] : memref<1x32xf32, #tpu.memory_space<vmem>>, vector<1x32xf32>
    %c0_7 = arith.constant 0 : index
    %c0_8 = arith.constant 0 : index
    %8 = vector.load %arg5[%c0_7, %c0_8] : memref<1x32xf32, #tpu.memory_space<vmem>>, vector<1x32xf32>
    %cst_9 = arith.constant dense<0.000000e+00> : vector<8xf32>
    %9 = vector.multi_reduction <add>, %6, %cst_9 [1] : vector<8x32xf32> to vector<8xf32>
    %10 = vector.shape_cast %9 : vector<8xf32> to vector<8x1xf32>
    %cst_10 = arith.constant 3.200000e+01 : f32
    %11 = vector.broadcast %cst_10 : f32 to vector<8x1xf32>
    %12 = arith.divf %10, %11 : vector<8x1xf32>
    %13 = vector.broadcast %12 : vector<8x1xf32> to vector<8x32xf32>
    %14 = arith.subf %6, %13 : vector<8x32xf32>
    %15 = arith.mulf %14, %14 : vector<8x32xf32>
    %cst_11 = arith.constant dense<0.000000e+00> : vector<8xf32>
    %16 = vector.multi_reduction <add>, %15, %cst_11 [1] : vector<8x32xf32> to vector<8xf32>
    %17 = vector.shape_cast %16 : vector<8xf32> to vector<8x1xf32>
    %cst_12 = arith.constant 3.200000e+01 : f32
    %18 = vector.broadcast %cst_12 : f32 to vector<8x1xf32>
    %19 = arith.divf %17, %18 : vector<8x1xf32>
    %20 = vector.broadcast %12 : vector<8x1xf32> to vector<8x32xf32>
    %21 = arith.subf %6, %20 : vector<8x32xf32>
    %cst_13 = arith.constant 9.99999974E-6 : f32
    %22 = vector.broadcast %cst_13 : f32 to vector<8x1xf32>
    %23 = arith.addf %19, %22 : vector<8x1xf32>
    %24 = math.rsqrt %23 : vector<8x1xf32>
    %25 = vector.broadcast %24 : vector<8x1xf32> to vector<8x32xf32>
    %26 = arith.mulf %21, %25 : vector<8x32xf32>
    %27 = vector.broadcast %7 : vector<1x32xf32> to vector<8x32xf32>
    %28 = arith.mulf %26, %27 : vector<8x32xf32>
    %29 = vector.broadcast %8 : vector<1x32xf32> to vector<8x32xf32>
    %30 = arith.addf %28, %29 : vector<8x32xf32>
    %cst_14 = arith.constant 0.000000e+00 : f32
    %31 = vector.broadcast %cst_14 : f32 to vector<8x32xf32>
    %32 = arith.maximumf %30, %31 : vector<8x32xf32>
    %33 = arith.truncf %32 : vector<8x32xf32> to vector<8x32xbf16>
    %c0_15 = arith.constant 0 : index
    %c0_16 = arith.constant 0 : index
    %34 = vector.load %arg6[%c0_15, %c0_16] : memref<32x32xbf16, #tpu.memory_space<vmem>>, vector<32x32xbf16>
    %cst_17 = arith.constant dense<0.000000e+00> : vector<8x32xf32>
    %35 = tpu.matmul %33, %34, %cst_17 {dimension_numbers = #tpu.dot_dimension_numbers<[1], [0], [0], [1], [0, 0, 1, 1], [], []>} : vector<8x32xbf16>, vector<32x32xbf16>, vector<8x32xf32> -> vector<8x32xf32>
    %c0_18 = arith.constant 0 : index
    %c0_19 = arith.constant 0 : index
    %36 = vector.load %arg7[%c0_18, %c0_19] : memref<1x32xf32, #tpu.memory_space<vmem>>, vector<1x32xf32>
    %37 = vector.broadcast %36 : vector<1x32xf32> to vector<8x32xf32>
    %38 = arith.addf %35, %37 : vector<8x32xf32>
    %c0_20 = arith.constant 0 : index
    %c0_21 = arith.constant 0 : index
    %39 = vector.load %arg8[%c0_20, %c0_21] : memref<1x32xf32, #tpu.memory_space<vmem>>, vector<1x32xf32>
    %c0_22 = arith.constant 0 : index
    %c0_23 = arith.constant 0 : index
    %40 = vector.load %arg9[%c0_22, %c0_23] : memref<1x32xf32, #tpu.memory_space<vmem>>, vector<1x32xf32>
    %cst_24 = arith.constant dense<0.000000e+00> : vector<8xf32>
    %41 = vector.multi_reduction <add>, %38, %cst_24 [1] : vector<8x32xf32> to vector<8xf32>
    %42 = vector.shape_cast %41 : vector<8xf32> to vector<8x1xf32>
    %cst_25 = arith.constant 3.200000e+01 : f32
    %43 = vector.broadcast %cst_25 : f32 to vector<8x1xf32>
    %44 = arith.divf %42, %43 : vector<8x1xf32>
    %45 = vector.broadcast %44 : vector<8x1xf32> to vector<8x32xf32>
    %46 = arith.subf %38, %45 : vector<8x32xf32>
    %47 = arith.mulf %46, %46 : vector<8x32xf32>
    %cst_26 = arith.constant dense<0.000000e+00> : vector<8xf32>
    %48 = vector.multi_reduction <add>, %47, %cst_26 [1] : vector<8x32xf32> to vector<8xf32>
    %49 = vector.shape_cast %48 : vector<8xf32> to vector<8x1xf32>
    %cst_27 = arith.constant 3.200000e+01 : f32
    %50 = vector.broadcast %cst_27 : f32 to vector<8x1xf32>
    %51 = arith.divf %49, %50 : vector<8x1xf32>
    %52 = vector.broadcast %44 : vector<8x1xf32> to vector<8x32xf32>
    %53 = arith.subf %38, %52 : vector<8x32xf32>
    %cst_28 = arith.constant 9.99999974E-6 : f32
    %54 = vector.broadcast %cst_28 : f32 to vector<8x1xf32>
    %55 = arith.addf %51, %54 : vector<8x1xf32>
    %56 = math.rsqrt %55 : vector<8x1xf32>
    %57 = vector.broadcast %56 : vector<8x1xf32> to vector<8x32xf32>
    %58 = arith.mulf %53, %57 : vector<8x32xf32>
    %59 = vector.broadcast %39 : vector<1x32xf32> to vector<8x32xf32>
    %60 = arith.mulf %58, %59 : vector<8x32xf32>
    %61 = vector.broadcast %40 : vector<1x32xf32> to vector<8x32xf32>
    %62 = arith.addf %60, %61 : vector<8x32xf32>
    %cst_29 = arith.constant 0.000000e+00 : f32
    %63 = vector.broadcast %cst_29 : f32 to vector<8x32xf32>
    %64 = arith.maximumf %62, %63 : vector<8x32xf32>
    %65 = arith.truncf %64 : vector<8x32xf32> to vector<8x32xbf16>
    %c0_30 = arith.constant 0 : index
    %c0_31 = arith.constant 0 : index
    %66 = vector.load %arg10[%c0_30, %c0_31] : memref<32x32xbf16, #tpu.memory_space<vmem>>, vector<32x32xbf16>
    %cst_32 = arith.constant dense<0.000000e+00> : vector<8x32xf32>
    %67 = tpu.matmul %65, %66, %cst_32 {dimension_numbers = #tpu.dot_dimension_numbers<[1], [0], [0], [1], [0, 0, 1, 1], [], []>} : vector<8x32xbf16>, vector<32x32xbf16>, vector<8x32xf32> -> vector<8x32xf32>
    %c0_33 = arith.constant 0 : index
    %c0_34 = arith.constant 0 : index
    %68 = vector.load %arg11[%c0_33, %c0_34] : memref<1x32xf32, #tpu.memory_space<vmem>>, vector<1x32xf32>
    %69 = vector.broadcast %68 : vector<1x32xf32> to vector<8x32xf32>
    %70 = arith.addf %67, %69 : vector<8x32xf32>
    %c0_35 = arith.constant 0 : index
    %c0_36 = arith.constant 0 : index
    %71 = vector.load %arg12[%c0_35, %c0_36] : memref<1x32xf32, #tpu.memory_space<vmem>>, vector<1x32xf32>
    %c0_37 = arith.constant 0 : index
    %c0_38 = arith.constant 0 : index
    %72 = vector.load %arg13[%c0_37, %c0_38] : memref<1x32xf32, #tpu.memory_space<vmem>>, vector<1x32xf32>
    %cst_39 = arith.constant dense<0.000000e+00> : vector<8xf32>
    %73 = vector.multi_reduction <add>, %70, %cst_39 [1] : vector<8x32xf32> to vector<8xf32>
    %74 = vector.shape_cast %73 : vector<8xf32> to vector<8x1xf32>
    %cst_40 = arith.constant 3.200000e+01 : f32
    %75 = vector.broadcast %cst_40 : f32 to vector<8x1xf32>
    %76 = arith.divf %74, %75 : vector<8x1xf32>
    %77 = vector.broadcast %76 : vector<8x1xf32> to vector<8x32xf32>
    %78 = arith.subf %70, %77 : vector<8x32xf32>
    %79 = arith.mulf %78, %78 : vector<8x32xf32>
    %cst_41 = arith.constant dense<0.000000e+00> : vector<8xf32>
    %80 = vector.multi_reduction <add>, %79, %cst_41 [1] : vector<8x32xf32> to vector<8xf32>
    %81 = vector.shape_cast %80 : vector<8xf32> to vector<8x1xf32>
    %cst_42 = arith.constant 3.200000e+01 : f32
    %82 = vector.broadcast %cst_42 : f32 to vector<8x1xf32>
    %83 = arith.divf %81, %82 : vector<8x1xf32>
    %84 = vector.broadcast %76 : vector<8x1xf32> to vector<8x32xf32>
    %85 = arith.subf %70, %84 : vector<8x32xf32>
    %cst_43 = arith.constant 9.99999974E-6 : f32
    %86 = vector.broadcast %cst_43 : f32 to vector<8x1xf32>
    %87 = arith.addf %83, %86 : vector<8x1xf32>
    %88 = math.rsqrt %87 : vector<8x1xf32>
    %89 = vector.broadcast %88 : vector<8x1xf32> to vector<8x32xf32>
    %90 = arith.mulf %85, %89 : vector<8x32xf32>
    %91 = vector.broadcast %71 : vector<1x32xf32> to vector<8x32xf32>
    %92 = arith.mulf %90, %91 : vector<8x32xf32>
    %93 = vector.broadcast %72 : vector<1x32xf32> to vector<8x32xf32>
    %94 = arith.addf %92, %93 : vector<8x32xf32>
    %95 = arith.truncf %94 : vector<8x32xf32> to vector<8x32xbf16>
    %c0_44 = arith.constant 0 : index
    %c0_45 = arith.constant 0 : index
    %96 = vector.load %arg14[%c0_44, %c0_45] : memref<8x32xbf16, #tpu.memory_space<vmem>>, vector<8x32xbf16>
    tpu.vector_store %arg14[%c0_44, %c0_45], %95 {strides = array<i32>} : memref<8x32xbf16, #tpu.memory_space<vmem>>, vector<8x32xbf16>,
    return
  }
  func.func @transform_0(%arg0: i32) -> (i32, i32) {
    %c0_i32 = arith.constant 0 : i32
    %c0_i32_0 = arith.constant 0 : i32
    return %arg0, %c0_i32 : i32, i32
  }
  func.func @transform_1(%arg0: i32) -> (i32, i32) {
    %c0_i32 = arith.constant 0 : i32
    %c0_i32_0 = arith.constant 0 : i32
    %c0_i32_1 = arith.constant 0 : i32
    return %c0_i32, %c0_i32_0 : i32, i32
  }
  func.func @transform_2(%arg0: i32) -> (i32, i32) {
    %c0_i32 = arith.constant 0 : i32
    %c0_i32_0 = arith.constant 0 : i32
    %c0_i32_1 = arith.constant 0 : i32
    return %c0_i32, %c0_i32_0 : i32, i32
  }
  func.func @transform_3(%arg0: i32) -> (i32, i32) {
    %c0_i32 = arith.constant 0 : i32
    %c0_i32_0 = arith.constant 0 : i32
    %c0_i32_1 = arith.constant 0 : i32
    return %c0_i32, %c0_i32_0 : i32, i32
  }
  func.func @transform_4(%arg0: i32) -> (i32, i32) {
    %c0_i32 = arith.constant 0 : i32
    %c0_i32_0 = arith.constant 0 : i32
    %c0_i32_1 = arith.constant 0 : i32
    return %c0_i32, %c0_i32_0 : i32, i32
  }
  func.func @transform_5(%arg0: i32) -> (i32, i32) {
    %c0_i32 = arith.constant 0 : i32
    %c0_i32_0 = arith.constant 0 : i32
    %c0_i32_1 = arith.constant 0 : i32
    return %c0_i32, %c0_i32_0 : i32, i32
  }
  func.func @transform_6(%arg0: i32) -> (i32, i32) {
    %c0_i32 = arith.constant 0 : i32
    %c0_i32_0 = arith.constant 0 : i32
    %c0_i32_1 = arith.constant 0 : i32
    return %c0_i32, %c0_i32_0 : i32, i32
  }
  func.func @transform_7(%arg0: i32) -> (i32, i32) {
    %c0_i32 = arith.constant 0 : i32
    %c0_i32_0 = arith.constant 0 : i32
    %c0_i32_1 = arith.constant 0 : i32
    return %c0_i32, %c0_i32_0 : i32, i32
  }
  func.func @transform_8(%arg0: i32) -> (i32, i32) {
    %c0_i32 = arith.constant 0 : i32
    %c0_i32_0 = arith.constant 0 : i32
    %c0_i32_1 = arith.constant 0 : i32
    return %c0_i32, %c0_i32_0 : i32, i32
  }
  func.func @transform_9(%arg0: i32) -> (i32, i32) {
    %c0_i32 = arith.constant 0 : i32
    %c0_i32_0 = arith.constant 0 : i32
    %c0_i32_1 = arith.constant 0 : i32
    return %c0_i32, %c0_i32_0 : i32, i32
  }
  func.func @transform_10(%arg0: i32) -> (i32, i32) {
    %c0_i32 = arith.constant 0 : i32
    %c0_i32_0 = arith.constant 0 : i32
    %c0_i32_1 = arith.constant 0 : i32
    return %c0_i32, %c0_i32_0 : i32, i32
  }
  func.func @transform_11(%arg0: i32) -> (i32, i32) {
    %c0_i32 = arith.constant 0 : i32
    %c0_i32_0 = arith.constant 0 : i32
    %c0_i32_1 = arith.constant 0 : i32
    return %c0_i32, %c0_i32_0 : i32, i32
  }
  func.func @transform_12(%arg0: i32) -> (i32, i32) {
    %c0_i32 = arith.constant 0 : i32
    %c0_i32_0 = arith.constant 0 : i32
    %c0_i32_1 = arith.constant 0 : i32
    return %c0_i32, %c0_i32_0 : i32, i32
  }
  func.func @transform_13(%arg0: i32) -> (i32, i32) {
    %c0_i32 = arith.constant 0 : i32
    %c0_i32_0 = arith.constant 0 : i32
    return %arg0, %c0_i32 : i32, i32
  }
}

module attributes {stable_mosaic.version = 11 : i64} {
  func.func @_highway_chain_kernel(%arg0: i32, %arg1: memref<1x16x32xbf16, #tpu.memory_space<vmem>>, %arg2: memref<10x3x32x64xbf16, #tpu.memory_space<vmem>>, %arg3: memref<10x1x64xf32, #tpu.memory_space<vmem>>, %arg4: memref<10x1x32xf32, #tpu.memory_space<vmem>>, %arg5: memref<10x1x32xf32, #tpu.memory_space<vmem>>, %arg6: memref<10x1x32xf32, #tpu.memory_space<vmem>>, %arg7: memref<10x1x32xf32, #tpu.memory_space<vmem>>, %arg8: memref<1x16x32xf32, #tpu.memory_space<vmem>>, %arg9: memref<70x32xf32, #tpu.memory_space<vmem>>) attributes {dimension_semantics = [#tpu.dimension_semantics<parallel>], iteration_bounds = array<i64: 2>, scalar_prefetch = 0 : i64, scratch_operands = 1 : i64, tpu.core_type = #tpu.core_type<tc>, window_params = [{transform_indices = @transform_0, window_bounds = array<i64: 1, 16, 32>}, {pipeline_mode = #tpu.pipeline_mode<synchronous>, transform_indices = @transform_1, window_bounds = array<i64: 10, 3, 32, 64>}, {pipeline_mode = #tpu.pipeline_mode<synchronous>, transform_indices = @transform_2, window_bounds = array<i64: 10, 1, 64>}, {pipeline_mode = #tpu.pipeline_mode<synchronous>, transform_indices = @transform_3, window_bounds = array<i64: 10, 1, 32>}, {pipeline_mode = #tpu.pipeline_mode<synchronous>, transform_indices = @transform_4, window_bounds = array<i64: 10, 1, 32>}, {pipeline_mode = #tpu.pipeline_mode<synchronous>, transform_indices = @transform_5, window_bounds = array<i64: 10, 1, 32>}, {pipeline_mode = #tpu.pipeline_mode<synchronous>, transform_indices = @transform_6, window_bounds = array<i64: 10, 1, 32>}, {transform_indices = @transform_7, window_bounds = array<i64: 1, 16, 32>}]} {
    %cst = arith.constant 0.000000e+00 : f32
    %0 = vector.broadcast %cst : f32 to vector<54x32xf32>
    %c0 = arith.constant 0 : index
    %c0_0 = arith.constant 0 : index
    %1 = vector.load %arg9[%c0, %c0_0] : memref<70x32xf32, #tpu.memory_space<vmem>>, vector<54x32xf32>
    tpu.vector_store %arg9[%c0, %c0_0], %0 {strides = array<i32>} : memref<70x32xf32, #tpu.memory_space<vmem>>, vector<54x32xf32>,
    %c0_1 = arith.constant 0 : index
    %c0_2 = arith.constant 0 : index
    %c0_3 = arith.constant 0 : index
    %2 = vector.load %arg1[%c0_1, %c0_2, %c0_3] : memref<1x16x32xbf16, #tpu.memory_space<vmem>>, vector<1x16x32xbf16>
    %3 = vector.shape_cast %2 : vector<1x16x32xbf16> to vector<16x32xbf16>
    %4 = arith.extf %3 : vector<16x32xbf16> to vector<16x32xf32>
    %c54 = arith.constant 54 : index
    %c0_4 = arith.constant 0 : index
    %5 = vector.load %arg9[%c54, %c0_4] : memref<70x32xf32, #tpu.memory_space<vmem>>, vector<16x32xf32>
    tpu.vector_store %arg9[%c54, %c0_4], %4 {strides = array<i32>} : memref<70x32xf32, #tpu.memory_space<vmem>>, vector<16x32xf32>,
    %c54_5 = arith.constant 54 : index
    %c0_6 = arith.constant 0 : index
    %6 = vector.load %arg9[%c54_5, %c0_6] : memref<70x32xf32, #tpu.memory_space<vmem>>, vector<16x32xf32>
    %cst_7 = arith.constant 0.000000e+00 : f32
    %7 = vector.broadcast %cst_7 : f32 to vector<16x64xf32>
    %c52 = arith.constant 52 : index
    %c0_8 = arith.constant 0 : index
    %8 = vector.load %arg9[%c52, %c0_8] : memref<70x32xf32, #tpu.memory_space<vmem>>, vector<16x32xf32>
    %9 = arith.truncf %8 : vector<16x32xf32> to vector<16x32xbf16>
    %c0_9 = arith.constant 0 : index
    %c0_10 = arith.constant 0 : index
    %c0_11 = arith.constant 0 : index
    %c0_12 = arith.constant 0 : index
    %10 = vector.load %arg2[%c0_9, %c0_10, %c0_11, %c0_12] : memref<10x3x32x64xbf16, #tpu.memory_space<vmem>>, vector<1x1x32x64xbf16>
    %11 = vector.shape_cast %10 : vector<1x1x32x64xbf16> to vector<32x64xbf16>
    %cst_13 = arith.constant dense<0.000000e+00> : vector<16x64xf32>
    %12 = tpu.matmul %9, %11, %cst_13 {dimension_numbers = #tpu.dot_dimension_numbers<[1], [0], [0], [1], [0, 0, 1, 1], [], []>} : vector<16x32xbf16>, vector<32x64xbf16>, vector<16x64xf32> -> vector<16x64xf32>
    %13 = arith.addf %7, %12 : vector<16x64xf32>
    %c53 = arith.constant 53 : index
    %c0_14 = arith.constant 0 : index
    %14 = vector.load %arg9[%c53, %c0_14] : memref<70x32xf32, #tpu.memory_space<vmem>>, vector<16x32xf32>
    %15 = arith.truncf %14 : vector<16x32xf32> to vector<16x32xbf16>
    %c0_15 = arith.constant 0 : index
    %c1 = arith.constant 1 : index
    %c0_16 = arith.constant 0 : index
    %c0_17 = arith.constant 0 : index
    %16 = vector.load %arg2[%c0_15, %c1, %c0_16, %c0_17] : memref<10x3x32x64xbf16, #tpu.memory_space<vmem>>, vector<1x1x32x64xbf16>
    %17 = vector.shape_cast %16 : vector<1x1x32x64xbf16> to vector<32x64xbf16>
    %cst_18 = arith.constant dense<0.000000e+00> : vector<16x64xf32>
    %18 = tpu.matmul %15, %17, %cst_18 {dimension_numbers = #tpu.dot_dimension_numbers<[1], [0], [0], [1], [0, 0, 1, 1], [], []>} : vector<16x32xbf16>, vector<32x64xbf16>, vector<16x64xf32> -> vector<16x64xf32>
    %19 = arith.addf %13, %18 : vector<16x64xf32>
    %c54_19 = arith.constant 54 : index
    %c0_20 = arith.constant 0 : index
    %20 = vector.load %arg9[%c54_19, %c0_20] : memref<70x32xf32, #tpu.memory_space<vmem>>, vector<16x32xf32>
    %21 = arith.truncf %20 : vector<16x32xf32> to vector<16x32xbf16>
    %c0_21 = arith.constant 0 : index
    %c2 = arith.constant 2 : index
    %c0_22 = arith.constant 0 : index
    %c0_23 = arith.constant 0 : index
    %22 = vector.load %arg2[%c0_21, %c2, %c0_22, %c0_23] : memref<10x3x32x64xbf16, #tpu.memory_space<vmem>>, vector<1x1x32x64xbf16>
    %23 = vector.shape_cast %22 : vector<1x1x32x64xbf16> to vector<32x64xbf16>
    %cst_24 = arith.constant dense<0.000000e+00> : vector<16x64xf32>
    %24 = tpu.matmul %21, %23, %cst_24 {dimension_numbers = #tpu.dot_dimension_numbers<[1], [0], [0], [1], [0, 0, 1, 1], [], []>} : vector<16x32xbf16>, vector<32x64xbf16>, vector<16x64xf32> -> vector<16x64xf32>
    %25 = arith.addf %19, %24 : vector<16x64xf32>
    %c0_25 = arith.constant 0 : index
    %c0_26 = arith.constant 0 : index
    %c0_27 = arith.constant 0 : index
    %26 = vector.load %arg3[%c0_25, %c0_26, %c0_27] : memref<10x1x64xf32, #tpu.memory_space<vmem>>, vector<1x1x64xf32>
    %27 = vector.shape_cast %26 : vector<1x1x64xf32> to vector<1x64xf32>
    %28 = vector.broadcast %27 : vector<1x64xf32> to vector<16x64xf32>
    %29 = arith.addf %25, %28 : vector<16x64xf32>
    %30 = vector.extract_strided_slice %29 {offsets = [0, 0], sizes = [16, 32], strides = [1, 1]} : vector<16x64xf32> to vector<16x32xf32>
    %c0_28 = arith.constant 0 : index
    %c0_29 = arith.constant 0 : index
    %c0_30 = arith.constant 0 : index
    %31 = vector.load %arg4[%c0_28, %c0_29, %c0_30] : memref<10x1x32xf32, #tpu.memory_space<vmem>>, vector<1x1x32xf32>
    %32 = vector.shape_cast %31 : vector<1x1x32xf32> to vector<1x32xf32>
    %c0_31 = arith.constant 0 : index
    %c0_32 = arith.constant 0 : index
    %c0_33 = arith.constant 0 : index
    %33 = vector.load %arg5[%c0_31, %c0_32, %c0_33] : memref<10x1x32xf32, #tpu.memory_space<vmem>>, vector<1x1x32xf32>
    %34 = vector.shape_cast %33 : vector<1x1x32xf32> to vector<1x32xf32>
    %cst_34 = arith.constant dense<0.000000e+00> : vector<16xf32>
    %35 = vector.multi_reduction <add>, %30, %cst_34 [1] : vector<16x32xf32> to vector<16xf32>
    %36 = vector.shape_cast %35 : vector<16xf32> to vector<16x1xf32>
    %cst_35 = arith.constant 3.200000e+01 : f32
    %37 = vector.broadcast %cst_35 : f32 to vector<16x1xf32>
    %38 = arith.divf %36, %37 : vector<16x1xf32>
    %39 = vector.broadcast %38 : vector<16x1xf32> to vector<16x32xf32>
    %40 = arith.subf %30, %39 : vector<16x32xf32>
    %41 = arith.mulf %40, %40 : vector<16x32xf32>
    %cst_36 = arith.constant dense<0.000000e+00> : vector<16xf32>
    %42 = vector.multi_reduction <add>, %41, %cst_36 [1] : vector<16x32xf32> to vector<16xf32>
    %43 = vector.shape_cast %42 : vector<16xf32> to vector<16x1xf32>
    %cst_37 = arith.constant 3.200000e+01 : f32
    %44 = vector.broadcast %cst_37 : f32 to vector<16x1xf32>
    %45 = arith.divf %43, %44 : vector<16x1xf32>
    %46 = vector.broadcast %38 : vector<16x1xf32> to vector<16x32xf32>
    %47 = arith.subf %30, %46 : vector<16x32xf32>
    %cst_38 = arith.constant 9.99999974E-6 : f32
    %48 = vector.broadcast %cst_38 : f32 to vector<16x1xf32>
    %49 = arith.addf %45, %48 : vector<16x1xf32>
    %50 = math.rsqrt %49 : vector<16x1xf32>
    %51 = vector.broadcast %50 : vector<16x1xf32> to vector<16x32xf32>
    %52 = arith.mulf %47, %51 : vector<16x32xf32>
    %53 = vector.broadcast %32 : vector<1x32xf32> to vector<16x32xf32>
    %54 = arith.mulf %52, %53 : vector<16x32xf32>
    %55 = vector.broadcast %34 : vector<1x32xf32> to vector<16x32xf32>
    %56 = arith.addf %54, %55 : vector<16x32xf32>
    %57 = vector.extract_strided_slice %29 {offsets = [0, 32], sizes = [16, 32], strides = [1, 1]} : vector<16x64xf32> to vector<16x32xf32>
    %c0_39 = arith.constant 0 : index
    %c0_40 = arith.constant 0 : index
    %c0_41 = arith.constant 0 : index
    %58 = vector.load %arg6[%c0_39, %c0_40, %c0_41] : memref<10x1x32xf32, #tpu.memory_space<vmem>>, vector<1x1x32xf32>
    %59 = vector.shape_cast %58 : vector<1x1x32xf32> to vector<1x32xf32>
    %c0_42 = arith.constant 0 : index
    %c0_43 = arith.constant 0 : index
    %c0_44 = arith.constant 0 : index
    %60 = vector.load %arg7[%c0_42, %c0_43, %c0_44] : memref<10x1x32xf32, #tpu.memory_space<vmem>>, vector<1x1x32xf32>
    %61 = vector.shape_cast %60 : vector<1x1x32xf32> to vector<1x32xf32>
    %cst_45 = arith.constant dense<0.000000e+00> : vector<16xf32>
    %62 = vector.multi_reduction <add>, %57, %cst_45 [1] : vector<16x32xf32> to vector<16xf32>
    %63 = vector.shape_cast %62 : vector<16xf32> to vector<16x1xf32>
    %cst_46 = arith.constant 3.200000e+01 : f32
    %64 = vector.broadcast %cst_46 : f32 to vector<16x1xf32>
    %65 = arith.divf %63, %64 : vector<16x1xf32>
    %66 = vector.broadcast %65 : vector<16x1xf32> to vector<16x32xf32>
    %67 = arith.subf %57, %66 : vector<16x32xf32>
    %68 = arith.mulf %67, %67 : vector<16x32xf32>
    %cst_47 = arith.constant dense<0.000000e+00> : vector<16xf32>
    %69 = vector.multi_reduction <add>, %68, %cst_47 [1] : vector<16x32xf32> to vector<16xf32>
    %70 = vector.shape_cast %69 : vector<16xf32> to vector<16x1xf32>
    %cst_48 = arith.constant 3.200000e+01 : f32
    %71 = vector.broadcast %cst_48 : f32 to vector<16x1xf32>
    %72 = arith.divf %70, %71 : vector<16x1xf32>
    %73 = vector.broadcast %65 : vector<16x1xf32> to vector<16x32xf32>
    %74 = arith.subf %57, %73 : vector<16x32xf32>
    %cst_49 = arith.constant 9.99999974E-6 : f32
    %75 = vector.broadcast %cst_49 : f32 to vector<16x1xf32>
    %76 = arith.addf %72, %75 : vector<16x1xf32>
    %77 = math.rsqrt %76 : vector<16x1xf32>
    %78 = vector.broadcast %77 : vector<16x1xf32> to vector<16x32xf32>
    %79 = arith.mulf %74, %78 : vector<16x32xf32>
    %80 = vector.broadcast %59 : vector<1x32xf32> to vector<16x32xf32>
    %81 = arith.mulf %79, %80 : vector<16x32xf32>
    %82 = vector.broadcast %61 : vector<1x32xf32> to vector<16x32xf32>
    %83 = arith.addf %81, %82 : vector<16x32xf32>
    %84 = arith.negf %56 : vector<16x32xf32>
    %85 = math.exp %84 : vector<16x32xf32>
    %cst_50 = arith.constant 1.000000e+00 : f32
    %86 = vector.broadcast %cst_50 : f32 to vector<16x32xf32>
    %87 = arith.addf %86, %85 : vector<16x32xf32>
    %88 = arith.divf %86, %87 : vector<16x32xf32>
    %89 = arith.mulf %88, %83 : vector<16x32xf32>
    %cst_51 = arith.constant 1.000000e+00 : f32
    %90 = vector.broadcast %cst_51 : f32 to vector<16x32xf32>
    %91 = arith.subf %90, %88 : vector<16x32xf32>
    %92 = arith.mulf %91, %6 : vector<16x32xf32>
    %93 = arith.addf %89, %92 : vector<16x32xf32>
    %c54_52 = arith.constant 54 : index
    %c0_53 = arith.constant 0 : index
    %94 = vector.load %arg9[%c54_52, %c0_53] : memref<70x32xf32, #tpu.memory_space<vmem>>, vector<16x32xf32>
    tpu.vector_store %arg9[%c54_52, %c0_53], %93 {strides = array<i32>} : memref<70x32xf32, #tpu.memory_space<vmem>>, vector<16x32xf32>,
    %c54_54 = arith.constant 54 : index
    %c0_55 = arith.constant 0 : index
    %95 = vector.load %arg9[%c54_54, %c0_55] : memref<70x32xf32, #tpu.memory_space<vmem>>, vector<16x32xf32>
    %cst_56 = arith.constant 0.000000e+00 : f32
    %96 = vector.broadcast %cst_56 : f32 to vector<16x64xf32>
    %c48 = arith.constant 48 : index
    %c0_57 = arith.constant 0 : index
    %97 = vector.load %arg9[%c48, %c0_57] : memref<70x32xf32, #tpu.memory_space<vmem>>, vector<16x32xf32>
    %98 = arith.truncf %97 : vector<16x32xf32> to vector<16x32xbf16>
    %c1_58 = arith.constant 1 : index
    %c0_59 = arith.constant 0 : index
    %c0_60 = arith.constant 0 : index
    %c0_61 = arith.constant 0 : index
    %99 = vector.load %arg2[%c1_58, %c0_59, %c0_60, %c0_61] : memref<10x3x32x64xbf16, #tpu.memory_space<vmem>>, vector<1x1x32x64xbf16>
    %100 = vector.shape_cast %99 : vector<1x1x32x64xbf16> to vector<32x64xbf16>
    %cst_62 = arith.constant dense<0.000000e+00> : vector<16x64xf32>
    %101 = tpu.matmul %98, %100, %cst_62 {dimension_numbers = #tpu.dot_dimension_numbers<[1], [0], [0], [1], [0, 0, 1, 1], [], []>} : vector<16x32xbf16>, vector<32x64xbf16>, vector<16x64xf32> -> vector<16x64xf32>
    %102 = arith.addf %96, %101 : vector<16x64xf32>
    %c51 = arith.constant 51 : index
    %c0_63 = arith.constant 0 : index
    %103 = vector.load %arg9[%c51, %c0_63] : memref<70x32xf32, #tpu.memory_space<vmem>>, vector<16x32xf32>
    %104 = arith.truncf %103 : vector<16x32xf32> to vector<16x32xbf16>
    %c1_64 = arith.constant 1 : index
    %c1_65 = arith.constant 1 : index
    %c0_66 = arith.constant 0 : index
    %c0_67 = arith.constant 0 : index
    %105 = vector.load %arg2[%c1_64, %c1_65, %c0_66, %c0_67] : memref<10x3x32x64xbf16, #tpu.memory_space<vmem>>, vector<1x1x32x64xbf16>
    %106 = vector.shape_cast %105 : vector<1x1x32x64xbf16> to vector<32x64xbf16>
    %cst_68 = arith.constant dense<0.000000e+00> : vector<16x64xf32>
    %107 = tpu.matmul %104, %106, %cst_68 {dimension_numbers = #tpu.dot_dimension_numbers<[1], [0], [0], [1], [0, 0, 1, 1], [], []>} : vector<16x32xbf16>, vector<32x64xbf16>, vector<16x64xf32> -> vector<16x64xf32>
    %108 = arith.addf %102, %107 : vector<16x64xf32>
    %c54_69 = arith.constant 54 : index
    %c0_70 = arith.constant 0 : index
    %109 = vector.load %arg9[%c54_69, %c0_70] : memref<70x32xf32, #tpu.memory_space<vmem>>, vector<16x32xf32>
    %110 = arith.truncf %109 : vector<16x32xf32> to vector<16x32xbf16>
    %c1_71 = arith.constant 1 : index
    %c2_72 = arith.constant 2 : index
    %c0_73 = arith.constant 0 : index
    %c0_74 = arith.constant 0 : index
    %111 = vector.load %arg2[%c1_71, %c2_72, %c0_73, %c0_74] : memref<10x3x32x64xbf16, #tpu.memory_space<vmem>>, vector<1x1x32x64xbf16>
    %112 = vector.shape_cast %111 : vector<1x1x32x64xbf16> to vector<32x64xbf16>
    %cst_75 = arith.constant dense<0.000000e+00> : vector<16x64xf32>
    %113 = tpu.matmul %110, %112, %cst_75 {dimension_numbers = #tpu.dot_dimension_numbers<[1], [0], [0], [1], [0, 0, 1, 1], [], []>} : vector<16x32xbf16>, vector<32x64xbf16>, vector<16x64xf32> -> vector<16x64xf32>
    %114 = arith.addf %108, %113 : vector<16x64xf32>
    %c1_76 = arith.constant 1 : index
    %c0_77 = arith.constant 0 : index
    %c0_78 = arith.constant 0 : index
    %115 = vector.load %arg3[%c1_76, %c0_77, %c0_78] : memref<10x1x64xf32, #tpu.memory_space<vmem>>, vector<1x1x64xf32>
    %116 = vector.shape_cast %115 : vector<1x1x64xf32> to vector<1x64xf32>
    %117 = vector.broadcast %116 : vector<1x64xf32> to vector<16x64xf32>
    %118 = arith.addf %114, %117 : vector<16x64xf32>
    %119 = vector.extract_strided_slice %118 {offsets = [0, 0], sizes = [16, 32], strides = [1, 1]} : vector<16x64xf32> to vector<16x32xf32>
    %c1_79 = arith.constant 1 : index
    %c0_80 = arith.constant 0 : index
    %c0_81 = arith.constant 0 : index
    %120 = vector.load %arg4[%c1_79, %c0_80, %c0_81] : memref<10x1x32xf32, #tpu.memory_space<vmem>>, vector<1x1x32xf32>
    %121 = vector.shape_cast %120 : vector<1x1x32xf32> to vector<1x32xf32>
    %c1_82 = arith.constant 1 : index
    %c0_83 = arith.constant 0 : index
    %c0_84 = arith.constant 0 : index
    %122 = vector.load %arg5[%c1_82, %c0_83, %c0_84] : memref<10x1x32xf32, #tpu.memory_space<vmem>>, vector<1x1x32xf32>
    %123 = vector.shape_cast %122 : vector<1x1x32xf32> to vector<1x32xf32>
    %cst_85 = arith.constant dense<0.000000e+00> : vector<16xf32>
    %124 = vector.multi_reduction <add>, %119, %cst_85 [1] : vector<16x32xf32> to vector<16xf32>
    %125 = vector.shape_cast %124 : vector<16xf32> to vector<16x1xf32>
    %cst_86 = arith.constant 3.200000e+01 : f32
    %126 = vector.broadcast %cst_86 : f32 to vector<16x1xf32>
    %127 = arith.divf %125, %126 : vector<16x1xf32>
    %128 = vector.broadcast %127 : vector<16x1xf32> to vector<16x32xf32>
    %129 = arith.subf %119, %128 : vector<16x32xf32>
    %130 = arith.mulf %129, %129 : vector<16x32xf32>
    %cst_87 = arith.constant dense<0.000000e+00> : vector<16xf32>
    %131 = vector.multi_reduction <add>, %130, %cst_87 [1] : vector<16x32xf32> to vector<16xf32>
    %132 = vector.shape_cast %131 : vector<16xf32> to vector<16x1xf32>
    %cst_88 = arith.constant 3.200000e+01 : f32
    %133 = vector.broadcast %cst_88 : f32 to vector<16x1xf32>
    %134 = arith.divf %132, %133 : vector<16x1xf32>
    %135 = vector.broadcast %127 : vector<16x1xf32> to vector<16x32xf32>
    %136 = arith.subf %119, %135 : vector<16x32xf32>
    %cst_89 = arith.constant 9.99999974E-6 : f32
    %137 = vector.broadcast %cst_89 : f32 to vector<16x1xf32>
    %138 = arith.addf %134, %137 : vector<16x1xf32>
    %139 = math.rsqrt %138 : vector<16x1xf32>
    %140 = vector.broadcast %139 : vector<16x1xf32> to vector<16x32xf32>
    %141 = arith.mulf %136, %140 : vector<16x32xf32>
    %142 = vector.broadcast %121 : vector<1x32xf32> to vector<16x32xf32>
    %143 = arith.mulf %141, %142 : vector<16x32xf32>
    %144 = vector.broadcast %123 : vector<1x32xf32> to vector<16x32xf32>
    %145 = arith.addf %143, %144 : vector<16x32xf32>
    %146 = vector.extract_strided_slice %118 {offsets = [0, 32], sizes = [16, 32], strides = [1, 1]} : vector<16x64xf32> to vector<16x32xf32>
    %c1_90 = arith.constant 1 : index
    %c0_91 = arith.constant 0 : index
    %c0_92 = arith.constant 0 : index
    %147 = vector.load %arg6[%c1_90, %c0_91, %c0_92] : memref<10x1x32xf32, #tpu.memory_space<vmem>>, vector<1x1x32xf32>
    %148 = vector.shape_cast %147 : vector<1x1x32xf32> to vector<1x32xf32>
    %c1_93 = arith.constant 1 : index
    %c0_94 = arith.constant 0 : index
    %c0_95 = arith.constant 0 : index
    %149 = vector.load %arg7[%c1_93, %c0_94, %c0_95] : memref<10x1x32xf32, #tpu.memory_space<vmem>>, vector<1x1x32xf32>
    %150 = vector.shape_cast %149 : vector<1x1x32xf32> to vector<1x32xf32>
    %cst_96 = arith.constant dense<0.000000e+00> : vector<16xf32>
    %151 = vector.multi_reduction <add>, %146, %cst_96 [1] : vector<16x32xf32> to vector<16xf32>
    %152 = vector.shape_cast %151 : vector<16xf32> to vector<16x1xf32>
    %cst_97 = arith.constant 3.200000e+01 : f32
    %153 = vector.broadcast %cst_97 : f32 to vector<16x1xf32>
    %154 = arith.divf %152, %153 : vector<16x1xf32>
    %155 = vector.broadcast %154 : vector<16x1xf32> to vector<16x32xf32>
    %156 = arith.subf %146, %155 : vector<16x32xf32>
    %157 = arith.mulf %156, %156 : vector<16x32xf32>
    %cst_98 = arith.constant dense<0.000000e+00> : vector<16xf32>
    %158 = vector.multi_reduction <add>, %157, %cst_98 [1] : vector<16x32xf32> to vector<16xf32>
    %159 = vector.shape_cast %158 : vector<16xf32> to vector<16x1xf32>
    %cst_99 = arith.constant 3.200000e+01 : f32
    %160 = vector.broadcast %cst_99 : f32 to vector<16x1xf32>
    %161 = arith.divf %159, %160 : vector<16x1xf32>
    %162 = vector.broadcast %154 : vector<16x1xf32> to vector<16x32xf32>
    %163 = arith.subf %146, %162 : vector<16x32xf32>
    %cst_100 = arith.constant 9.99999974E-6 : f32
    %164 = vector.broadcast %cst_100 : f32 to vector<16x1xf32>
    %165 = arith.addf %161, %164 : vector<16x1xf32>
    %166 = math.rsqrt %165 : vector<16x1xf32>
    %167 = vector.broadcast %166 : vector<16x1xf32> to vector<16x32xf32>
    %168 = arith.mulf %163, %167 : vector<16x32xf32>
    %169 = vector.broadcast %148 : vector<1x32xf32> to vector<16x32xf32>
    %170 = arith.mulf %168, %169 : vector<16x32xf32>
    %171 = vector.broadcast %150 : vector<1x32xf32> to vector<16x32xf32>
    %172 = arith.addf %170, %171 : vector<16x32xf32>
    %173 = arith.negf %145 : vector<16x32xf32>
    %174 = math.exp %173 : vector<16x32xf32>
    %cst_101 = arith.constant 1.000000e+00 : f32
    %175 = vector.broadcast %cst_101 : f32 to vector<16x32xf32>
    %176 = arith.addf %175, %174 : vector<16x32xf32>
    %177 = arith.divf %175, %176 : vector<16x32xf32>
    %178 = arith.mulf %177, %172 : vector<16x32xf32>
    %cst_102 = arith.constant 1.000000e+00 : f32
    %179 = vector.broadcast %cst_102 : f32 to vector<16x32xf32>
    %180 = arith.subf %179, %177 : vector<16x32xf32>
    %181 = arith.mulf %180, %95 : vector<16x32xf32>
    %182 = arith.addf %178, %181 : vector<16x32xf32>
    %c54_103 = arith.constant 54 : index
    %c0_104 = arith.constant 0 : index
    %183 = vector.load %arg9[%c54_103, %c0_104] : memref<70x32xf32, #tpu.memory_space<vmem>>, vector<16x32xf32>
    tpu.vector_store %arg9[%c54_103, %c0_104], %182 {strides = array<i32>} : memref<70x32xf32, #tpu.memory_space<vmem>>, vector<16x32xf32>,
    %c54_105 = arith.constant 54 : index
    %c0_106 = arith.constant 0 : index
    %184 = vector.load %arg9[%c54_105, %c0_106] : memref<70x32xf32, #tpu.memory_space<vmem>>, vector<16x32xf32>
    %cst_107 = arith.constant 0.000000e+00 : f32
    %185 = vector.broadcast %cst_107 : f32 to vector<16x64xf32>
    %c36 = arith.constant 36 : index
    %c0_108 = arith.constant 0 : index
    %186 = vector.load %arg9[%c36, %c0_108] : memref<70x32xf32, #tpu.memory_space<vmem>>, vector<16x32xf32>
    %187 = arith.truncf %186 : vector<16x32xf32> to vector<16x32xbf16>
    %c2_109 = arith.constant 2 : index
    %c0_110 = arith.constant 0 : index
    %c0_111 = arith.constant 0 : index
    %c0_112 = arith.constant 0 : index
    %188 = vector.load %arg2[%c2_109, %c0_110, %c0_111, %c0_112] : memref<10x3x32x64xbf16, #tpu.memory_space<vmem>>, vector<1x1x32x64xbf16>
    %189 = vector.shape_cast %188 : vector<1x1x32x64xbf16> to vector<32x64xbf16>
    %cst_113 = arith.constant dense<0.000000e+00> : vector<16x64xf32>
    %190 = tpu.matmul %187, %189, %cst_113 {dimension_numbers = #tpu.dot_dimension_numbers<[1], [0], [0], [1], [0, 0, 1, 1], [], []>} : vector<16x32xbf16>, vector<32x64xbf16>, vector<16x64xf32> -> vector<16x64xf32>
    %191 = arith.addf %185, %190 : vector<16x64xf32>
    %c45 = arith.constant 45 : index
    %c0_114 = arith.constant 0 : index
    %192 = vector.load %arg9[%c45, %c0_114] : memref<70x32xf32, #tpu.memory_space<vmem>>, vector<16x32xf32>
    %193 = arith.truncf %192 : vector<16x32xf32> to vector<16x32xbf16>
    %c2_115 = arith.constant 2 : index
    %c1_116 = arith.constant 1 : index
    %c0_117 = arith.constant 0 : index
    %c0_118 = arith.constant 0 : index
    %194 = vector.load %arg2[%c2_115, %c1_116, %c0_117, %c0_118] : memref<10x3x32x64xbf16, #tpu.memory_space<vmem>>, vector<1x1x32x64xbf16>
    %195 = vector.shape_cast %194 : vector<1x1x32x64xbf16> to vector<32x64xbf16>
    %cst_119 = arith.constant dense<0.000000e+00> : vector<16x64xf32>
    %196 = tpu.matmul %193, %195, %cst_119 {dimension_numbers = #tpu.dot_dimension_numbers<[1], [0], [0], [1], [0, 0, 1, 1], [], []>} : vector<16x32xbf16>, vector<32x64xbf16>, vector<16x64xf32> -> vector<16x64xf32>
    %197 = arith.addf %191, %196 : vector<16x64xf32>
    %c54_120 = arith.constant 54 : index
    %c0_121 = arith.constant 0 : index
    %198 = vector.load %arg9[%c54_120, %c0_121] : memref<70x32xf32, #tpu.memory_space<vmem>>, vector<16x32xf32>
    %199 = arith.truncf %198 : vector<16x32xf32> to vector<16x32xbf16>
    %c2_122 = arith.constant 2 : index
    %c2_123 = arith.constant 2 : index
    %c0_124 = arith.constant 0 : index
    %c0_125 = arith.constant 0 : index
    %200 = vector.load %arg2[%c2_122, %c2_123, %c0_124, %c0_125] : memref<10x3x32x64xbf16, #tpu.memory_space<vmem>>, vector<1x1x32x64xbf16>
    %201 = vector.shape_cast %200 : vector<1x1x32x64xbf16> to vector<32x64xbf16>
    %cst_126 = arith.constant dense<0.000000e+00> : vector<16x64xf32>
    %202 = tpu.matmul %199, %201, %cst_126 {dimension_numbers = #tpu.dot_dimension_numbers<[1], [0], [0], [1], [0, 0, 1, 1], [], []>} : vector<16x32xbf16>, vector<32x64xbf16>, vector<16x64xf32> -> vector<16x64xf32>
    %203 = arith.addf %197, %202 : vector<16x64xf32>
    %c2_127 = arith.constant 2 : index
    %c0_128 = arith.constant 0 : index
    %c0_129 = arith.constant 0 : index
    %204 = vector.load %arg3[%c2_127, %c0_128, %c0_129] : memref<10x1x64xf32, #tpu.memory_space<vmem>>, vector<1x1x64xf32>
    %205 = vector.shape_cast %204 : vector<1x1x64xf32> to vector<1x64xf32>
    %206 = vector.broadcast %205 : vector<1x64xf32> to vector<16x64xf32>
    %207 = arith.addf %203, %206 : vector<16x64xf32>
    %208 = vector.extract_strided_slice %207 {offsets = [0, 0], sizes = [16, 32], strides = [1, 1]} : vector<16x64xf32> to vector<16x32xf32>
    %c2_130 = arith.constant 2 : index
    %c0_131 = arith.constant 0 : index
    %c0_132 = arith.constant 0 : index
    %209 = vector.load %arg4[%c2_130, %c0_131, %c0_132] : memref<10x1x32xf32, #tpu.memory_space<vmem>>, vector<1x1x32xf32>
    %210 = vector.shape_cast %209 : vector<1x1x32xf32> to vector<1x32xf32>
    %c2_133 = arith.constant 2 : index
    %c0_134 = arith.constant 0 : index
    %c0_135 = arith.constant 0 : index
    %211 = vector.load %arg5[%c2_133, %c0_134, %c0_135] : memref<10x1x32xf32, #tpu.memory_space<vmem>>, vector<1x1x32xf32>
    %212 = vector.shape_cast %211 : vector<1x1x32xf32> to vector<1x32xf32>
    %cst_136 = arith.constant dense<0.000000e+00> : vector<16xf32>
    %213 = vector.multi_reduction <add>, %208, %cst_136 [1] : vector<16x32xf32> to vector<16xf32>
    %214 = vector.shape_cast %213 : vector<16xf32> to vector<16x1xf32>
    %cst_137 = arith.constant 3.200000e+01 : f32
    %215 = vector.broadcast %cst_137 : f32 to vector<16x1xf32>
    %216 = arith.divf %214, %215 : vector<16x1xf32>
    %217 = vector.broadcast %216 : vector<16x1xf32> to vector<16x32xf32>
    %218 = arith.subf %208, %217 : vector<16x32xf32>
    %219 = arith.mulf %218, %218 : vector<16x32xf32>
    %cst_138 = arith.constant dense<0.000000e+00> : vector<16xf32>
    %220 = vector.multi_reduction <add>, %219, %cst_138 [1] : vector<16x32xf32> to vector<16xf32>
    %221 = vector.shape_cast %220 : vector<16xf32> to vector<16x1xf32>
    %cst_139 = arith.constant 3.200000e+01 : f32
    %222 = vector.broadcast %cst_139 : f32 to vector<16x1xf32>
    %223 = arith.divf %221, %222 : vector<16x1xf32>
    %224 = vector.broadcast %216 : vector<16x1xf32> to vector<16x32xf32>
    %225 = arith.subf %208, %224 : vector<16x32xf32>
    %cst_140 = arith.constant 9.99999974E-6 : f32
    %226 = vector.broadcast %cst_140 : f32 to vector<16x1xf32>
    %227 = arith.addf %223, %226 : vector<16x1xf32>
    %228 = math.rsqrt %227 : vector<16x1xf32>
    %229 = vector.broadcast %228 : vector<16x1xf32> to vector<16x32xf32>
    %230 = arith.mulf %225, %229 : vector<16x32xf32>
    %231 = vector.broadcast %210 : vector<1x32xf32> to vector<16x32xf32>
    %232 = arith.mulf %230, %231 : vector<16x32xf32>
    %233 = vector.broadcast %212 : vector<1x32xf32> to vector<16x32xf32>
    %234 = arith.addf %232, %233 : vector<16x32xf32>
    %235 = vector.extract_strided_slice %207 {offsets = [0, 32], sizes = [16, 32], strides = [1, 1]} : vector<16x64xf32> to vector<16x32xf32>
    %c2_141 = arith.constant 2 : index
    %c0_142 = arith.constant 0 : index
    %c0_143 = arith.constant 0 : index
    %236 = vector.load %arg6[%c2_141, %c0_142, %c0_143] : memref<10x1x32xf32, #tpu.memory_space<vmem>>, vector<1x1x32xf32>
    %237 = vector.shape_cast %236 : vector<1x1x32xf32> to vector<1x32xf32>
    %c2_144 = arith.constant 2 : index
    %c0_145 = arith.constant 0 : index
    %c0_146 = arith.constant 0 : index
    %238 = vector.load %arg7[%c2_144, %c0_145, %c0_146] : memref<10x1x32xf32, #tpu.memory_space<vmem>>, vector<1x1x32xf32>
    %239 = vector.shape_cast %238 : vector<1x1x32xf32> to vector<1x32xf32>
    %cst_147 = arith.constant dense<0.000000e+00> : vector<16xf32>
    %240 = vector.multi_reduction <add>, %235, %cst_147 [1] : vector<16x32xf32> to vector<16xf32>
    %241 = vector.shape_cast %240 : vector<16xf32> to vector<16x1xf32>
    %cst_148 = arith.constant 3.200000e+01 : f32
    %242 = vector.broadcast %cst_148 : f32 to vector<16x1xf32>
    %243 = arith.divf %241, %242 : vector<16x1xf32>
    %244 = vector.broadcast %243 : vector<16x1xf32> to vector<16x32xf32>
    %245 = arith.subf %235, %244 : vector<16x32xf32>
    %246 = arith.mulf %245, %245 : vector<16x32xf32>
    %cst_149 = arith.constant dense<0.000000e+00> : vector<16xf32>
    %247 = vector.multi_reduction <add>, %246, %cst_149 [1] : vector<16x32xf32> to vector<16xf32>
    %248 = vector.shape_cast %247 : vector<16xf32> to vector<16x1xf32>
    %cst_150 = arith.constant 3.200000e+01 : f32
    %249 = vector.broadcast %cst_150 : f32 to vector<16x1xf32>
    %250 = arith.divf %248, %249 : vector<16x1xf32>
    %251 = vector.broadcast %243 : vector<16x1xf32> to vector<16x32xf32>
    %252 = arith.subf %235, %251 : vector<16x32xf32>
    %cst_151 = arith.constant 9.99999974E-6 : f32
    %253 = vector.broadcast %cst_151 : f32 to vector<16x1xf32>
    %254 = arith.addf %250, %253 : vector<16x1xf32>
    %255 = math.rsqrt %254 : vector<16x1xf32>
    %256 = vector.broadcast %255 : vector<16x1xf32> to vector<16x32xf32>
    %257 = arith.mulf %252, %256 : vector<16x32xf32>
    %258 = vector.broadcast %237 : vector<1x32xf32> to vector<16x32xf32>
    %259 = arith.mulf %257, %258 : vector<16x32xf32>
    %260 = vector.broadcast %239 : vector<1x32xf32> to vector<16x32xf32>
    %261 = arith.addf %259, %260 : vector<16x32xf32>
    %262 = arith.negf %234 : vector<16x32xf32>
    %263 = math.exp %262 : vector<16x32xf32>
    %cst_152 = arith.constant 1.000000e+00 : f32
    %264 = vector.broadcast %cst_152 : f32 to vector<16x32xf32>
    %265 = arith.addf %264, %263 : vector<16x32xf32>
    %266 = arith.divf %264, %265 : vector<16x32xf32>
    %267 = arith.mulf %266, %261 : vector<16x32xf32>
    %cst_153 = arith.constant 1.000000e+00 : f32
    %268 = vector.broadcast %cst_153 : f32 to vector<16x32xf32>
    %269 = arith.subf %268, %266 : vector<16x32xf32>
    %270 = arith.mulf %269, %184 : vector<16x32xf32>
    %271 = arith.addf %267, %270 : vector<16x32xf32>
    %c54_154 = arith.constant 54 : index
    %c0_155 = arith.constant 0 : index
    %272 = vector.load %arg9[%c54_154, %c0_155] : memref<70x32xf32, #tpu.memory_space<vmem>>, vector<16x32xf32>
    tpu.vector_store %arg9[%c54_154, %c0_155], %271 {strides = array<i32>} : memref<70x32xf32, #tpu.memory_space<vmem>>, vector<16x32xf32>,
    %c54_156 = arith.constant 54 : index
    %c0_157 = arith.constant 0 : index
    %273 = vector.load %arg9[%c54_156, %c0_157] : memref<70x32xf32, #tpu.memory_space<vmem>>, vector<16x32xf32>
    %cst_158 = arith.constant 0.000000e+00 : f32
    %274 = vector.broadcast %cst_158 : f32 to vector<16x64xf32>
    %c0_159 = arith.constant 0 : index
    %c0_160 = arith.constant 0 : index
    %275 = vector.load %arg9[%c0_159, %c0_160] : memref<70x32xf32, #tpu.memory_space<vmem>>, vector<16x32xf32>
    %276 = arith.truncf %275 : vector<16x32xf32> to vector<16x32xbf16>
    %c3 = arith.constant 3 : index
    %c0_161 = arith.constant 0 : index
    %c0_162 = arith.constant 0 : index
    %c0_163 = arith.constant 0 : index
    %277 = vector.load %arg2[%c3, %c0_161, %c0_162, %c0_163] : memref<10x3x32x64xbf16, #tpu.memory_space<vmem>>, vector<1x1x32x64xbf16>
    %278 = vector.shape_cast %277 : vector<1x1x32x64xbf16> to vector<32x64xbf16>
    %cst_164 = arith.constant dense<0.000000e+00> : vector<16x64xf32>
    %279 = tpu.matmul %276, %278, %cst_164 {dimension_numbers = #tpu.dot_dimension_numbers<[1], [0], [0], [1], [0, 0, 1, 1], [], []>} : vector<16x32xbf16>, vector<32x64xbf16>, vector<16x64xf32> -> vector<16x64xf32>
    %280 = arith.addf %274, %279 : vector<16x64xf32>
    %c27 = arith.constant 27 : index
    %c0_165 = arith.constant 0 : index
    %281 = vector.load %arg9[%c27, %c0_165] : memref<70x32xf32, #tpu.memory_space<vmem>>, vector<16x32xf32>
    %282 = arith.truncf %281 : vector<16x32xf32> to vector<16x32xbf16>
    %c3_166 = arith.constant 3 : index
    %c1_167 = arith.constant 1 : index
    %c0_168 = arith.constant 0 : index
    %c0_169 = arith.constant 0 : index
    %283 = vector.load %arg2[%c3_166, %c1_167, %c0_168, %c0_169] : memref<10x3x32x64xbf16, #tpu.memory_space<vmem>>, vector<1x1x32x64xbf16>
    %284 = vector.shape_cast %283 : vector<1x1x32x64xbf16> to vector<32x64xbf16>
    %cst_170 = arith.constant dense<0.000000e+00> : vector<16x64xf32>
    %285 = tpu.matmul %282, %284, %cst_170 {dimension_numbers = #tpu.dot_dimension_numbers<[1], [0], [0], [1], [0, 0, 1, 1], [], []>} : vector<16x32xbf16>, vector<32x64xbf16>, vector<16x64xf32> -> vector<16x64xf32>
    %286 = arith.addf %280, %285 : vector<16x64xf32>
    %c54_171 = arith.constant 54 : index
    %c0_172 = arith.constant 0 : index
    %287 = vector.load %arg9[%c54_171, %c0_172] : memref<70x32xf32, #tpu.memory_space<vmem>>, vector<16x32xf32>
    %288 = arith.truncf %287 : vector<16x32xf32> to vector<16x32xbf16>
    %c3_173 = arith.constant 3 : index
    %c2_174 = arith.constant 2 : index
    %c0_175 = arith.constant 0 : index
    %c0_176 = arith.constant 0 : index
    %289 = vector.load %arg2[%c3_173, %c2_174, %c0_175, %c0_176] : memref<10x3x32x64xbf16, #tpu.memory_space<vmem>>, vector<1x1x32x64xbf16>
    %290 = vector.shape_cast %289 : vector<1x1x32x64xbf16> to vector<32x64xbf16>
    %cst_177 = arith.constant dense<0.000000e+00> : vector<16x64xf32>
    %291 = tpu.matmul %288, %290, %cst_177 {dimension_numbers = #tpu.dot_dimension_numbers<[1], [0], [0], [1], [0, 0, 1, 1], [], []>} : vector<16x32xbf16>, vector<32x64xbf16>, vector<16x64xf32> -> vector<16x64xf32>
    %292 = arith.addf %286, %291 : vector<16x64xf32>
    %c3_178 = arith.constant 3 : index
    %c0_179 = arith.constant 0 : index
    %c0_180 = arith.constant 0 : index
    %293 = vector.load %arg3[%c3_178, %c0_179, %c0_180] : memref<10x1x64xf32, #tpu.memory_space<vmem>>, vector<1x1x64xf32>
    %294 = vector.shape_cast %293 : vector<1x1x64xf32> to vector<1x64xf32>
    %295 = vector.broadcast %294 : vector<1x64xf32> to vector<16x64xf32>
    %296 = arith.addf %292, %295 : vector<16x64xf32>
    %297 = vector.extract_strided_slice %296 {offsets = [0, 0], sizes = [16, 32], strides = [1, 1]} : vector<16x64xf32> to vector<16x32xf32>
    %c3_181 = arith.constant 3 : index
    %c0_182 = arith.constant 0 : index
    %c0_183 = arith.constant 0 : index
    %298 = vector.load %arg4[%c3_181, %c0_182, %c0_183] : memref<10x1x32xf32, #tpu.memory_space<vmem>>, vector<1x1x32xf32>
    %299 = vector.shape_cast %298 : vector<1x1x32xf32> to vector<1x32xf32>
    %c3_184 = arith.constant 3 : index
    %c0_185 = arith.constant 0 : index
    %c0_186 = arith.constant 0 : index
    %300 = vector.load %arg5[%c3_184, %c0_185, %c0_186] : memref<10x1x32xf32, #tpu.memory_space<vmem>>, vector<1x1x32xf32>
    %301 = vector.shape_cast %300 : vector<1x1x32xf32> to vector<1x32xf32>
    %cst_187 = arith.constant dense<0.000000e+00> : vector<16xf32>
    %302 = vector.multi_reduction <add>, %297, %cst_187 [1] : vector<16x32xf32> to vector<16xf32>
    %303 = vector.shape_cast %302 : vector<16xf32> to vector<16x1xf32>
    %cst_188 = arith.constant 3.200000e+01 : f32
    %304 = vector.broadcast %cst_188 : f32 to vector<16x1xf32>
    %305 = arith.divf %303, %304 : vector<16x1xf32>
    %306 = vector.broadcast %305 : vector<16x1xf32> to vector<16x32xf32>
    %307 = arith.subf %297, %306 : vector<16x32xf32>
    %308 = arith.mulf %307, %307 : vector<16x32xf32>
    %cst_189 = arith.constant dense<0.000000e+00> : vector<16xf32>
    %309 = vector.multi_reduction <add>, %308, %cst_189 [1] : vector<16x32xf32> to vector<16xf32>
    %310 = vector.shape_cast %309 : vector<16xf32> to vector<16x1xf32>
    %cst_190 = arith.constant 3.200000e+01 : f32
    %311 = vector.broadcast %cst_190 : f32 to vector<16x1xf32>
    %312 = arith.divf %310, %311 : vector<16x1xf32>
    %313 = vector.broadcast %305 : vector<16x1xf32> to vector<16x32xf32>
    %314 = arith.subf %297, %313 : vector<16x32xf32>
    %cst_191 = arith.constant 9.99999974E-6 : f32
    %315 = vector.broadcast %cst_191 : f32 to vector<16x1xf32>
    %316 = arith.addf %312, %315 : vector<16x1xf32>
    %317 = math.rsqrt %316 : vector<16x1xf32>
    %318 = vector.broadcast %317 : vector<16x1xf32> to vector<16x32xf32>
    %319 = arith.mulf %314, %318 : vector<16x32xf32>
    %320 = vector.broadcast %299 : vector<1x32xf32> to vector<16x32xf32>
    %321 = arith.mulf %319, %320 : vector<16x32xf32>
    %322 = vector.broadcast %301 : vector<1x32xf32> to vector<16x32xf32>
    %323 = arith.addf %321, %322 : vector<16x32xf32>
    %324 = vector.extract_strided_slice %296 {offsets = [0, 32], sizes = [16, 32], strides = [1, 1]} : vector<16x64xf32> to vector<16x32xf32>
    %c3_192 = arith.constant 3 : index
    %c0_193 = arith.constant 0 : index
    %c0_194 = arith.constant 0 : index
    %325 = vector.load %arg6[%c3_192, %c0_193, %c0_194] : memref<10x1x32xf32, #tpu.memory_space<vmem>>, vector<1x1x32xf32>
    %326 = vector.shape_cast %325 : vector<1x1x32xf32> to vector<1x32xf32>
    %c3_195 = arith.constant 3 : index
    %c0_196 = arith.constant 0 : index
    %c0_197 = arith.constant 0 : index
    %327 = vector.load %arg7[%c3_195, %c0_196, %c0_197] : memref<10x1x32xf32, #tpu.memory_space<vmem>>, vector<1x1x32xf32>
    %328 = vector.shape_cast %327 : vector<1x1x32xf32> to vector<1x32xf32>
    %cst_198 = arith.constant dense<0.000000e+00> : vector<16xf32>
    %329 = vector.multi_reduction <add>, %324, %cst_198 [1] : vector<16x32xf32> to vector<16xf32>
    %330 = vector.shape_cast %329 : vector<16xf32> to vector<16x1xf32>
    %cst_199 = arith.constant 3.200000e+01 : f32
    %331 = vector.broadcast %cst_199 : f32 to vector<16x1xf32>
    %332 = arith.divf %330, %331 : vector<16x1xf32>
    %333 = vector.broadcast %332 : vector<16x1xf32> to vector<16x32xf32>
    %334 = arith.subf %324, %333 : vector<16x32xf32>
    %335 = arith.mulf %334, %334 : vector<16x32xf32>
    %cst_200 = arith.constant dense<0.000000e+00> : vector<16xf32>
    %336 = vector.multi_reduction <add>, %335, %cst_200 [1] : vector<16x32xf32> to vector<16xf32>
    %337 = vector.shape_cast %336 : vector<16xf32> to vector<16x1xf32>
    %cst_201 = arith.constant 3.200000e+01 : f32
    %338 = vector.broadcast %cst_201 : f32 to vector<16x1xf32>
    %339 = arith.divf %337, %338 : vector<16x1xf32>
    %340 = vector.broadcast %332 : vector<16x1xf32> to vector<16x32xf32>
    %341 = arith.subf %324, %340 : vector<16x32xf32>
    %cst_202 = arith.constant 9.99999974E-6 : f32
    %342 = vector.broadcast %cst_202 : f32 to vector<16x1xf32>
    %343 = arith.addf %339, %342 : vector<16x1xf32>
    %344 = math.rsqrt %343 : vector<16x1xf32>
    %345 = vector.broadcast %344 : vector<16x1xf32> to vector<16x32xf32>
    %346 = arith.mulf %341, %345 : vector<16x32xf32>
    %347 = vector.broadcast %326 : vector<1x32xf32> to vector<16x32xf32>
    %348 = arith.mulf %346, %347 : vector<16x32xf32>
    %349 = vector.broadcast %328 : vector<1x32xf32> to vector<16x32xf32>
    %350 = arith.addf %348, %349 : vector<16x32xf32>
    %351 = arith.negf %323 : vector<16x32xf32>
    %352 = math.exp %351 : vector<16x32xf32>
    %cst_203 = arith.constant 1.000000e+00 : f32
    %353 = vector.broadcast %cst_203 : f32 to vector<16x32xf32>
    %354 = arith.addf %353, %352 : vector<16x32xf32>
    %355 = arith.divf %353, %354 : vector<16x32xf32>
    %356 = arith.mulf %355, %350 : vector<16x32xf32>
    %cst_204 = arith.constant 1.000000e+00 : f32
    %357 = vector.broadcast %cst_204 : f32 to vector<16x32xf32>
    %358 = arith.subf %357, %355 : vector<16x32xf32>
    %359 = arith.mulf %358, %273 : vector<16x32xf32>
    %360 = arith.addf %356, %359 : vector<16x32xf32>
    %c54_205 = arith.constant 54 : index
    %c0_206 = arith.constant 0 : index
    %361 = vector.load %arg9[%c54_205, %c0_206] : memref<70x32xf32, #tpu.memory_space<vmem>>, vector<16x32xf32>
    tpu.vector_store %arg9[%c54_205, %c0_206], %360 {strides = array<i32>} : memref<70x32xf32, #tpu.memory_space<vmem>>, vector<16x32xf32>,
    %c54_207 = arith.constant 54 : index
    %c0_208 = arith.constant 0 : index
    %362 = vector.load %arg9[%c54_207, %c0_208] : memref<70x32xf32, #tpu.memory_space<vmem>>, vector<16x32xf32>
    %cst_209 = arith.constant 0.000000e+00 : f32
    %363 = vector.broadcast %cst_209 : f32 to vector<16x64xf32>
    %c52_210 = arith.constant 52 : index
    %c0_211 = arith.constant 0 : index
    %364 = vector.load %arg9[%c52_210, %c0_211] : memref<70x32xf32, #tpu.memory_space<vmem>>, vector<16x32xf32>
    %365 = arith.truncf %364 : vector<16x32xf32> to vector<16x32xbf16>
    %c4 = arith.constant 4 : index
    %c0_212 = arith.constant 0 : index
    %c0_213 = arith.constant 0 : index
    %c0_214 = arith.constant 0 : index
    %366 = vector.load %arg2[%c4, %c0_212, %c0_213, %c0_214] : memref<10x3x32x64xbf16, #tpu.memory_space<vmem>>, vector<1x1x32x64xbf16>
    %367 = vector.shape_cast %366 : vector<1x1x32x64xbf16> to vector<32x64xbf16>
    %cst_215 = arith.constant dense<0.000000e+00> : vector<16x64xf32>
    %368 = tpu.matmul %365, %367, %cst_215 {dimension_numbers = #tpu.dot_dimension_numbers<[1], [0], [0], [1], [0, 0, 1, 1], [], []>} : vector<16x32xbf16>, vector<32x64xbf16>, vector<16x64xf32> -> vector<16x64xf32>
    %369 = arith.addf %363, %368 : vector<16x64xf32>
    %c53_216 = arith.constant 53 : index
    %c0_217 = arith.constant 0 : index
    %370 = vector.load %arg9[%c53_216, %c0_217] : memref<70x32xf32, #tpu.memory_space<vmem>>, vector<16x32xf32>
    %371 = arith.truncf %370 : vector<16x32xf32> to vector<16x32xbf16>
    %c4_218 = arith.constant 4 : index
    %c1_219 = arith.constant 1 : index
    %c0_220 = arith.constant 0 : index
    %c0_221 = arith.constant 0 : index
    %372 = vector.load %arg2[%c4_218, %c1_219, %c0_220, %c0_221] : memref<10x3x32x64xbf16, #tpu.memory_space<vmem>>, vector<1x1x32x64xbf16>
    %373 = vector.shape_cast %372 : vector<1x1x32x64xbf16> to vector<32x64xbf16>
    %cst_222 = arith.constant dense<0.000000e+00> : vector<16x64xf32>
    %374 = tpu.matmul %371, %373, %cst_222 {dimension_numbers = #tpu.dot_dimension_numbers<[1], [0], [0], [1], [0, 0, 1, 1], [], []>} : vector<16x32xbf16>, vector<32x64xbf16>, vector<16x64xf32> -> vector<16x64xf32>
    %375 = arith.addf %369, %374 : vector<16x64xf32>
    %c54_223 = arith.constant 54 : index
    %c0_224 = arith.constant 0 : index
    %376 = vector.load %arg9[%c54_223, %c0_224] : memref<70x32xf32, #tpu.memory_space<vmem>>, vector<16x32xf32>
    %377 = arith.truncf %376 : vector<16x32xf32> to vector<16x32xbf16>
    %c4_225 = arith.constant 4 : index
    %c2_226 = arith.constant 2 : index
    %c0_227 = arith.constant 0 : index
    %c0_228 = arith.constant 0 : index
    %378 = vector.load %arg2[%c4_225, %c2_226, %c0_227, %c0_228] : memref<10x3x32x64xbf16, #tpu.memory_space<vmem>>, vector<1x1x32x64xbf16>
    %379 = vector.shape_cast %378 : vector<1x1x32x64xbf16> to vector<32x64xbf16>
    %cst_229 = arith.constant dense<0.000000e+00> : vector<16x64xf32>
    %380 = tpu.matmul %377, %379, %cst_229 {dimension_numbers = #tpu.dot_dimension_numbers<[1], [0], [0], [1], [0, 0, 1, 1], [], []>} : vector<16x32xbf16>, vector<32x64xbf16>, vector<16x64xf32> -> vector<16x64xf32>
    %381 = arith.addf %375, %380 : vector<16x64xf32>
    %c4_230 = arith.constant 4 : index
    %c0_231 = arith.constant 0 : index
    %c0_232 = arith.constant 0 : index
    %382 = vector.load %arg3[%c4_230, %c0_231, %c0_232] : memref<10x1x64xf32, #tpu.memory_space<vmem>>, vector<1x1x64xf32>
    %383 = vector.shape_cast %382 : vector<1x1x64xf32> to vector<1x64xf32>
    %384 = vector.broadcast %383 : vector<1x64xf32> to vector<16x64xf32>
    %385 = arith.addf %381, %384 : vector<16x64xf32>
    %386 = vector.extract_strided_slice %385 {offsets = [0, 0], sizes = [16, 32], strides = [1, 1]} : vector<16x64xf32> to vector<16x32xf32>
    %c4_233 = arith.constant 4 : index
    %c0_234 = arith.constant 0 : index
    %c0_235 = arith.constant 0 : index
    %387 = vector.load %arg4[%c4_233, %c0_234, %c0_235] : memref<10x1x32xf32, #tpu.memory_space<vmem>>, vector<1x1x32xf32>
    %388 = vector.shape_cast %387 : vector<1x1x32xf32> to vector<1x32xf32>
    %c4_236 = arith.constant 4 : index
    %c0_237 = arith.constant 0 : index
    %c0_238 = arith.constant 0 : index
    %389 = vector.load %arg5[%c4_236, %c0_237, %c0_238] : memref<10x1x32xf32, #tpu.memory_space<vmem>>, vector<1x1x32xf32>
    %390 = vector.shape_cast %389 : vector<1x1x32xf32> to vector<1x32xf32>
    %cst_239 = arith.constant dense<0.000000e+00> : vector<16xf32>
    %391 = vector.multi_reduction <add>, %386, %cst_239 [1] : vector<16x32xf32> to vector<16xf32>
    %392 = vector.shape_cast %391 : vector<16xf32> to vector<16x1xf32>
    %cst_240 = arith.constant 3.200000e+01 : f32
    %393 = vector.broadcast %cst_240 : f32 to vector<16x1xf32>
    %394 = arith.divf %392, %393 : vector<16x1xf32>
    %395 = vector.broadcast %394 : vector<16x1xf32> to vector<16x32xf32>
    %396 = arith.subf %386, %395 : vector<16x32xf32>
    %397 = arith.mulf %396, %396 : vector<16x32xf32>
    %cst_241 = arith.constant dense<0.000000e+00> : vector<16xf32>
    %398 = vector.multi_reduction <add>, %397, %cst_241 [1] : vector<16x32xf32> to vector<16xf32>
    %399 = vector.shape_cast %398 : vector<16xf32> to vector<16x1xf32>
    %cst_242 = arith.constant 3.200000e+01 : f32
    %400 = vector.broadcast %cst_242 : f32 to vector<16x1xf32>
    %401 = arith.divf %399, %400 : vector<16x1xf32>
    %402 = vector.broadcast %394 : vector<16x1xf32> to vector<16x32xf32>
    %403 = arith.subf %386, %402 : vector<16x32xf32>
    %cst_243 = arith.constant 9.99999974E-6 : f32
    %404 = vector.broadcast %cst_243 : f32 to vector<16x1xf32>
    %405 = arith.addf %401, %404 : vector<16x1xf32>
    %406 = math.rsqrt %405 : vector<16x1xf32>
    %407 = vector.broadcast %406 : vector<16x1xf32> to vector<16x32xf32>
    %408 = arith.mulf %403, %407 : vector<16x32xf32>
    %409 = vector.broadcast %388 : vector<1x32xf32> to vector<16x32xf32>
    %410 = arith.mulf %408, %409 : vector<16x32xf32>
    %411 = vector.broadcast %390 : vector<1x32xf32> to vector<16x32xf32>
    %412 = arith.addf %410, %411 : vector<16x32xf32>
    %413 = vector.extract_strided_slice %385 {offsets = [0, 32], sizes = [16, 32], strides = [1, 1]} : vector<16x64xf32> to vector<16x32xf32>
    %c4_244 = arith.constant 4 : index
    %c0_245 = arith.constant 0 : index
    %c0_246 = arith.constant 0 : index
    %414 = vector.load %arg6[%c4_244, %c0_245, %c0_246] : memref<10x1x32xf32, #tpu.memory_space<vmem>>, vector<1x1x32xf32>
    %415 = vector.shape_cast %414 : vector<1x1x32xf32> to vector<1x32xf32>
    %c4_247 = arith.constant 4 : index
    %c0_248 = arith.constant 0 : index
    %c0_249 = arith.constant 0 : index
    %416 = vector.load %arg7[%c4_247, %c0_248, %c0_249] : memref<10x1x32xf32, #tpu.memory_space<vmem>>, vector<1x1x32xf32>
    %417 = vector.shape_cast %416 : vector<1x1x32xf32> to vector<1x32xf32>
    %cst_250 = arith.constant dense<0.000000e+00> : vector<16xf32>
    %418 = vector.multi_reduction <add>, %413, %cst_250 [1] : vector<16x32xf32> to vector<16xf32>
    %419 = vector.shape_cast %418 : vector<16xf32> to vector<16x1xf32>
    %cst_251 = arith.constant 3.200000e+01 : f32
    %420 = vector.broadcast %cst_251 : f32 to vector<16x1xf32>
    %421 = arith.divf %419, %420 : vector<16x1xf32>
    %422 = vector.broadcast %421 : vector<16x1xf32> to vector<16x32xf32>
    %423 = arith.subf %413, %422 : vector<16x32xf32>
    %424 = arith.mulf %423, %423 : vector<16x32xf32>
    %cst_252 = arith.constant dense<0.000000e+00> : vector<16xf32>
    %425 = vector.multi_reduction <add>, %424, %cst_252 [1] : vector<16x32xf32> to vector<16xf32>
    %426 = vector.shape_cast %425 : vector<16xf32> to vector<16x1xf32>
    %cst_253 = arith.constant 3.200000e+01 : f32
    %427 = vector.broadcast %cst_253 : f32 to vector<16x1xf32>
    %428 = arith.divf %426, %427 : vector<16x1xf32>
    %429 = vector.broadcast %421 : vector<16x1xf32> to vector<16x32xf32>
    %430 = arith.subf %413, %429 : vector<16x32xf32>
    %cst_254 = arith.constant 9.99999974E-6 : f32
    %431 = vector.broadcast %cst_254 : f32 to vector<16x1xf32>
    %432 = arith.addf %428, %431 : vector<16x1xf32>
    %433 = math.rsqrt %432 : vector<16x1xf32>
    %434 = vector.broadcast %433 : vector<16x1xf32> to vector<16x32xf32>
    %435 = arith.mulf %430, %434 : vector<16x32xf32>
    %436 = vector.broadcast %415 : vector<1x32xf32> to vector<16x32xf32>
    %437 = arith.mulf %435, %436 : vector<16x32xf32>
    %438 = vector.broadcast %417 : vector<1x32xf32> to vector<16x32xf32>
    %439 = arith.addf %437, %438 : vector<16x32xf32>
    %440 = arith.negf %412 : vector<16x32xf32>
    %441 = math.exp %440 : vector<16x32xf32>
    %cst_255 = arith.constant 1.000000e+00 : f32
    %442 = vector.broadcast %cst_255 : f32 to vector<16x32xf32>
    %443 = arith.addf %442, %441 : vector<16x32xf32>
    %444 = arith.divf %442, %443 : vector<16x32xf32>
    %445 = arith.mulf %444, %439 : vector<16x32xf32>
    %cst_256 = arith.constant 1.000000e+00 : f32
    %446 = vector.broadcast %cst_256 : f32 to vector<16x32xf32>
    %447 = arith.subf %446, %444 : vector<16x32xf32>
    %448 = arith.mulf %447, %362 : vector<16x32xf32>
    %449 = arith.addf %445, %448 : vector<16x32xf32>
    %c54_257 = arith.constant 54 : index
    %c0_258 = arith.constant 0 : index
    %450 = vector.load %arg9[%c54_257, %c0_258] : memref<70x32xf32, #tpu.memory_space<vmem>>, vector<16x32xf32>
    tpu.vector_store %arg9[%c54_257, %c0_258], %449 {strides = array<i32>} : memref<70x32xf32, #tpu.memory_space<vmem>>, vector<16x32xf32>,
    %c54_259 = arith.constant 54 : index
    %c0_260 = arith.constant 0 : index
    %451 = vector.load %arg9[%c54_259, %c0_260] : memref<70x32xf32, #tpu.memory_space<vmem>>, vector<16x32xf32>
    %cst_261 = arith.constant 0.000000e+00 : f32
    %452 = vector.broadcast %cst_261 : f32 to vector<16x64xf32>
    %c48_262 = arith.constant 48 : index
    %c0_263 = arith.constant 0 : index
    %453 = vector.load %arg9[%c48_262, %c0_263] : memref<70x32xf32, #tpu.memory_space<vmem>>, vector<16x32xf32>
    %454 = arith.truncf %453 : vector<16x32xf32> to vector<16x32xbf16>
    %c5 = arith.constant 5 : index
    %c0_264 = arith.constant 0 : index
    %c0_265 = arith.constant 0 : index
    %c0_266 = arith.constant 0 : index
    %455 = vector.load %arg2[%c5, %c0_264, %c0_265, %c0_266] : memref<10x3x32x64xbf16, #tpu.memory_space<vmem>>, vector<1x1x32x64xbf16>
    %456 = vector.shape_cast %455 : vector<1x1x32x64xbf16> to vector<32x64xbf16>
    %cst_267 = arith.constant dense<0.000000e+00> : vector<16x64xf32>
    %457 = tpu.matmul %454, %456, %cst_267 {dimension_numbers = #tpu.dot_dimension_numbers<[1], [0], [0], [1], [0, 0, 1, 1], [], []>} : vector<16x32xbf16>, vector<32x64xbf16>, vector<16x64xf32> -> vector<16x64xf32>
    %458 = arith.addf %452, %457 : vector<16x64xf32>
    %c51_268 = arith.constant 51 : index
    %c0_269 = arith.constant 0 : index
    %459 = vector.load %arg9[%c51_268, %c0_269] : memref<70x32xf32, #tpu.memory_space<vmem>>, vector<16x32xf32>
    %460 = arith.truncf %459 : vector<16x32xf32> to vector<16x32xbf16>
    %c5_270 = arith.constant 5 : index
    %c1_271 = arith.constant 1 : index
    %c0_272 = arith.constant 0 : index
    %c0_273 = arith.constant 0 : index
    %461 = vector.load %arg2[%c5_270, %c1_271, %c0_272, %c0_273] : memref<10x3x32x64xbf16, #tpu.memory_space<vmem>>, vector<1x1x32x64xbf16>
    %462 = vector.shape_cast %461 : vector<1x1x32x64xbf16> to vector<32x64xbf16>
    %cst_274 = arith.constant dense<0.000000e+00> : vector<16x64xf32>
    %463 = tpu.matmul %460, %462, %cst_274 {dimension_numbers = #tpu.dot_dimension_numbers<[1], [0], [0], [1], [0, 0, 1, 1], [], []>} : vector<16x32xbf16>, vector<32x64xbf16>, vector<16x64xf32> -> vector<16x64xf32>
    %464 = arith.addf %458, %463 : vector<16x64xf32>
    %c54_275 = arith.constant 54 : index
    %c0_276 = arith.constant 0 : index
    %465 = vector.load %arg9[%c54_275, %c0_276] : memref<70x32xf32, #tpu.memory_space<vmem>>, vector<16x32xf32>
    %466 = arith.truncf %465 : vector<16x32xf32> to vector<16x32xbf16>
    %c5_277 = arith.constant 5 : index
    %c2_278 = arith.constant 2 : index
    %c0_279 = arith.constant 0 : index
    %c0_280 = arith.constant 0 : index
    %467 = vector.load %arg2[%c5_277, %c2_278, %c0_279, %c0_280] : memref<10x3x32x64xbf16, #tpu.memory_space<vmem>>, vector<1x1x32x64xbf16>
    %468 = vector.shape_cast %467 : vector<1x1x32x64xbf16> to vector<32x64xbf16>
    %cst_281 = arith.constant dense<0.000000e+00> : vector<16x64xf32>
    %469 = tpu.matmul %466, %468, %cst_281 {dimension_numbers = #tpu.dot_dimension_numbers<[1], [0], [0], [1], [0, 0, 1, 1], [], []>} : vector<16x32xbf16>, vector<32x64xbf16>, vector<16x64xf32> -> vector<16x64xf32>
    %470 = arith.addf %464, %469 : vector<16x64xf32>
    %c5_282 = arith.constant 5 : index
    %c0_283 = arith.constant 0 : index
    %c0_284 = arith.constant 0 : index
    %471 = vector.load %arg3[%c5_282, %c0_283, %c0_284] : memref<10x1x64xf32, #tpu.memory_space<vmem>>, vector<1x1x64xf32>
    %472 = vector.shape_cast %471 : vector<1x1x64xf32> to vector<1x64xf32>
    %473 = vector.broadcast %472 : vector<1x64xf32> to vector<16x64xf32>
    %474 = arith.addf %470, %473 : vector<16x64xf32>
    %475 = vector.extract_strided_slice %474 {offsets = [0, 0], sizes = [16, 32], strides = [1, 1]} : vector<16x64xf32> to vector<16x32xf32>
    %c5_285 = arith.constant 5 : index
    %c0_286 = arith.constant 0 : index
    %c0_287 = arith.constant 0 : index
    %476 = vector.load %arg4[%c5_285, %c0_286, %c0_287] : memref<10x1x32xf32, #tpu.memory_space<vmem>>, vector<1x1x32xf32>
    %477 = vector.shape_cast %476 : vector<1x1x32xf32> to vector<1x32xf32>
    %c5_288 = arith.constant 5 : index
    %c0_289 = arith.constant 0 : index
    %c0_290 = arith.constant 0 : index
    %478 = vector.load %arg5[%c5_288, %c0_289, %c0_290] : memref<10x1x32xf32, #tpu.memory_space<vmem>>, vector<1x1x32xf32>
    %479 = vector.shape_cast %478 : vector<1x1x32xf32> to vector<1x32xf32>
    %cst_291 = arith.constant dense<0.000000e+00> : vector<16xf32>
    %480 = vector.multi_reduction <add>, %475, %cst_291 [1] : vector<16x32xf32> to vector<16xf32>
    %481 = vector.shape_cast %480 : vector<16xf32> to vector<16x1xf32>
    %cst_292 = arith.constant 3.200000e+01 : f32
    %482 = vector.broadcast %cst_292 : f32 to vector<16x1xf32>
    %483 = arith.divf %481, %482 : vector<16x1xf32>
    %484 = vector.broadcast %483 : vector<16x1xf32> to vector<16x32xf32>
    %485 = arith.subf %475, %484 : vector<16x32xf32>
    %486 = arith.mulf %485, %485 : vector<16x32xf32>
    %cst_293 = arith.constant dense<0.000000e+00> : vector<16xf32>
    %487 = vector.multi_reduction <add>, %486, %cst_293 [1] : vector<16x32xf32> to vector<16xf32>
    %488 = vector.shape_cast %487 : vector<16xf32> to vector<16x1xf32>
    %cst_294 = arith.constant 3.200000e+01 : f32
    %489 = vector.broadcast %cst_294 : f32 to vector<16x1xf32>
    %490 = arith.divf %488, %489 : vector<16x1xf32>
    %491 = vector.broadcast %483 : vector<16x1xf32> to vector<16x32xf32>
    %492 = arith.subf %475, %491 : vector<16x32xf32>
    %cst_295 = arith.constant 9.99999974E-6 : f32
    %493 = vector.broadcast %cst_295 : f32 to vector<16x1xf32>
    %494 = arith.addf %490, %493 : vector<16x1xf32>
    %495 = math.rsqrt %494 : vector<16x1xf32>
    %496 = vector.broadcast %495 : vector<16x1xf32> to vector<16x32xf32>
    %497 = arith.mulf %492, %496 : vector<16x32xf32>
    %498 = vector.broadcast %477 : vector<1x32xf32> to vector<16x32xf32>
    %499 = arith.mulf %497, %498 : vector<16x32xf32>
    %500 = vector.broadcast %479 : vector<1x32xf32> to vector<16x32xf32>
    %501 = arith.addf %499, %500 : vector<16x32xf32>
    %502 = vector.extract_strided_slice %474 {offsets = [0, 32], sizes = [16, 32], strides = [1, 1]} : vector<16x64xf32> to vector<16x32xf32>
    %c5_296 = arith.constant 5 : index
    %c0_297 = arith.constant 0 : index
    %c0_298 = arith.constant 0 : index
    %503 = vector.load %arg6[%c5_296, %c0_297, %c0_298] : memref<10x1x32xf32, #tpu.memory_space<vmem>>, vector<1x1x32xf32>
    %504 = vector.shape_cast %503 : vector<1x1x32xf32> to vector<1x32xf32>
    %c5_299 = arith.constant 5 : index
    %c0_300 = arith.constant 0 : index
    %c0_301 = arith.constant 0 : index
    %505 = vector.load %arg7[%c5_299, %c0_300, %c0_301] : memref<10x1x32xf32, #tpu.memory_space<vmem>>, vector<1x1x32xf32>
    %506 = vector.shape_cast %505 : vector<1x1x32xf32> to vector<1x32xf32>
    %cst_302 = arith.constant dense<0.000000e+00> : vector<16xf32>
    %507 = vector.multi_reduction <add>, %502, %cst_302 [1] : vector<16x32xf32> to vector<16xf32>
    %508 = vector.shape_cast %507 : vector<16xf32> to vector<16x1xf32>
    %cst_303 = arith.constant 3.200000e+01 : f32
    %509 = vector.broadcast %cst_303 : f32 to vector<16x1xf32>
    %510 = arith.divf %508, %509 : vector<16x1xf32>
    %511 = vector.broadcast %510 : vector<16x1xf32> to vector<16x32xf32>
    %512 = arith.subf %502, %511 : vector<16x32xf32>
    %513 = arith.mulf %512, %512 : vector<16x32xf32>
    %cst_304 = arith.constant dense<0.000000e+00> : vector<16xf32>
    %514 = vector.multi_reduction <add>, %513, %cst_304 [1] : vector<16x32xf32> to vector<16xf32>
    %515 = vector.shape_cast %514 : vector<16xf32> to vector<16x1xf32>
    %cst_305 = arith.constant 3.200000e+01 : f32
    %516 = vector.broadcast %cst_305 : f32 to vector<16x1xf32>
    %517 = arith.divf %515, %516 : vector<16x1xf32>
    %518 = vector.broadcast %510 : vector<16x1xf32> to vector<16x32xf32>
    %519 = arith.subf %502, %518 : vector<16x32xf32>
    %cst_306 = arith.constant 9.99999974E-6 : f32
    %520 = vector.broadcast %cst_306 : f32 to vector<16x1xf32>
    %521 = arith.addf %517, %520 : vector<16x1xf32>
    %522 = math.rsqrt %521 : vector<16x1xf32>
    %523 = vector.broadcast %522 : vector<16x1xf32> to vector<16x32xf32>
    %524 = arith.mulf %519, %523 : vector<16x32xf32>
    %525 = vector.broadcast %504 : vector<1x32xf32> to vector<16x32xf32>
    %526 = arith.mulf %524, %525 : vector<16x32xf32>
    %527 = vector.broadcast %506 : vector<1x32xf32> to vector<16x32xf32>
    %528 = arith.addf %526, %527 : vector<16x32xf32>
    %529 = arith.negf %501 : vector<16x32xf32>
    %530 = math.exp %529 : vector<16x32xf32>
    %cst_307 = arith.constant 1.000000e+00 : f32
    %531 = vector.broadcast %cst_307 : f32 to vector<16x32xf32>
    %532 = arith.addf %531, %530 : vector<16x32xf32>
    %533 = arith.divf %531, %532 : vector<16x32xf32>
    %534 = arith.mulf %533, %528 : vector<16x32xf32>
    %cst_308 = arith.constant 1.000000e+00 : f32
    %535 = vector.broadcast %cst_308 : f32 to vector<16x32xf32>
    %536 = arith.subf %535, %533 : vector<16x32xf32>
    %537 = arith.mulf %536, %451 : vector<16x32xf32>
    %538 = arith.addf %534, %537 : vector<16x32xf32>
    %c54_309 = arith.constant 54 : index
    %c0_310 = arith.constant 0 : index
    %539 = vector.load %arg9[%c54_309, %c0_310] : memref<70x32xf32, #tpu.memory_space<vmem>>, vector<16x32xf32>
    tpu.vector_store %arg9[%c54_309, %c0_310], %538 {strides = array<i32>} : memref<70x32xf32, #tpu.memory_space<vmem>>, vector<16x32xf32>,
    %c54_311 = arith.constant 54 : index
    %c0_312 = arith.constant 0 : index
    %540 = vector.load %arg9[%c54_311, %c0_312] : memref<70x32xf32, #tpu.memory_space<vmem>>, vector<16x32xf32>
    %cst_313 = arith.constant 0.000000e+00 : f32
    %541 = vector.broadcast %cst_313 : f32 to vector<16x64xf32>
    %c36_314 = arith.constant 36 : index
    %c0_315 = arith.constant 0 : index
    %542 = vector.load %arg9[%c36_314, %c0_315] : memref<70x32xf32, #tpu.memory_space<vmem>>, vector<16x32xf32>
    %543 = arith.truncf %542 : vector<16x32xf32> to vector<16x32xbf16>
    %c6 = arith.constant 6 : index
    %c0_316 = arith.constant 0 : index
    %c0_317 = arith.constant 0 : index
    %c0_318 = arith.constant 0 : index
    %544 = vector.load %arg2[%c6, %c0_316, %c0_317, %c0_318] : memref<10x3x32x64xbf16, #tpu.memory_space<vmem>>, vector<1x1x32x64xbf16>
    %545 = vector.shape_cast %544 : vector<1x1x32x64xbf16> to vector<32x64xbf16>
    %cst_319 = arith.constant dense<0.000000e+00> : vector<16x64xf32>
    %546 = tpu.matmul %543, %545, %cst_319 {dimension_numbers = #tpu.dot_dimension_numbers<[1], [0], [0], [1], [0, 0, 1, 1], [], []>} : vector<16x32xbf16>, vector<32x64xbf16>, vector<16x64xf32> -> vector<16x64xf32>
    %547 = arith.addf %541, %546 : vector<16x64xf32>
    %c45_320 = arith.constant 45 : index
    %c0_321 = arith.constant 0 : index
    %548 = vector.load %arg9[%c45_320, %c0_321] : memref<70x32xf32, #tpu.memory_space<vmem>>, vector<16x32xf32>
    %549 = arith.truncf %548 : vector<16x32xf32> to vector<16x32xbf16>
    %c6_322 = arith.constant 6 : index
    %c1_323 = arith.constant 1 : index
    %c0_324 = arith.constant 0 : index
    %c0_325 = arith.constant 0 : index
    %550 = vector.load %arg2[%c6_322, %c1_323, %c0_324, %c0_325] : memref<10x3x32x64xbf16, #tpu.memory_space<vmem>>, vector<1x1x32x64xbf16>
    %551 = vector.shape_cast %550 : vector<1x1x32x64xbf16> to vector<32x64xbf16>
    %cst_326 = arith.constant dense<0.000000e+00> : vector<16x64xf32>
    %552 = tpu.matmul %549, %551, %cst_326 {dimension_numbers = #tpu.dot_dimension_numbers<[1], [0], [0], [1], [0, 0, 1, 1], [], []>} : vector<16x32xbf16>, vector<32x64xbf16>, vector<16x64xf32> -> vector<16x64xf32>
    %553 = arith.addf %547, %552 : vector<16x64xf32>
    %c54_327 = arith.constant 54 : index
    %c0_328 = arith.constant 0 : index
    %554 = vector.load %arg9[%c54_327, %c0_328] : memref<70x32xf32, #tpu.memory_space<vmem>>, vector<16x32xf32>
    %555 = arith.truncf %554 : vector<16x32xf32> to vector<16x32xbf16>
    %c6_329 = arith.constant 6 : index
    %c2_330 = arith.constant 2 : index
    %c0_331 = arith.constant 0 : index
    %c0_332 = arith.constant 0 : index
    %556 = vector.load %arg2[%c6_329, %c2_330, %c0_331, %c0_332] : memref<10x3x32x64xbf16, #tpu.memory_space<vmem>>, vector<1x1x32x64xbf16>
    %557 = vector.shape_cast %556 : vector<1x1x32x64xbf16> to vector<32x64xbf16>
    %cst_333 = arith.constant dense<0.000000e+00> : vector<16x64xf32>
    %558 = tpu.matmul %555, %557, %cst_333 {dimension_numbers = #tpu.dot_dimension_numbers<[1], [0], [0], [1], [0, 0, 1, 1], [], []>} : vector<16x32xbf16>, vector<32x64xbf16>, vector<16x64xf32> -> vector<16x64xf32>
    %559 = arith.addf %553, %558 : vector<16x64xf32>
    %c6_334 = arith.constant 6 : index
    %c0_335 = arith.constant 0 : index
    %c0_336 = arith.constant 0 : index
    %560 = vector.load %arg3[%c6_334, %c0_335, %c0_336] : memref<10x1x64xf32, #tpu.memory_space<vmem>>, vector<1x1x64xf32>
    %561 = vector.shape_cast %560 : vector<1x1x64xf32> to vector<1x64xf32>
    %562 = vector.broadcast %561 : vector<1x64xf32> to vector<16x64xf32>
    %563 = arith.addf %559, %562 : vector<16x64xf32>
    %564 = vector.extract_strided_slice %563 {offsets = [0, 0], sizes = [16, 32], strides = [1, 1]} : vector<16x64xf32> to vector<16x32xf32>
    %c6_337 = arith.constant 6 : index
    %c0_338 = arith.constant 0 : index
    %c0_339 = arith.constant 0 : index
    %565 = vector.load %arg4[%c6_337, %c0_338, %c0_339] : memref<10x1x32xf32, #tpu.memory_space<vmem>>, vector<1x1x32xf32>
    %566 = vector.shape_cast %565 : vector<1x1x32xf32> to vector<1x32xf32>
    %c6_340 = arith.constant 6 : index
    %c0_341 = arith.constant 0 : index
    %c0_342 = arith.constant 0 : index
    %567 = vector.load %arg5[%c6_340, %c0_341, %c0_342] : memref<10x1x32xf32, #tpu.memory_space<vmem>>, vector<1x1x32xf32>
    %568 = vector.shape_cast %567 : vector<1x1x32xf32> to vector<1x32xf32>
    %cst_343 = arith.constant dense<0.000000e+00> : vector<16xf32>
    %569 = vector.multi_reduction <add>, %564, %cst_343 [1] : vector<16x32xf32> to vector<16xf32>
    %570 = vector.shape_cast %569 : vector<16xf32> to vector<16x1xf32>
    %cst_344 = arith.constant 3.200000e+01 : f32
    %571 = vector.broadcast %cst_344 : f32 to vector<16x1xf32>
    %572 = arith.divf %570, %571 : vector<16x1xf32>
    %573 = vector.broadcast %572 : vector<16x1xf32> to vector<16x32xf32>
    %574 = arith.subf %564, %573 : vector<16x32xf32>
    %575 = arith.mulf %574, %574 : vector<16x32xf32>
    %cst_345 = arith.constant dense<0.000000e+00> : vector<16xf32>
    %576 = vector.multi_reduction <add>, %575, %cst_345 [1] : vector<16x32xf32> to vector<16xf32>
    %577 = vector.shape_cast %576 : vector<16xf32> to vector<16x1xf32>
    %cst_346 = arith.constant 3.200000e+01 : f32
    %578 = vector.broadcast %cst_346 : f32 to vector<16x1xf32>
    %579 = arith.divf %577, %578 : vector<16x1xf32>
    %580 = vector.broadcast %572 : vector<16x1xf32> to vector<16x32xf32>
    %581 = arith.subf %564, %580 : vector<16x32xf32>
    %cst_347 = arith.constant 9.99999974E-6 : f32
    %582 = vector.broadcast %cst_347 : f32 to vector<16x1xf32>
    %583 = arith.addf %579, %582 : vector<16x1xf32>
    %584 = math.rsqrt %583 : vector<16x1xf32>
    %585 = vector.broadcast %584 : vector<16x1xf32> to vector<16x32xf32>
    %586 = arith.mulf %581, %585 : vector<16x32xf32>
    %587 = vector.broadcast %566 : vector<1x32xf32> to vector<16x32xf32>
    %588 = arith.mulf %586, %587 : vector<16x32xf32>
    %589 = vector.broadcast %568 : vector<1x32xf32> to vector<16x32xf32>
    %590 = arith.addf %588, %589 : vector<16x32xf32>
    %591 = vector.extract_strided_slice %563 {offsets = [0, 32], sizes = [16, 32], strides = [1, 1]} : vector<16x64xf32> to vector<16x32xf32>
    %c6_348 = arith.constant 6 : index
    %c0_349 = arith.constant 0 : index
    %c0_350 = arith.constant 0 : index
    %592 = vector.load %arg6[%c6_348, %c0_349, %c0_350] : memref<10x1x32xf32, #tpu.memory_space<vmem>>, vector<1x1x32xf32>
    %593 = vector.shape_cast %592 : vector<1x1x32xf32> to vector<1x32xf32>
    %c6_351 = arith.constant 6 : index
    %c0_352 = arith.constant 0 : index
    %c0_353 = arith.constant 0 : index
    %594 = vector.load %arg7[%c6_351, %c0_352, %c0_353] : memref<10x1x32xf32, #tpu.memory_space<vmem>>, vector<1x1x32xf32>
    %595 = vector.shape_cast %594 : vector<1x1x32xf32> to vector<1x32xf32>
    %cst_354 = arith.constant dense<0.000000e+00> : vector<16xf32>
    %596 = vector.multi_reduction <add>, %591, %cst_354 [1] : vector<16x32xf32> to vector<16xf32>
    %597 = vector.shape_cast %596 : vector<16xf32> to vector<16x1xf32>
    %cst_355 = arith.constant 3.200000e+01 : f32
    %598 = vector.broadcast %cst_355 : f32 to vector<16x1xf32>
    %599 = arith.divf %597, %598 : vector<16x1xf32>
    %600 = vector.broadcast %599 : vector<16x1xf32> to vector<16x32xf32>
    %601 = arith.subf %591, %600 : vector<16x32xf32>
    %602 = arith.mulf %601, %601 : vector<16x32xf32>
    %cst_356 = arith.constant dense<0.000000e+00> : vector<16xf32>
    %603 = vector.multi_reduction <add>, %602, %cst_356 [1] : vector<16x32xf32> to vector<16xf32>
    %604 = vector.shape_cast %603 : vector<16xf32> to vector<16x1xf32>
    %cst_357 = arith.constant 3.200000e+01 : f32
    %605 = vector.broadcast %cst_357 : f32 to vector<16x1xf32>
    %606 = arith.divf %604, %605 : vector<16x1xf32>
    %607 = vector.broadcast %599 : vector<16x1xf32> to vector<16x32xf32>
    %608 = arith.subf %591, %607 : vector<16x32xf32>
    %cst_358 = arith.constant 9.99999974E-6 : f32
    %609 = vector.broadcast %cst_358 : f32 to vector<16x1xf32>
    %610 = arith.addf %606, %609 : vector<16x1xf32>
    %611 = math.rsqrt %610 : vector<16x1xf32>
    %612 = vector.broadcast %611 : vector<16x1xf32> to vector<16x32xf32>
    %613 = arith.mulf %608, %612 : vector<16x32xf32>
    %614 = vector.broadcast %593 : vector<1x32xf32> to vector<16x32xf32>
    %615 = arith.mulf %613, %614 : vector<16x32xf32>
    %616 = vector.broadcast %595 : vector<1x32xf32> to vector<16x32xf32>
    %617 = arith.addf %615, %616 : vector<16x32xf32>
    %618 = arith.negf %590 : vector<16x32xf32>
    %619 = math.exp %618 : vector<16x32xf32>
    %cst_359 = arith.constant 1.000000e+00 : f32
    %620 = vector.broadcast %cst_359 : f32 to vector<16x32xf32>
    %621 = arith.addf %620, %619 : vector<16x32xf32>
    %622 = arith.divf %620, %621 : vector<16x32xf32>
    %623 = arith.mulf %622, %617 : vector<16x32xf32>
    %cst_360 = arith.constant 1.000000e+00 : f32
    %624 = vector.broadcast %cst_360 : f32 to vector<16x32xf32>
    %625 = arith.subf %624, %622 : vector<16x32xf32>
    %626 = arith.mulf %625, %540 : vector<16x32xf32>
    %627 = arith.addf %623, %626 : vector<16x32xf32>
    %c54_361 = arith.constant 54 : index
    %c0_362 = arith.constant 0 : index
    %628 = vector.load %arg9[%c54_361, %c0_362] : memref<70x32xf32, #tpu.memory_space<vmem>>, vector<16x32xf32>
    tpu.vector_store %arg9[%c54_361, %c0_362], %627 {strides = array<i32>} : memref<70x32xf32, #tpu.memory_space<vmem>>, vector<16x32xf32>,
    %c54_363 = arith.constant 54 : index
    %c0_364 = arith.constant 0 : index
    %629 = vector.load %arg9[%c54_363, %c0_364] : memref<70x32xf32, #tpu.memory_space<vmem>>, vector<16x32xf32>
    %cst_365 = arith.constant 0.000000e+00 : f32
    %630 = vector.broadcast %cst_365 : f32 to vector<16x64xf32>
    %c0_366 = arith.constant 0 : index
    %c0_367 = arith.constant 0 : index
    %631 = vector.load %arg9[%c0_366, %c0_367] : memref<70x32xf32, #tpu.memory_space<vmem>>, vector<16x32xf32>
    %632 = arith.truncf %631 : vector<16x32xf32> to vector<16x32xbf16>
    %c7 = arith.constant 7 : index
    %c0_368 = arith.constant 0 : index
    %c0_369 = arith.constant 0 : index
    %c0_370 = arith.constant 0 : index
    %633 = vector.load %arg2[%c7, %c0_368, %c0_369, %c0_370] : memref<10x3x32x64xbf16, #tpu.memory_space<vmem>>, vector<1x1x32x64xbf16>
    %634 = vector.shape_cast %633 : vector<1x1x32x64xbf16> to vector<32x64xbf16>
    %cst_371 = arith.constant dense<0.000000e+00> : vector<16x64xf32>
    %635 = tpu.matmul %632, %634, %cst_371 {dimension_numbers = #tpu.dot_dimension_numbers<[1], [0], [0], [1], [0, 0, 1, 1], [], []>} : vector<16x32xbf16>, vector<32x64xbf16>, vector<16x64xf32> -> vector<16x64xf32>
    %636 = arith.addf %630, %635 : vector<16x64xf32>
    %c27_372 = arith.constant 27 : index
    %c0_373 = arith.constant 0 : index
    %637 = vector.load %arg9[%c27_372, %c0_373] : memref<70x32xf32, #tpu.memory_space<vmem>>, vector<16x32xf32>
    %638 = arith.truncf %637 : vector<16x32xf32> to vector<16x32xbf16>
    %c7_374 = arith.constant 7 : index
    %c1_375 = arith.constant 1 : index
    %c0_376 = arith.constant 0 : index
    %c0_377 = arith.constant 0 : index
    %639 = vector.load %arg2[%c7_374, %c1_375, %c0_376, %c0_377] : memref<10x3x32x64xbf16, #tpu.memory_space<vmem>>, vector<1x1x32x64xbf16>
    %640 = vector.shape_cast %639 : vector<1x1x32x64xbf16> to vector<32x64xbf16>
    %cst_378 = arith.constant dense<0.000000e+00> : vector<16x64xf32>
    %641 = tpu.matmul %638, %640, %cst_378 {dimension_numbers = #tpu.dot_dimension_numbers<[1], [0], [0], [1], [0, 0, 1, 1], [], []>} : vector<16x32xbf16>, vector<32x64xbf16>, vector<16x64xf32> -> vector<16x64xf32>
    %642 = arith.addf %636, %641 : vector<16x64xf32>
    %c54_379 = arith.constant 54 : index
    %c0_380 = arith.constant 0 : index
    %643 = vector.load %arg9[%c54_379, %c0_380] : memref<70x32xf32, #tpu.memory_space<vmem>>, vector<16x32xf32>
    %644 = arith.truncf %643 : vector<16x32xf32> to vector<16x32xbf16>
    %c7_381 = arith.constant 7 : index
    %c2_382 = arith.constant 2 : index
    %c0_383 = arith.constant 0 : index
    %c0_384 = arith.constant 0 : index
    %645 = vector.load %arg2[%c7_381, %c2_382, %c0_383, %c0_384] : memref<10x3x32x64xbf16, #tpu.memory_space<vmem>>, vector<1x1x32x64xbf16>
    %646 = vector.shape_cast %645 : vector<1x1x32x64xbf16> to vector<32x64xbf16>
    %cst_385 = arith.constant dense<0.000000e+00> : vector<16x64xf32>
    %647 = tpu.matmul %644, %646, %cst_385 {dimension_numbers = #tpu.dot_dimension_numbers<[1], [0], [0], [1], [0, 0, 1, 1], [], []>} : vector<16x32xbf16>, vector<32x64xbf16>, vector<16x64xf32> -> vector<16x64xf32>
    %648 = arith.addf %642, %647 : vector<16x64xf32>
    %c7_386 = arith.constant 7 : index
    %c0_387 = arith.constant 0 : index
    %c0_388 = arith.constant 0 : index
    %649 = vector.load %arg3[%c7_386, %c0_387, %c0_388] : memref<10x1x64xf32, #tpu.memory_space<vmem>>, vector<1x1x64xf32>
    %650 = vector.shape_cast %649 : vector<1x1x64xf32> to vector<1x64xf32>
    %651 = vector.broadcast %650 : vector<1x64xf32> to vector<16x64xf32>
    %652 = arith.addf %648, %651 : vector<16x64xf32>
    %653 = vector.extract_strided_slice %652 {offsets = [0, 0], sizes = [16, 32], strides = [1, 1]} : vector<16x64xf32> to vector<16x32xf32>
    %c7_389 = arith.constant 7 : index
    %c0_390 = arith.constant 0 : index
    %c0_391 = arith.constant 0 : index
    %654 = vector.load %arg4[%c7_389, %c0_390, %c0_391] : memref<10x1x32xf32, #tpu.memory_space<vmem>>, vector<1x1x32xf32>
    %655 = vector.shape_cast %654 : vector<1x1x32xf32> to vector<1x32xf32>
    %c7_392 = arith.constant 7 : index
    %c0_393 = arith.constant 0 : index
    %c0_394 = arith.constant 0 : index
    %656 = vector.load %arg5[%c7_392, %c0_393, %c0_394] : memref<10x1x32xf32, #tpu.memory_space<vmem>>, vector<1x1x32xf32>
    %657 = vector.shape_cast %656 : vector<1x1x32xf32> to vector<1x32xf32>
    %cst_395 = arith.constant dense<0.000000e+00> : vector<16xf32>
    %658 = vector.multi_reduction <add>, %653, %cst_395 [1] : vector<16x32xf32> to vector<16xf32>
    %659 = vector.shape_cast %658 : vector<16xf32> to vector<16x1xf32>
    %cst_396 = arith.constant 3.200000e+01 : f32
    %660 = vector.broadcast %cst_396 : f32 to vector<16x1xf32>
    %661 = arith.divf %659, %660 : vector<16x1xf32>
    %662 = vector.broadcast %661 : vector<16x1xf32> to vector<16x32xf32>
    %663 = arith.subf %653, %662 : vector<16x32xf32>
    %664 = arith.mulf %663, %663 : vector<16x32xf32>
    %cst_397 = arith.constant dense<0.000000e+00> : vector<16xf32>
    %665 = vector.multi_reduction <add>, %664, %cst_397 [1] : vector<16x32xf32> to vector<16xf32>
    %666 = vector.shape_cast %665 : vector<16xf32> to vector<16x1xf32>
    %cst_398 = arith.constant 3.200000e+01 : f32
    %667 = vector.broadcast %cst_398 : f32 to vector<16x1xf32>
    %668 = arith.divf %666, %667 : vector<16x1xf32>
    %669 = vector.broadcast %661 : vector<16x1xf32> to vector<16x32xf32>
    %670 = arith.subf %653, %669 : vector<16x32xf32>
    %cst_399 = arith.constant 9.99999974E-6 : f32
    %671 = vector.broadcast %cst_399 : f32 to vector<16x1xf32>
    %672 = arith.addf %668, %671 : vector<16x1xf32>
    %673 = math.rsqrt %672 : vector<16x1xf32>
    %674 = vector.broadcast %673 : vector<16x1xf32> to vector<16x32xf32>
    %675 = arith.mulf %670, %674 : vector<16x32xf32>
    %676 = vector.broadcast %655 : vector<1x32xf32> to vector<16x32xf32>
    %677 = arith.mulf %675, %676 : vector<16x32xf32>
    %678 = vector.broadcast %657 : vector<1x32xf32> to vector<16x32xf32>
    %679 = arith.addf %677, %678 : vector<16x32xf32>
    %680 = vector.extract_strided_slice %652 {offsets = [0, 32], sizes = [16, 32], strides = [1, 1]} : vector<16x64xf32> to vector<16x32xf32>
    %c7_400 = arith.constant 7 : index
    %c0_401 = arith.constant 0 : index
    %c0_402 = arith.constant 0 : index
    %681 = vector.load %arg6[%c7_400, %c0_401, %c0_402] : memref<10x1x32xf32, #tpu.memory_space<vmem>>, vector<1x1x32xf32>
    %682 = vector.shape_cast %681 : vector<1x1x32xf32> to vector<1x32xf32>
    %c7_403 = arith.constant 7 : index
    %c0_404 = arith.constant 0 : index
    %c0_405 = arith.constant 0 : index
    %683 = vector.load %arg7[%c7_403, %c0_404, %c0_405] : memref<10x1x32xf32, #tpu.memory_space<vmem>>, vector<1x1x32xf32>
    %684 = vector.shape_cast %683 : vector<1x1x32xf32> to vector<1x32xf32>
    %cst_406 = arith.constant dense<0.000000e+00> : vector<16xf32>
    %685 = vector.multi_reduction <add>, %680, %cst_406 [1] : vector<16x32xf32> to vector<16xf32>
    %686 = vector.shape_cast %685 : vector<16xf32> to vector<16x1xf32>
    %cst_407 = arith.constant 3.200000e+01 : f32
    %687 = vector.broadcast %cst_407 : f32 to vector<16x1xf32>
    %688 = arith.divf %686, %687 : vector<16x1xf32>
    %689 = vector.broadcast %688 : vector<16x1xf32> to vector<16x32xf32>
    %690 = arith.subf %680, %689 : vector<16x32xf32>
    %691 = arith.mulf %690, %690 : vector<16x32xf32>
    %cst_408 = arith.constant dense<0.000000e+00> : vector<16xf32>
    %692 = vector.multi_reduction <add>, %691, %cst_408 [1] : vector<16x32xf32> to vector<16xf32>
    %693 = vector.shape_cast %692 : vector<16xf32> to vector<16x1xf32>
    %cst_409 = arith.constant 3.200000e+01 : f32
    %694 = vector.broadcast %cst_409 : f32 to vector<16x1xf32>
    %695 = arith.divf %693, %694 : vector<16x1xf32>
    %696 = vector.broadcast %688 : vector<16x1xf32> to vector<16x32xf32>
    %697 = arith.subf %680, %696 : vector<16x32xf32>
    %cst_410 = arith.constant 9.99999974E-6 : f32
    %698 = vector.broadcast %cst_410 : f32 to vector<16x1xf32>
    %699 = arith.addf %695, %698 : vector<16x1xf32>
    %700 = math.rsqrt %699 : vector<16x1xf32>
    %701 = vector.broadcast %700 : vector<16x1xf32> to vector<16x32xf32>
    %702 = arith.mulf %697, %701 : vector<16x32xf32>
    %703 = vector.broadcast %682 : vector<1x32xf32> to vector<16x32xf32>
    %704 = arith.mulf %702, %703 : vector<16x32xf32>
    %705 = vector.broadcast %684 : vector<1x32xf32> to vector<16x32xf32>
    %706 = arith.addf %704, %705 : vector<16x32xf32>
    %707 = arith.negf %679 : vector<16x32xf32>
    %708 = math.exp %707 : vector<16x32xf32>
    %cst_411 = arith.constant 1.000000e+00 : f32
    %709 = vector.broadcast %cst_411 : f32 to vector<16x32xf32>
    %710 = arith.addf %709, %708 : vector<16x32xf32>
    %711 = arith.divf %709, %710 : vector<16x32xf32>
    %712 = arith.mulf %711, %706 : vector<16x32xf32>
    %cst_412 = arith.constant 1.000000e+00 : f32
    %713 = vector.broadcast %cst_412 : f32 to vector<16x32xf32>
    %714 = arith.subf %713, %711 : vector<16x32xf32>
    %715 = arith.mulf %714, %629 : vector<16x32xf32>
    %716 = arith.addf %712, %715 : vector<16x32xf32>
    %c54_413 = arith.constant 54 : index
    %c0_414 = arith.constant 0 : index
    %717 = vector.load %arg9[%c54_413, %c0_414] : memref<70x32xf32, #tpu.memory_space<vmem>>, vector<16x32xf32>
    tpu.vector_store %arg9[%c54_413, %c0_414], %716 {strides = array<i32>} : memref<70x32xf32, #tpu.memory_space<vmem>>, vector<16x32xf32>,
    %c54_415 = arith.constant 54 : index
    %c0_416 = arith.constant 0 : index
    %718 = vector.load %arg9[%c54_415, %c0_416] : memref<70x32xf32, #tpu.memory_space<vmem>>, vector<16x32xf32>
    %cst_417 = arith.constant 0.000000e+00 : f32
    %719 = vector.broadcast %cst_417 : f32 to vector<16x64xf32>
    %c48_418 = arith.constant 48 : index
    %c0_419 = arith.constant 0 : index
    %720 = vector.load %arg9[%c48_418, %c0_419] : memref<70x32xf32, #tpu.memory_space<vmem>>, vector<16x32xf32>
    %721 = arith.truncf %720 : vector<16x32xf32> to vector<16x32xbf16>
    %c8 = arith.constant 8 : index
    %c0_420 = arith.constant 0 : index
    %c0_421 = arith.constant 0 : index
    %c0_422 = arith.constant 0 : index
    %722 = vector.load %arg2[%c8, %c0_420, %c0_421, %c0_422] : memref<10x3x32x64xbf16, #tpu.memory_space<vmem>>, vector<1x1x32x64xbf16>
    %723 = vector.shape_cast %722 : vector<1x1x32x64xbf16> to vector<32x64xbf16>
    %cst_423 = arith.constant dense<0.000000e+00> : vector<16x64xf32>
    %724 = tpu.matmul %721, %723, %cst_423 {dimension_numbers = #tpu.dot_dimension_numbers<[1], [0], [0], [1], [0, 0, 1, 1], [], []>} : vector<16x32xbf16>, vector<32x64xbf16>, vector<16x64xf32> -> vector<16x64xf32>
    %725 = arith.addf %719, %724 : vector<16x64xf32>
    %c51_424 = arith.constant 51 : index
    %c0_425 = arith.constant 0 : index
    %726 = vector.load %arg9[%c51_424, %c0_425] : memref<70x32xf32, #tpu.memory_space<vmem>>, vector<16x32xf32>
    %727 = arith.truncf %726 : vector<16x32xf32> to vector<16x32xbf16>
    %c8_426 = arith.constant 8 : index
    %c1_427 = arith.constant 1 : index
    %c0_428 = arith.constant 0 : index
    %c0_429 = arith.constant 0 : index
    %728 = vector.load %arg2[%c8_426, %c1_427, %c0_428, %c0_429] : memref<10x3x32x64xbf16, #tpu.memory_space<vmem>>, vector<1x1x32x64xbf16>
    %729 = vector.shape_cast %728 : vector<1x1x32x64xbf16> to vector<32x64xbf16>
    %cst_430 = arith.constant dense<0.000000e+00> : vector<16x64xf32>
    %730 = tpu.matmul %727, %729, %cst_430 {dimension_numbers = #tpu.dot_dimension_numbers<[1], [0], [0], [1], [0, 0, 1, 1], [], []>} : vector<16x32xbf16>, vector<32x64xbf16>, vector<16x64xf32> -> vector<16x64xf32>
    %731 = arith.addf %725, %730 : vector<16x64xf32>
    %c54_431 = arith.constant 54 : index
    %c0_432 = arith.constant 0 : index
    %732 = vector.load %arg9[%c54_431, %c0_432] : memref<70x32xf32, #tpu.memory_space<vmem>>, vector<16x32xf32>
    %733 = arith.truncf %732 : vector<16x32xf32> to vector<16x32xbf16>
    %c8_433 = arith.constant 8 : index
    %c2_434 = arith.constant 2 : index
    %c0_435 = arith.constant 0 : index
    %c0_436 = arith.constant 0 : index
    %734 = vector.load %arg2[%c8_433, %c2_434, %c0_435, %c0_436] : memref<10x3x32x64xbf16, #tpu.memory_space<vmem>>, vector<1x1x32x64xbf16>
    %735 = vector.shape_cast %734 : vector<1x1x32x64xbf16> to vector<32x64xbf16>
    %cst_437 = arith.constant dense<0.000000e+00> : vector<16x64xf32>
    %736 = tpu.matmul %733, %735, %cst_437 {dimension_numbers = #tpu.dot_dimension_numbers<[1], [0], [0], [1], [0, 0, 1, 1], [], []>} : vector<16x32xbf16>, vector<32x64xbf16>, vector<16x64xf32> -> vector<16x64xf32>
    %737 = arith.addf %731, %736 : vector<16x64xf32>
    %c8_438 = arith.constant 8 : index
    %c0_439 = arith.constant 0 : index
    %c0_440 = arith.constant 0 : index
    %738 = vector.load %arg3[%c8_438, %c0_439, %c0_440] : memref<10x1x64xf32, #tpu.memory_space<vmem>>, vector<1x1x64xf32>
    %739 = vector.shape_cast %738 : vector<1x1x64xf32> to vector<1x64xf32>
    %740 = vector.broadcast %739 : vector<1x64xf32> to vector<16x64xf32>
    %741 = arith.addf %737, %740 : vector<16x64xf32>
    %742 = vector.extract_strided_slice %741 {offsets = [0, 0], sizes = [16, 32], strides = [1, 1]} : vector<16x64xf32> to vector<16x32xf32>
    %c8_441 = arith.constant 8 : index
    %c0_442 = arith.constant 0 : index
    %c0_443 = arith.constant 0 : index
    %743 = vector.load %arg4[%c8_441, %c0_442, %c0_443] : memref<10x1x32xf32, #tpu.memory_space<vmem>>, vector<1x1x32xf32>
    %744 = vector.shape_cast %743 : vector<1x1x32xf32> to vector<1x32xf32>
    %c8_444 = arith.constant 8 : index
    %c0_445 = arith.constant 0 : index
    %c0_446 = arith.constant 0 : index
    %745 = vector.load %arg5[%c8_444, %c0_445, %c0_446] : memref<10x1x32xf32, #tpu.memory_space<vmem>>, vector<1x1x32xf32>
    %746 = vector.shape_cast %745 : vector<1x1x32xf32> to vector<1x32xf32>
    %cst_447 = arith.constant dense<0.000000e+00> : vector<16xf32>
    %747 = vector.multi_reduction <add>, %742, %cst_447 [1] : vector<16x32xf32> to vector<16xf32>
    %748 = vector.shape_cast %747 : vector<16xf32> to vector<16x1xf32>
    %cst_448 = arith.constant 3.200000e+01 : f32
    %749 = vector.broadcast %cst_448 : f32 to vector<16x1xf32>
    %750 = arith.divf %748, %749 : vector<16x1xf32>
    %751 = vector.broadcast %750 : vector<16x1xf32> to vector<16x32xf32>
    %752 = arith.subf %742, %751 : vector<16x32xf32>
    %753 = arith.mulf %752, %752 : vector<16x32xf32>
    %cst_449 = arith.constant dense<0.000000e+00> : vector<16xf32>
    %754 = vector.multi_reduction <add>, %753, %cst_449 [1] : vector<16x32xf32> to vector<16xf32>
    %755 = vector.shape_cast %754 : vector<16xf32> to vector<16x1xf32>
    %cst_450 = arith.constant 3.200000e+01 : f32
    %756 = vector.broadcast %cst_450 : f32 to vector<16x1xf32>
    %757 = arith.divf %755, %756 : vector<16x1xf32>
    %758 = vector.broadcast %750 : vector<16x1xf32> to vector<16x32xf32>
    %759 = arith.subf %742, %758 : vector<16x32xf32>
    %cst_451 = arith.constant 9.99999974E-6 : f32
    %760 = vector.broadcast %cst_451 : f32 to vector<16x1xf32>
    %761 = arith.addf %757, %760 : vector<16x1xf32>
    %762 = math.rsqrt %761 : vector<16x1xf32>
    %763 = vector.broadcast %762 : vector<16x1xf32> to vector<16x32xf32>
    %764 = arith.mulf %759, %763 : vector<16x32xf32>
    %765 = vector.broadcast %744 : vector<1x32xf32> to vector<16x32xf32>
    %766 = arith.mulf %764, %765 : vector<16x32xf32>
    %767 = vector.broadcast %746 : vector<1x32xf32> to vector<16x32xf32>
    %768 = arith.addf %766, %767 : vector<16x32xf32>
    %769 = vector.extract_strided_slice %741 {offsets = [0, 32], sizes = [16, 32], strides = [1, 1]} : vector<16x64xf32> to vector<16x32xf32>
    %c8_452 = arith.constant 8 : index
    %c0_453 = arith.constant 0 : index
    %c0_454 = arith.constant 0 : index
    %770 = vector.load %arg6[%c8_452, %c0_453, %c0_454] : memref<10x1x32xf32, #tpu.memory_space<vmem>>, vector<1x1x32xf32>
    %771 = vector.shape_cast %770 : vector<1x1x32xf32> to vector<1x32xf32>
    %c8_455 = arith.constant 8 : index
    %c0_456 = arith.constant 0 : index
    %c0_457 = arith.constant 0 : index
    %772 = vector.load %arg7[%c8_455, %c0_456, %c0_457] : memref<10x1x32xf32, #tpu.memory_space<vmem>>, vector<1x1x32xf32>
    %773 = vector.shape_cast %772 : vector<1x1x32xf32> to vector<1x32xf32>
    %cst_458 = arith.constant dense<0.000000e+00> : vector<16xf32>
    %774 = vector.multi_reduction <add>, %769, %cst_458 [1] : vector<16x32xf32> to vector<16xf32>
    %775 = vector.shape_cast %774 : vector<16xf32> to vector<16x1xf32>
    %cst_459 = arith.constant 3.200000e+01 : f32
    %776 = vector.broadcast %cst_459 : f32 to vector<16x1xf32>
    %777 = arith.divf %775, %776 : vector<16x1xf32>
    %778 = vector.broadcast %777 : vector<16x1xf32> to vector<16x32xf32>
    %779 = arith.subf %769, %778 : vector<16x32xf32>
    %780 = arith.mulf %779, %779 : vector<16x32xf32>
    %cst_460 = arith.constant dense<0.000000e+00> : vector<16xf32>
    %781 = vector.multi_reduction <add>, %780, %cst_460 [1] : vector<16x32xf32> to vector<16xf32>
    %782 = vector.shape_cast %781 : vector<16xf32> to vector<16x1xf32>
    %cst_461 = arith.constant 3.200000e+01 : f32
    %783 = vector.broadcast %cst_461 : f32 to vector<16x1xf32>
    %784 = arith.divf %782, %783 : vector<16x1xf32>
    %785 = vector.broadcast %777 : vector<16x1xf32> to vector<16x32xf32>
    %786 = arith.subf %769, %785 : vector<16x32xf32>
    %cst_462 = arith.constant 9.99999974E-6 : f32
    %787 = vector.broadcast %cst_462 : f32 to vector<16x1xf32>
    %788 = arith.addf %784, %787 : vector<16x1xf32>
    %789 = math.rsqrt %788 : vector<16x1xf32>
    %790 = vector.broadcast %789 : vector<16x1xf32> to vector<16x32xf32>
    %791 = arith.mulf %786, %790 : vector<16x32xf32>
    %792 = vector.broadcast %771 : vector<1x32xf32> to vector<16x32xf32>
    %793 = arith.mulf %791, %792 : vector<16x32xf32>
    %794 = vector.broadcast %773 : vector<1x32xf32> to vector<16x32xf32>
    %795 = arith.addf %793, %794 : vector<16x32xf32>
    %796 = arith.negf %768 : vector<16x32xf32>
    %797 = math.exp %796 : vector<16x32xf32>
    %cst_463 = arith.constant 1.000000e+00 : f32
    %798 = vector.broadcast %cst_463 : f32 to vector<16x32xf32>
    %799 = arith.addf %798, %797 : vector<16x32xf32>
    %800 = arith.divf %798, %799 : vector<16x32xf32>
    %801 = arith.mulf %800, %795 : vector<16x32xf32>
    %cst_464 = arith.constant 1.000000e+00 : f32
    %802 = vector.broadcast %cst_464 : f32 to vector<16x32xf32>
    %803 = arith.subf %802, %800 : vector<16x32xf32>
    %804 = arith.mulf %803, %718 : vector<16x32xf32>
    %805 = arith.addf %801, %804 : vector<16x32xf32>
    %c54_465 = arith.constant 54 : index
    %c0_466 = arith.constant 0 : index
    %806 = vector.load %arg9[%c54_465, %c0_466] : memref<70x32xf32, #tpu.memory_space<vmem>>, vector<16x32xf32>
    tpu.vector_store %arg9[%c54_465, %c0_466], %805 {strides = array<i32>} : memref<70x32xf32, #tpu.memory_space<vmem>>, vector<16x32xf32>,
    %c54_467 = arith.constant 54 : index
    %c0_468 = arith.constant 0 : index
    %807 = vector.load %arg9[%c54_467, %c0_468] : memref<70x32xf32, #tpu.memory_space<vmem>>, vector<16x32xf32>
    %cst_469 = arith.constant 0.000000e+00 : f32
    %808 = vector.broadcast %cst_469 : f32 to vector<16x64xf32>
    %c48_470 = arith.constant 48 : index
    %c0_471 = arith.constant 0 : index
    %809 = vector.load %arg9[%c48_470, %c0_471] : memref<70x32xf32, #tpu.memory_space<vmem>>, vector<16x32xf32>
    %810 = arith.truncf %809 : vector<16x32xf32> to vector<16x32xbf16>
    %c9 = arith.constant 9 : index
    %c0_472 = arith.constant 0 : index
    %c0_473 = arith.constant 0 : index
    %c0_474 = arith.constant 0 : index
    %811 = vector.load %arg2[%c9, %c0_472, %c0_473, %c0_474] : memref<10x3x32x64xbf16, #tpu.memory_space<vmem>>, vector<1x1x32x64xbf16>
    %812 = vector.shape_cast %811 : vector<1x1x32x64xbf16> to vector<32x64xbf16>
    %cst_475 = arith.constant dense<0.000000e+00> : vector<16x64xf32>
    %813 = tpu.matmul %810, %812, %cst_475 {dimension_numbers = #tpu.dot_dimension_numbers<[1], [0], [0], [1], [0, 0, 1, 1], [], []>} : vector<16x32xbf16>, vector<32x64xbf16>, vector<16x64xf32> -> vector<16x64xf32>
    %814 = arith.addf %808, %813 : vector<16x64xf32>
    %c51_476 = arith.constant 51 : index
    %c0_477 = arith.constant 0 : index
    %815 = vector.load %arg9[%c51_476, %c0_477] : memref<70x32xf32, #tpu.memory_space<vmem>>, vector<16x32xf32>
    %816 = arith.truncf %815 : vector<16x32xf32> to vector<16x32xbf16>
    %c9_478 = arith.constant 9 : index
    %c1_479 = arith.constant 1 : index
    %c0_480 = arith.constant 0 : index
    %c0_481 = arith.constant 0 : index
    %817 = vector.load %arg2[%c9_478, %c1_479, %c0_480, %c0_481] : memref<10x3x32x64xbf16, #tpu.memory_space<vmem>>, vector<1x1x32x64xbf16>
    %818 = vector.shape_cast %817 : vector<1x1x32x64xbf16> to vector<32x64xbf16>
    %cst_482 = arith.constant dense<0.000000e+00> : vector<16x64xf32>
    %819 = tpu.matmul %816, %818, %cst_482 {dimension_numbers = #tpu.dot_dimension_numbers<[1], [0], [0], [1], [0, 0, 1, 1], [], []>} : vector<16x32xbf16>, vector<32x64xbf16>, vector<16x64xf32> -> vector<16x64xf32>
    %820 = arith.addf %814, %819 : vector<16x64xf32>
    %c54_483 = arith.constant 54 : index
    %c0_484 = arith.constant 0 : index
    %821 = vector.load %arg9[%c54_483, %c0_484] : memref<70x32xf32, #tpu.memory_space<vmem>>, vector<16x32xf32>
    %822 = arith.truncf %821 : vector<16x32xf32> to vector<16x32xbf16>
    %c9_485 = arith.constant 9 : index
    %c2_486 = arith.constant 2 : index
    %c0_487 = arith.constant 0 : index
    %c0_488 = arith.constant 0 : index
    %823 = vector.load %arg2[%c9_485, %c2_486, %c0_487, %c0_488] : memref<10x3x32x64xbf16, #tpu.memory_space<vmem>>, vector<1x1x32x64xbf16>
    %824 = vector.shape_cast %823 : vector<1x1x32x64xbf16> to vector<32x64xbf16>
    %cst_489 = arith.constant dense<0.000000e+00> : vector<16x64xf32>
    %825 = tpu.matmul %822, %824, %cst_489 {dimension_numbers = #tpu.dot_dimension_numbers<[1], [0], [0], [1], [0, 0, 1, 1], [], []>} : vector<16x32xbf16>, vector<32x64xbf16>, vector<16x64xf32> -> vector<16x64xf32>
    %826 = arith.addf %820, %825 : vector<16x64xf32>
    %c9_490 = arith.constant 9 : index
    %c0_491 = arith.constant 0 : index
    %c0_492 = arith.constant 0 : index
    %827 = vector.load %arg3[%c9_490, %c0_491, %c0_492] : memref<10x1x64xf32, #tpu.memory_space<vmem>>, vector<1x1x64xf32>
    %828 = vector.shape_cast %827 : vector<1x1x64xf32> to vector<1x64xf32>
    %829 = vector.broadcast %828 : vector<1x64xf32> to vector<16x64xf32>
    %830 = arith.addf %826, %829 : vector<16x64xf32>
    %831 = vector.extract_strided_slice %830 {offsets = [0, 0], sizes = [16, 32], strides = [1, 1]} : vector<16x64xf32> to vector<16x32xf32>
    %c9_493 = arith.constant 9 : index
    %c0_494 = arith.constant 0 : index
    %c0_495 = arith.constant 0 : index
    %832 = vector.load %arg4[%c9_493, %c0_494, %c0_495] : memref<10x1x32xf32, #tpu.memory_space<vmem>>, vector<1x1x32xf32>
    %833 = vector.shape_cast %832 : vector<1x1x32xf32> to vector<1x32xf32>
    %c9_496 = arith.constant 9 : index
    %c0_497 = arith.constant 0 : index
    %c0_498 = arith.constant 0 : index
    %834 = vector.load %arg5[%c9_496, %c0_497, %c0_498] : memref<10x1x32xf32, #tpu.memory_space<vmem>>, vector<1x1x32xf32>
    %835 = vector.shape_cast %834 : vector<1x1x32xf32> to vector<1x32xf32>
    %cst_499 = arith.constant dense<0.000000e+00> : vector<16xf32>
    %836 = vector.multi_reduction <add>, %831, %cst_499 [1] : vector<16x32xf32> to vector<16xf32>
    %837 = vector.shape_cast %836 : vector<16xf32> to vector<16x1xf32>
    %cst_500 = arith.constant 3.200000e+01 : f32
    %838 = vector.broadcast %cst_500 : f32 to vector<16x1xf32>
    %839 = arith.divf %837, %838 : vector<16x1xf32>
    %840 = vector.broadcast %839 : vector<16x1xf32> to vector<16x32xf32>
    %841 = arith.subf %831, %840 : vector<16x32xf32>
    %842 = arith.mulf %841, %841 : vector<16x32xf32>
    %cst_501 = arith.constant dense<0.000000e+00> : vector<16xf32>
    %843 = vector.multi_reduction <add>, %842, %cst_501 [1] : vector<16x32xf32> to vector<16xf32>
    %844 = vector.shape_cast %843 : vector<16xf32> to vector<16x1xf32>
    %cst_502 = arith.constant 3.200000e+01 : f32
    %845 = vector.broadcast %cst_502 : f32 to vector<16x1xf32>
    %846 = arith.divf %844, %845 : vector<16x1xf32>
    %847 = vector.broadcast %839 : vector<16x1xf32> to vector<16x32xf32>
    %848 = arith.subf %831, %847 : vector<16x32xf32>
    %cst_503 = arith.constant 9.99999974E-6 : f32
    %849 = vector.broadcast %cst_503 : f32 to vector<16x1xf32>
    %850 = arith.addf %846, %849 : vector<16x1xf32>
    %851 = math.rsqrt %850 : vector<16x1xf32>
    %852 = vector.broadcast %851 : vector<16x1xf32> to vector<16x32xf32>
    %853 = arith.mulf %848, %852 : vector<16x32xf32>
    %854 = vector.broadcast %833 : vector<1x32xf32> to vector<16x32xf32>
    %855 = arith.mulf %853, %854 : vector<16x32xf32>
    %856 = vector.broadcast %835 : vector<1x32xf32> to vector<16x32xf32>
    %857 = arith.addf %855, %856 : vector<16x32xf32>
    %858 = vector.extract_strided_slice %830 {offsets = [0, 32], sizes = [16, 32], strides = [1, 1]} : vector<16x64xf32> to vector<16x32xf32>
    %c9_504 = arith.constant 9 : index
    %c0_505 = arith.constant 0 : index
    %c0_506 = arith.constant 0 : index
    %859 = vector.load %arg6[%c9_504, %c0_505, %c0_506] : memref<10x1x32xf32, #tpu.memory_space<vmem>>, vector<1x1x32xf32>
    %860 = vector.shape_cast %859 : vector<1x1x32xf32> to vector<1x32xf32>
    %c9_507 = arith.constant 9 : index
    %c0_508 = arith.constant 0 : index
    %c0_509 = arith.constant 0 : index
    %861 = vector.load %arg7[%c9_507, %c0_508, %c0_509] : memref<10x1x32xf32, #tpu.memory_space<vmem>>, vector<1x1x32xf32>
    %862 = vector.shape_cast %861 : vector<1x1x32xf32> to vector<1x32xf32>
    %cst_510 = arith.constant dense<0.000000e+00> : vector<16xf32>
    %863 = vector.multi_reduction <add>, %858, %cst_510 [1] : vector<16x32xf32> to vector<16xf32>
    %864 = vector.shape_cast %863 : vector<16xf32> to vector<16x1xf32>
    %cst_511 = arith.constant 3.200000e+01 : f32
    %865 = vector.broadcast %cst_511 : f32 to vector<16x1xf32>
    %866 = arith.divf %864, %865 : vector<16x1xf32>
    %867 = vector.broadcast %866 : vector<16x1xf32> to vector<16x32xf32>
    %868 = arith.subf %858, %867 : vector<16x32xf32>
    %869 = arith.mulf %868, %868 : vector<16x32xf32>
    %cst_512 = arith.constant dense<0.000000e+00> : vector<16xf32>
    %870 = vector.multi_reduction <add>, %869, %cst_512 [1] : vector<16x32xf32> to vector<16xf32>
    %871 = vector.shape_cast %870 : vector<16xf32> to vector<16x1xf32>
    %cst_513 = arith.constant 3.200000e+01 : f32
    %872 = vector.broadcast %cst_513 : f32 to vector<16x1xf32>
    %873 = arith.divf %871, %872 : vector<16x1xf32>
    %874 = vector.broadcast %866 : vector<16x1xf32> to vector<16x32xf32>
    %875 = arith.subf %858, %874 : vector<16x32xf32>
    %cst_514 = arith.constant 9.99999974E-6 : f32
    %876 = vector.broadcast %cst_514 : f32 to vector<16x1xf32>
    %877 = arith.addf %873, %876 : vector<16x1xf32>
    %878 = math.rsqrt %877 : vector<16x1xf32>
    %879 = vector.broadcast %878 : vector<16x1xf32> to vector<16x32xf32>
    %880 = arith.mulf %875, %879 : vector<16x32xf32>
    %881 = vector.broadcast %860 : vector<1x32xf32> to vector<16x32xf32>
    %882 = arith.mulf %880, %881 : vector<16x32xf32>
    %883 = vector.broadcast %862 : vector<1x32xf32> to vector<16x32xf32>
    %884 = arith.addf %882, %883 : vector<16x32xf32>
    %885 = arith.negf %857 : vector<16x32xf32>
    %886 = math.exp %885 : vector<16x32xf32>
    %cst_515 = arith.constant 1.000000e+00 : f32
    %887 = vector.broadcast %cst_515 : f32 to vector<16x32xf32>
    %888 = arith.addf %887, %886 : vector<16x32xf32>
    %889 = arith.divf %887, %888 : vector<16x32xf32>
    %890 = arith.mulf %889, %884 : vector<16x32xf32>
    %cst_516 = arith.constant 1.000000e+00 : f32
    %891 = vector.broadcast %cst_516 : f32 to vector<16x32xf32>
    %892 = arith.subf %891, %889 : vector<16x32xf32>
    %893 = arith.mulf %892, %807 : vector<16x32xf32>
    %894 = arith.addf %890, %893 : vector<16x32xf32>
    %c54_517 = arith.constant 54 : index
    %c0_518 = arith.constant 0 : index
    %895 = vector.load %arg9[%c54_517, %c0_518] : memref<70x32xf32, #tpu.memory_space<vmem>>, vector<16x32xf32>
    tpu.vector_store %arg9[%c54_517, %c0_518], %894 {strides = array<i32>} : memref<70x32xf32, #tpu.memory_space<vmem>>, vector<16x32xf32>,
    %c54_519 = arith.constant 54 : index
    %c0_520 = arith.constant 0 : index
    %896 = vector.load %arg9[%c54_519, %c0_520] : memref<70x32xf32, #tpu.memory_space<vmem>>, vector<16x32xf32>
    %c0_521 = arith.constant 0 : index
    %c0_522 = arith.constant 0 : index
    %c0_523 = arith.constant 0 : index
    %897 = vector.load %arg8[%c0_521, %c0_522, %c0_523] : memref<1x16x32xf32, #tpu.memory_space<vmem>>, vector<1x16x32xf32>
    %898 = vector.shape_cast %897 : vector<1x16x32xf32> to vector<16x32xf32>
    %899 = vector.shape_cast %896 : vector<16x32xf32> to vector<1x16x32xf32>
    tpu.vector_store %arg8[%c0_521, %c0_522, %c0_523], %899 {strides = array<i32>} : memref<1x16x32xf32, #tpu.memory_space<vmem>>, vector<1x16x32xf32>,
    return
  }
  func.func @transform_0(%arg0: i32) -> (i32, i32, i32) {
    %c0_i32 = arith.constant 0 : i32
    %c0_i32_0 = arith.constant 0 : i32
    %c0_i32_1 = arith.constant 0 : i32
    return %arg0, %c0_i32, %c0_i32_0 : i32, i32, i32
  }
  func.func @transform_1(%arg0: i32) -> (i32, i32, i32, i32) {
    %c0_i32 = arith.constant 0 : i32
    %c0_i32_0 = arith.constant 0 : i32
    %c0_i32_1 = arith.constant 0 : i32
    %c0_i32_2 = arith.constant 0 : i32
    %c0_i32_3 = arith.constant 0 : i32
    return %c0_i32, %c0_i32_0, %c0_i32_1, %c0_i32_2 : i32, i32, i32, i32
  }
  func.func @transform_2(%arg0: i32) -> (i32, i32, i32) {
    %c0_i32 = arith.constant 0 : i32
    %c0_i32_0 = arith.constant 0 : i32
    %c0_i32_1 = arith.constant 0 : i32
    %c0_i32_2 = arith.constant 0 : i32
    return %c0_i32, %c0_i32_0, %c0_i32_1 : i32, i32, i32
  }
  func.func @transform_3(%arg0: i32) -> (i32, i32, i32) {
    %c0_i32 = arith.constant 0 : i32
    %c0_i32_0 = arith.constant 0 : i32
    %c0_i32_1 = arith.constant 0 : i32
    %c0_i32_2 = arith.constant 0 : i32
    return %c0_i32, %c0_i32_0, %c0_i32_1 : i32, i32, i32
  }
  func.func @transform_4(%arg0: i32) -> (i32, i32, i32) {
    %c0_i32 = arith.constant 0 : i32
    %c0_i32_0 = arith.constant 0 : i32
    %c0_i32_1 = arith.constant 0 : i32
    %c0_i32_2 = arith.constant 0 : i32
    return %c0_i32, %c0_i32_0, %c0_i32_1 : i32, i32, i32
  }
  func.func @transform_5(%arg0: i32) -> (i32, i32, i32) {
    %c0_i32 = arith.constant 0 : i32
    %c0_i32_0 = arith.constant 0 : i32
    %c0_i32_1 = arith.constant 0 : i32
    %c0_i32_2 = arith.constant 0 : i32
    return %c0_i32, %c0_i32_0, %c0_i32_1 : i32, i32, i32
  }
  func.func @transform_6(%arg0: i32) -> (i32, i32, i32) {
    %c0_i32 = arith.constant 0 : i32
    %c0_i32_0 = arith.constant 0 : i32
    %c0_i32_1 = arith.constant 0 : i32
    %c0_i32_2 = arith.constant 0 : i32
    return %c0_i32, %c0_i32_0, %c0_i32_1 : i32, i32, i32
  }
  func.func @transform_7(%arg0: i32) -> (i32, i32, i32) {
    %c0_i32 = arith.constant 0 : i32
    %c0_i32_0 = arith.constant 0 : i32
    %c0_i32_1 = arith.constant 0 : i32
    return %arg0, %c0_i32, %c0_i32_0 : i32, i32, i32
  }
}

</mosaic_0001>

<llo_original>
// kernel: audio_enc_forward.2
$region0: #{audio_enc_forward.2}
  #allocation0 [shape = 'u32[]', space=smem, size = 0x4, offset = 0x4, fixed_abs, tag = 'smem constant byte address 0x4 - core index']
  #allocation1 [shape = 'u32[144,128]{1,0:T(1,128)}', space=vmem, size = 0x12000, scoped, tag = 'internal scratch']
  %s0 = inlined_call_operand.vmem [shape: f32[32,16], index: 0, kind: input, shape index: {}]
  %s1 = inlined_call_operand.vmem [shape: bf16[16,32], index: 1, kind: input, shape index: {}]
  %s2 = inlined_call_operand.vmem [shape: f32[1,32], index: 2, kind: input, shape index: {}]
  %s3 = inlined_call_operand.vmem [shape: f32[1,32], index: 3, kind: input, shape index: {}]
  %s4 = inlined_call_operand.vmem [shape: f32[1,32], index: 4, kind: input, shape index: {}]
  %s5 = inlined_call_operand.vmem [shape: bf16[32,32], index: 5, kind: input, shape index: {}]
  %s6 = inlined_call_operand.vmem [shape: f32[1,32], index: 6, kind: input, shape index: {}]
  %s7 = inlined_call_operand.vmem [shape: f32[1,32], index: 7, kind: input, shape index: {}]
  %s8 = inlined_call_operand.vmem [shape: f32[1,32], index: 8, kind: input, shape index: {}]
  %s9 = inlined_call_operand.vmem [shape: bf16[32,32], index: 9, kind: input, shape index: {}]
  %s10 = inlined_call_operand.vmem [shape: f32[1,32], index: 10, kind: input, shape index: {}]
  %s11 = inlined_call_operand.vmem [shape: f32[1,32], index: 11, kind: input, shape index: {}]
  %s12 = inlined_call_operand.vmem [shape: f32[1,32], index: 12, kind: input, shape index: {}]
  %s13 = inlined_call_operand.vmem [shape: bf16[32,32], index: 13, kind: output, shape index: {}]
  %s14 = sld [smem:[#allocation0]]
  $region85: #{audio_enc_forward.2} parent=0
    _
  %s16 = ssub.s32 1, %s14
  %s17 = scalar_select 0, %s16, %s14
  loop: start=0, step=1, limit=6
  $region2: #{audio_enc_forward.2} parent=0 // loop_pre_header
    _
  $region3: #{audio_enc_forward.2} parent=0 // loop_header
    %s19 = sphi 0, %s23
    %p20 = scmp.ge.s32.totalorder %s19, 6
    %s29 = sphi 0, %s31
    %s32 = sphi 0, %s29
    %s33 = sphi 0, %s32
    %s49 = sphi 0, %s33
    %s53 = sphi 0, %s53
    %s55 = sphi 0, %s53
    %s56 = sphi 0, %s55
    %s70 = sphi 0, %s56
    %s74 = sphi 0, %s74
    %s76 = sphi 0, %s74
    %s77 = sphi 0, %s76
    %s91 = sphi 0, %s77
    %s95 = sphi 0, %s95
    %s97 = sphi 0, %s95
    %s98 = sphi 0, %s97
    %s112 = sphi 0, %s98
    %s116 = sphi 0, %s116
    %s118 = sphi 0, %s116
    %s119 = sphi 0, %s118
    %s133 = sphi 0, %s119
    %s137 = sphi 0, %s137
    %s139 = sphi 0, %s137
    %s140 = sphi 0, %s139
    %s154 = sphi 0, %s140
    %s158 = sphi 0, %s158
    %s160 = sphi 0, %s158
    %s161 = sphi 0, %s160
    %s175 = sphi 0, %s161
    %s179 = sphi 0, %s179
    %s181 = sphi 0, %s179
    %s182 = sphi 0, %s181
    %s196 = sphi 0, %s182
    %s200 = sphi 0, %s200
    %s202 = sphi 0, %s200
    %s203 = sphi 0, %s202
    %s217 = sphi 0, %s203
    %s221 = sphi 0, %s221
    %s223 = sphi 0, %s221
    %s224 = sphi 0, %s223
    %s238 = sphi 0, %s224
    %s242 = sphi 0, %s242
    %s244 = sphi 0, %s242
    %s245 = sphi 0, %s244
    %s259 = sphi 0, %s245
    %s263 = sphi 0, %s263
    %s265 = sphi 0, %s263
    %s266 = sphi 0, %s265
    %s280 = sphi 0, %s266
    %s284 = sphi 0, %s284
    %s286 = sphi 0, %s284
    %s287 = sphi 0, %s286
    %s301 = sphi 0, %s287
    %s307 = sphi 0, %s309
    %s310 = sphi 0, %s307
    %s311 = sphi 0, %s310
    %s327 = sphi 0, %s311
  $region4: #{audio_enc_forward.2} parent=0 // loop_header_branch
    %22 = sbr.rel (%p20) target = $region8
  $region5: #{audio_enc_forward.2} parent=0 // loop_body
    %s24 = ssub.s32 %s19, 1
    %s25 = ssub.s32 %s19, 2
    %s26 = sadd.s32 %s19, 1
    %s27 = ssub.s32 %s19, %s26
    %p28 = scmp.eq.s32.totalorder %s27, 0
    %s30 = sadd.s32 %s29, 1
    %s31 = scalar_select %p28, %s29, %s30
    %p34 = pneg %p28
    %p35 = scmp.eq.s32.totalorder %s19, 3
    %p36 = por %p34, %p35
    %p37 = scmp.ne.s32.totalorder %s29, %s32
    %p38 = scmp.eq.s32.totalorder %s19, 0
    %p39 = por %p37, %p38
    %p40 = scmp.ne.s32.totalorder %s29, %s32
    %p41 = scmp.eq.s32.totalorder %s24, 3
    %p42 = por %p40, %p41
    %p43 = scmp.ne.s32.totalorder %s32, %s33
    %p44 = scmp.eq.s32.totalorder %s24, 0
    %p45 = por %p43, %p44
    %p46 = scmp.ne.s32.totalorder %s32, %s33
    %p47 = scmp.eq.s32.totalorder %s25, 3
    %p48 = por %p46, %p47
    %p50 = scmp.ne.s32.totalorder %s33, %s49
    %p51 = scmp.eq.s32.totalorder %s25, 0
    %p52 = por %p50, %p51
    %s54 = sadd.s32 %s53, 1
    %p57 = scmp.eq.s32.totalorder %s19, 3
    %p58 = scmp.ne.s32.totalorder %s53, %s55
    %p59 = scmp.eq.s32.totalorder %s19, 0
    %p60 = por %p58, %p59
    %p61 = scmp.ne.s32.totalorder %s53, %s55
    %p62 = scmp.eq.s32.totalorder %s24, 3
    %p63 = por %p61, %p62
    %p64 = scmp.ne.s32.totalorder %s55, %s56
    %p65 = scmp.eq.s32.totalorder %s24, 0
    %p66 = por %p64, %p65
    %p67 = scmp.ne.s32.totalorder %s55, %s56
    %p68 = scmp.eq.s32.totalorder %s25, 3
    %p69 = por %p67, %p68
    %p71 = scmp.ne.s32.totalorder %s56, %s70
    %p72 = scmp.eq.s32.totalorder %s25, 0
    %p73 = por %p71, %p72
    %s75 = sadd.s32 %s74, 1
    %p78 = scmp.eq.s32.totalorder %s19, 3
    %p79 = scmp.ne.s32.totalorder %s74, %s76
    %p80 = scmp.eq.s32.totalorder %s19, 0
    %p81 = por %p79, %p80
    %p82 = scmp.ne.s32.totalorder %s74, %s76
    %p83 = scmp.eq.s32.totalorder %s24, 3
    %p84 = por %p82, %p83
    %p85 = scmp.ne.s32.totalorder %s76, %s77
    %p86 = scmp.eq.s32.totalorder %s24, 0
    %p87 = por %p85, %p86
    %p88 = scmp.ne.s32.totalorder %s76, %s77
    %p89 = scmp.eq.s32.totalorder %s25, 3
    %p90 = por %p88, %p89
    %p92 = scmp.ne.s32.totalorder %s77, %s91
    %p93 = scmp.eq.s32.totalorder %s25, 0
    %p94 = por %p92, %p93
    %s96 = sadd.s32 %s95, 1
    %p99 = scmp.eq.s32.totalorder %s19, 3
    %p100 = scmp.ne.s32.totalorder %s95, %s97
    %p101 = scmp.eq.s32.totalorder %s19, 0
    %p102 = por %p100, %p101
    %p103 = scmp.ne.s32.totalorder %s95, %s97
    %p104 = scmp.eq.s32.totalorder %s24, 3
    %p105 = por %p103, %p104
    %p106 = scmp.ne.s32.totalorder %s97, %s98
    %p107 = scmp.eq.s32.totalorder %s24, 0
    %p108 = por %p106, %p107
    %p109 = scmp.ne.s32.totalorder %s97, %s98
    %p110 = scmp.eq.s32.totalorder %s25, 3
    %p111 = por %p109, %p110
    %p113 = scmp.ne.s32.totalorder %s98, %s112
    %p114 = scmp.eq.s32.totalorder %s25, 0
    %p115 = por %p113, %p114
    %s117 = sadd.s32 %s116, 1
    %p120 = scmp.eq.s32.totalorder %s19, 3
    %p121 = scmp.ne.s32.totalorder %s116, %s118
    %p122 = scmp.eq.s32.totalorder %s19, 0
    %p123 = por %p121, %p122
    %p124 = scmp.ne.s32.totalorder %s116, %s118
    %p125 = scmp.eq.s32.totalorder %s24, 3
    %p126 = por %p124, %p125
    %p127 = scmp.ne.s32.totalorder %s118, %s119
    %p128 = scmp.eq.s32.totalorder %s24, 0
    %p129 = por %p127, %p128
    %p130 = scmp.ne.s32.totalorder %s118, %s119
    %p131 = scmp.eq.s32.totalorder %s25, 3
    %p132 = por %p130, %p131
    %p134 = scmp.ne.s32.totalorder %s119, %s133
    %p135 = scmp.eq.s32.totalorder %s25, 0
    %p136 = por %p134, %p135
    %s138 = sadd.s32 %s137, 1
    %p141 = scmp.eq.s32.totalorder %s19, 3
    %p142 = scmp.ne.s32.totalorder %s137, %s139
    %p143 = scmp.eq.s32.totalorder %s19, 0
    %p144 = por %p142, %p143
    %p145 = scmp.ne.s32.totalorder %s137, %s139
    %p146 = scmp.eq.s32.totalorder %s24, 3
    %p147 = por %p145, %p146
    %p148 = scmp.ne.s32.totalorder %s139, %s140
    %p149 = scmp.eq.s32.totalorder %s24, 0
    %p150 = por %p148, %p149
    %p151 = scmp.ne.s32.totalorder %s139, %s140
    %p152 = scmp.eq.s32.totalorder %s25, 3
    %p153 = por %p151, %p152
    %p155 = scmp.ne.s32.totalorder %s140, %s154
    %p156 = scmp.eq.s32.totalorder %s25, 0
    %p157 = por %p155, %p156
    %s159 = sadd.s32 %s158, 1
    %p162 = scmp.eq.s32.totalorder %s19, 3
    %p163 = scmp.ne.s32.totalorder %s158, %s160
    %p164 = scmp.eq.s32.totalorder %s19, 0
    %p165 = por %p163, %p164
    %p166 = scmp.ne.s32.totalorder %s158, %s160
    %p167 = scmp.eq.s32.totalorder %s24, 3
    %p168 = por %p166, %p167
    %p169 = scmp.ne.s32.totalorder %s160, %s161
    %p170 = scmp.eq.s32.totalorder %s24, 0
    %p171 = por %p169, %p170
    %p172 = scmp.ne.s32.totalorder %s160, %s161
    %p173 = scmp.eq.s32.totalorder %s25, 3
    %p174 = por %p172, %p173
    %p176 = scmp.ne.s32.totalorder %s161, %s175
    %p177 = scmp.eq.s32.totalorder %s25, 0
    %p178 = por %p176, %p177
    %s180 = sadd.s32 %s179, 1
    %p183 = scmp.eq.s32.totalorder %s19, 3
    %p184 = scmp.ne.s32.totalorder %s179, %s181
    %p185 = scmp.eq.s32.totalorder %s19, 0
    %p186 = por %p184, %p185
    %p187 = scmp.ne.s32.totalorder %s179, %s181
    %p188 = scmp.eq.s32.totalorder %s24, 3
    %p189 = por %p187, %p188
    %p190 = scmp.ne.s32.totalorder %s181, %s182
    %p191 = scmp.eq.s32.totalorder %s24, 0
    %p192 = por %p190, %p191
    %p193 = scmp.ne.s32.totalorder %s181, %s182
    %p194 = scmp.eq.s32.totalorder %s25, 3
    %p195 = por %p193, %p194
    %p197 = scmp.ne.s32.totalorder %s182, %s196
    %p198 = scmp.eq.s32.totalorder %s25, 0
    %p199 = por %p197, %p198
    %s201 = sadd.s32 %s200, 1
    %p204 = scmp.eq.s32.totalorder %s19, 3
    %p205 = scmp.ne.s32.totalorder %s200, %s202
    %p206 = scmp.eq.s32.totalorder %s19, 0
    %p207 = por %p205, %p206
    %p208 = scmp.ne.s32.totalorder %s200, %s202
    %p209 = scmp.eq.s32.totalorder %s24, 3
    %p210 = por %p208, %p209
    %p211 = scmp.ne.s32.totalorder %s202, %s203
    %p212 = scmp.eq.s32.totalorder %s24, 0
    %p213 = por %p211, %p212
    %p214 = scmp.ne.s32.totalorder %s202, %s203
    %p215 = scmp.eq.s32.totalorder %s25, 3
    %p216 = por %p214, %p215
    %p218 = scmp.ne.s32.totalorder %s203, %s217
    %p219 = scmp.eq.s32.totalorder %s25, 0
    %p220 = por %p218, %p219
    %s222 = sadd.s32 %s221, 1
    %p225 = scmp.eq.s32.totalorder %s19, 3
    %p226 = scmp.ne.s32.totalorder %s221, %s223
    %p227 = scmp.eq.s32.totalorder %s19, 0
    %p228 = por %p226, %p227
    %p229 = scmp.ne.s32.totalorder %s221, %s223
    %p230 = scmp.eq.s32.totalorder %s24, 3
    %p231 = por %p229, %p230
    %p232 = scmp.ne.s32.totalorder %s223, %s224
    %p233 = scmp.eq.s32.totalorder %s24, 0
    %p234 = por %p232, %p233
    %p235 = scmp.ne.s32.totalorder %s223, %s224
    %p236 = scmp.eq.s32.totalorder %s25, 3
    %p237 = por %p235, %p236
    %p239 = scmp.ne.s32.totalorder %s224, %s238
    %p240 = scmp.eq.s32.totalorder %s25, 0
    %p241 = por %p239, %p240
    %s243 = sadd.s32 %s242, 1
    %p246 = scmp.eq.s32.totalorder %s19, 3
    %p247 = scmp.ne.s32.totalorder %s242, %s244
    %p248 = scmp.eq.s32.totalorder %s19, 0
    %p249 = por %p247, %p248
    %p250 = scmp.ne.s32.totalorder %s242, %s244
    %p251 = scmp.eq.s32.totalorder %s24, 3
    %p252 = por %p250, %p251
    %p253 = scmp.ne.s32.totalorder %s244, %s245
    %p254 = scmp.eq.s32.totalorder %s24, 0
    %p255 = por %p253, %p254
    %p256 = scmp.ne.s32.totalorder %s244, %s245
    %p257 = scmp.eq.s32.totalorder %s25, 3
    %p258 = por %p256, %p257
    %p260 = scmp.ne.s32.totalorder %s245, %s259
    %p261 = scmp.eq.s32.totalorder %s25, 0
    %p262 = por %p260, %p261
    %s264 = sadd.s32 %s263, 1
    %p267 = scmp.eq.s32.totalorder %s19, 3
    %p268 = scmp.ne.s32.totalorder %s263, %s265
    %p269 = scmp.eq.s32.totalorder %s19, 0
    %p270 = por %p268, %p269
    %p271 = scmp.ne.s32.totalorder %s263, %s265
    %p272 = scmp.eq.s32.totalorder %s24, 3
    %p273 = por %p271, %p272
    %p274 = scmp.ne.s32.totalorder %s265, %s266
    %p275 = scmp.eq.s32.totalorder %s24, 0
    %p276 = por %p274, %p275
    %p277 = scmp.ne.s32.totalorder %s265, %s266
    %p278 = scmp.eq.s32.totalorder %s25, 3
    %p279 = por %p277, %p278
    %p281 = scmp.ne.s32.totalorder %s266, %s280
    %p282 = scmp.eq.s32.totalorder %s25, 0
    %p283 = por %p281, %p282
    %s285 = sadd.s32 %s284, 1
    %p288 = scmp.eq.s32.totalorder %s19, 3
    %p289 = scmp.ne.s32.totalorder %s284, %s286
    %p290 = scmp.eq.s32.totalorder %s19, 0
    %p291 = por %p289, %p290
    %p292 = scmp.ne.s32.totalorder %s284, %s286
    %p293 = scmp.eq.s32.totalorder %s24, 3
    %p294 = por %p292, %p293
    %p295 = scmp.ne.s32.totalorder %s286, %s287
    %p296 = scmp.eq.s32.totalorder %s24, 0
    %p297 = por %p295, %p296
    %p298 = scmp.ne.s32.totalorder %s286, %s287
    %p299 = scmp.eq.s32.totalorder %s25, 3
    %p300 = por %p298, %p299
    %p302 = scmp.ne.s32.totalorder %s287, %s301
    %p303 = scmp.eq.s32.totalorder %s25, 0
    %p304 = por %p302, %p303
    %s305 = ssub.s32 %s19, %s26
    %p306 = scmp.eq.s32.totalorder %s305, 0
    %s308 = sadd.s32 %s307, 1
    %s309 = scalar_select %p306, %s307, %s308
    %p312 = pneg %p306
    %p313 = scmp.eq.s32.totalorder %s19, 3
    %p314 = por %p312, %p313
    %p315 = scmp.ne.s32.totalorder %s307, %s310
    %p316 = scmp.eq.s32.totalorder %s19, 0
    %p317 = por %p315, %p316
    %p318 = scmp.ne.s32.totalorder %s307, %s310
    %p319 = scmp.eq.s32.totalorder %s24, 3
    %p320 = por %p318, %p319
    %p321 = scmp.ne.s32.totalorder %s310, %s311
    %p322 = scmp.eq.s32.totalorder %s24, 0
    %p323 = por %p321, %p322
    %p324 = scmp.ne.s32.totalorder %s310, %s311
    %p325 = scmp.eq.s32.totalorder %s25, 3
    %p326 = por %p324, %p325
    %p328 = scmp.ne.s32.totalorder %s311, %s327
    %p329 = scmp.eq.s32.totalorder %s25, 0
    %p330 = por %p328, %p329
    %p331 = scmp.le.s32.totalorder 1, %s19
    %p332 = scmp.lt.s32.totalorder %s19, 5
    %p333 = pnand %p331, %p332
    %p334 = pneg %p333
    // Predicated region
    $region9: #{audio_enc_forward.2} parent=5 // pred_check
      _
    $region10: #{audio_enc_forward.2} parent=5 // pred_check_branch
      %336 = sbr.rel (%p333) target = $region12
    $region11: #{audio_enc_forward.2} parent=5 // pred_region
      %s337 = ssub.s32 %s19, 1
      // Predicated region
      $region13: #{audio_enc_forward.2} parent=11 // pred_check
        %p338 = pneg %p66
      $region14: #{audio_enc_forward.2} parent=11 // pred_check_branch
        %340 = sbr.rel (%p338) target = $region16
      $region15: #{audio_enc_forward.2} parent=11 // pred_region
        _
      $region16: #{audio_enc_forward.2} parent=11 // pred_fallthru
        _
      // Predicated region
      $region17: #{audio_enc_forward.2} parent=11 // pred_check
        %p341 = pneg %p87
      $region18: #{audio_enc_forward.2} parent=11 // pred_check_branch
        %343 = sbr.rel (%p341) target = $region20
      $region19: #{audio_enc_forward.2} parent=11 // pred_region
        _
      $region20: #{audio_enc_forward.2} parent=11 // pred_fallthru
        _
      // Predicated region
      $region21: #{audio_enc_forward.2} parent=11 // pred_check
        %p344 = pneg %p108
      $region22: #{audio_enc_forward.2} parent=11 // pred_check_branch
        %346 = sbr.rel (%p344) target = $region24
      $region23: #{audio_enc_forward.2} parent=11 // pred_region
        _
      $region24: #{audio_enc_forward.2} parent=11 // pred_fallthru
        _
      // Predicated region
      $region25: #{audio_enc_forward.2} parent=11 // pred_check
        %p347 = pneg %p129
      $region26: #{audio_enc_forward.2} parent=11 // pred_check_branch
        %349 = sbr.rel (%p347) target = $region28
      $region27: #{audio_enc_forward.2} parent=11 // pred_region
        _
      $region28: #{audio_enc_forward.2} parent=11 // pred_fallthru
        _
      // Predicated region
      $region29: #{audio_enc_forward.2} parent=11 // pred_check
        %p350 = pneg %p150
      $region30: #{audio_enc_forward.2} parent=11 // pred_check_branch
        %352 = sbr.rel (%p350) target = $region32
      $region31: #{audio_enc_forward.2} parent=11 // pred_region
        _
      $region32: #{audio_enc_forward.2} parent=11 // pred_fallthru
        _
      // Predicated region
      $region33: #{audio_enc_forward.2} parent=11 // pred_check
        %p353 = pneg %p171
      $region34: #{audio_enc_forward.2} parent=11 // pred_check_branch
        %355 = sbr.rel (%p353) target = $region36
      $region35: #{audio_enc_forward.2} parent=11 // pred_region
        _
      $region36: #{audio_enc_forward.2} parent=11 // pred_fallthru
        _
      // Predicated region
      $region37: #{audio_enc_forward.2} parent=11 // pred_check
        %p356 = pneg %p192
      $region38: #{audio_enc_forward.2} parent=11 // pred_check_branch
        %358 = sbr.rel (%p356) target = $region40
      $region39: #{audio_enc_forward.2} parent=11 // pred_region
        _
      $region40: #{audio_enc_forward.2} parent=11 // pred_fallthru
        _
      // Predicated region
      $region41: #{audio_enc_forward.2} parent=11 // pred_check
        %p359 = pneg %p213
      $region42: #{audio_enc_forward.2} parent=11 // pred_check_branch
        %361 = sbr.rel (%p359) target = $region44
      $region43: #{audio_enc_forward.2} parent=11 // pred_region
        _
      $region44: #{audio_enc_forward.2} parent=11 // pred_fallthru
        _
      // Predicated region
      $region45: #{audio_enc_forward.2} parent=11 // pred_check
        %p362 = pneg %p234
      $region46: #{audio_enc_forward.2} parent=11 // pred_check_branch
        %364 = sbr.rel (%p362) target = $region48
      $region47: #{audio_enc_forward.2} parent=11 // pred_region
        _
      $region48: #{audio_enc_forward.2} parent=11 // pred_fallthru
        _
      // Predicated region
      $region49: #{audio_enc_forward.2} parent=11 // pred_check
        %p365 = pneg %p255
      $region50: #{audio_enc_forward.2} parent=11 // pred_check_branch
        %367 = sbr.rel (%p365) target = $region52
      $region51: #{audio_enc_forward.2} parent=11 // pred_region
        _
      $region52: #{audio_enc_forward.2} parent=11 // pred_fallthru
        _
      // Predicated region
      $region53: #{audio_enc_forward.2} parent=11 // pred_check
        %p368 = pneg %p276
      $region54: #{audio_enc_forward.2} parent=11 // pred_check_branch
        %370 = sbr.rel (%p368) target = $region56
      $region55: #{audio_enc_forward.2} parent=11 // pred_region
        _
      $region56: #{audio_enc_forward.2} parent=11 // pred_fallthru
        _
      // Predicated region
      $region57: #{audio_enc_forward.2} parent=11 // pred_check
        %p371 = pneg %p297
      $region58: #{audio_enc_forward.2} parent=11 // pred_check_branch
        %373 = sbr.rel (%p371) target = $region60
      $region59: #{audio_enc_forward.2} parent=11 // pred_region
        _
      $region60: #{audio_enc_forward.2} parent=11 // pred_fallthru
        _
    $region12: #{audio_enc_forward.2} parent=5 // pred_fallthru
      _
    %p374 = scmp.lt.s32.totalorder %s19, 4
    // Predicated region
    $region61: #{audio_enc_forward.2} parent=5 // pred_check
      %p375 = pneg %p374
    $region62: #{audio_enc_forward.2} parent=5 // pred_check_branch
      %377 = sbr.rel (%p375) target = $region64
    $region63: #{audio_enc_forward.2} parent=5 // pred_region
      // Predicated region
      $region65: #{audio_enc_forward.2} parent=63 // pred_check
        %p378 = pneg %p39
      $region66: #{audio_enc_forward.2} parent=63 // pred_check_branch
        %380 = sbr.rel (%p378) target = $region68
      $region67: #{audio_enc_forward.2} parent=63 // pred_region
        %p381 = scmp.lt.s32.totalorder %s19, 3
        %s382 = scalar_select %p381, %s19, 3
        %s383 = smul.addr %s382, 8
        %s384 = scalar_lea.vmem %s0, %s383
      $region68: #{audio_enc_forward.2} parent=63 // pred_fallthru
        _
    $region64: #{audio_enc_forward.2} parent=5 // pred_fallthru
      _
    %p385 = scmp.le.s32.totalorder 1, %s19
    %p386 = scmp.lt.s32.totalorder %s19, 5
    %p387 = pnand %p385, %p386
    %p388 = pneg %p387
    // Predicated region
    $region69: #{audio_enc_forward.2} parent=5 // pred_check
      _
    $region70: #{audio_enc_forward.2} parent=5 // pred_check_branch
      %390 = sbr.rel (%p387) target = $region72
    $region71: #{audio_enc_forward.2} parent=5 // pred_region
      %s391 = ssub.s32 %s19, 1
      %p392 = scmp.lt.s32.totalorder %s24, 3
      %s393 = scalar_select %p392, %s24, 3
      %s394 = smul.addr %s393, 8
      %s395 = scalar_lea.vmem %s0, %s394
      %p396 = pneg %p45
      %p397 = pneg %p42
      %p398 = pneg %p66
      %p399 = pneg %p63
      %p400 = pneg %p87
      %p401 = pneg %p84
      %p402 = pneg %p108
      %p403 = pneg %p105
      %p404 = pneg %p129
      %p405 = pneg %p126
      %p406 = pneg %p150
      %p407 = pneg %p147
      %p408 = pneg %p171
      %p409 = pneg %p168
      %p410 = pneg %p192
      %p411 = pneg %p189
      %p412 = pneg %p213
      %p413 = pneg %p210
      %p414 = pneg %p234
      %p415 = pneg %p231
      %p416 = pneg %p255
      %p417 = pneg %p252
      %p418 = pneg %p276
      %p419 = pneg %p273
      %p420 = pneg %p297
      %p421 = pneg %p294
      %p422 = pneg %p323
      %p423 = pneg %p320
      %p424 = scmp.lt.s32.totalorder %s24, 3
      %s425 = scalar_select %p424, %s24, 3
      %s426 = smul.addr %s425, 4
      %s427 = scalar_lea.vmem %s13, %s426
      %p428 = scmp.lt.s32.totalorder %s24, 3
      %s429 = scalar_select %p428, %s24, 3
      %s430 = smul.addr %s429, 8
      %s431 = scalar_lea.vmem %s0, %s430
      %p432 = scmp.lt.s32.totalorder %s24, 3
      %s433 = scalar_select %p432, %s24, 3
      %s434 = smul.addr %s433, 4
      %s435 = scalar_lea.vmem %s13, %s434
      %v437 = vld [vmem:[%s431] sm:$0xff]
      %v438 = vpack.c.bf16 %v437, %v437
      %v439 = vld [vmem:[%s1] sm:$0xf]
      %v440 = vld [vmem:[%s1 + $0x4] sm:$0xf]
      %v441 = vld [vmem:[%s2] sm:$0x1]
      %v443 = vlaneseq
      %v444 = vshrl.u32 %v443, 7
      %v445 = vsub.s32 0, %v444
      %v446 = vrot.slane %v441, %v445
      %v450 = vunpack.c.l.b16 %v439
      %v451 = vunpack.c.l.b16 %v440
      %v452 = vpack.c.b16 %v451, %v450
      %vm454 = vcmask 130048
      %v456 = vsel %vm454, %v438, 0
      %458 = vmatprep.subr.bf16.mxu0 0
      %459 = vmatpush1.bf16.msra.mxu0 %v452
      %460 = vmatprep.subr.bf16.mxu0 0
      %461 = vmatpush1.bf16.msra.mxu0 0
      %462 = vmatprep.subr.bf16.mxu0 0
      %463 = vmatpush1.bf16.msra.mxu0 0
      %464 = vmatprep.subr.bf16.mxu0 0
      %465 = vmatpush1.bf16.msra.mxu0 0
      %466 = vmatprep.subr.bf16.mxu0 0
      %467 = vmatpush1.bf16.msra.mxu0 0
      %468 = vmatprep.subr.bf16.mxu0 0
      %469 = vmatpush1.bf16.msra.mxu0 0
      %470 = vmatprep.subr.bf16.mxu0 0
      %471 = vmatpush1.bf16.msra.mxu0 0
      %472 = vmatprep.subr.bf16.mxu0 0
      %473 = vmatpush1.bf16.msra.mxu0 0
      %474 = vmatprep.subr.bf16.mxu0 0
      %475 = vmatpush1.bf16.msra.mxu0 0
      %476 = vmatprep.subr.bf16.mxu0 0
      %477 = vmatpush1.bf16.msra.mxu0 0
      %478 = vmatprep.subr.bf16.mxu0 0
      %479 = vmatpush1.bf16.msra.mxu0 0
      %480 = vmatprep.subr.bf16.mxu0 0
      %481 = vmatpush1.bf16.msra.mxu0 0
      %482 = vmatprep.subr.bf16.mxu0 0
      %483 = vmatpush1.bf16.msra.mxu0 0
      %484 = vmatprep.subr.bf16.mxu0 0
      %485 = vmatpush1.bf16.msra.mxu0 0
      %486 = vmatprep.subr.bf16.mxu0 0
      %487 = vmatpush1.bf16.msra.mxu0 0
      %488 = vmatprep.subr.bf16.mxu0 0
      %489 = vmatpush1.bf16.msra.mxu0 0
      %490 = vmatprep.mubr.bf16.mxu0 0
      %491 = vmatmul.mubr.bf16.gmra.mrb[0].mxu0 %v456
      %v492 = vpop.f32.mrb[0].mxu0
      %v493 = vadd.f32 %v446, %v492
      %v494 = vpop.f32.mrb[0].mxu0
      %v495 = vpop.f32.mrb[0].mxu0
      %v496 = vpop.f32.mrb[0].mxu0
      %497 = vdwg.mxu0
      %v498 = vld [vmem:[%s3] sm:$0x1]
      %v499 = vld [vmem:[%s4] sm:$0x1]
      %vm500 = vcmask 261120
      %v501 = vsel %vm500, %v493, 0.0
      %502 = vadd.xlane.f32.xlu0 %v501
      %v503 = vpop.xlane.xlu0 %502
      %v504 = vrcp.pop 32.0
      %v505 = vmul.f32 %v503, %v504
      %v506 = vsub.f32 %v493, %v505
      %v507 = vmul.f32 %v506, %v506
      %v508 = vsel %vm500, %v507, 0.0
      %509 = vadd.xlane.f32.xlu0 %v508
      %v510 = vpop.xlane.xlu0 %509
      %v511 = vmul.f32 %v510, %v504
      %v512 = vadd.f32 %v511, 1e-05
      %v513 = vrsqrt.pop %v512
      %v514 = vmul.f32 %v506, %v513
      %v516 = vlaneseq
      %v517 = vshrl.u32 %v516, 7
      %v518 = vsub.s32 0, %v517
      %v519 = vrot.slane %v498, %v518
      %v521 = vmul.f32 %v514, %v519
      %v523 = vlaneseq
      %v524 = vshrl.u32 %v523, 7
      %v525 = vsub.s32 0, %v524
      %v526 = vrot.slane %v499, %v525
      %v528 = vadd.f32 %v521, %v526
      %v529 = vmax.f32 %v528, 0.0
      %v530 = vpack.c.bf16 %v529, %v529
      %v531 = vld [vmem:[%s5] sm:$0xf]
      %v532 = vld [vmem:[%s5 + $0x4] sm:$0xf]
      %v533 = vld [vmem:[%s5 + $0x8] sm:$0xf]
      %v534 = vld [vmem:[%s5 + $0xc] sm:$0xf]
      %v535 = vld [vmem:[%s6] sm:$0x1]
      %v537 = vlaneseq
      %v538 = vshrl.u32 %v537, 7
      %v539 = vsub.s32 0, %v538
      %v540 = vrot.slane %v535, %v539
      %v546 = vunpack.c.l.b16 %v531
      %v547 = vunpack.c.l.b16 %v532
      %v548 = vunpack.c.l.b16 %v533
      %v549 = vunpack.c.l.b16 %v534
      %v550 = vpack.c.b16 %v547, %v546
      %v551 = vpack.c.b16 %v549, %v548
      %v555 = vsel %vm500, %v530, 0
      %557 = vmatprep.subr.bf16.mxu0 0
      %558 = vmatpush1.bf16.msra.mxu0 %v550
      %559 = vmatprep.subr.bf16.mxu0 0
      %560 = vmatpush1.bf16.msra.mxu0 %v551
      %561 = vmatprep.subr.bf16.mxu0 0
      %562 = vmatpush1.bf16.msra.mxu0 0
      %563 = vmatprep.subr.bf16.mxu0 0
      %564 = vmatpush1.bf16.msra.mxu0 0
      %565 = vmatprep.subr.bf16.mxu0 0
      %566 = vmatpush1.bf16.msra.mxu0 0
      %567 = vmatprep.subr.bf16.mxu0 0
      %568 = vmatpush1.bf16.msra.mxu0 0
      %569 = vmatprep.subr.bf16.mxu0 0
      %570 = vmatpush1.bf16.msra.mxu0 0
      %571 = vmatprep.subr.bf16.mxu0 0
      %572 = vmatpush1.bf16.msra.mxu0 0
      %573 = vmatprep.subr.bf16.mxu0 0
      %574 = vmatpush1.bf16.msra.mxu0 0
      %575 = vmatprep.subr.bf16.mxu0 0
      %576 = vmatpush1.bf16.msra.mxu0 0
      %577 = vmatprep.subr.bf16.mxu0 0
      %578 = vmatpush1.bf16.msra.mxu0 0
      %579 = vmatprep.subr.bf16.mxu0 0
      %580 = vmatpush1.bf16.msra.mxu0 0
      %581 = vmatprep.subr.bf16.mxu0 0
      %582 = vmatpush1.bf16.msra.mxu0 0
      %583 = vmatprep.subr.bf16.mxu0 0
      %584 = vmatpush1.bf16.msra.mxu0 0
      %585 = vmatprep.subr.bf16.mxu0 0
      %586 = vmatpush1.bf16.msra.mxu0 0
      %587 = vmatprep.subr.bf16.mxu0 0
      %588 = vmatpush1.bf16.msra.mxu0 0
      %589 = vmatprep.mubr.bf16.mxu0 0
      %590 = vmatmul.mubr.bf16.gmra.mrb[0].mxu0 %v555
      %v591 = vpop.f32.mrb[0].mxu0
      %v592 = vadd.f32 %v540, %v591
      %v593 = vpop.f32.mrb[0].mxu0
      %v594 = vpop.f32.mrb[0].mxu0
      %v595 = vpop.f32.mrb[0].mxu0
      %596 = vdwg.mxu0
      %v597 = vld [vmem:[%s7] sm:$0x1]
      %v598 = vld [vmem:[%s8] sm:$0x1]
      %v599 = vsel %vm500, %v592, 0.0
      %600 = vadd.xlane.f32.xlu0 %v599
      %v601 = vpop.xlane.xlu0 %600
      %v602 = vmul.f32 %v601, %v504
      %v603 = vsub.f32 %v592, %v602
      %v604 = vmul.f32 %v603, %v603
      %v605 = vsel %vm500, %v604, 0.0
      %606 = vadd.xlane.f32.xlu0 %v605
      %v607 = vpop.xlane.xlu0 %606
      %v608 = vmul.f32 %v607, %v504
      %v609 = vadd.f32 %v608, 1e-05
      %v610 = vrsqrt.pop %v609
      %v611 = vmul.f32 %v603, %v610
      %v613 = vlaneseq
      %v614 = vshrl.u32 %v613, 7
      %v615 = vsub.s32 0, %v614
      %v616 = vrot.slane %v597, %v615
      %v618 = vmul.f32 %v611, %v616
      %v620 = vlaneseq
      %v621 = vshrl.u32 %v620, 7
      %v622 = vsub.s32 0, %v621
      %v623 = vrot.slane %v598, %v622
      %v625 = vadd.f32 %v618, %v623
      %v626 = vmax.f32 %v625, 0.0
      %v627 = vpack.c.bf16 %v626, %v626
      %v628 = vld [vmem:[%s9] sm:$0xf]
      %v629 = vld [vmem:[%s9 + $0x4] sm:$0xf]
      %v630 = vld [vmem:[%s9 + $0x8] sm:$0xf]
      %v631 = vld [vmem:[%s9 + $0xc] sm:$0xf]
      %v632 = vld [vmem:[%s10] sm:$0x1]
      %v634 = vlaneseq
      %v635 = vshrl.u32 %v634, 7
      %v636 = vsub.s32 0, %v635
      %v637 = vrot.slane %v632, %v636
      %v643 = vunpack.c.l.b16 %v628
      %v644 = vunpack.c.l.b16 %v629
      %v645 = vunpack.c.l.b16 %v630
      %v646 = vunpack.c.l.b16 %v631
      %v647 = vpack.c.b16 %v644, %v643
      %v648 = vpack.c.b16 %v646, %v645
      %v652 = vsel %vm500, %v627, 0
      %654 = vmatprep.subr.bf16.mxu0 0
      %655 = vmatpush1.bf16.msra.mxu0 %v647
      %656 = vmatprep.subr.bf16.mxu0 0
      %657 = vmatpush1.bf16.msra.mxu0 %v648
      %658 = vmatprep.subr.bf16.mxu0 0
      %659 = vmatpush1.bf16.msra.mxu0 0
      %660 = vmatprep.subr.bf16.mxu0 0
      %661 = vmatpush1.bf16.msra.mxu0 0
      %662 = vmatprep.subr.bf16.mxu0 0
      %663 = vmatpush1.bf16.msra.mxu0 0
      %664 = vmatprep.subr.bf16.mxu0 0
      %665 = vmatpush1.bf16.msra.mxu0 0
      %666 = vmatprep.subr.bf16.mxu0 0
      %667 = vmatpush1.bf16.msra.mxu0 0
      %668 = vmatprep.subr.bf16.mxu0 0
      %669 = vmatpush1.bf16.msra.mxu0 0
      %670 = vmatprep.subr.bf16.mxu0 0
      %671 = vmatpush1.bf16.msra.mxu0 0
      %672 = vmatprep.subr.bf16.mxu0 0
      %673 = vmatpush1.bf16.msra.mxu0 0
      %674 = vmatprep.subr.bf16.mxu0 0
      %675 = vmatpush1.bf16.msra.mxu0 0
      %676 = vmatprep.subr.bf16.mxu0 0
      %677 = vmatpush1.bf16.msra.mxu0 0
      %678 = vmatprep.subr.bf16.mxu0 0
      %679 = vmatpush1.bf16.msra.mxu0 0
      %680 = vmatprep.subr.bf16.mxu0 0
      %681 = vmatpush1.bf16.msra.mxu0 0
      %682 = vmatprep.subr.bf16.mxu0 0
      %683 = vmatpush1.bf16.msra.mxu0 0
      %684 = vmatprep.subr.bf16.mxu0 0
      %685 = vmatpush1.bf16.msra.mxu0 0
      %686 = vmatprep.mubr.bf16.mxu0 0
      %687 = vmatmul.mubr.bf16.gmra.mrb[0].mxu0 %v652
      %v688 = vpop.f32.mrb[0].mxu0
      %v689 = vadd.f32 %v637, %v688
      %v690 = vpop.f32.mrb[0].mxu0
      %v691 = vpop.f32.mrb[0].mxu0
      %v692 = vpop.f32.mrb[0].mxu0
      %693 = vdwg.mxu0
      %v694 = vld [vmem:[%s11] sm:$0x1]
      %v695 = vld [vmem:[%s12] sm:$0x1]
      %v696 = vsel %vm500, %v689, 0.0
      %697 = vadd.xlane.f32.xlu0 %v696
      %v698 = vpop.xlane.xlu0 %697
      %v699 = vmul.f32 %v698, %v504
      %v700 = vsub.f32 %v689, %v699
      %v701 = vmul.f32 %v700, %v700
      %v702 = vsel %vm500, %v701, 0.0
      %703 = vadd.xlane.f32.xlu0 %v702
      %v704 = vpop.xlane.xlu0 %703
      %v705 = vmul.f32 %v704, %v504
      %v706 = vadd.f32 %v705, 1e-05
      %v707 = vrsqrt.pop %v706
      %v708 = vmul.f32 %v700, %v707
      %v710 = vlaneseq
      %v711 = vshrl.u32 %v710, 7
      %v712 = vsub.s32 0, %v711
      %v713 = vrot.slane %v694, %v712
      %v715 = vmul.f32 %v708, %v713
      %v717 = vlaneseq
      %v718 = vshrl.u32 %v717, 7
      %v719 = vsub.s32 0, %v718
      %v720 = vrot.slane %v695, %v719
      %v722 = vadd.f32 %v715, %v720
      %v723 = vpack.c.bf16 %v722, %v722
      %vm724 = vcmask 257024
      %725 = vst.msk [vmem:[%s435] sm:$0xf] %vm724, %v723
      %p726 = scmp.lt.s32.totalorder %s24, 3
      %s727 = scalar_select %p726, %s24, 3
      %s728 = smul.addr %s727, 4
      %s729 = scalar_lea.vmem %s13, %s728
      // Predicated region
      $region73: #{audio_enc_forward.2} parent=71 // pred_check
        %p730 = pneg %p320
      $region74: #{audio_enc_forward.2} parent=71 // pred_check_branch
        %732 = sbr.rel (%p730) target = $region76
      $region75: #{audio_enc_forward.2} parent=71 // pred_region
        _
      $region76: #{audio_enc_forward.2} parent=71 // pred_fallthru
        _
    $region72: #{audio_enc_forward.2} parent=5 // pred_fallthru
      _
    %p733 = scmp.le.s32.totalorder 2, %s19
    // Predicated region
    $region77: #{audio_enc_forward.2} parent=5 // pred_check
      %p734 = pneg %p733
    $region78: #{audio_enc_forward.2} parent=5 // pred_check_branch
      %736 = sbr.rel (%p734) target = $region80
    $region79: #{audio_enc_forward.2} parent=5 // pred_region
      %s737 = ssub.s32 %s19, 2
      // Predicated region
      $region81: #{audio_enc_forward.2} parent=79 // pred_check
        %p738 = pneg %p326
      $region82: #{audio_enc_forward.2} parent=79 // pred_check_branch
        %740 = sbr.rel (%p738) target = $region84
      $region83: #{audio_enc_forward.2} parent=79 // pred_region
        %p741 = scmp.lt.s32.totalorder %s25, 3
        %s742 = scalar_select %p741, %s25, 3
        %s743 = smul.addr %s742, 4
        %s744 = scalar_lea.vmem %s13, %s743
      $region84: #{audio_enc_forward.2} parent=79 // pred_fallthru
        _
    $region80: #{audio_enc_forward.2} parent=5 // pred_fallthru
      _
  $region6: #{audio_enc_forward.2} parent=0 // loop_footer
    %s23 = sadd.s32 1, %s19
  $region7: #{audio_enc_forward.2} parent=0 // loop_footer_branch
    %18 = sbr.rel target = $region3
  $region8: #{audio_enc_forward.2} parent=0 // loop_exit
    _

// kernel: audio_enc_forward.3
$region0: #{audio_enc_forward.3}
  #allocation0 [shape = 'u32[]', space=smem, size = 0x4, offset = 0x4, fixed_abs, tag = 'smem constant byte address 0x4 - core index']
  #allocation1 [shape = 'u32[144,128]{1,0:T(1,128)}', space=vmem, size = 0x12000, scoped, tag = 'internal scratch']
  #allocation2 [shape = 'f32[70,32]{1,0:T(8,128)}', space=vmem, size = 0x9000, scoped, tag = 'scratch operand']
  %s0 = inlined_call_operand.vmem [shape: bf16[2,16,32], index: 0, kind: input, shape index: {}]
  %s1 = inlined_call_operand.hbm [shape: bf16[10,3,32,64], index: 1, kind: input, shape index: {}]
  %s2 = inlined_call_operand.vmem [shape: f32[10,1,64], index: 2, kind: input, shape index: {}]
  %s3 = inlined_call_operand.vmem [shape: f32[10,1,32], index: 3, kind: input, shape index: {}]
  %s4 = inlined_call_operand.vmem [shape: f32[10,1,32], index: 4, kind: input, shape index: {}]
  %s5 = inlined_call_operand.vmem [shape: f32[10,1,32], index: 5, kind: input, shape index: {}]
  %s6 = inlined_call_operand.vmem [shape: f32[10,1,32], index: 6, kind: input, shape index: {}]
  %s7 = inlined_call_operand.hbm [shape: f32[2,16,32], index: 7, kind: output, shape index: {}]
  %s8 = sld [smem:[#allocation0]]
  $region65: #{audio_enc_forward.3} parent=0
    _
  %s10 = ssub.s32 1, %s8
  %s11 = scalar_select 0, %s10, %s8
  $region1: #{audio_enc_forward.3} parent=0
    #allocation3 [shape = 'u8[245760]{0}', space=vmem, size = 0x3c000, scoped, tag = 'input window, operand 1, single buffered']
    #allocation4 [shape = 's32[2]{0}', space=sflag, size = 0x8, scoped, tag = 'scoped memory for audio_enc_forward.3']
    #allocation5 [shape = 's32[2]{0}', space=sflag, size = 0x8, scoped, tag = 'scoped memory for audio_enc_forward.3']
    #allocation6 [shape = 'u8[16384]{0}', space=vmem, size = 0x4000, scoped, tag = 'output window, operand 0']
    %12 = vsyncpa [#allocation4], 0
    %13 = vsyncpa [#allocation5], 0
    %s14 = scalar_lea.sflag [#allocation5], 1
    %15 = vsyncpa %s14, 0
    loop: start=0, step=1, limit=4
    $region2: #{audio_enc_forward.3} parent=1 // loop_pre_header
      _
    $region3: #{audio_enc_forward.3} parent=1 // loop_header
      %s17 = sphi 0, %s21
      %p18 = scmp.ge.s32.totalorder %s17, 4
      %s27 = sphi 0, %s29
      %s30 = sphi 0, %s27
      %s31 = sphi 0, %s30
      %s47 = sphi 0, %s31
      %s51 = sphi 0, %s51
      %s53 = sphi 0, %s51
      %s54 = sphi 0, %s53
      %s68 = sphi 0, %s54
      %s72 = sphi 0, %s72
      %s74 = sphi 0, %s72
      %s75 = sphi 0, %s74
      %s89 = sphi 0, %s75
      %s93 = sphi 0, %s93
      %s95 = sphi 0, %s93
      %s96 = sphi 0, %s95
      %s110 = sphi 0, %s96
      %s114 = sphi 0, %s114
      %s116 = sphi 0, %s114
      %s117 = sphi 0, %s116
      %s131 = sphi 0, %s117
      %s135 = sphi 0, %s135
      %s137 = sphi 0, %s135
      %s138 = sphi 0, %s137
      %s152 = sphi 0, %s138
      %s156 = sphi 0, %s156
      %s158 = sphi 0, %s156
      %s159 = sphi 0, %s158
      %s173 = sphi 0, %s159
      %s179 = sphi 0, %s181
      %s182 = sphi 0, %s179
      %s183 = sphi 0, %s182
      %s199 = sphi 0, %s183
    $region4: #{audio_enc_forward.3} parent=1 // loop_header_branch
      %20 = sbr.rel (%p18) target = $region8
    $region5: #{audio_enc_forward.3} parent=1 // loop_body
      %s22 = ssub.s32 %s17, 1
      %s23 = ssub.s32 %s17, 2
      %s24 = sadd.s32 %s17, 1
      %s25 = ssub.s32 %s17, %s24
      %p26 = scmp.eq.s32.totalorder %s25, 0
      %s28 = sadd.s32 %s27, 1
      %s29 = scalar_select %p26, %s27, %s28
      %p32 = pneg %p26
      %p33 = scmp.eq.s32.totalorder %s17, 1
      %p34 = por %p32, %p33
      %p35 = scmp.ne.s32.totalorder %s27, %s30
      %p36 = scmp.eq.s32.totalorder %s17, 0
      %p37 = por %p35, %p36
      %p38 = scmp.ne.s32.totalorder %s27, %s30
      %p39 = scmp.eq.s32.totalorder %s22, 1
      %p40 = por %p38, %p39
      %p41 = scmp.ne.s32.totalorder %s30, %s31
      %p42 = scmp.eq.s32.totalorder %s22, 0
      %p43 = por %p41, %p42
      %p44 = scmp.ne.s32.totalorder %s30, %s31
      %p45 = scmp.eq.s32.totalorder %s23, 1
      %p46 = por %p44, %p45
      %p48 = scmp.ne.s32.totalorder %s31, %s47
      %p49 = scmp.eq.s32.totalorder %s23, 0
      %p50 = por %p48, %p49
      %s52 = sadd.s32 %s51, 1
      %p55 = scmp.eq.s32.totalorder %s17, 1
      %p56 = scmp.ne.s32.totalorder %s51, %s53
      %p57 = scmp.eq.s32.totalorder %s17, 0
      %p58 = por %p56, %p57
      %p59 = scmp.ne.s32.totalorder %s51, %s53
      %p60 = scmp.eq.s32.totalorder %s22, 1
      %p61 = por %p59, %p60
      %p62 = scmp.ne.s32.totalorder %s53, %s54
      %p63 = scmp.eq.s32.totalorder %s22, 0
      %p64 = por %p62, %p63
      %p65 = scmp.ne.s32.totalorder %s53, %s54
      %p66 = scmp.eq.s32.totalorder %s23, 1
      %p67 = por %p65, %p66
      %p69 = scmp.ne.s32.totalorder %s54, %s68
      %p70 = scmp.eq.s32.totalorder %s23, 0
      %p71 = por %p69, %p70
      %s73 = sadd.s32 %s72, 1
      %p76 = scmp.eq.s32.totalorder %s17, 1
      %p77 = scmp.ne.s32.totalorder %s72, %s74
      %p78 = scmp.eq.s32.totalorder %s17, 0
      %p79 = por %p77, %p78
      %p80 = scmp.ne.s32.totalorder %s72, %s74
      %p81 = scmp.eq.s32.totalorder %s22, 1
      %p82 = por %p80, %p81
      %p83 = scmp.ne.s32.totalorder %s74, %s75
      %p84 = scmp.eq.s32.totalorder %s22, 0
      %p85 = por %p83, %p84
      %p86 = scmp.ne.s32.totalorder %s74, %s75
      %p87 = scmp.eq.s32.totalorder %s23, 1
      %p88 = por %p86, %p87
      %p90 = scmp.ne.s32.totalorder %s75, %s89
      %p91 = scmp.eq.s32.totalorder %s23, 0
      %p92 = por %p90, %p91
      %s94 = sadd.s32 %s93, 1
      %p97 = scmp.eq.s32.totalorder %s17, 1
      %p98 = scmp.ne.s32.totalorder %s93, %s95
      %p99 = scmp.eq.s32.totalorder %s17, 0
      %p100 = por %p98, %p99
      %p101 = scmp.ne.s32.totalorder %s93, %s95
      %p102 = scmp.eq.s32.totalorder %s22, 1
      %p103 = por %p101, %p102
      %p104 = scmp.ne.s32.totalorder %s95, %s96
      %p105 = scmp.eq.s32.totalorder %s22, 0
      %p106 = por %p104, %p105
      %p107 = scmp.ne.s32.totalorder %s95, %s96
      %p108 = scmp.eq.s32.totalorder %s23, 1
      %p109 = por %p107, %p108
      %p111 = scmp.ne.s32.totalorder %s96, %s110
      %p112 = scmp.eq.s32.totalorder %s23, 0
      %p113 = por %p111, %p112
      %s115 = sadd.s32 %s114, 1
      %p118 = scmp.eq.s32.totalorder %s17, 1
      %p119 = scmp.ne.s32.totalorder %s114, %s116
      %p120 = scmp.eq.s32.totalorder %s17, 0
      %p121 = por %p119, %p120
      %p122 = scmp.ne.s32.totalorder %s114, %s116
      %p123 = scmp.eq.s32.totalorder %s22, 1
      %p124 = por %p122, %p123
      %p125 = scmp.ne.s32.totalorder %s116, %s117
      %p126 = scmp.eq.s32.totalorder %s22, 0
      %p127 = por %p125, %p126
      %p128 = scmp.ne.s32.totalorder %s116, %s117
      %p129 = scmp.eq.s32.totalorder %s23, 1
      %p130 = por %p128, %p129
      %p132 = scmp.ne.s32.totalorder %s117, %s131
      %p133 = scmp.eq.s32.totalorder %s23, 0
      %p134 = por %p132, %p133
      %s136 = sadd.s32 %s135, 1
      %p139 = scmp.eq.s32.totalorder %s17, 1
      %p140 = scmp.ne.s32.totalorder %s135, %s137
      %p141 = scmp.eq.s32.totalorder %s17, 0
      %p142 = por %p140, %p141
      %p143 = scmp.ne.s32.totalorder %s135, %s137
      %p144 = scmp.eq.s32.totalorder %s22, 1
      %p145 = por %p143, %p144
      %p146 = scmp.ne.s32.totalorder %s137, %s138
      %p147 = scmp.eq.s32.totalorder %s22, 0
      %p148 = por %p146, %p147
      %p149 = scmp.ne.s32.totalorder %s137, %s138
      %p150 = scmp.eq.s32.totalorder %s23, 1
      %p151 = por %p149, %p150
      %p153 = scmp.ne.s32.totalorder %s138, %s152
      %p154 = scmp.eq.s32.totalorder %s23, 0
      %p155 = por %p153, %p154
      %s157 = sadd.s32 %s156, 1
      %p160 = scmp.eq.s32.totalorder %s17, 1
      %p161 = scmp.ne.s32.totalorder %s156, %s158
      %p162 = scmp.eq.s32.totalorder %s17, 0
      %p163 = por %p161, %p162
      %p164 = scmp.ne.s32.totalorder %s156, %s158
      %p165 = scmp.eq.s32.totalorder %s22, 1
      %p166 = por %p164, %p165
      %p167 = scmp.ne.s32.totalorder %s158, %s159
      %p168 = scmp.eq.s32.totalorder %s22, 0
      %p169 = por %p167, %p168
      %p170 = scmp.ne.s32.totalorder %s158, %s159
      %p171 = scmp.eq.s32.totalorder %s23, 1
      %p172 = por %p170, %p171
      %p174 = scmp.ne.s32.totalorder %s159, %s173
      %p175 = scmp.eq.s32.totalorder %s23, 0
      %p176 = por %p174, %p175
      %s177 = ssub.s32 %s17, %s24
      %p178 = scmp.eq.s32.totalorder %s177, 0
      %s180 = sadd.s32 %s179, 1
      %s181 = scalar_select %p178, %s179, %s180
      %p184 = pneg %p178
      %p185 = scmp.eq.s32.totalorder %s17, 1
      %p186 = por %p184, %p185
      %p187 = scmp.ne.s32.totalorder %s179, %s182
      %p188 = scmp.eq.s32.totalorder %s17, 0
      %p189 = por %p187, %p188
      %p190 = scmp.ne.s32.totalorder %s179, %s182
      %p191 = scmp.eq.s32.totalorder %s22, 1
      %p192 = por %p190, %p191
      %p193 = scmp.ne.s32.totalorder %s182, %s183
      %p194 = scmp.eq.s32.totalorder %s22, 0
      %p195 = por %p193, %p194
      %p196 = scmp.ne.s32.totalorder %s182, %s183
      %p197 = scmp.eq.s32.totalorder %s23, 1
      %p198 = por %p196, %p197
      %p200 = scmp.ne.s32.totalorder %s183, %s199
      %p201 = scmp.eq.s32.totalorder %s23, 0
      %p202 = por %p200, %p201
      %p203 = scmp.le.s32.totalorder 1, %s17
      %p204 = scmp.lt.s32.totalorder %s17, 3
      %p205 = pnand %p203, %p204
      %p206 = pneg %p205
      // Predicated region
      $region9: #{audio_enc_forward.3} parent=5 // pred_check
        _
      $region10: #{audio_enc_forward.3} parent=5 // pred_check_branch
        %208 = sbr.rel (%p205) target = $region12
      $region11: #{audio_enc_forward.3} parent=5 // pred_region
        %s209 = ssub.s32 %s17, 1
        // Predicated region
        $region13: #{audio_enc_forward.3} parent=11 // pred_check
          %p210 = pneg %p64
        $region14: #{audio_enc_forward.3} parent=11 // pred_check_branch
          %212 = sbr.rel (%p210) target = $region16
        $region15: #{audio_enc_forward.3} parent=11 // pred_region
          %s214 = ssub.s32 7680, 7680
          %215 = vsyncadd [#allocation4], %s214
          %s216 = sshll.u32 [#allocation3], 4
          %s217 = int_to_ptr.vmem [resolvable:$true] %s216
          %222 = dma.hbm_to_vmem [thread:$0]  %s1, 7680, %s217, [#allocation4], 64, 64, 4
        $region16: #{audio_enc_forward.3} parent=11 // pred_fallthru
          _
        // Predicated region
        $region17: #{audio_enc_forward.3} parent=11 // pred_check
          %p223 = pneg %p85
        $region18: #{audio_enc_forward.3} parent=11 // pred_check_branch
          %225 = sbr.rel (%p223) target = $region20
        $region19: #{audio_enc_forward.3} parent=11 // pred_region
          _
        $region20: #{audio_enc_forward.3} parent=11 // pred_fallthru
          _
        // Predicated region
        $region21: #{audio_enc_forward.3} parent=11 // pred_check
          %p226 = pneg %p106
        $region22: #{audio_enc_forward.3} parent=11 // pred_check_branch
          %228 = sbr.rel (%p226) target = $region24
        $region23: #{audio_enc_forward.3} parent=11 // pred_region
          _
        $region24: #{audio_enc_forward.3} parent=11 // pred_fallthru
          _
        // Predicated region
        $region25: #{audio_enc_forward.3} parent=11 // pred_check
          %p229 = pneg %p127
        $region26: #{audio_enc_forward.3} parent=11 // pred_check_branch
          %231 = sbr.rel (%p229) target = $region28
        $region27: #{audio_enc_forward.3} parent=11 // pred_region
          _
        $region28: #{audio_enc_forward.3} parent=11 // pred_fallthru
          _
        // Predicated region
        $region29: #{audio_enc_forward.3} parent=11 // pred_check
          %p232 = pneg %p148
        $region30: #{audio_enc_forward.3} parent=11 // pred_check_branch
          %234 = sbr.rel (%p232) target = $region32
        $region31: #{audio_enc_forward.3} parent=11 // pred_region
          _
        $region32: #{audio_enc_forward.3} parent=11 // pred_fallthru
          _
        // Predicated region
        $region33: #{audio_enc_forward.3} parent=11 // pred_check
          %p235 = pneg %p169
        $region34: #{audio_enc_forward.3} parent=11 // pred_check_branch
          %237 = sbr.rel (%p235) target = $region36
        $region35: #{audio_enc_forward.3} parent=11 // pred_region
          _
        $region36: #{audio_enc_forward.3} parent=11 // pred_fallthru
          _
      $region12: #{audio_enc_forward.3} parent=5 // pred_fallthru
        _
      %p238 = scmp.lt.s32.totalorder %s17, 2
      // Predicated region
      $region37: #{audio_enc_forward.3} parent=5 // pred_check
        %p239 = pneg %p238
      $region38: #{audio_enc_forward.3} parent=5 // pred_check_branch
        %241 = sbr.rel (%p239) target = $region40
      $region39: #{audio_enc_forward.3} parent=5 // pred_region
        // Predicated region
        $region41: #{audio_enc_forward.3} parent=39 // pred_check
          %p242 = pneg %p37
        $region42: #{audio_enc_forward.3} parent=39 // pred_check_branch
          %244 = sbr.rel (%p242) target = $region44
        $region43: #{audio_enc_forward.3} parent=39 // pred_region
          %p245 = scmp.lt.s32.totalorder %s17, 1
          %s246 = scalar_select %p245, %s17, 1
          %s247 = smul.addr %s246, 2
          %s248 = smul.addr %s247, 4
          %s249 = scalar_lea.vmem %s0, %s248
        $region44: #{audio_enc_forward.3} parent=39 // pred_fallthru
          _
      $region40: #{audio_enc_forward.3} parent=5 // pred_fallthru
        _
      %p250 = scmp.le.s32.totalorder 1, %s17
      %p251 = scmp.lt.s32.totalorder %s17, 3
      %p252 = pnand %p250, %p251
      %p253 = pneg %p252
      // Predicated region
      $region45: #{audio_enc_forward.3} parent=5 // pred_check
        _
      $region46: #{audio_enc_forward.3} parent=5 // pred_check_branch
        %255 = sbr.rel (%p252) target = $region48
      $region47: #{audio_enc_forward.3} parent=5 // pred_region
        %s256 = ssub.s32 %s17, 1
        // Predicated region
        $region49: #{audio_enc_forward.3} parent=47 // pred_check
          %p257 = pneg %p64
        $region50: #{audio_enc_forward.3} parent=47 // pred_check_branch
          %259 = sbr.rel (%p257) target = $region52
        $region51: #{audio_enc_forward.3} parent=47 // pred_region
          %260 = dma.done [#allocation4], 7680
        $region52: #{audio_enc_forward.3} parent=47 // pred_fallthru
          _
        %p261 = scmp.lt.s32.totalorder %s22, 1
        %s262 = scalar_select %p261, %s22, 1
        %s263 = smul.addr %s262, 2
        %s264 = smul.addr %s263, 4
        %s265 = scalar_lea.vmem %s0, %s264
        %p266 = pneg %p43
        %p267 = pneg %p40
        %p268 = pneg %p64
        %p269 = pneg %p61
        %p270 = pneg %p85
        %p271 = pneg %p82
        %p272 = pneg %p106
        %p273 = pneg %p103
        %p274 = pneg %p127
        %p275 = pneg %p124
        %p276 = pneg %p148
        %p277 = pneg %p145
        %p278 = pneg %p169
        %p279 = pneg %p166
        %p280 = pneg %p195
        %p281 = pneg %p192
        %s282 = sand.u32 %s182, 1
        %s283 = scalar_lea.sflag [#allocation5], %s282
        %s284 = sand.u32 %s182, 1
        %s285 = smul.addr %s284, 16
        %s286 = scalar_lea.vmem [#allocation6], %s285
        %p287 = scmp.lt.s32.totalorder %s22, 1
        %s288 = scalar_select %p287, %s22, 1
        %s289 = smul.addr %s288, 2
        %s290 = smul.addr %s289, 4
        %s291 = scalar_lea.vmem %s0, %s290
        %vm293 = vcmask 261120
        %294 = vst.msk [vmem:[#allocation2] sm:$0xff] %vm293, 0.0
        %295 = vst.msk [vmem:[#allocation2 + $0x8] sm:$0xff] %vm293, 0.0
        %296 = vst.msk [vmem:[#allocation2 + $0x10] sm:$0xff] %vm293, 0.0
        %297 = vst.msk [vmem:[#allocation2 + $0x18] sm:$0xff] %vm293, 0.0
        %298 = vst.msk [vmem:[#allocation2 + $0x20] sm:$0xff] %vm293, 0.0
        %299 = vst.msk [vmem:[#allocation2 + $0x28] sm:$0xff] %vm293, 0.0
        %vm300 = vcmask 259072
        %301 = vst.msk [vmem:[#allocation2 + $0x30] sm:$0x3f] %vm300, 0.0
        %v302 = vld [vmem:[%s291] sm:$0xf]
        %v303 = vld [vmem:[%s291 + $0x4] sm:$0xf]
        %v304 = vunpack.c.l.bf16 %v302
        %v305 = vunpack.c.l.bf16 %v303
        %306 = vst.msk [vmem:[#allocation2 + $0x36] sm:$0xff] %vm293, %v304
        %307 = vst.msk [vmem:[#allocation2 + $0x3e] sm:$0xff] %vm293, %v305
        %v308 = vld [vmem:[#allocation2 + $0x36] sm:$0xff]
        %v309 = vld [vmem:[#allocation2 + $0x3e] sm:$0xff]
        %v310 = vld [vmem:[#allocation2 + $0x34] sm:$0xff]
        %v311 = vld [vmem:[#allocation2 + $0x3c] sm:$0xff]
        %v312 = vpack.c.bf16 %v311, %v310
        %v313 = vld [vmem:[#allocation3] sm:$0xf]
        %v314 = vld [vmem:[#allocation3 + $0x4] sm:$0xf]
        %v315 = vld [vmem:[#allocation3 + $0x8] sm:$0xf]
        %v316 = vld [vmem:[#allocation3 + $0xc] sm:$0xf]
        %v317 = vld [vmem:[#allocation2 + $0x35] sm:$0xff]
        %v318 = vld [vmem:[#allocation2 + $0x3d] sm:$0xff]
        %v319 = vpack.c.bf16 %v318, %v317
        %s320 = scalar_lea.vmem [#allocation3], 16
        %v321 = vld [vmem:[%s320] sm:$0xf]
        %v322 = vld [vmem:[%s320 + $0x4] sm:$0xf]
        %v323 = vld [vmem:[%s320 + $0x8] sm:$0xf]
        %v324 = vld [vmem:[%s320 + $0xc] sm:$0xf]
        %v329 = vunpack.c.l.b16 %v321
        %v330 = vunpack.c.l.b16 %v322
        %v331 = vunpack.c.l.b16 %v323
        %v332 = vunpack.c.l.b16 %v324
        %v333 = vpack.c.b16 %v330, %v329
        %v334 = vpack.c.b16 %v332, %v331
        %v338 = vsel %vm293, %v319, 0
        %340 = vmatprep.subr.bf16.mxu0 0
        %341 = vmatpush1.bf16.msra.mxu0 %v333
        %342 = vmatprep.subr.bf16.mxu0 0
        %343 = vmatpush1.bf16.msra.mxu0 %v334
        %344 = vmatprep.subr.bf16.mxu0 0
        %345 = vmatpush1.bf16.msra.mxu0 0
        %346 = vmatprep.subr.bf16.mxu0 0
        %347 = vmatpush1.bf16.msra.mxu0 0
        %348 = vmatprep.subr.bf16.mxu0 0
        %349 = vmatpush1.bf16.msra.mxu0 0
        %350 = vmatprep.subr.bf16.mxu0 0
        %351 = vmatpush1.bf16.msra.mxu0 0
        %352 = vmatprep.subr.bf16.mxu0 0
        %353 = vmatpush1.bf16.msra.mxu0 0
        %354 = vmatprep.subr.bf16.mxu0 0
        %355 = vmatpush1.bf16.msra.mxu0 0
        %356 = vmatprep.subr.bf16.mxu0 0
        %357 = vmatpush1.bf16.msra.mxu0 0
        %358 = vmatprep.subr.bf16.mxu0 0
        %359 = vmatpush1.bf16.msra.mxu0 0
        %360 = vmatprep.subr.bf16.mxu0 0
        %361 = vmatpush1.bf16.msra.mxu0 0
        %362 = vmatprep.subr.bf16.mxu0 0
        %363 = vmatpush1.bf16.msra.mxu0 0
        %364 = vmatprep.subr.bf16.mxu0 0
        %365 = vmatpush1.bf16.msra.mxu0 0
        %366 = vmatprep.subr.bf16.mxu0 0
        %367 = vmatpush1.bf16.msra.mxu0 0
        %368 = vmatprep.subr.bf16.mxu0 0
        %369 = vmatpush1.bf16.msra.mxu0 0
        %370 = vmatprep.subr.bf16.mxu0 0
        %371 = vmatpush1.bf16.msra.mxu0 0
        %372 = vmatprep.mubr.bf16.mxu0 0
        %373 = vmatmul.mubr.bf16.gmra.mrb[0].mxu0 %v338
        %v374 = vpop.f32.mrb[0].mxu0
        %v375 = vadd.f32 0.0, %v374
        %v376 = vpop.f32.mrb[0].mxu0
        %v377 = vpop.f32.mrb[0].mxu0
        %v378 = vadd.f32 0.0, %v377
        %v379 = vpop.f32.mrb[0].mxu0
        %380 = vdwg.mxu0
        %v385 = vunpack.c.l.b16 %v313
        %v386 = vunpack.c.l.b16 %v314
        %v387 = vunpack.c.l.b16 %v315
        %v388 = vunpack.c.l.b16 %v316
        %v389 = vpack.c.b16 %v386, %v385
        %v390 = vpack.c.b16 %v388, %v387
        %v394 = vsel %vm293, %v312, 0
        %396 = vmatprep.subr.bf16.mxu0 0
        %397 = vmatpush1.bf16.msra.mxu0 %v389
        %398 = vmatprep.subr.bf16.mxu0 0
        %399 = vmatpush1.bf16.msra.mxu0 %v390
        %400 = vmatprep.subr.bf16.mxu0 0
        %401 = vmatpush1.bf16.msra.mxu0 0
        %402 = vmatprep.subr.bf16.mxu0 0
        %403 = vmatpush1.bf16.msra.mxu0 0
        %404 = vmatprep.subr.bf16.mxu0 0
        %405 = vmatpush1.bf16.msra.mxu0 0
        %406 = vmatprep.subr.bf16.mxu0 0
        %407 = vmatpush1.bf16.msra.mxu0 0
        %408 = vmatprep.subr.bf16.mxu0 0
        %409 = vmatpush1.bf16.msra.mxu0 0
        %410 = vmatprep.subr.bf16.mxu0 0
        %411 = vmatpush1.bf16.msra.mxu0 0
        %412 = vmatprep.subr.bf16.mxu0 0
        %413 = vmatpush1.bf16.msra.mxu0 0
        %414 = vmatprep.subr.bf16.mxu0 0
        %415 = vmatpush1.bf16.msra.mxu0 0
        %416 = vmatprep.subr.bf16.mxu0 0
        %417 = vmatpush1.bf16.msra.mxu0 0
        %418 = vmatprep.subr.bf16.mxu0 0
        %419 = vmatpush1.bf16.msra.mxu0 0
        %420 = vmatprep.subr.bf16.mxu0 0
        %421 = vmatpush1.bf16.msra.mxu0 0
        %422 = vmatprep.subr.bf16.mxu0 0
        %423 = vmatpush1.bf16.msra.mxu0 0
        %424 = vmatprep.subr.bf16.mxu0 0
        %425 = vmatpush1.bf16.msra.mxu0 0
        %426 = vmatprep.subr.bf16.mxu0 0
        %427 = vmatpush1.bf16.msra.mxu0 0
        %428 = vmatprep.mubr.bf16.mxu0 0
        %429 = vmatmul.mubr.bf16.gmra.mrb[0].mxu0 %v394
        %v430 = vpop.f32.mrb[0].mxu0
        %v431 = vadd.f32 %v375, %v430
        %v432 = vpop.f32.mrb[0].mxu0
        %v433 = vpop.f32.mrb[0].mxu0
        %v434 = vadd.f32 %v378, %v433
        %v435 = vpop.f32.mrb[0].mxu0
        %436 = vdwg.mxu0
        %v437 = vpack.c.bf16 %v309, %v308
        %s438 = scalar_lea.vmem [#allocation3], 32
        %v439 = vld [vmem:[%s438] sm:$0xf]
        %v440 = vld [vmem:[%s438 + $0x4] sm:$0xf]
        %v441 = vld [vmem:[%s438 + $0x8] sm:$0xf]
        %v442 = vld [vmem:[%s438 + $0xc] sm:$0xf]
        %v447 = vunpack.c.l.b16 %v439
        %v448 = vunpack.c.l.b16 %v440
        %v449 = vunpack.c.l.b16 %v441
        %v450 = vunpack.c.l.b16 %v442
        %v451 = vpack.c.b16 %v448, %v447
        %v452 = vpack.c.b16 %v450, %v449
        %v456 = vsel %vm293, %v437, 0
        %458 = vmatprep.subr.bf16.mxu0 0
        %459 = vmatpush1.bf16.msra.mxu0 %v451
        %460 = vmatprep.subr.bf16.mxu0 0
        %461 = vmatpush1.bf16.msra.mxu0 %v452
        %462 = vmatprep.subr.bf16.mxu0 0
        %463 = vmatpush1.bf16.msra.mxu0 0
        %464 = vmatprep.subr.bf16.mxu0 0
        %465 = vmatpush1.bf16.msra.mxu0 0
        %466 = vmatprep.subr.bf16.mxu0 0
        %467 = vmatpush1.bf16.msra.mxu0 0
        %468 = vmatprep.subr.bf16.mxu0 0
        %469 = vmatpush1.bf16.msra.mxu0 0
        %470 = vmatprep.subr.bf16.mxu0 0
        %471 = vmatpush1.bf16.msra.mxu0 0
        %472 = vmatprep.subr.bf16.mxu0 0
        %473 = vmatpush1.bf16.msra.mxu0 0
        %474 = vmatprep.subr.bf16.mxu0 0
        %475 = vmatpush1.bf16.msra.mxu0 0
        %476 = vmatprep.subr.bf16.mxu0 0
        %477 = vmatpush1.bf16.msra.mxu0 0
        %478 = vmatprep.subr.bf16.mxu0 0
        %479 = vmatpush1.bf16.msra.mxu0 0
        %480 = vmatprep.subr.bf16.mxu0 0
        %481 = vmatpush1.bf16.msra.mxu0 0
        %482 = vmatprep.subr.bf16.mxu0 0
        %483 = vmatpush1.bf16.msra.mxu0 0
        %484 = vmatprep.subr.bf16.mxu0 0
        %485 = vmatpush1.bf16.msra.mxu0 0
        %486 = vmatprep.subr.bf16.mxu0 0
        %487 = vmatpush1.bf16.msra.mxu0 0
        %488 = vmatprep.subr.bf16.mxu0 0
        %489 = vmatpush1.bf16.msra.mxu0 0
        %490 = vmatprep.mubr.bf16.mxu0 0
        %491 = vmatmul.mubr.bf16.gmra.mrb[0].mxu0 %v456
        %v492 = vpop.f32.mrb[0].mxu0
        %v493 = vadd.f32 0.0, %v492
        %v494 = vpop.f32.mrb[0].mxu0
        %v495 = vpop.f32.mrb[0].mxu0
        %v496 = vadd.f32 0.0, %v495
        %v497 = vpop.f32.mrb[0].mxu0
        %498 = vdwg.mxu0
        %v499 = vadd.f32 %v431, %v493
        %v500 = vadd.f32 %v434, %v496
        %v501 = vld [vmem:[%s2] sm:$0x1]
        %v503 = vlaneseq
        %v504 = vshrl.u32 %v503, 7
        %v505 = vsub.s32 0, %v504
        %v506 = vrot.slane %v501, %v505
        %v508 = vadd.f32 %v499, %v506
        %v509 = vadd.f32 %v500, %v506
        %v510 = vld [vmem:[%s3] sm:$0x1]
        %v511 = vld [vmem:[%s4] sm:$0x1]
        %v512 = vsel %vm293, %v508, 0.0
        %513 = vadd.xlane.f32.xlu0 %v512
        %v514 = vpop.xlane.xlu0 %513
        %v515 = vsel %vm293, %v509, 0.0
        %516 = vadd.xlane.f32.xlu0 %v515
        %v517 = vpop.xlane.xlu0 %516
        %v518 = vrcp.pop 32.0
        %v519 = vmul.f32 %v514, %v518
        %v520 = vmul.f32 %v517, %v518
        %v521 = vsub.f32 %v508, %v519
        %v522 = vsub.f32 %v509, %v520
        %v523 = vmul.f32 %v521, %v521
        %v524 = vmul.f32 %v522, %v522
        %v525 = vsel %vm293, %v523, 0.0
        %526 = vadd.xlane.f32.xlu0 %v525
        %v527 = vpop.xlane.xlu0 %526
        %v528 = vsel %vm293, %v524, 0.0
        %529 = vadd.xlane.f32.xlu0 %v528
        %v530 = vpop.xlane.xlu0 %529
        %v531 = vmul.f32 %v527, %v518
        %v532 = vmul.f32 %v530, %v518
        %v533 = vadd.f32 %v531, 1e-05
        %v534 = vadd.f32 %v532, 1e-05
        %v535 = vrsqrt.pop %v533
        %v536 = vrsqrt.pop %v534
        %v537 = vmul.f32 %v521, %v535
        %v538 = vmul.f32 %v522, %v536
        %v540 = vlaneseq
        %v541 = vshrl.u32 %v540, 7
        %v542 = vsub.s32 0, %v541
        %v543 = vrot.slane %v510, %v542
        %v545 = vmul.f32 %v537, %v543
        %v546 = vmul.f32 %v538, %v543
        %v548 = vlaneseq
        %v549 = vshrl.u32 %v548, 7
        %v550 = vsub.s32 0, %v549
        %v551 = vrot.slane %v511, %v550
        %v553 = vadd.f32 %v545, %v551
        %v554 = vadd.f32 %v546, %v551
        %v555 = vld [vmem:[%s5] sm:$0x1]
        %v556 = vld [vmem:[%s6] sm:$0x1]
        %559 = vrot.lane.b32.xlu0 %v508, 96
        %v560 = vpop.permute.xlu0 %559
        %561 = vrot.lane.b32.xlu0 %v509, 96
        %v562 = vpop.permute.xlu0 %561
        %v565 = vsel %vm293, %v560, 0.0
        %566 = vadd.xlane.f32.xlu0 %v565
        %v567 = vpop.xlane.xlu0 %566
        %v568 = vsel %vm293, %v562, 0.0
        %569 = vadd.xlane.f32.xlu0 %v568
        %v570 = vpop.xlane.xlu0 %569
        %v571 = vmul.f32 %v567, %v518
        %v572 = vmul.f32 %v570, %v518
        %v573 = vsub.f32 %v508, %v571
        %v574 = vsub.f32 %v509, %v572
        %v575 = vmul.f32 %v573, %v573
        %v576 = vmul.f32 %v574, %v574
        %579 = vrot.lane.b32.xlu0 %v575, 96
        %v580 = vpop.permute.xlu0 %579
        %581 = vrot.lane.b32.xlu0 %v576, 96
        %v582 = vpop.permute.xlu0 %581
        %v585 = vsel %vm293, %v580, 0.0
        %586 = vadd.xlane.f32.xlu0 %v585
        %v587 = vpop.xlane.xlu0 %586
        %v588 = vsel %vm293, %v582, 0.0
        %589 = vadd.xlane.f32.xlu0 %v588
        %v590 = vpop.xlane.xlu0 %589
        %v591 = vmul.f32 %v587, %v518
        %v592 = vmul.f32 %v590, %v518
        %v593 = vadd.f32 %v591, 1e-05
        %v594 = vadd.f32 %v592, 1e-05
        %v595 = vrsqrt.pop %v593
        %v596 = vrsqrt.pop %v594
        %v597 = vmul.f32 %v573, %v595
        %v598 = vmul.f32 %v574, %v596
        %v600 = vlaneseq
        %v601 = vshrl.u32 %v600, 7
        %v602 = vsub.s32 0, %v601
        %v603 = vrot.slane %v555, %v602
        %604 = vrot.lane.b32.xlu0 %v603, 32
        %v605 = vpop.permute.xlu0 %604
        %v607 = vmul.f32 %v597, %v605
        %v608 = vmul.f32 %v598, %v605
        %v610 = vlaneseq
        %v611 = vshrl.u32 %v610, 7
        %v612 = vsub.s32 0, %v611
        %v613 = vrot.slane %v556, %v612
        %614 = vrot.lane.b32.xlu0 %v613, 32
        %v615 = vpop.permute.xlu0 %614
        %v617 = vadd.f32 %v607, %v615
        %v618 = vadd.f32 %v608, %v615
        %v619 = vxor.u32 %v553, 2147483648
        %v620 = vxor.u32 %v554, 2147483648
        %v621 = vmul.f32 %v619, 1.442695
        %v622 = vpow.pop %v621
        %v623 = vmul.f32 %v620, 1.442695
        %v624 = vpow.pop %v623
        %v625 = vadd.f32 %v622, 1.0
        %v626 = vadd.f32 %v624, 1.0
        %v627 = vrcp.pop %v625
        %v628 = vmul.f32 1.0, %v627
        %v629 = vrcp.pop %v626
        %v630 = vmul.f32 1.0, %v629
        %633 = vrot.lane.b32.xlu0 %v617, 96
        %v634 = vpop.permute.xlu0 %633
        %635 = vrot.lane.b32.xlu0 %v618, 96
        %v636 = vpop.permute.xlu0 %635
        %v639 = vmul.f32 %v628, %v634
        %v640 = vmul.f32 %v630, %v636
        %v641 = vsub.f32 1.0, %v628
        %v642 = vsub.f32 1.0, %v630
        %v643 = vmul.f32 %v641, %v308
        %v644 = vmul.f32 %v642, %v309
        %v645 = vadd.f32 %v639, %v643
        %v646 = vadd.f32 %v640, %v644
        %647 = vst.msk [vmem:[#allocation2 + $0x36] sm:$0xff] %vm293, %v645
        %648 = vst.msk [vmem:[#allocation2 + $0x3e] sm:$0xff] %vm293, %v646
        %v649 = vld [vmem:[#allocation2 + $0x36] sm:$0xff]
        %v650 = vld [vmem:[#allocation2 + $0x3e] sm:$0xff]
        %v651 = vld [vmem:[#allocation2 + $0x30] sm:$0xff]
        %v652 = vld [vmem:[#allocation2 + $0x38] sm:$0xff]
        %v653 = vpack.c.bf16 %v652, %v651
        %s654 = scalar_lea.vmem [#allocation3], 48
        %v655 = vld [vmem:[%s654] sm:$0xf]
        %v656 = vld [vmem:[%s654 + $0x4] sm:$0xf]
        %v657 = vld [vmem:[%s654 + $0x8] sm:$0xf]
        %v658 = vld [vmem:[%s654 + $0xc] sm:$0xf]
        %v659 = vld [vmem:[#allocation2 + $0x33] sm:$0xff]
        %v660 = vld [vmem:[#allocation2 + $0x3b] sm:$0xff]
        %v661 = vpack.c.bf16 %v660, %v659
        %s662 = scalar_lea.vmem [#allocation3], 64
        %v663 = vld [vmem:[%s662] sm:$0xf]
        %v664 = vld [vmem:[%s662 + $0x4] sm:$0xf]
        %v665 = vld [vmem:[%s662 + $0x8] sm:$0xf]
        %v666 = vld [vmem:[%s662 + $0xc] sm:$0xf]
        %v671 = vunpack.c.l.b16 %v663
        %v672 = vunpack.c.l.b16 %v664
        %v673 = vunpack.c.l.b16 %v665
        %v674 = vunpack.c.l.b16 %v666
        %v675 = vpack.c.b16 %v672, %v671
        %v676 = vpack.c.b16 %v674, %v673
        %v680 = vsel %vm293, %v661, 0
        %682 = vmatprep.subr.bf16.mxu0 0
        %683 = vmatpush1.bf16.msra.mxu0 %v675
        %684 = vmatprep.subr.bf16.mxu0 0
        %685 = vmatpush1.bf16.msra.mxu0 %v676
        %686 = vmatprep.subr.bf16.mxu0 0
        %687 = vmatpush1.bf16.msra.mxu0 0
        %688 = vmatprep.subr.bf16.mxu0 0
        %689 = vmatpush1.bf16.msra.mxu0 0
        %690 = vmatprep.subr.bf16.mxu0 0
        %691 = vmatpush1.bf16.msra.mxu0 0
        %692 = vmatprep.subr.bf16.mxu0 0
        %693 = vmatpush1.bf16.msra.mxu0 0
        %694 = vmatprep.subr.bf16.mxu0 0
        %695 = vmatpush1.bf16.msra.mxu0 0
        %696 = vmatprep.subr.bf16.mxu0 0
        %697 = vmatpush1.bf16.msra.mxu0 0
        %698 = vmatprep.subr.bf16.mxu0 0
        %699 = vmatpush1.bf16.msra.mxu0 0
        %700 = vmatprep.subr.bf16.mxu0 0
        %701 = vmatpush1.bf16.msra.mxu0 0
        %702 = vmatprep.subr.bf16.mxu0 0
        %703 = vmatpush1.bf16.msra.mxu0 0
        %704 = vmatprep.subr.bf16.mxu0 0
        %705 = vmatpush1.bf16.msra.mxu0 0
        %706 = vmatprep.subr.bf16.mxu0 0
        %707 = vmatpush1.bf16.msra.mxu0 0
        %708 = vmatprep.subr.bf16.mxu0 0
        %709 = vmatpush1.bf16.msra.mxu0 0
        %710 = vmatprep.subr.bf16.mxu0 0
        %711 = vmatpush1.bf16.msra.mxu0 0
        %712 = vmatprep.subr.bf16.mxu0 0
        %713 = vmatpush1.bf16.msra.mxu0 0
        %714 = vmatprep.mubr.bf16.mxu0 0
        %715 = vmatmul.mubr.bf16.gmra.mrb[0].mxu0 %v680
        %v716 = vpop.f32.mrb[0].mxu0
        %v717 = vadd.f32 0.0, %v716
        %v718 = vpop.f32.mrb[0].mxu0
        %v719 = vpop.f32.mrb[0].mxu0
        %v720 = vadd.f32 0.0, %v719
        %v721 = vpop.f32.mrb[0].mxu0
        %722 = vdwg.mxu0
        %v727 = vunpack.c.l.b16 %v655
        %v728 = vunpack.c.l.b16 %v656
        %v729 = vunpack.c.l.b16 %v657
        %v730 = vunpack.c.l.b16 %v658
        %v731 = vpack.c.b16 %v728, %v727
        %v732 = vpack.c.b16 %v730, %v729
        %v736 = vsel %vm293, %v653, 0
        %738 = vmatprep.subr.bf16.mxu0 0
        %739 = vmatpush1.bf16.msra.mxu0 %v731
        %740 = vmatprep.subr.bf16.mxu0 0
        %741 = vmatpush1.bf16.msra.mxu0 %v732
        %742 = vmatprep.subr.bf16.mxu0 0
        %743 = vmatpush1.bf16.msra.mxu0 0
        %744 = vmatprep.subr.bf16.mxu0 0
        %745 = vmatpush1.bf16.msra.mxu0 0
        %746 = vmatprep.subr.bf16.mxu0 0
        %747 = vmatpush1.bf16.msra.mxu0 0
        %748 = vmatprep.subr.bf16.mxu0 0
        %749 = vmatpush1.bf16.msra.mxu0 0
        %750 = vmatprep.subr.bf16.mxu0 0
        %751 = vmatpush1.bf16.msra.mxu0 0
        %752 = vmatprep.subr.bf16.mxu0 0
        %753 = vmatpush1.bf16.msra.mxu0 0
        %754 = vmatprep.subr.bf16.mxu0 0
        %755 = vmatpush1.bf16.msra.mxu0 0
        %756 = vmatprep.subr.bf16.mxu0 0
        %757 = vmatpush1.bf16.msra.mxu0 0
        %758 = vmatprep.subr.bf16.mxu0 0
        %759 = vmatpush1.bf16.msra.mxu0 0
        %760 = vmatprep.subr.bf16.mxu0 0
        %761 = vmatpush1.bf16.msra.mxu0 0
        %762 = vmatprep.subr.bf16.mxu0 0
        %763 = vmatpush1.bf16.msra.mxu0 0
        %764 = vmatprep.subr.bf16.mxu0 0
        %765 = vmatpush1.bf16.msra.mxu0 0
        %766 = vmatprep.subr.bf16.mxu0 0
        %767 = vmatpush1.bf16.msra.mxu0 0
        %768 = vmatprep.subr.bf16.mxu0 0
        %769 = vmatpush1.bf16.msra.mxu0 0
        %770 = vmatprep.mubr.bf16.mxu0 0
        %771 = vmatmul.mubr.bf16.gmra.mrb[0].mxu0 %v736
        %v772 = vpop.f32.mrb[0].mxu0
        %v773 = vadd.f32 %v717, %v772
        %v774 = vpop.f32.mrb[0].mxu0
        %v775 = vpop.f32.mrb[0].mxu0
        %v776 = vadd.f32 %v720, %v775
        %v777 = vpop.f32.mrb[0].mxu0
        %778 = vdwg.mxu0
        %v779 = vpack.c.bf16 %v650, %v649
        %s780 = scalar_lea.vmem [#allocation3], 80
        %v781 = vld [vmem:[%s780] sm:$0xf]
        %v782 = vld [vmem:[%s780 + $0x4] sm:$0xf]
        %v783 = vld [vmem:[%s780 + $0x8] sm:$0xf]
        %v784 = vld [vmem:[%s780 + $0xc] sm:$0xf]
        %v789 = vunpack.c.l.b16 %v781
        %v790 = vunpack.c.l.b16 %v782
        %v791 = vunpack.c.l.b16 %v783
        %v792 = vunpack.c.l.b16 %v784
        %v793 = vpack.c.b16 %v790, %v789
        %v794 = vpack.c.b16 %v792, %v791
        %v798 = vsel %vm293, %v779, 0
        %800 = vmatprep.subr.bf16.mxu0 0
        %801 = vmatpush1.bf16.msra.mxu0 %v793
        %802 = vmatprep.subr.bf16.mxu0 0
        %803 = vmatpush1.bf16.msra.mxu0 %v794
        %804 = vmatprep.subr.bf16.mxu0 0
        %805 = vmatpush1.bf16.msra.mxu0 0
        %806 = vmatprep.subr.bf16.mxu0 0
        %807 = vmatpush1.bf16.msra.mxu0 0
        %808 = vmatprep.subr.bf16.mxu0 0
        %809 = vmatpush1.bf16.msra.mxu0 0
        %810 = vmatprep.subr.bf16.mxu0 0
        %811 = vmatpush1.bf16.msra.mxu0 0
        %812 = vmatprep.subr.bf16.mxu0 0
        %813 = vmatpush1.bf16.msra.mxu0 0
        %814 = vmatprep.subr.bf16.mxu0 0
        %815 = vmatpush1.bf16.msra.mxu0 0
        %816 = vmatprep.subr.bf16.mxu0 0
        %817 = vmatpush1.bf16.msra.mxu0 0
        %818 = vmatprep.subr.bf16.mxu0 0
        %819 = vmatpush1.bf16.msra.mxu0 0
        %820 = vmatprep.subr.bf16.mxu0 0
        %821 = vmatpush1.bf16.msra.mxu0 0
        %822 = vmatprep.subr.bf16.mxu0 0
        %823 = vmatpush1.bf16.msra.mxu0 0
        %824 = vmatprep.subr.bf16.mxu0 0
        %825 = vmatpush1.bf16.msra.mxu0 0
        %826 = vmatprep.subr.bf16.mxu0 0
        %827 = vmatpush1.bf16.msra.mxu0 0
        %828 = vmatprep.subr.bf16.mxu0 0
        %829 = vmatpush1.bf16.msra.mxu0 0
        %830 = vmatprep.subr.bf16.mxu0 0
        %831 = vmatpush1.bf16.msra.mxu0 0
        %832 = vmatprep.mubr.bf16.mxu0 0
        %833 = vmatmul.mubr.bf16.gmra.mrb[0].mxu0 %v798
        %v834 = vpop.f32.mrb[0].mxu0
        %v835 = vadd.f32 0.0, %v834
        %v836 = vpop.f32.mrb[0].mxu0
        %v837 = vpop.f32.mrb[0].mxu0
        %v838 = vadd.f32 0.0, %v837
        %v839 = vpop.f32.mrb[0].mxu0
        %840 = vdwg.mxu0
        %v841 = vadd.f32 %v773, %v835
        %v842 = vadd.f32 %v776, %v838
        %s843 = scalar_lea.vmem %s2, 1
        %v844 = vld [vmem:[%s843] sm:$0x1]
        %v846 = vlaneseq
        %v847 = vshrl.u32 %v846, 7
        %v848 = vsub.s32 0, %v847
        %v849 = vrot.slane %v844, %v848
        %v851 = vadd.f32 %v841, %v849
        %v852 = vadd.f32 %v842, %v849
        %s853 = scalar_lea.vmem %s3, 1
        %v854 = vld [vmem:[%s853] sm:$0x1]
        %s855 = scalar_lea.vmem %s4, 1
        %v856 = vld [vmem:[%s855] sm:$0x1]
        %v857 = vsel %vm293, %v851, 0.0
        %858 = vadd.xlane.f32.xlu0 %v857
        %v859 = vpop.xlane.xlu0 %858
        %v860 = vsel %vm293, %v852, 0.0
        %861 = vadd.xlane.f32.xlu0 %v860
        %v862 = vpop.xlane.xlu0 %861
        %v863 = vmul.f32 %v859, %v518
        %v864 = vmul.f32 %v862, %v518
        %v865 = vsub.f32 %v851, %v863
        %v866 = vsub.f32 %v852, %v864
        %v867 = vmul.f32 %v865, %v865
        %v868 = vmul.f32 %v866, %v866
        %v869 = vsel %vm293, %v867, 0.0
        %870 = vadd.xlane.f32.xlu0 %v869
        %v871 = vpop.xlane.xlu0 %870
        %v872 = vsel %vm293, %v868, 0.0
        %873 = vadd.xlane.f32.xlu0 %v872
        %v874 = vpop.xlane.xlu0 %873
        %v875 = vmul.f32 %v871, %v518
        %v876 = vmul.f32 %v874, %v518
        %v877 = vadd.f32 %v875, 1e-05
        %v878 = vadd.f32 %v876, 1e-05
        %v879 = vrsqrt.pop %v877
        %v880 = vrsqrt.pop %v878
        %v881 = vmul.f32 %v865, %v879
        %v882 = vmul.f32 %v866, %v880
        %v884 = vlaneseq
        %v885 = vshrl.u32 %v884, 7
        %v886 = vsub.s32 0, %v885
        %v887 = vrot.slane %v854, %v886
        %v889 = vmul.f32 %v881, %v887
        %v890 = vmul.f32 %v882, %v887
        %v892 = vlaneseq
        %v893 = vshrl.u32 %v892, 7
        %v894 = vsub.s32 0, %v893
        %v895 = vrot.slane %v856, %v894
        %v897 = vadd.f32 %v889, %v895
        %v898 = vadd.f32 %v890, %v895
        %s899 = scalar_lea.vmem %s5, 1
        %v900 = vld [vmem:[%s899] sm:$0x1]
        %s901 = scalar_lea.vmem %s6, 1
        %v902 = vld [vmem:[%s901] sm:$0x1]
        %905 = vrot.lane.b32.xlu0 %v851, 96
        %v906 = vpop.permute.xlu0 %905
        %907 = vrot.lane.b32.xlu0 %v852, 96
        %v908 = vpop.permute.xlu0 %907
        %v911 = vsel %vm293, %v906, 0.0
        %912 = vadd.xlane.f32.xlu0 %v911
        %v913 = vpop.xlane.xlu0 %912
        %v914 = vsel %vm293, %v908, 0.0
        %915 = vadd.xlane.f32.xlu0 %v914
        %v916 = vpop.xlane.xlu0 %915
        %v917 = vmul.f32 %v913, %v518
        %v918 = vmul.f32 %v916, %v518
        %v919 = vsub.f32 %v851, %v917
        %v920 = vsub.f32 %v852, %v918
        %v921 = vmul.f32 %v919, %v919
        %v922 = vmul.f32 %v920, %v920
        %925 = vrot.lane.b32.xlu0 %v921, 96
        %v926 = vpop.permute.xlu0 %925
        %927 = vrot.lane.b32.xlu0 %v922, 96
        %v928 = vpop.permute.xlu0 %927
        %v931 = vsel %vm293, %v926, 0.0
        %932 = vadd.xlane.f32.xlu0 %v931
        %v933 = vpop.xlane.xlu0 %932
        %v934 = vsel %vm293, %v928, 0.0
        %935 = vadd.xlane.f32.xlu0 %v934
        %v936 = vpop.xlane.xlu0 %935
        %v937 = vmul.f32 %v933, %v518
        %v938 = vmul.f32 %v936, %v518
        %v939 = vadd.f32 %v937, 1e-05
        %v940 = vadd.f32 %v938, 1e-05
        %v941 = vrsqrt.pop %v939
        %v942 = vrsqrt.pop %v940
        %v943 = vmul.f32 %v919, %v941
        %v944 = vmul.f32 %v920, %v942
        %v946 = vlaneseq
        %v947 = vshrl.u32 %v946, 7
        %v948 = vsub.s32 0, %v947
        %v949 = vrot.slane %v900, %v948
        %950 = vrot.lane.b32.xlu0 %v949, 32
        %v951 = vpop.permute.xlu0 %950
        %v953 = vmul.f32 %v943, %v951
        %v954 = vmul.f32 %v944, %v951
        %v956 = vlaneseq
        %v957 = vshrl.u32 %v956, 7
        %v958 = vsub.s32 0, %v957
        %v959 = vrot.slane %v902, %v958
        %960 = vrot.lane.b32.xlu0 %v959, 32
        %v961 = vpop.permute.xlu0 %960
        %v963 = vadd.f32 %v953, %v961
        %v964 = vadd.f32 %v954, %v961
        %v965 = vxor.u32 %v897, 2147483648
        %v966 = vxor.u32 %v898, 2147483648
        %v967 = vmul.f32 %v965, 1.442695
        %v968 = vpow.pop %v967
        %v969 = vmul.f32 %v966, 1.442695
        %v970 = vpow.pop %v969
        %v971 = vadd.f32 %v968, 1.0
        %v972 = vadd.f32 %v970, 1.0
        %v973 = vrcp.pop %v971
        %v974 = vmul.f32 1.0, %v973
        %v975 = vrcp.pop %v972
        %v976 = vmul.f32 1.0, %v975
        %979 = vrot.lane.b32.xlu0 %v963, 96
        %v980 = vpop.permute.xlu0 %979
        %981 = vrot.lane.b32.xlu0 %v964, 96
        %v982 = vpop.permute.xlu0 %981
        %v985 = vmul.f32 %v974, %v980
        %v986 = vmul.f32 %v976, %v982
        %v987 = vsub.f32 1.0, %v974
        %v988 = vsub.f32 1.0, %v976
        %v989 = vmul.f32 %v987, %v649
        %v990 = vmul.f32 %v988, %v650
        %v991 = vadd.f32 %v985, %v989
        %v992 = vadd.f32 %v986, %v990
        %993 = vst.msk [vmem:[#allocation2 + $0x36] sm:$0xff] %vm293, %v991
        %994 = vst.msk [vmem:[#allocation2 + $0x3e] sm:$0xff] %vm293, %v992
        %v995 = vld [vmem:[#allocation2 + $0x36] sm:$0xff]
        %v996 = vld [vmem:[#allocation2 + $0x3e] sm:$0xff]
        %v997 = vld [vmem:[#allocation2 + $0x24] sm:$0xff]
        %v998 = vld [vmem:[#allocation2 + $0x2c] sm:$0xff]
        %v999 = vpack.c.bf16 %v998, %v997
        %s1000 = scalar_lea.vmem [#allocation3], 96
        %v1001 = vld [vmem:[%s1000] sm:$0xf]
        %v1002 = vld [vmem:[%s1000 + $0x4] sm:$0xf]
        %v1003 = vld [vmem:[%s1000 + $0x8] sm:$0xf]
        %v1004 = vld [vmem:[%s1000 + $0xc] sm:$0xf]
        %v1005 = vld [vmem:[#allocation2 + $0x2d] sm:$0xff]
        %v1006 = vld [vmem:[#allocation2 + $0x35] sm:$0xff]
        %v1007 = vpack.c.bf16 %v1006, %v1005
        %s1008 = scalar_lea.vmem [#allocation3], 112
        %v1009 = vld [vmem:[%s1008] sm:$0xf]
        %v1010 = vld [vmem:[%s1008 + $0x4] sm:$0xf]
        %v1011 = vld [vmem:[%s1008 + $0x8] sm:$0xf]
        %v1012 = vld [vmem:[%s1008 + $0xc] sm:$0xf]
        %v1017 = vunpack.c.l.b16 %v1009
        %v1018 = vunpack.c.l.b16 %v1010
        %v1019 = vunpack.c.l.b16 %v1011
        %v1020 = vunpack.c.l.b16 %v1012
        %v1021 = vpack.c.b16 %v1018, %v1017
        %v1022 = vpack.c.b16 %v1020, %v1019
        %v1026 = vsel %vm293, %v1007, 0
        %1028 = vmatprep.subr.bf16.mxu0 0
        %1029 = vmatpush1.bf16.msra.mxu0 %v1021
        %1030 = vmatprep.subr.bf16.mxu0 0
        %1031 = vmatpush1.bf16.msra.mxu0 %v1022
        %1032 = vmatprep.subr.bf16.mxu0 0
        %1033 = vmatpush1.bf16.msra.mxu0 0
        %1034 = vmatprep.subr.bf16.mxu0 0
        %1035 = vmatpush1.bf16.msra.mxu0 0
        %1036 = vmatprep.subr.bf16.mxu0 0
        %1037 = vmatpush1.bf16.msra.mxu0 0
        %1038 = vmatprep.subr.bf16.mxu0 0
        %1039 = vmatpush1.bf16.msra.mxu0 0
        %1040 = vmatprep.subr.bf16.mxu0 0
        %1041 = vmatpush1.bf16.msra.mxu0 0
        %1042 = vmatprep.subr.bf16.mxu0 0
        %1043 = vmatpush1.bf16.msra.mxu0 0
        %1044 = vmatprep.subr.bf16.mxu0 0
        %1045 = vmatpush1.bf16.msra.mxu0 0
        %1046 = vmatprep.subr.bf16.mxu0 0
        %1047 = vmatpush1.bf16.msra.mxu0 0
        %1048 = vmatprep.subr.bf16.mxu0 0
        %1049 = vmatpush1.bf16.msra.mxu0 0
        %1050 = vmatprep.subr.bf16.mxu0 0
        %1051 = vmatpush1.bf16.msra.mxu0 0
        %1052 = vmatprep.subr.bf16.mxu0 0
        %1053 = vmatpush1.bf16.msra.mxu0 0
        %1054 = vmatprep.subr.bf16.mxu0 0
        %1055 = vmatpush1.bf16.msra.mxu0 0
        %1056 = vmatprep.subr.bf16.mxu0 0
        %1057 = vmatpush1.bf16.msra.mxu0 0
        %1058 = vmatprep.subr.bf16.mxu0 0
        %1059 = vmatpush1.bf16.msra.mxu0 0
        %1060 = vmatprep.mubr.bf16.mxu0 0
        %1061 = vmatmul.mubr.bf16.gmra.mrb[0].mxu0 %v1026
        %v1062 = vpop.f32.mrb[0].mxu0
        %v1063 = vadd.f32 0.0, %v1062
        %v1064 = vpop.f32.mrb[0].mxu0
        %v1065 = vpop.f32.mrb[0].mxu0
        %v1066 = vadd.f32 0.0, %v1065
        %v1067 = vpop.f32.mrb[0].mxu0
        %1068 = vdwg.mxu0
        %v1073 = vunpack.c.l.b16 %v1001
        %v1074 = vunpack.c.l.b16 %v1002
        %v1075 = vunpack.c.l.b16 %v1003
        %v1076 = vunpack.c.l.b16 %v1004
        %v1077 = vpack.c.b16 %v1074, %v1073
        %v1078 = vpack.c.b16 %v1076, %v1075
        %v1082 = vsel %vm293, %v999, 0
        %1084 = vmatprep.subr.bf16.mxu0 0
        %1085 = vmatpush1.bf16.msra.mxu0 %v1077
        %1086 = vmatprep.subr.bf16.mxu0 0
        %1087 = vmatpush1.bf16.msra.mxu0 %v1078
        %1088 = vmatprep.subr.bf16.mxu0 0
        %1089 = vmatpush1.bf16.msra.mxu0 0
        %1090 = vmatprep.subr.bf16.mxu0 0
        %1091 = vmatpush1.bf16.msra.mxu0 0
        %1092 = vmatprep.subr.bf16.mxu0 0
        %1093 = vmatpush1.bf16.msra.mxu0 0
        %1094 = vmatprep.subr.bf16.mxu0 0
        %1095 = vmatpush1.bf16.msra.mxu0 0
        %1096 = vmatprep.subr.bf16.mxu0 0
        %1097 = vmatpush1.bf16.msra.mxu0 0
        %1098 = vmatprep.subr.bf16.mxu0 0
        %1099 = vmatpush1.bf16.msra.mxu0 0
        %1100 = vmatprep.subr.bf16.mxu0 0
        %1101 = vmatpush1.bf16.msra.mxu0 0
        %1102 = vmatprep.subr.bf16.mxu0 0
        %1103 = vmatpush1.bf16.msra.mxu0 0
        %1104 = vmatprep.subr.bf16.mxu0 0
        %1105 = vmatpush1.bf16.msra.mxu0 0
        %1106 = vmatprep.subr.bf16.mxu0 0
        %1107 = vmatpush1.bf16.msra.mxu0 0
        %1108 = vmatprep.subr.bf16.mxu0 0
        %1109 = vmatpush1.bf16.msra.mxu0 0
        %1110 = vmatprep.subr.bf16.mxu0 0
        %1111 = vmatpush1.bf16.msra.mxu0 0
        %1112 = vmatprep.subr.bf16.mxu0 0
        %1113 = vmatpush1.bf16.msra.mxu0 0
        %1114 = vmatprep.subr.bf16.mxu0 0
        %1115 = vmatpush1.bf16.msra.mxu0 0
        %1116 = vmatprep.mubr.bf16.mxu0 0
        %1117 = vmatmul.mubr.bf16.gmra.mrb[0].mxu0 %v1082
        %v1118 = vpop.f32.mrb[0].mxu0
        %v1119 = vadd.f32 %v1063, %v1118
        %v1120 = vpop.f32.mrb[0].mxu0
        %v1121 = vpop.f32.mrb[0].mxu0
        %v1122 = vadd.f32 %v1066, %v1121
        %v1123 = vpop.f32.mrb[0].mxu0
        %1124 = vdwg.mxu0
        %v1125 = vpack.c.bf16 %v996, %v995
        %s1126 = scalar_lea.vmem [#allocation3], 128
        %v1127 = vld [vmem:[%s1126] sm:$0xf]
        %v1128 = vld [vmem:[%s1126 + $0x4] sm:$0xf]
        %v1129 = vld [vmem:[%s1126 + $0x8] sm:$0xf]
        %v1130 = vld [vmem:[%s1126 + $0xc] sm:$0xf]
        %v1135 = vunpack.c.l.b16 %v1127
        %v1136 = vunpack.c.l.b16 %v1128
        %v1137 = vunpack.c.l.b16 %v1129
        %v1138 = vunpack.c.l.b16 %v1130
        %v1139 = vpack.c.b16 %v1136, %v1135
        %v1140 = vpack.c.b16 %v1138, %v1137
        %v1144 = vsel %vm293, %v1125, 0
        %1146 = vmatprep.subr.bf16.mxu0 0
        %1147 = vmatpush1.bf16.msra.mxu0 %v1139
        %1148 = vmatprep.subr.bf16.mxu0 0
        %1149 = vmatpush1.bf16.msra.mxu0 %v1140
        %1150 = vmatprep.subr.bf16.mxu0 0
        %1151 = vmatpush1.bf16.msra.mxu0 0
        %1152 = vmatprep.subr.bf16.mxu0 0
        %1153 = vmatpush1.bf16.msra.mxu0 0
        %1154 = vmatprep.subr.bf16.mxu0 0
        %1155 = vmatpush1.bf16.msra.mxu0 0
        %1156 = vmatprep.subr.bf16.mxu0 0
        %1157 = vmatpush1.bf16.msra.mxu0 0
        %1158 = vmatprep.subr.bf16.mxu0 0
        %1159 = vmatpush1.bf16.msra.mxu0 0
        %1160 = vmatprep.subr.bf16.mxu0 0
        %1161 = vmatpush1.bf16.msra.mxu0 0
        %1162 = vmatprep.subr.bf16.mxu0 0
        %1163 = vmatpush1.bf16.msra.mxu0 0
        %1164 = vmatprep.subr.bf16.mxu0 0
        %1165 = vmatpush1.bf16.msra.mxu0 0
        %1166 = vmatprep.subr.bf16.mxu0 0
        %1167 = vmatpush1.bf16.msra.mxu0 0
        %1168 = vmatprep.subr.bf16.mxu0 0
        %1169 = vmatpush1.bf16.msra.mxu0 0
        %1170 = vmatprep.subr.bf16.mxu0 0
        %1171 = vmatpush1.bf16.msra.mxu0 0
        %1172 = vmatprep.subr.bf16.mxu0 0
        %1173 = vmatpush1.bf16.msra.mxu0 0
        %1174 = vmatprep.subr.bf16.mxu0 0
        %1175 = vmatpush1.bf16.msra.mxu0 0
        %1176 = vmatprep.subr.bf16.mxu0 0
        %1177 = vmatpush1.bf16.msra.mxu0 0
        %1178 = vmatprep.mubr.bf16.mxu0 0
        %1179 = vmatmul.mubr.bf16.gmra.mrb[0].mxu0 %v1144
        %v1180 = vpop.f32.mrb[0].mxu0
        %v1181 = vadd.f32 0.0, %v1180
        %v1182 = vpop.f32.mrb[0].mxu0
        %v1183 = vpop.f32.mrb[0].mxu0
        %v1184 = vadd.f32 0.0, %v1183
        %v1185 = vpop.f32.mrb[0].mxu0
        %1186 = vdwg.mxu0
        %v1187 = vadd.f32 %v1119, %v1181
        %v1188 = vadd.f32 %v1122, %v1184
        %s1189 = scalar_lea.vmem %s2, 2
        %v1190 = vld [vmem:[%s1189] sm:$0x1]
        %v1192 = vlaneseq
        %v1193 = vshrl.u32 %v1192, 7
        %v1194 = vsub.s32 0, %v1193
        %v1195 = vrot.slane %v1190, %v1194
        %v1197 = vadd.f32 %v1187, %v1195
        %v1198 = vadd.f32 %v1188, %v1195
        %s1199 = scalar_lea.vmem %s3, 2
        %v1200 = vld [vmem:[%s1199] sm:$0x1]
        %s1201 = scalar_lea.vmem %s4, 2
        %v1202 = vld [vmem:[%s1201] sm:$0x1]
        %v1203 = vsel %vm293, %v1197, 0.0
        %1204 = vadd.xlane.f32.xlu0 %v1203
        %v1205 = vpop.xlane.xlu0 %1204
        %v1206 = vsel %vm293, %v1198, 0.0
        %1207 = vadd.xlane.f32.xlu0 %v1206
        %v1208 = vpop.xlane.xlu0 %1207
        %v1209 = vmul.f32 %v1205, %v518
        %v1210 = vmul.f32 %v1208, %v518
        %v1211 = vsub.f32 %v1197, %v1209
        %v1212 = vsub.f32 %v1198, %v1210
        %v1213 = vmul.f32 %v1211, %v1211
        %v1214 = vmul.f32 %v1212, %v1212
        %v1215 = vsel %vm293, %v1213, 0.0
        %1216 = vadd.xlane.f32.xlu0 %v1215
        %v1217 = vpop.xlane.xlu0 %1216
        %v1218 = vsel %vm293, %v1214, 0.0
        %1219 = vadd.xlane.f32.xlu0 %v1218
        %v1220 = vpop.xlane.xlu0 %1219
        %v1221 = vmul.f32 %v1217, %v518
        %v1222 = vmul.f32 %v1220, %v518
        %v1223 = vadd.f32 %v1221, 1e-05
        %v1224 = vadd.f32 %v1222, 1e-05
        %v1225 = vrsqrt.pop %v1223
        %v1226 = vrsqrt.pop %v1224
        %v1227 = vmul.f32 %v1211, %v1225
        %v1228 = vmul.f32 %v1212, %v1226
        %v1230 = vlaneseq
        %v1231 = vshrl.u32 %v1230, 7
        %v1232 = vsub.s32 0, %v1231
        %v1233 = vrot.slane %v1200, %v1232
        %v1235 = vmul.f32 %v1227, %v1233
        %v1236 = vmul.f32 %v1228, %v1233
        %v1238 = vlaneseq
        %v1239 = vshrl.u32 %v1238, 7
        %v1240 = vsub.s32 0, %v1239
        %v1241 = vrot.slane %v1202, %v1240
        %v1243 = vadd.f32 %v1235, %v1241
        %v1244 = vadd.f32 %v1236, %v1241
        %s1245 = scalar_lea.vmem %s5, 2
        %v1246 = vld [vmem:[%s1245] sm:$0x1]
        %s1247 = scalar_lea.vmem %s6, 2
        %v1248 = vld [vmem:[%s1247] sm:$0x1]
        %1251 = vrot.lane.b32.xlu0 %v1197, 96
        %v1252 = vpop.permute.xlu0 %1251
        %1253 = vrot.lane.b32.xlu0 %v1198, 96
        %v1254 = vpop.permute.xlu0 %1253
        %v1257 = vsel %vm293, %v1252, 0.0
        %1258 = vadd.xlane.f32.xlu0 %v1257
        %v1259 = vpop.xlane.xlu0 %1258
        %v1260 = vsel %vm293, %v1254, 0.0
        %1261 = vadd.xlane.f32.xlu0 %v1260
        %v1262 = vpop.xlane.xlu0 %1261
        %v1263 = vmul.f32 %v1259, %v518
        %v1264 = vmul.f32 %v1262, %v518
        %v1265 = vsub.f32 %v1197, %v1263
        %v1266 = vsub.f32 %v1198, %v1264
        %v1267 = vmul.f32 %v1265, %v1265
        %v1268 = vmul.f32 %v1266, %v1266
        %1271 = vrot.lane.b32.xlu0 %v1267, 96
        %v1272 = vpop.permute.xlu0 %1271
        %1273 = vrot.lane.b32.xlu0 %v1268, 96
        %v1274 = vpop.permute.xlu0 %1273
        %v1277 = vsel %vm293, %v1272, 0.0
        %1278 = vadd.xlane.f32.xlu0 %v1277
        %v1279 = vpop.xlane.xlu0 %1278
        %v1280 = vsel %vm293, %v1274, 0.0
        %1281 = vadd.xlane.f32.xlu0 %v1280
        %v1282 = vpop.xlane.xlu0 %1281
        %v1283 = vmul.f32 %v1279, %v518
        %v1284 = vmul.f32 %v1282, %v518
        %v1285 = vadd.f32 %v1283, 1e-05
        %v1286 = vadd.f32 %v1284, 1e-05
        %v1287 = vrsqrt.pop %v1285
        %v1288 = vrsqrt.pop %v1286
        %v1289 = vmul.f32 %v1265, %v1287
        %v1290 = vmul.f32 %v1266, %v1288
        %v1292 = vlaneseq
        %v1293 = vshrl.u32 %v1292, 7
        %v1294 = vsub.s32 0, %v1293
        %v1295 = vrot.slane %v1246, %v1294
        %1296 = vrot.lane.b32.xlu0 %v1295, 32
        %v1297 = vpop.permute.xlu0 %1296
        %v1299 = vmul.f32 %v1289, %v1297
        %v1300 = vmul.f32 %v1290, %v1297
        %v1302 = vlaneseq
        %v1303 = vshrl.u32 %v1302, 7
        %v1304 = vsub.s32 0, %v1303
        %v1305 = vrot.slane %v1248, %v1304
        %1306 = vrot.lane.b32.xlu0 %v1305, 32
        %v1307 = vpop.permute.xlu0 %1306
        %v1309 = vadd.f32 %v1299, %v1307
        %v1310 = vadd.f32 %v1300, %v1307
        %v1311 = vxor.u32 %v1243, 2147483648
        %v1312 = vxor.u32 %v1244, 2147483648
        %v1313 = vmul.f32 %v1311, 1.442695
        %v1314 = vpow.pop %v1313
        %v1315 = vmul.f32 %v1312, 1.442695
        %v1316 = vpow.pop %v1315
        %v1317 = vadd.f32 %v1314, 1.0
        %v1318 = vadd.f32 %v1316, 1.0
        %v1319 = vrcp.pop %v1317
        %v1320 = vmul.f32 1.0, %v1319
        %v1321 = vrcp.pop %v1318
        %v1322 = vmul.f32 1.0, %v1321
        %1325 = vrot.lane.b32.xlu0 %v1309, 96
        %v1326 = vpop.permute.xlu0 %1325
        %1327 = vrot.lane.b32.xlu0 %v1310, 96
        %v1328 = vpop.permute.xlu0 %1327
        %v1331 = vmul.f32 %v1320, %v1326
        %v1332 = vmul.f32 %v1322, %v1328
        %v1333 = vsub.f32 1.0, %v1320
        %v1334 = vsub.f32 1.0, %v1322
        %v1335 = vmul.f32 %v1333, %v995
        %v1336 = vmul.f32 %v1334, %v996
        %v1337 = vadd.f32 %v1331, %v1335
        %v1338 = vadd.f32 %v1332, %v1336
        %1339 = vst.msk [vmem:[#allocation2 + $0x36] sm:$0xff] %vm293, %v1337
        %1340 = vst.msk [vmem:[#allocation2 + $0x3e] sm:$0xff] %vm293, %v1338
        %v1341 = vld [vmem:[#allocation2 + $0x36] sm:$0xff]
        %v1342 = vld [vmem:[#allocation2 + $0x3e] sm:$0xff]
        %v1343 = vld [vmem:[#allocation2] sm:$0xff]
        %v1344 = vld [vmem:[#allocation2 + $0x8] sm:$0xff]
        %v1345 = vpack.c.bf16 %v1344, %v1343
        %s1346 = scalar_lea.vmem [#allocation3], 144
        %v1347 = vld [vmem:[%s1346] sm:$0xf]
        %v1348 = vld [vmem:[%s1346 + $0x4] sm:$0xf]
        %v1349 = vld [vmem:[%s1346 + $0x8] sm:$0xf]
        %v1350 = vld [vmem:[%s1346 + $0xc] sm:$0xf]
        %v1351 = vld [vmem:[#allocation2 + $0x1b] sm:$0xff]
        %v1352 = vld [vmem:[#allocation2 + $0x23] sm:$0xff]
        %v1353 = vpack.c.bf16 %v1352, %v1351
        %s1354 = scalar_lea.vmem [#allocation3], 160
        %v1355 = vld [vmem:[%s1354] sm:$0xf]
        %v1356 = vld [vmem:[%s1354 + $0x4] sm:$0xf]
        %v1357 = vld [vmem:[%s1354 + $0x8] sm:$0xf]
        %v1358 = vld [vmem:[%s1354 + $0xc] sm:$0xf]
        %v1363 = vunpack.c.l.b16 %v1355
        %v1364 = vunpack.c.l.b16 %v1356
        %v1365 = vunpack.c.l.b16 %v1357
        %v1366 = vunpack.c.l.b16 %v1358
        %v1367 = vpack.c.b16 %v1364, %v1363
        %v1368 = vpack.c.b16 %v1366, %v1365
        %v1372 = vsel %vm293, %v1353, 0
        %1374 = vmatprep.subr.bf16.mxu0 0
        %1375 = vmatpush1.bf16.msra.mxu0 %v1367
        %1376 = vmatprep.subr.bf16.mxu0 0
        %1377 = vmatpush1.bf16.msra.mxu0 %v1368
        %1378 = vmatprep.subr.bf16.mxu0 0
        %1379 = vmatpush1.bf16.msra.mxu0 0
        %1380 = vmatprep.subr.bf16.mxu0 0
        %1381 = vmatpush1.bf16.msra.mxu0 0
        %1382 = vmatprep.subr.bf16.mxu0 0
        %1383 = vmatpush1.bf16.msra.mxu0 0
        %1384 = vmatprep.subr.bf16.mxu0 0
        %1385 = vmatpush1.bf16.msra.mxu0 0
        %1386 = vmatprep.subr.bf16.mxu0 0
        %1387 = vmatpush1.bf16.msra.mxu0 0
        %1388 = vmatprep.subr.bf16.mxu0 0
        %1389 = vmatpush1.bf16.msra.mxu0 0
        %1390 = vmatprep.subr.bf16.mxu0 0
        %1391 = vmatpush1.bf16.msra.mxu0 0
        %1392 = vmatprep.subr.bf16.mxu0 0
        %1393 = vmatpush1.bf16.msra.mxu0 0
        %1394 = vmatprep.subr.bf16.mxu0 0
        %1395 = vmatpush1.bf16.msra.mxu0 0
        %1396 = vmatprep.subr.bf16.mxu0 0
        %1397 = vmatpush1.bf16.msra.mxu0 0
        %1398 = vmatprep.subr.bf16.mxu0 0
        %1399 = vmatpush1.bf16.msra.mxu0 0
        %1400 = vmatprep.subr.bf16.mxu0 0
        %1401 = vmatpush1.bf16.msra.mxu0 0
        %1402 = vmatprep.subr.bf16.mxu0 0
        %1403 = vmatpush1.bf16.msra.mxu0 0
        %1404 = vmatprep.subr.bf16.mxu0 0
        %1405 = vmatpush1.bf16.msra.mxu0 0
        %1406 = vmatprep.mubr.bf16.mxu0 0
        %1407 = vmatmul.mubr.bf16.gmra.mrb[0].mxu0 %v1372
        %v1408 = vpop.f32.mrb[0].mxu0
        %v1409 = vadd.f32 0.0, %v1408
        %v1410 = vpop.f32.mrb[0].mxu0
        %v1411 = vpop.f32.mrb[0].mxu0
        %v1412 = vadd.f32 0.0, %v1411
        %v1413 = vpop.f32.mrb[0].mxu0
        %1414 = vdwg.mxu0
        %v1419 = vunpack.c.l.b16 %v1347
        %v1420 = vunpack.c.l.b16 %v1348
        %v1421 = vunpack.c.l.b16 %v1349
        %v1422 = vunpack.c.l.b16 %v1350
        %v1423 = vpack.c.b16 %v1420, %v1419
        %v1424 = vpack.c.b16 %v1422, %v1421
        %v1428 = vsel %vm293, %v1345, 0
        %1430 = vmatprep.subr.bf16.mxu0 0
        %1431 = vmatpush1.bf16.msra.mxu0 %v1423
        %1432 = vmatprep.subr.bf16.mxu0 0
        %1433 = vmatpush1.bf16.msra.mxu0 %v1424
        %1434 = vmatprep.subr.bf16.mxu0 0
        %1435 = vmatpush1.bf16.msra.mxu0 0
        %1436 = vmatprep.subr.bf16.mxu0 0
        %1437 = vmatpush1.bf16.msra.mxu0 0
        %1438 = vmatprep.subr.bf16.mxu0 0
        %1439 = vmatpush1.bf16.msra.mxu0 0
        %1440 = vmatprep.subr.bf16.mxu0 0
        %1441 = vmatpush1.bf16.msra.mxu0 0
        %1442 = vmatprep.subr.bf16.mxu0 0
        %1443 = vmatpush1.bf16.msra.mxu0 0
        %1444 = vmatprep.subr.bf16.mxu0 0
        %1445 = vmatpush1.bf16.msra.mxu0 0
        %1446 = vmatprep.subr.bf16.mxu0 0
        %1447 = vmatpush1.bf16.msra.mxu0 0
        %1448 = vmatprep.subr.bf16.mxu0 0
        %1449 = vmatpush1.bf16.msra.mxu0 0
        %1450 = vmatprep.subr.bf16.mxu0 0
        %1451 = vmatpush1.bf16.msra.mxu0 0
        %1452 = vmatprep.subr.bf16.mxu0 0
        %1453 = vmatpush1.bf16.msra.mxu0 0
        %1454 = vmatprep.subr.bf16.mxu0 0
        %1455 = vmatpush1.bf16.msra.mxu0 0
        %1456 = vmatprep.subr.bf16.mxu0 0
        %1457 = vmatpush1.bf16.msra.mxu0 0
        %1458 = vmatprep.subr.bf16.mxu0 0
        %1459 = vmatpush1.bf16.msra.mxu0 0
        %1460 = vmatprep.subr.bf16.mxu0 0
        %1461 = vmatpush1.bf16.msra.mxu0 0
        %1462 = vmatprep.mubr.bf16.mxu0 0
        %1463 = vmatmul.mubr.bf16.gmra.mrb[0].mxu0 %v1428
        %v1464 = vpop.f32.mrb[0].mxu0
        %v1465 = vadd.f32 %v1409, %v1464
        %v1466 = vpop.f32.mrb[0].mxu0
        %v1467 = vpop.f32.mrb[0].mxu0
        %v1468 = vadd.f32 %v1412, %v1467
        %v1469 = vpop.f32.mrb[0].mxu0
        %1470 = vdwg.mxu0
        %v1471 = vpack.c.bf16 %v1342, %v1341
        %s1472 = scalar_lea.vmem [#allocation3], 176
        %v1473 = vld [vmem:[%s1472] sm:$0xf]
        %v1474 = vld [vmem:[%s1472 + $0x4] sm:$0xf]
        %v1475 = vld [vmem:[%s1472 + $0x8] sm:$0xf]
        %v1476 = vld [vmem:[%s1472 + $0xc] sm:$0xf]
        %v1481 = vunpack.c.l.b16 %v1473
        %v1482 = vunpack.c.l.b16 %v1474
        %v1483 = vunpack.c.l.b16 %v1475
        %v1484 = vunpack.c.l.b16 %v1476
        %v1485 = vpack.c.b16 %v1482, %v1481
        %v1486 = vpack.c.b16 %v1484, %v1483
        %v1490 = vsel %vm293, %v1471, 0
        %1492 = vmatprep.subr.bf16.mxu0 0
        %1493 = vmatpush1.bf16.msra.mxu0 %v1485
        %1494 = vmatprep.subr.bf16.mxu0 0
        %1495 = vmatpush1.bf16.msra.mxu0 %v1486
        %1496 = vmatprep.subr.bf16.mxu0 0
        %1497 = vmatpush1.bf16.msra.mxu0 0
        %1498 = vmatprep.subr.bf16.mxu0 0
        %1499 = vmatpush1.bf16.msra.mxu0 0
        %1500 = vmatprep.subr.bf16.mxu0 0
        %1501 = vmatpush1.bf16.msra.mxu0 0
        %1502 = vmatprep.subr.bf16.mxu0 0
        %1503 = vmatpush1.bf16.msra.mxu0 0
        %1504 = vmatprep.subr.bf16.mxu0 0
        %1505 = vmatpush1.bf16.msra.mxu0 0
        %1506 = vmatprep.subr.bf16.mxu0 0
        %1507 = vmatpush1.bf16.msra.mxu0 0
        %1508 = vmatprep.subr.bf16.mxu0 0
        %1509 = vmatpush1.bf16.msra.mxu0 0
        %1510 = vmatprep.subr.bf16.mxu0 0
        %1511 = vmatpush1.bf16.msra.mxu0 0
        %1512 = vmatprep.subr.bf16.mxu0 0
        %1513 = vmatpush1.bf16.msra.mxu0 0
        %1514 = vmatprep.subr.bf16.mxu0 0
        %1515 = vmatpush1.bf16.msra.mxu0 0
        %1516 = vmatprep.subr.bf16.mxu0 0
        %1517 = vmatpush1.bf16.msra.mxu0 0
        %1518 = vmatprep.subr.bf16.mxu0 0
        %1519 = vmatpush1.bf16.msra.mxu0 0
        %1520 = vmatprep.subr.bf16.mxu0 0
        %1521 = vmatpush1.bf16.msra.mxu0 0
        %1522 = vmatprep.subr.bf16.mxu0 0
        %1523 = vmatpush1.bf16.msra.mxu0 0
        %1524 = vmatprep.mubr.bf16.mxu0 0
        %1525 = vmatmul.mubr.bf16.gmra.mrb[0].mxu0 %v1490
        %v1526 = vpop.f32.mrb[0].mxu0
        %v1527 = vadd.f32 0.0, %v1526
        %v1528 = vpop.f32.mrb[0].mxu0
        %v1529 = vpop.f32.mrb[0].mxu0
        %v1530 = vadd.f32 0.0, %v1529
        %v1531 = vpop.f32.mrb[0].mxu0
        %1532 = vdwg.mxu0
        %v1533 = vadd.f32 %v1465, %v1527
        %v1534 = vadd.f32 %v1468, %v1530
        %s1535 = scalar_lea.vmem %s2, 3
        %v1536 = vld [vmem:[%s1535] sm:$0x1]
        %v1538 = vlaneseq
        %v1539 = vshrl.u32 %v1538, 7
        %v1540 = vsub.s32 0, %v1539
        %v1541 = vrot.slane %v1536, %v1540
        %v1543 = vadd.f32 %v1533, %v1541
        %v1544 = vadd.f32 %v1534, %v1541
        %s1545 = scalar_lea.vmem %s3, 3
        %v1546 = vld [vmem:[%s1545] sm:$0x1]
        %s1547 = scalar_lea.vmem %s4, 3
        %v1548 = vld [vmem:[%s1547] sm:$0x1]
        %v1549 = vsel %vm293, %v1543, 0.0
        %1550 = vadd.xlane.f32.xlu0 %v1549
        %v1551 = vpop.xlane.xlu0 %1550
        %v1552 = vsel %vm293, %v1544, 0.0
        %1553 = vadd.xlane.f32.xlu0 %v1552
        %v1554 = vpop.xlane.xlu0 %1553
        %v1555 = vmul.f32 %v1551, %v518
        %v1556 = vmul.f32 %v1554, %v518
        %v1557 = vsub.f32 %v1543, %v1555
        %v1558 = vsub.f32 %v1544, %v1556
        %v1559 = vmul.f32 %v1557, %v1557
        %v1560 = vmul.f32 %v1558, %v1558
        %v1561 = vsel %vm293, %v1559, 0.0
        %1562 = vadd.xlane.f32.xlu0 %v1561
        %v1563 = vpop.xlane.xlu0 %1562
        %v1564 = vsel %vm293, %v1560, 0.0
        %1565 = vadd.xlane.f32.xlu0 %v1564
        %v1566 = vpop.xlane.xlu0 %1565
        %v1567 = vmul.f32 %v1563, %v518
        %v1568 = vmul.f32 %v1566, %v518
        %v1569 = vadd.f32 %v1567, 1e-05
        %v1570 = vadd.f32 %v1568, 1e-05
        %v1571 = vrsqrt.pop %v1569
        %v1572 = vrsqrt.pop %v1570
        %v1573 = vmul.f32 %v1557, %v1571
        %v1574 = vmul.f32 %v1558, %v1572
        %v1576 = vlaneseq
        %v1577 = vshrl.u32 %v1576, 7
        %v1578 = vsub.s32 0, %v1577
        %v1579 = vrot.slane %v1546, %v1578
        %v1581 = vmul.f32 %v1573, %v1579
        %v1582 = vmul.f32 %v1574, %v1579
        %v1584 = vlaneseq
        %v1585 = vshrl.u32 %v1584, 7
        %v1586 = vsub.s32 0, %v1585
        %v1587 = vrot.slane %v1548, %v1586
        %v1589 = vadd.f32 %v1581, %v1587
        %v1590 = vadd.f32 %v1582, %v1587
        %s1591 = scalar_lea.vmem %s5, 3
        %v1592 = vld [vmem:[%s1591] sm:$0x1]
        %s1593 = scalar_lea.vmem %s6, 3
        %v1594 = vld [vmem:[%s1593] sm:$0x1]
        %1597 = vrot.lane.b32.xlu0 %v1543, 96
        %v1598 = vpop.permute.xlu0 %1597
        %1599 = vrot.lane.b32.xlu0 %v1544, 96
        %v1600 = vpop.permute.xlu0 %1599
        %v1603 = vsel %vm293, %v1598, 0.0
        %1604 = vadd.xlane.f32.xlu0 %v1603
        %v1605 = vpop.xlane.xlu0 %1604
        %v1606 = vsel %vm293, %v1600, 0.0
        %1607 = vadd.xlane.f32.xlu0 %v1606
        %v1608 = vpop.xlane.xlu0 %1607
        %v1609 = vmul.f32 %v1605, %v518
        %v1610 = vmul.f32 %v1608, %v518
        %v1611 = vsub.f32 %v1543, %v1609
        %v1612 = vsub.f32 %v1544, %v1610
        %v1613 = vmul.f32 %v1611, %v1611
        %v1614 = vmul.f32 %v1612, %v1612
        %1617 = vrot.lane.b32.xlu0 %v1613, 96
        %v1618 = vpop.permute.xlu0 %1617
        %1619 = vrot.lane.b32.xlu0 %v1614, 96
        %v1620 = vpop.permute.xlu0 %1619
        %v1623 = vsel %vm293, %v1618, 0.0
        %1624 = vadd.xlane.f32.xlu0 %v1623
        %v1625 = vpop.xlane.xlu0 %1624
        %v1626 = vsel %vm293, %v1620, 0.0
        %1627 = vadd.xlane.f32.xlu0 %v1626
        %v1628 = vpop.xlane.xlu0 %1627
        %v1629 = vmul.f32 %v1625, %v518
        %v1630 = vmul.f32 %v1628, %v518
        %v1631 = vadd.f32 %v1629, 1e-05
        %v1632 = vadd.f32 %v1630, 1e-05
        %v1633 = vrsqrt.pop %v1631
        %v1634 = vrsqrt.pop %v1632
        %v1635 = vmul.f32 %v1611, %v1633
        %v1636 = vmul.f32 %v1612, %v1634
        %v1638 = vlaneseq
        %v1639 = vshrl.u32 %v1638, 7
        %v1640 = vsub.s32 0, %v1639
        %v1641 = vrot.slane %v1592, %v1640
        %1642 = vrot.lane.b32.xlu0 %v1641, 32
        %v1643 = vpop.permute.xlu0 %1642
        %v1645 = vmul.f32 %v1635, %v1643
        %v1646 = vmul.f32 %v1636, %v1643
        %v1648 = vlaneseq
        %v1649 = vshrl.u32 %v1648, 7
        %v1650 = vsub.s32 0, %v1649
        %v1651 = vrot.slane %v1594, %v1650
        %1652 = vrot.lane.b32.xlu0 %v1651, 32
        %v1653 = vpop.permute.xlu0 %1652
        %v1655 = vadd.f32 %v1645, %v1653
        %v1656 = vadd.f32 %v1646, %v1653
        %v1657 = vxor.u32 %v1589, 2147483648
        %v1658 = vxor.u32 %v1590, 2147483648
        %v1659 = vmul.f32 %v1657, 1.442695
        %v1660 = vpow.pop %v1659
        %v1661 = vmul.f32 %v1658, 1.442695
        %v1662 = vpow.pop %v1661
        %v1663 = vadd.f32 %v1660, 1.0
        %v1664 = vadd.f32 %v1662, 1.0
        %v1665 = vrcp.pop %v1663
        %v1666 = vmul.f32 1.0, %v1665
        %v1667 = vrcp.pop %v1664
        %v1668 = vmul.f32 1.0, %v1667
        %1671 = vrot.lane.b32.xlu0 %v1655, 96
        %v1672 = vpop.permute.xlu0 %1671
        %1673 = vrot.lane.b32.xlu0 %v1656, 96
        %v1674 = vpop.permute.xlu0 %1673
        %v1677 = vmul.f32 %v1666, %v1672
        %v1678 = vmul.f32 %v1668, %v1674
        %v1679 = vsub.f32 1.0, %v1666
        %v1680 = vsub.f32 1.0, %v1668
        %v1681 = vmul.f32 %v1679, %v1341
        %v1682 = vmul.f32 %v1680, %v1342
        %v1683 = vadd.f32 %v1677, %v1681
        %v1684 = vadd.f32 %v1678, %v1682
        %1685 = vst.msk [vmem:[#allocation2 + $0x36] sm:$0xff] %vm293, %v1683
        %1686 = vst.msk [vmem:[#allocation2 + $0x3e] sm:$0xff] %vm293, %v1684
        %v1687 = vld [vmem:[#allocation2 + $0x36] sm:$0xff]
        %v1688 = vld [vmem:[#allocation2 + $0x3e] sm:$0xff]
        %v1689 = vld [vmem:[#allocation2 + $0x34] sm:$0xff]
        %v1690 = vld [vmem:[#allocation2 + $0x3c] sm:$0xff]
        %v1691 = vpack.c.bf16 %v1690, %v1689
        %s1692 = scalar_lea.vmem [#allocation3], 192
        %v1693 = vld [vmem:[%s1692] sm:$0xf]
        %v1694 = vld [vmem:[%s1692 + $0x4] sm:$0xf]
        %v1695 = vld [vmem:[%s1692 + $0x8] sm:$0xf]
        %v1696 = vld [vmem:[%s1692 + $0xc] sm:$0xf]
        %v1697 = vld [vmem:[#allocation2 + $0x35] sm:$0xff]
        %v1698 = vld [vmem:[#allocation2 + $0x3d] sm:$0xff]
        %v1699 = vpack.c.bf16 %v1698, %v1697
        %s1700 = scalar_lea.vmem [#allocation3], 208
        %v1701 = vld [vmem:[%s1700] sm:$0xf]
        %v1702 = vld [vmem:[%s1700 + $0x4] sm:$0xf]
        %v1703 = vld [vmem:[%s1700 + $0x8] sm:$0xf]
        %v1704 = vld [vmem:[%s1700 + $0xc] sm:$0xf]
        %v1709 = vunpack.c.l.b16 %v1701
        %v1710 = vunpack.c.l.b16 %v1702
        %v1711 = vunpack.c.l.b16 %v1703
        %v1712 = vunpack.c.l.b16 %v1704
        %v1713 = vpack.c.b16 %v1710, %v1709
        %v1714 = vpack.c.b16 %v1712, %v1711
        %v1718 = vsel %vm293, %v1699, 0
        %1720 = vmatprep.subr.bf16.mxu0 0
        %1721 = vmatpush1.bf16.msra.mxu0 %v1713
        %1722 = vmatprep.subr.bf16.mxu0 0
        %1723 = vmatpush1.bf16.msra.mxu0 %v1714
        %1724 = vmatprep.subr.bf16.mxu0 0
        %1725 = vmatpush1.bf16.msra.mxu0 0
        %1726 = vmatprep.subr.bf16.mxu0 0
        %1727 = vmatpush1.bf16.msra.mxu0 0
        %1728 = vmatprep.subr.bf16.mxu0 0
        %1729 = vmatpush1.bf16.msra.mxu0 0
        %1730 = vmatprep.subr.bf16.mxu0 0
        %1731 = vmatpush1.bf16.msra.mxu0 0
        %1732 = vmatprep.subr.bf16.mxu0 0
        %1733 = vmatpush1.bf16.msra.mxu0 0
        %1734 = vmatprep.subr.bf16.mxu0 0
        %1735 = vmatpush1.bf16.msra.mxu0 0
        %1736 = vmatprep.subr.bf16.mxu0 0
        %1737 = vmatpush1.bf16.msra.mxu0 0
        %1738 = vmatprep.subr.bf16.mxu0 0
        %1739 = vmatpush1.bf16.msra.mxu0 0
        %1740 = vmatprep.subr.bf16.mxu0 0
        %1741 = vmatpush1.bf16.msra.mxu0 0
        %1742 = vmatprep.subr.bf16.mxu0 0
        %1743 = vmatpush1.bf16.msra.mxu0 0
        %1744 = vmatprep.subr.bf16.mxu0 0
        %1745 = vmatpush1.bf16.msra.mxu0 0
        %1746 = vmatprep.subr.bf16.mxu0 0
        %1747 = vmatpush1.bf16.msra.mxu0 0
        %1748 = vmatprep.subr.bf16.mxu0 0
        %1749 = vmatpush1.bf16.msra.mxu0 0
        %1750 = vmatprep.subr.bf16.mxu0 0
        %1751 = vmatpush1.bf16.msra.mxu0 0
        %1752 = vmatprep.mubr.bf16.mxu0 0
        %1753 = vmatmul.mubr.bf16.gmra.mrb[0].mxu0 %v1718
        %v1754 = vpop.f32.mrb[0].mxu0
        %v1755 = vadd.f32 0.0, %v1754
        %v1756 = vpop.f32.mrb[0].mxu0
        %v1757 = vpop.f32.mrb[0].mxu0
        %v1758 = vadd.f32 0.0, %v1757
        %v1759 = vpop.f32.mrb[0].mxu0
        %1760 = vdwg.mxu0
        %v1765 = vunpack.c.l.b16 %v1693
        %v1766 = vunpack.c.l.b16 %v1694
        %v1767 = vunpack.c.l.b16 %v1695
        %v1768 = vunpack.c.l.b16 %v1696
        %v1769 = vpack.c.b16 %v1766, %v1765
        %v1770 = vpack.c.b16 %v1768, %v1767
        %v1774 = vsel %vm293, %v1691, 0
        %1776 = vmatprep.subr.bf16.mxu0 0
        %1777 = vmatpush1.bf16.msra.mxu0 %v1769
        %1778 = vmatprep.subr.bf16.mxu0 0
        %1779 = vmatpush1.bf16.msra.mxu0 %v1770
        %1780 = vmatprep.subr.bf16.mxu0 0
        %1781 = vmatpush1.bf16.msra.mxu0 0
        %1782 = vmatprep.subr.bf16.mxu0 0
        %1783 = vmatpush1.bf16.msra.mxu0 0
        %1784 = vmatprep.subr.bf16.mxu0 0
        %1785 = vmatpush1.bf16.msra.mxu0 0
        %1786 = vmatprep.subr.bf16.mxu0 0
        %1787 = vmatpush1.bf16.msra.mxu0 0
        %1788 = vmatprep.subr.bf16.mxu0 0
        %1789 = vmatpush1.bf16.msra.mxu0 0
        %1790 = vmatprep.subr.bf16.mxu0 0
        %1791 = vmatpush1.bf16.msra.mxu0 0
        %1792 = vmatprep.subr.bf16.mxu0 0
        %1793 = vmatpush1.bf16.msra.mxu0 0
        %1794 = vmatprep.subr.bf16.mxu0 0
        %1795 = vmatpush1.bf16.msra.mxu0 0
        %1796 = vmatprep.subr.bf16.mxu0 0
        %1797 = vmatpush1.bf16.msra.mxu0 0
        %1798 = vmatprep.subr.bf16.mxu0 0
        %1799 = vmatpush1.bf16.msra.mxu0 0
        %1800 = vmatprep.subr.bf16.mxu0 0
        %1801 = vmatpush1.bf16.msra.mxu0 0
        %1802 = vmatprep.subr.bf16.mxu0 0
        %1803 = vmatpush1.bf16.msra.mxu0 0
        %1804 = vmatprep.subr.bf16.mxu0 0
        %1805 = vmatpush1.bf16.msra.mxu0 0
        %1806 = vmatprep.subr.bf16.mxu0 0
        %1807 = vmatpush1.bf16.msra.mxu0 0
        %1808 = vmatprep.mubr.bf16.mxu0 0
        %1809 = vmatmul.mubr.bf16.gmra.mrb[0].mxu0 %v1774
        %v1810 = vpop.f32.mrb[0].mxu0
        %v1811 = vadd.f32 %v1755, %v1810
        %v1812 = vpop.f32.mrb[0].mxu0
        %v1813 = vpop.f32.mrb[0].mxu0
        %v1814 = vadd.f32 %v1758, %v1813
        %v1815 = vpop.f32.mrb[0].mxu0
        %1816 = vdwg.mxu0
        %v1817 = vpack.c.bf16 %v1688, %v1687
        %s1818 = scalar_lea.vmem [#allocation3], 224
        %v1819 = vld [vmem:[%s1818] sm:$0xf]
        %v1820 = vld [vmem:[%s1818 + $0x4] sm:$0xf]
        %v1821 = vld [vmem:[%s1818 + $0x8] sm:$0xf]
        %v1822 = vld [vmem:[%s1818 + $0xc] sm:$0xf]
        %v1827 = vunpack.c.l.b16 %v1819
        %v1828 = vunpack.c.l.b16 %v1820
        %v1829 = vunpack.c.l.b16 %v1821
        %v1830 = vunpack.c.l.b16 %v1822
        %v1831 = vpack.c.b16 %v1828, %v1827
        %v1832 = vpack.c.b16 %v1830, %v1829
        %v1836 = vsel %vm293, %v1817, 0
        %1838 = vmatprep.subr.bf16.mxu0 0
        %1839 = vmatpush1.bf16.msra.mxu0 %v1831
        %1840 = vmatprep.subr.bf16.mxu0 0
        %1841 = vmatpush1.bf16.msra.mxu0 %v1832
        %1842 = vmatprep.subr.bf16.mxu0 0
        %1843 = vmatpush1.bf16.msra.mxu0 0
        %1844 = vmatprep.subr.bf16.mxu0 0
        %1845 = vmatpush1.bf16.msra.mxu0 0
        %1846 = vmatprep.subr.bf16.mxu0 0
        %1847 = vmatpush1.bf16.msra.mxu0 0
        %1848 = vmatprep.subr.bf16.mxu0 0
        %1849 = vmatpush1.bf16.msra.mxu0 0
        %1850 = vmatprep.subr.bf16.mxu0 0
        %1851 = vmatpush1.bf16.msra.mxu0 0
        %1852 = vmatprep.subr.bf16.mxu0 0
        %1853 = vmatpush1.bf16.msra.mxu0 0
        %1854 = vmatprep.subr.bf16.mxu0 0
        %1855 = vmatpush1.bf16.msra.mxu0 0
        %1856 = vmatprep.subr.bf16.mxu0 0
        %1857 = vmatpush1.bf16.msra.mxu0 0
        %1858 = vmatprep.subr.bf16.mxu0 0
        %1859 = vmatpush1.bf16.msra.mxu0 0
        %1860 = vmatprep.subr.bf16.mxu0 0
        %1861 = vmatpush1.bf16.msra.mxu0 0
        %1862 = vmatprep.subr.bf16.mxu0 0
        %1863 = vmatpush1.bf16.msra.mxu0 0
        %1864 = vmatprep.subr.bf16.mxu0 0
        %1865 = vmatpush1.bf16.msra.mxu0 0
        %1866 = vmatprep.subr.bf16.mxu0 0
        %1867 = vmatpush1.bf16.msra.mxu0 0
        %1868 = vmatprep.subr.bf16.mxu0 0
        %1869 = vmatpush1.bf16.msra.mxu0 0
        %1870 = vmatprep.mubr.bf16.mxu0 0
        %1871 = vmatmul.mubr.bf16.gmra.mrb[0].mxu0 %v1836
        %v1872 = vpop.f32.mrb[0].mxu0
        %v1873 = vadd.f32 0.0, %v1872
        %v1874 = vpop.f32.mrb[0].mxu0
        %v1875 = vpop.f32.mrb[0].mxu0
        %v1876 = vadd.f32 0.0, %v1875
        %v1877 = vpop.f32.mrb[0].mxu0
        %1878 = vdwg.mxu0
        %v1879 = vadd.f32 %v1811, %v1873
        %v1880 = vadd.f32 %v1814, %v1876
        %s1881 = scalar_lea.vmem %s2, 4
        %v1882 = vld [vmem:[%s1881] sm:$0x1]
        %v1884 = vlaneseq
        %v1885 = vshrl.u32 %v1884, 7
        %v1886 = vsub.s32 0, %v1885
        %v1887 = vrot.slane %v1882, %v1886
        %v1889 = vadd.f32 %v1879, %v1887
        %v1890 = vadd.f32 %v1880, %v1887
        %s1891 = scalar_lea.vmem %s3, 4
        %v1892 = vld [vmem:[%s1891] sm:$0x1]
        %s1893 = scalar_lea.vmem %s4, 4
        %v1894 = vld [vmem:[%s1893] sm:$0x1]
        %v1895 = vsel %vm293, %v1889, 0.0
        %1896 = vadd.xlane.f32.xlu0 %v1895
        %v1897 = vpop.xlane.xlu0 %1896
        %v1898 = vsel %vm293, %v1890, 0.0
        %1899 = vadd.xlane.f32.xlu0 %v1898
        %v1900 = vpop.xlane.xlu0 %1899
        %v1901 = vmul.f32 %v1897, %v518
        %v1902 = vmul.f32 %v1900, %v518
        %v1903 = vsub.f32 %v1889, %v1901
        %v1904 = vsub.f32 %v1890, %v1902
        %v1905 = vmul.f32 %v1903, %v1903
        %v1906 = vmul.f32 %v1904, %v1904
        %v1907 = vsel %vm293, %v1905, 0.0
        %1908 = vadd.xlane.f32.xlu0 %v1907
        %v1909 = vpop.xlane.xlu0 %1908
        %v1910 = vsel %vm293, %v1906, 0.0
        %1911 = vadd.xlane.f32.xlu0 %v1910
        %v1912 = vpop.xlane.xlu0 %1911
        %v1913 = vmul.f32 %v1909, %v518
        %v1914 = vmul.f32 %v1912, %v518
        %v1915 = vadd.f32 %v1913, 1e-05
        %v1916 = vadd.f32 %v1914, 1e-05
        %v1917 = vrsqrt.pop %v1915
        %v1918 = vrsqrt.pop %v1916
        %v1919 = vmul.f32 %v1903, %v1917
        %v1920 = vmul.f32 %v1904, %v1918
        %v1922 = vlaneseq
        %v1923 = vshrl.u32 %v1922, 7
        %v1924 = vsub.s32 0, %v1923
        %v1925 = vrot.slane %v1892, %v1924
        %v1927 = vmul.f32 %v1919, %v1925
        %v1928 = vmul.f32 %v1920, %v1925
        %v1930 = vlaneseq
        %v1931 = vshrl.u32 %v1930, 7
        %v1932 = vsub.s32 0, %v1931
        %v1933 = vrot.slane %v1894, %v1932
        %v1935 = vadd.f32 %v1927, %v1933
        %v1936 = vadd.f32 %v1928, %v1933
        %s1937 = scalar_lea.vmem %s5, 4
        %v1938 = vld [vmem:[%s1937] sm:$0x1]
        %s1939 = scalar_lea.vmem %s6, 4
        %v1940 = vld [vmem:[%s1939] sm:$0x1]
        %1943 = vrot.lane.b32.xlu0 %v1889, 96
        %v1944 = vpop.permute.xlu0 %1943
        %1945 = vrot.lane.b32.xlu0 %v1890, 96
        %v1946 = vpop.permute.xlu0 %1945
        %v1949 = vsel %vm293, %v1944, 0.0
        %1950 = vadd.xlane.f32.xlu0 %v1949
        %v1951 = vpop.xlane.xlu0 %1950
        %v1952 = vsel %vm293, %v1946, 0.0
        %1953 = vadd.xlane.f32.xlu0 %v1952
        %v1954 = vpop.xlane.xlu0 %1953
        %v1955 = vmul.f32 %v1951, %v518
        %v1956 = vmul.f32 %v1954, %v518
        %v1957 = vsub.f32 %v1889, %v1955
        %v1958 = vsub.f32 %v1890, %v1956
        %v1959 = vmul.f32 %v1957, %v1957
        %v1960 = vmul.f32 %v1958, %v1958
        %1963 = vrot.lane.b32.xlu0 %v1959, 96
        %v1964 = vpop.permute.xlu0 %1963
        %1965 = vrot.lane.b32.xlu0 %v1960, 96
        %v1966 = vpop.permute.xlu0 %1965
        %v1969 = vsel %vm293, %v1964, 0.0
        %1970 = vadd.xlane.f32.xlu0 %v1969
        %v1971 = vpop.xlane.xlu0 %1970
        %v1972 = vsel %vm293, %v1966, 0.0
        %1973 = vadd.xlane.f32.xlu0 %v1972
        %v1974 = vpop.xlane.xlu0 %1973
        %v1975 = vmul.f32 %v1971, %v518
        %v1976 = vmul.f32 %v1974, %v518
        %v1977 = vadd.f32 %v1975, 1e-05
        %v1978 = vadd.f32 %v1976, 1e-05
        %v1979 = vrsqrt.pop %v1977
        %v1980 = vrsqrt.pop %v1978
        %v1981 = vmul.f32 %v1957, %v1979
        %v1982 = vmul.f32 %v1958, %v1980
        %v1984 = vlaneseq
        %v1985 = vshrl.u32 %v1984, 7
        %v1986 = vsub.s32 0, %v1985
        %v1987 = vrot.slane %v1938, %v1986
        %1988 = vrot.lane.b32.xlu0 %v1987, 32
        %v1989 = vpop.permute.xlu0 %1988
        %v1991 = vmul.f32 %v1981, %v1989
        %v1992 = vmul.f32 %v1982, %v1989
        %v1994 = vlaneseq
        %v1995 = vshrl.u32 %v1994, 7
        %v1996 = vsub.s32 0, %v1995
        %v1997 = vrot.slane %v1940, %v1996
        %1998 = vrot.lane.b32.xlu0 %v1997, 32
        %v1999 = vpop.permute.xlu0 %1998
        %v2001 = vadd.f32 %v1991, %v1999
        %v2002 = vadd.f32 %v1992, %v1999
        %v2003 = vxor.u32 %v1935, 2147483648
        %v2004 = vxor.u32 %v1936, 2147483648
        %v2005 = vmul.f32 %v2003, 1.442695
        %v2006 = vpow.pop %v2005
        %v2007 = vmul.f32 %v2004, 1.442695
        %v2008 = vpow.pop %v2007
        %v2009 = vadd.f32 %v2006, 1.0
        %v2010 = vadd.f32 %v2008, 1.0
        %v2011 = vrcp.pop %v2009
        %v2012 = vmul.f32 1.0, %v2011
        %v2013 = vrcp.pop %v2010
        %v2014 = vmul.f32 1.0, %v2013
        %2017 = vrot.lane.b32.xlu0 %v2001, 96
        %v2018 = vpop.permute.xlu0 %2017
        %2019 = vrot.lane.b32.xlu0 %v2002, 96
        %v2020 = vpop.permute.xlu0 %2019
        %v2023 = vmul.f32 %v2012, %v2018
        %v2024 = vmul.f32 %v2014, %v2020
        %v2025 = vsub.f32 1.0, %v2012
        %v2026 = vsub.f32 1.0, %v2014
        %v2027 = vmul.f32 %v2025, %v1687
        %v2028 = vmul.f32 %v2026, %v1688
        %v2029 = vadd.f32 %v2023, %v2027
        %v2030 = vadd.f32 %v2024, %v2028
        %2031 = vst.msk [vmem:[#allocation2 + $0x36] sm:$0xff] %vm293, %v2029
        %2032 = vst.msk [vmem:[#allocation2 + $0x3e] sm:$0xff] %vm293, %v2030
        %v2033 = vld [vmem:[#allocation2 + $0x36] sm:$0xff]
        %v2034 = vld [vmem:[#allocation2 + $0x3e] sm:$0xff]
        %v2035 = vld [vmem:[#allocation2 + $0x30] sm:$0xff]
        %v2036 = vld [vmem:[#allocation2 + $0x38] sm:$0xff]
        %v2037 = vpack.c.bf16 %v2036, %v2035
        %s2038 = scalar_lea.vmem [#allocation3], 240
        %v2039 = vld [vmem:[%s2038] sm:$0xf]
        %v2040 = vld [vmem:[%s2038 + $0x4] sm:$0xf]
        %v2041 = vld [vmem:[%s2038 + $0x8] sm:$0xf]
        %v2042 = vld [vmem:[%s2038 + $0xc] sm:$0xf]
        %v2043 = vld [vmem:[#allocation2 + $0x33] sm:$0xff]
        %v2044 = vld [vmem:[#allocation2 + $0x3b] sm:$0xff]
        %v2045 = vpack.c.bf16 %v2044, %v2043
        %s2046 = scalar_lea.vmem [#allocation3], 256
        %v2047 = vld [vmem:[%s2046] sm:$0xf]
        %v2048 = vld [vmem:[%s2046 + $0x4] sm:$0xf]
        %v2049 = vld [vmem:[%s2046 + $0x8] sm:$0xf]
        %v2050 = vld [vmem:[%s2046 + $0xc] sm:$0xf]
        %v2055 = vunpack.c.l.b16 %v2047
        %v2056 = vunpack.c.l.b16 %v2048
        %v2057 = vunpack.c.l.b16 %v2049
        %v2058 = vunpack.c.l.b16 %v2050
        %v2059 = vpack.c.b16 %v2056, %v2055
        %v2060 = vpack.c.b16 %v2058, %v2057
        %v2064 = vsel %vm293, %v2045, 0
        %2066 = vmatprep.subr.bf16.mxu0 0
        %2067 = vmatpush1.bf16.msra.mxu0 %v2059
        %2068 = vmatprep.subr.bf16.mxu0 0
        %2069 = vmatpush1.bf16.msra.mxu0 %v2060
        %2070 = vmatprep.subr.bf16.mxu0 0
        %2071 = vmatpush1.bf16.msra.mxu0 0
        %2072 = vmatprep.subr.bf16.mxu0 0
        %2073 = vmatpush1.bf16.msra.mxu0 0
        %2074 = vmatprep.subr.bf16.mxu0 0
        %2075 = vmatpush1.bf16.msra.mxu0 0
        %2076 = vmatprep.subr.bf16.mxu0 0
        %2077 = vmatpush1.bf16.msra.mxu0 0
        %2078 = vmatprep.subr.bf16.mxu0 0
        %2079 = vmatpush1.bf16.msra.mxu0 0
        %2080 = vmatprep.subr.bf16.mxu0 0
        %2081 = vmatpush1.bf16.msra.mxu0 0
        %2082 = vmatprep.subr.bf16.mxu0 0
        %2083 = vmatpush1.bf16.msra.mxu0 0
        %2084 = vmatprep.subr.bf16.mxu0 0
        %2085 = vmatpush1.bf16.msra.mxu0 0
        %2086 = vmatprep.subr.bf16.mxu0 0
        %2087 = vmatpush1.bf16.msra.mxu0 0
        %2088 = vmatprep.subr.bf16.mxu0 0
        %2089 = vmatpush1.bf16.msra.mxu0 0
        %2090 = vmatprep.subr.bf16.mxu0 0
        %2091 = vmatpush1.bf16.msra.mxu0 0
        %2092 = vmatprep.subr.bf16.mxu0 0
        %2093 = vmatpush1.bf16.msra.mxu0 0
        %2094 = vmatprep.subr.bf16.mxu0 0
        %2095 = vmatpush1.bf16.msra.mxu0 0
        %2096 = vmatprep.subr.bf16.mxu0 0
        %2097 = vmatpush1.bf16.msra.mxu0 0
        %2098 = vmatprep.mubr.bf16.mxu0 0
        %2099 = vmatmul.mubr.bf16.gmra.mrb[0].mxu0 %v2064
        %v2100 = vpop.f32.mrb[0].mxu0
        %v2101 = vadd.f32 0.0, %v2100
        %v2102 = vpop.f32.mrb[0].mxu0
        %v2103 = vpop.f32.mrb[0].mxu0
        %v2104 = vadd.f32 0.0, %v2103
        %v2105 = vpop.f32.mrb[0].mxu0
        %2106 = vdwg.mxu0
        %v2111 = vunpack.c.l.b16 %v2039
        %v2112 = vunpack.c.l.b16 %v2040
        %v2113 = vunpack.c.l.b16 %v2041
        %v2114 = vunpack.c.l.b16 %v2042
        %v2115 = vpack.c.b16 %v2112, %v2111
        %v2116 = vpack.c.b16 %v2114, %v2113
        %v2120 = vsel %vm293, %v2037, 0
        %2122 = vmatprep.subr.bf16.mxu0 0
        %2123 = vmatpush1.bf16.msra.mxu0 %v2115
        %2124 = vmatprep.subr.bf16.mxu0 0
        %2125 = vmatpush1.bf16.msra.mxu0 %v2116
        %2126 = vmatprep.subr.bf16.mxu0 0
        %2127 = vmatpush1.bf16.msra.mxu0 0
        %2128 = vmatprep.subr.bf16.mxu0 0
        %2129 = vmatpush1.bf16.msra.mxu0 0
        %2130 = vmatprep.subr.bf16.mxu0 0
        %2131 = vmatpush1.bf16.msra.mxu0 0
        %2132 = vmatprep.subr.bf16.mxu0 0
        %2133 = vmatpush1.bf16.msra.mxu0 0
        %2134 = vmatprep.subr.bf16.mxu0 0
        %2135 = vmatpush1.bf16.msra.mxu0 0
        %2136 = vmatprep.subr.bf16.mxu0 0
        %2137 = vmatpush1.bf16.msra.mxu0 0
        %2138 = vmatprep.subr.bf16.mxu0 0
        %2139 = vmatpush1.bf16.msra.mxu0 0
        %2140 = vmatprep.subr.bf16.mxu0 0
        %2141 = vmatpush1.bf16.msra.mxu0 0
        %2142 = vmatprep.subr.bf16.mxu0 0
        %2143 = vmatpush1.bf16.msra.mxu0 0
        %2144 = vmatprep.subr.bf16.mxu0 0
        %2145 = vmatpush1.bf16.msra.mxu0 0
        %2146 = vmatprep.subr.bf16.mxu0 0
        %2147 = vmatpush1.bf16.msra.mxu0 0
        %2148 = vmatprep.subr.bf16.mxu0 0
        %2149 = vmatpush1.bf16.msra.mxu0 0
        %2150 = vmatprep.subr.bf16.mxu0 0
        %2151 = vmatpush1.bf16.msra.mxu0 0
        %2152 = vmatprep.subr.bf16.mxu0 0
        %2153 = vmatpush1.bf16.msra.mxu0 0
        %2154 = vmatprep.mubr.bf16.mxu0 0
        %2155 = vmatmul.mubr.bf16.gmra.mrb[0].mxu0 %v2120
        %v2156 = vpop.f32.mrb[0].mxu0
        %v2157 = vadd.f32 %v2101, %v2156
        %v2158 = vpop.f32.mrb[0].mxu0
        %v2159 = vpop.f32.mrb[0].mxu0
        %v2160 = vadd.f32 %v2104, %v2159
        %v2161 = vpop.f32.mrb[0].mxu0
        %2162 = vdwg.mxu0
        %v2163 = vpack.c.bf16 %v2034, %v2033
        %s2164 = scalar_lea.vmem [#allocation3], 272
        %v2165 = vld [vmem:[%s2164] sm:$0xf]
        %v2166 = vld [vmem:[%s2164 + $0x4] sm:$0xf]
        %v2167 = vld [vmem:[%s2164 + $0x8] sm:$0xf]
        %v2168 = vld [vmem:[%s2164 + $0xc] sm:$0xf]
        %v2173 = vunpack.c.l.b16 %v2165
        %v2174 = vunpack.c.l.b16 %v2166
        %v2175 = vunpack.c.l.b16 %v2167
        %v2176 = vunpack.c.l.b16 %v2168
        %v2177 = vpack.c.b16 %v2174, %v2173
        %v2178 = vpack.c.b16 %v2176, %v2175
        %v2182 = vsel %vm293, %v2163, 0
        %2184 = vmatprep.subr.bf16.mxu0 0
        %2185 = vmatpush1.bf16.msra.mxu0 %v2177
        %2186 = vmatprep.subr.bf16.mxu0 0
        %2187 = vmatpush1.bf16.msra.mxu0 %v2178
        %2188 = vmatprep.subr.bf16.mxu0 0
        %2189 = vmatpush1.bf16.msra.mxu0 0
        %2190 = vmatprep.subr.bf16.mxu0 0
        %2191 = vmatpush1.bf16.msra.mxu0 0
        %2192 = vmatprep.subr.bf16.mxu0 0
        %2193 = vmatpush1.bf16.msra.mxu0 0
        %2194 = vmatprep.subr.bf16.mxu0 0
        %2195 = vmatpush1.bf16.msra.mxu0 0
        %2196 = vmatprep.subr.bf16.mxu0 0
        %2197 = vmatpush1.bf16.msra.mxu0 0
        %2198 = vmatprep.subr.bf16.mxu0 0
        %2199 = vmatpush1.bf16.msra.mxu0 0
        %2200 = vmatprep.subr.bf16.mxu0 0
        %2201 = vmatpush1.bf16.msra.mxu0 0
        %2202 = vmatprep.subr.bf16.mxu0 0
        %2203 = vmatpush1.bf16.msra.mxu0 0
        %2204 = vmatprep.subr.bf16.mxu0 0
        %2205 = vmatpush1.bf16.msra.mxu0 0
        %2206 = vmatprep.subr.bf16.mxu0 0
        %2207 = vmatpush1.bf16.msra.mxu0 0
        %2208 = vmatprep.subr.bf16.mxu0 0
        %2209 = vmatpush1.bf16.msra.mxu0 0
        %2210 = vmatprep.subr.bf16.mxu0 0
        %2211 = vmatpush1.bf16.msra.mxu0 0
        %2212 = vmatprep.subr.bf16.mxu0 0
        %2213 = vmatpush1.bf16.msra.mxu0 0
        %2214 = vmatprep.subr.bf16.mxu0 0
        %2215 = vmatpush1.bf16.msra.mxu0 0
        %2216 = vmatprep.mubr.bf16.mxu0 0
        %2217 = vmatmul.mubr.bf16.gmra.mrb[0].mxu0 %v2182
        %v2218 = vpop.f32.mrb[0].mxu0
        %v2219 = vadd.f32 0.0, %v2218
        %v2220 = vpop.f32.mrb[0].mxu0
        %v2221 = vpop.f32.mrb[0].mxu0
        %v2222 = vadd.f32 0.0, %v2221
        %v2223 = vpop.f32.mrb[0].mxu0
        %2224 = vdwg.mxu0
        %v2225 = vadd.f32 %v2157, %v2219
        %v2226 = vadd.f32 %v2160, %v2222
        %s2227 = scalar_lea.vmem %s2, 5
        %v2228 = vld [vmem:[%s2227] sm:$0x1]
        %v2230 = vlaneseq
        %v2231 = vshrl.u32 %v2230, 7
        %v2232 = vsub.s32 0, %v2231
        %v2233 = vrot.slane %v2228, %v2232
        %v2235 = vadd.f32 %v2225, %v2233
        %v2236 = vadd.f32 %v2226, %v2233
        %s2237 = scalar_lea.vmem %s3, 5
        %v2238 = vld [vmem:[%s2237] sm:$0x1]
        %s2239 = scalar_lea.vmem %s4, 5
        %v2240 = vld [vmem:[%s2239] sm:$0x1]
        %v2241 = vsel %vm293, %v2235, 0.0
        %2242 = vadd.xlane.f32.xlu0 %v2241
        %v2243 = vpop.xlane.xlu0 %2242
        %v2244 = vsel %vm293, %v2236, 0.0
        %2245 = vadd.xlane.f32.xlu0 %v2244
        %v2246 = vpop.xlane.xlu0 %2245
        %v2247 = vmul.f32 %v2243, %v518
        %v2248 = vmul.f32 %v2246, %v518
        %v2249 = vsub.f32 %v2235, %v2247
        %v2250 = vsub.f32 %v2236, %v2248
        %v2251 = vmul.f32 %v2249, %v2249
        %v2252 = vmul.f32 %v2250, %v2250
        %v2253 = vsel %vm293, %v2251, 0.0
        %2254 = vadd.xlane.f32.xlu0 %v2253
        %v2255 = vpop.xlane.xlu0 %2254
        %v2256 = vsel %vm293, %v2252, 0.0
        %2257 = vadd.xlane.f32.xlu0 %v2256
        %v2258 = vpop.xlane.xlu0 %2257
        %v2259 = vmul.f32 %v2255, %v518
        %v2260 = vmul.f32 %v2258, %v518
        %v2261 = vadd.f32 %v2259, 1e-05
        %v2262 = vadd.f32 %v2260, 1e-05
        %v2263 = vrsqrt.pop %v2261
        %v2264 = vrsqrt.pop %v2262
        %v2265 = vmul.f32 %v2249, %v2263
        %v2266 = vmul.f32 %v2250, %v2264
        %v2268 = vlaneseq
        %v2269 = vshrl.u32 %v2268, 7
        %v2270 = vsub.s32 0, %v2269
        %v2271 = vrot.slane %v2238, %v2270
        %v2273 = vmul.f32 %v2265, %v2271
        %v2274 = vmul.f32 %v2266, %v2271
        %v2276 = vlaneseq
        %v2277 = vshrl.u32 %v2276, 7
        %v2278 = vsub.s32 0, %v2277
        %v2279 = vrot.slane %v2240, %v2278
        %v2281 = vadd.f32 %v2273, %v2279
        %v2282 = vadd.f32 %v2274, %v2279
        %s2283 = scalar_lea.vmem %s5, 5
        %v2284 = vld [vmem:[%s2283] sm:$0x1]
        %s2285 = scalar_lea.vmem %s6, 5
        %v2286 = vld [vmem:[%s2285] sm:$0x1]
        %2289 = vrot.lane.b32.xlu0 %v2235, 96
        %v2290 = vpop.permute.xlu0 %2289
        %2291 = vrot.lane.b32.xlu0 %v2236, 96
        %v2292 = vpop.permute.xlu0 %2291
        %v2295 = vsel %vm293, %v2290, 0.0
        %2296 = vadd.xlane.f32.xlu0 %v2295
        %v2297 = vpop.xlane.xlu0 %2296
        %v2298 = vsel %vm293, %v2292, 0.0
        %2299 = vadd.xlane.f32.xlu0 %v2298
        %v2300 = vpop.xlane.xlu0 %2299
        %v2301 = vmul.f32 %v2297, %v518
        %v2302 = vmul.f32 %v2300, %v518
        %v2303 = vsub.f32 %v2235, %v2301
        %v2304 = vsub.f32 %v2236, %v2302
        %v2305 = vmul.f32 %v2303, %v2303
        %v2306 = vmul.f32 %v2304, %v2304
        %2309 = vrot.lane.b32.xlu0 %v2305, 96
        %v2310 = vpop.permute.xlu0 %2309
        %2311 = vrot.lane.b32.xlu0 %v2306, 96
        %v2312 = vpop.permute.xlu0 %2311
        %v2315 = vsel %vm293, %v2310, 0.0
        %2316 = vadd.xlane.f32.xlu0 %v2315
        %v2317 = vpop.xlane.xlu0 %2316
        %v2318 = vsel %vm293, %v2312, 0.0
        %2319 = vadd.xlane.f32.xlu0 %v2318
        %v2320 = vpop.xlane.xlu0 %2319
        %v2321 = vmul.f32 %v2317, %v518
        %v2322 = vmul.f32 %v2320, %v518
        %v2323 = vadd.f32 %v2321, 1e-05
        %v2324 = vadd.f32 %v2322, 1e-05
        %v2325 = vrsqrt.pop %v2323
        %v2326 = vrsqrt.pop %v2324
        %v2327 = vmul.f32 %v2303, %v2325
        %v2328 = vmul.f32 %v2304, %v2326
        %v2330 = vlaneseq
        %v2331 = vshrl.u32 %v2330, 7
        %v2332 = vsub.s32 0, %v2331
        %v2333 = vrot.slane %v2284, %v2332
        %2334 = vrot.lane.b32.xlu0 %v2333, 32
        %v2335 = vpop.permute.xlu0 %2334
        %v2337 = vmul.f32 %v2327, %v2335
        %v2338 = vmul.f32 %v2328, %v2335
        %v2340 = vlaneseq
        %v2341 = vshrl.u32 %v2340, 7
        %v2342 = vsub.s32 0, %v2341
        %v2343 = vrot.slane %v2286, %v2342
        %2344 = vrot.lane.b32.xlu0 %v2343, 32
        %v2345 = vpop.permute.xlu0 %2344
        %v2347 = vadd.f32 %v2337, %v2345
        %v2348 = vadd.f32 %v2338, %v2345
        %v2349 = vxor.u32 %v2281, 2147483648
        %v2350 = vxor.u32 %v2282, 2147483648
        %v2351 = vmul.f32 %v2349, 1.442695
        %v2352 = vpow.pop %v2351
        %v2353 = vmul.f32 %v2350, 1.442695
        %v2354 = vpow.pop %v2353
        %v2355 = vadd.f32 %v2352, 1.0
        %v2356 = vadd.f32 %v2354, 1.0
        %v2357 = vrcp.pop %v2355
        %v2358 = vmul.f32 1.0, %v2357
        %v2359 = vrcp.pop %v2356
        %v2360 = vmul.f32 1.0, %v2359
        %2363 = vrot.lane.b32.xlu0 %v2347, 96
        %v2364 = vpop.permute.xlu0 %2363
        %2365 = vrot.lane.b32.xlu0 %v2348, 96
        %v2366 = vpop.permute.xlu0 %2365
        %v2369 = vmul.f32 %v2358, %v2364
        %v2370 = vmul.f32 %v2360, %v2366
        %v2371 = vsub.f32 1.0, %v2358
        %v2372 = vsub.f32 1.0, %v2360
        %v2373 = vmul.f32 %v2371, %v2033
        %v2374 = vmul.f32 %v2372, %v2034
        %v2375 = vadd.f32 %v2369, %v2373
        %v2376 = vadd.f32 %v2370, %v2374
        %2377 = vst.msk [vmem:[#allocation2 + $0x36] sm:$0xff] %vm293, %v2375
        %2378 = vst.msk [vmem:[#allocation2 + $0x3e] sm:$0xff] %vm293, %v2376
        %v2379 = vld [vmem:[#allocation2 + $0x36] sm:$0xff]
        %v2380 = vld [vmem:[#allocation2 + $0x3e] sm:$0xff]
        %v2381 = vld [vmem:[#allocation2 + $0x24] sm:$0xff]
        %v2382 = vld [vmem:[#allocation2 + $0x2c] sm:$0xff]
        %v2383 = vpack.c.bf16 %v2382, %v2381
        %s2384 = scalar_lea.vmem [#allocation3], 288
        %v2385 = vld [vmem:[%s2384] sm:$0xf]
        %v2386 = vld [vmem:[%s2384 + $0x4] sm:$0xf]
        %v2387 = vld [vmem:[%s2384 + $0x8] sm:$0xf]
        %v2388 = vld [vmem:[%s2384 + $0xc] sm:$0xf]
        %v2389 = vld [vmem:[#allocation2 + $0x2d] sm:$0xff]
        %v2390 = vld [vmem:[#allocation2 + $0x35] sm:$0xff]
        %v2391 = vpack.c.bf16 %v2390, %v2389
        %s2392 = scalar_lea.vmem [#allocation3], 304
        %v2393 = vld [vmem:[%s2392] sm:$0xf]
        %v2394 = vld [vmem:[%s2392 + $0x4] sm:$0xf]
        %v2395 = vld [vmem:[%s2392 + $0x8] sm:$0xf]
        %v2396 = vld [vmem:[%s2392 + $0xc] sm:$0xf]
        %v2401 = vunpack.c.l.b16 %v2393
        %v2402 = vunpack.c.l.b16 %v2394
        %v2403 = vunpack.c.l.b16 %v2395
        %v2404 = vunpack.c.l.b16 %v2396
        %v2405 = vpack.c.b16 %v2402, %v2401
        %v2406 = vpack.c.b16 %v2404, %v2403
        %v2410 = vsel %vm293, %v2391, 0
        %2412 = vmatprep.subr.bf16.mxu0 0
        %2413 = vmatpush1.bf16.msra.mxu0 %v2405
        %2414 = vmatprep.subr.bf16.mxu0 0
        %2415 = vmatpush1.bf16.msra.mxu0 %v2406
        %2416 = vmatprep.subr.bf16.mxu0 0
        %2417 = vmatpush1.bf16.msra.mxu0 0
        %2418 = vmatprep.subr.bf16.mxu0 0
        %2419 = vmatpush1.bf16.msra.mxu0 0
        %2420 = vmatprep.subr.bf16.mxu0 0
        %2421 = vmatpush1.bf16.msra.mxu0 0
        %2422 = vmatprep.subr.bf16.mxu0 0
        %2423 = vmatpush1.bf16.msra.mxu0 0
        %2424 = vmatprep.subr.bf16.mxu0 0
        %2425 = vmatpush1.bf16.msra.mxu0 0
        %2426 = vmatprep.subr.bf16.mxu0 0
        %2427 = vmatpush1.bf16.msra.mxu0 0
        %2428 = vmatprep.subr.bf16.mxu0 0
        %2429 = vmatpush1.bf16.msra.mxu0 0
        %2430 = vmatprep.subr.bf16.mxu0 0
        %2431 = vmatpush1.bf16.msra.mxu0 0
        %2432 = vmatprep.subr.bf16.mxu0 0
        %2433 = vmatpush1.bf16.msra.mxu0 0
        %2434 = vmatprep.subr.bf16.mxu0 0
        %2435 = vmatpush1.bf16.msra.mxu0 0
        %2436 = vmatprep.subr.bf16.mxu0 0
        %2437 = vmatpush1.bf16.msra.mxu0 0
        %2438 = vmatprep.subr.bf16.mxu0 0
        %2439 = vmatpush1.bf16.msra.mxu0 0
        %2440 = vmatprep.subr.bf16.mxu0 0
        %2441 = vmatpush1.bf16.msra.mxu0 0
        %2442 = vmatprep.subr.bf16.mxu0 0
        %2443 = vmatpush1.bf16.msra.mxu0 0
        %2444 = vmatprep.mubr.bf16.mxu0 0
        %2445 = vmatmul.mubr.bf16.gmra.mrb[0].mxu0 %v2410
        %v2446 = vpop.f32.mrb[0].mxu0
        %v2447 = vadd.f32 0.0, %v2446
        %v2448 = vpop.f32.mrb[0].mxu0
        %v2449 = vpop.f32.mrb[0].mxu0
        %v2450 = vadd.f32 0.0, %v2449
        %v2451 = vpop.f32.mrb[0].mxu0
        %2452 = vdwg.mxu0
        %v2457 = vunpack.c.l.b16 %v2385
        %v2458 = vunpack.c.l.b16 %v2386
        %v2459 = vunpack.c.l.b16 %v2387
        %v2460 = vunpack.c.l.b16 %v2388
        %v2461 = vpack.c.b16 %v2458, %v2457
        %v2462 = vpack.c.b16 %v2460, %v2459
        %v2466 = vsel %vm293, %v2383, 0
        %2468 = vmatprep.subr.bf16.mxu0 0
        %2469 = vmatpush1.bf16.msra.mxu0 %v2461
        %2470 = vmatprep.subr.bf16.mxu0 0
        %2471 = vmatpush1.bf16.msra.mxu0 %v2462
        %2472 = vmatprep.subr.bf16.mxu0 0
        %2473 = vmatpush1.bf16.msra.mxu0 0
        %2474 = vmatprep.subr.bf16.mxu0 0
        %2475 = vmatpush1.bf16.msra.mxu0 0
        %2476 = vmatprep.subr.bf16.mxu0 0
        %2477 = vmatpush1.bf16.msra.mxu0 0
        %2478 = vmatprep.subr.bf16.mxu0 0
        %2479 = vmatpush1.bf16.msra.mxu0 0
        %2480 = vmatprep.subr.bf16.mxu0 0
        %2481 = vmatpush1.bf16.msra.mxu0 0
        %2482 = vmatprep.subr.bf16.mxu0 0
        %2483 = vmatpush1.bf16.msra.mxu0 0
        %2484 = vmatprep.subr.bf16.mxu0 0
        %2485 = vmatpush1.bf16.msra.mxu0 0
        %2486 = vmatprep.subr.bf16.mxu0 0
        %2487 = vmatpush1.bf16.msra.mxu0 0
        %2488 = vmatprep.subr.bf16.mxu0 0
        %2489 = vmatpush1.bf16.msra.mxu0 0
        %2490 = vmatprep.subr.bf16.mxu0 0
        %2491 = vmatpush1.bf16.msra.mxu0 0
        %2492 = vmatprep.subr.bf16.mxu0 0
        %2493 = vmatpush1.bf16.msra.mxu0 0
        %2494 = vmatprep.subr.bf16.mxu0 0
        %2495 = vmatpush1.bf16.msra.mxu0 0
        %2496 = vmatprep.subr.bf16.mxu0 0
        %2497 = vmatpush1.bf16.msra.mxu0 0
        %2498 = vmatprep.subr.bf16.mxu0 0
        %2499 = vmatpush1.bf16.msra.mxu0 0
        %2500 = vmatprep.mubr.bf16.mxu0 0
        %2501 = vmatmul.mubr.bf16.gmra.mrb[0].mxu0 %v2466
        %v2502 = vpop.f32.mrb[0].mxu0
        %v2503 = vadd.f32 %v2447, %v2502
        %v2504 = vpop.f32.mrb[0].mxu0
        %v2505 = vpop.f32.mrb[0].mxu0
        %v2506 = vadd.f32 %v2450, %v2505
        %v2507 = vpop.f32.mrb[0].mxu0
        %2508 = vdwg.mxu0
        %v2509 = vpack.c.bf16 %v2380, %v2379
        %s2510 = scalar_lea.vmem [#allocation3], 320
        %v2511 = vld [vmem:[%s2510] sm:$0xf]
        %v2512 = vld [vmem:[%s2510 + $0x4] sm:$0xf]
        %v2513 = vld [vmem:[%s2510 + $0x8] sm:$0xf]
        %v2514 = vld [vmem:[%s2510 + $0xc] sm:$0xf]
        %v2519 = vunpack.c.l.b16 %v2511
        %v2520 = vunpack.c.l.b16 %v2512
        %v2521 = vunpack.c.l.b16 %v2513
        %v2522 = vunpack.c.l.b16 %v2514
        %v2523 = vpack.c.b16 %v2520, %v2519
        %v2524 = vpack.c.b16 %v2522, %v2521
        %v2528 = vsel %vm293, %v2509, 0
        %2530 = vmatprep.subr.bf16.mxu0 0
        %2531 = vmatpush1.bf16.msra.mxu0 %v2523
        %2532 = vmatprep.subr.bf16.mxu0 0
        %2533 = vmatpush1.bf16.msra.mxu0 %v2524
        %2534 = vmatprep.subr.bf16.mxu0 0
        %2535 = vmatpush1.bf16.msra.mxu0 0
        %2536 = vmatprep.subr.bf16.mxu0 0
        %2537 = vmatpush1.bf16.msra.mxu0 0
        %2538 = vmatprep.subr.bf16.mxu0 0
        %2539 = vmatpush1.bf16.msra.mxu0 0
        %2540 = vmatprep.subr.bf16.mxu0 0
        %2541 = vmatpush1.bf16.msra.mxu0 0
        %2542 = vmatprep.subr.bf16.mxu0 0
        %2543 = vmatpush1.bf16.msra.mxu0 0
        %2544 = vmatprep.subr.bf16.mxu0 0
        %2545 = vmatpush1.bf16.msra.mxu0 0
        %2546 = vmatprep.subr.bf16.mxu0 0
        %2547 = vmatpush1.bf16.msra.mxu0 0
        %2548 = vmatprep.subr.bf16.mxu0 0
        %2549 = vmatpush1.bf16.msra.mxu0 0
        %2550 = vmatprep.subr.bf16.mxu0 0
        %2551 = vmatpush1.bf16.msra.mxu0 0
        %2552 = vmatprep.subr.bf16.mxu0 0
        %2553 = vmatpush1.bf16.msra.mxu0 0
        %2554 = vmatprep.subr.bf16.mxu0 0
        %2555 = vmatpush1.bf16.msra.mxu0 0
        %2556 = vmatprep.subr.bf16.mxu0 0
        %2557 = vmatpush1.bf16.msra.mxu0 0
        %2558 = vmatprep.subr.bf16.mxu0 0
        %2559 = vmatpush1.bf16.msra.mxu0 0
        %2560 = vmatprep.subr.bf16.mxu0 0
        %2561 = vmatpush1.bf16.msra.mxu0 0
        %2562 = vmatprep.mubr.bf16.mxu0 0
        %2563 = vmatmul.mubr.bf16.gmra.mrb[0].mxu0 %v2528
        %v2564 = vpop.f32.mrb[0].mxu0
        %v2565 = vadd.f32 0.0, %v2564
        %v2566 = vpop.f32.mrb[0].mxu0
        %v2567 = vpop.f32.mrb[0].mxu0
        %v2568 = vadd.f32 0.0, %v2567
        %v2569 = vpop.f32.mrb[0].mxu0
        %2570 = vdwg.mxu0
        %v2571 = vadd.f32 %v2503, %v2565
        %v2572 = vadd.f32 %v2506, %v2568
        %s2573 = scalar_lea.vmem %s2, 6
        %v2574 = vld [vmem:[%s2573] sm:$0x1]
        %v2576 = vlaneseq
        %v2577 = vshrl.u32 %v2576, 7
        %v2578 = vsub.s32 0, %v2577
        %v2579 = vrot.slane %v2574, %v2578
        %v2581 = vadd.f32 %v2571, %v2579
        %v2582 = vadd.f32 %v2572, %v2579
        %s2583 = scalar_lea.vmem %s3, 6
        %v2584 = vld [vmem:[%s2583] sm:$0x1]
        %s2585 = scalar_lea.vmem %s4, 6
        %v2586 = vld [vmem:[%s2585] sm:$0x1]
        %v2587 = vsel %vm293, %v2581, 0.0
        %2588 = vadd.xlane.f32.xlu0 %v2587
        %v2589 = vpop.xlane.xlu0 %2588
        %v2590 = vsel %vm293, %v2582, 0.0
        %2591 = vadd.xlane.f32.xlu0 %v2590
        %v2592 = vpop.xlane.xlu0 %2591
        %v2593 = vmul.f32 %v2589, %v518
        %v2594 = vmul.f32 %v2592, %v518
        %v2595 = vsub.f32 %v2581, %v2593
        %v2596 = vsub.f32 %v2582, %v2594
        %v2597 = vmul.f32 %v2595, %v2595
        %v2598 = vmul.f32 %v2596, %v2596
        %v2599 = vsel %vm293, %v2597, 0.0
        %2600 = vadd.xlane.f32.xlu0 %v2599
        %v2601 = vpop.xlane.xlu0 %2600
        %v2602 = vsel %vm293, %v2598, 0.0
        %2603 = vadd.xlane.f32.xlu0 %v2602
        %v2604 = vpop.xlane.xlu0 %2603
        %v2605 = vmul.f32 %v2601, %v518
        %v2606 = vmul.f32 %v2604, %v518
        %v2607 = vadd.f32 %v2605, 1e-05
        %v2608 = vadd.f32 %v2606, 1e-05
        %v2609 = vrsqrt.pop %v2607
        %v2610 = vrsqrt.pop %v2608
        %v2611 = vmul.f32 %v2595, %v2609
        %v2612 = vmul.f32 %v2596, %v2610
        %v2614 = vlaneseq
        %v2615 = vshrl.u32 %v2614, 7
        %v2616 = vsub.s32 0, %v2615
        %v2617 = vrot.slane %v2584, %v2616
        %v2619 = vmul.f32 %v2611, %v2617
        %v2620 = vmul.f32 %v2612, %v2617
        %v2622 = vlaneseq
        %v2623 = vshrl.u32 %v2622, 7
        %v2624 = vsub.s32 0, %v2623
        %v2625 = vrot.slane %v2586, %v2624
        %v2627 = vadd.f32 %v2619, %v2625
        %v2628 = vadd.f32 %v2620, %v2625
        %s2629 = scalar_lea.vmem %s5, 6
        %v2630 = vld [vmem:[%s2629] sm:$0x1]
        %s2631 = scalar_lea.vmem %s6, 6
        %v2632 = vld [vmem:[%s2631] sm:$0x1]
        %2635 = vrot.lane.b32.xlu0 %v2581, 96
        %v2636 = vpop.permute.xlu0 %2635
        %2637 = vrot.lane.b32.xlu0 %v2582, 96
        %v2638 = vpop.permute.xlu0 %2637
        %v2641 = vsel %vm293, %v2636, 0.0
        %2642 = vadd.xlane.f32.xlu0 %v2641
        %v2643 = vpop.xlane.xlu0 %2642
        %v2644 = vsel %vm293, %v2638, 0.0
        %2645 = vadd.xlane.f32.xlu0 %v2644
        %v2646 = vpop.xlane.xlu0 %2645
        %v2647 = vmul.f32 %v2643, %v518
        %v2648 = vmul.f32 %v2646, %v518
        %v2649 = vsub.f32 %v2581, %v2647
        %v2650 = vsub.f32 %v2582, %v2648
        %v2651 = vmul.f32 %v2649, %v2649
        %v2652 = vmul.f32 %v2650, %v2650
        %2655 = vrot.lane.b32.xlu0 %v2651, 96
        %v2656 = vpop.permute.xlu0 %2655
        %2657 = vrot.lane.b32.xlu0 %v2652, 96
        %v2658 = vpop.permute.xlu0 %2657
        %v2661 = vsel %vm293, %v2656, 0.0
        %2662 = vadd.xlane.f32.xlu0 %v2661
        %v2663 = vpop.xlane.xlu0 %2662
        %v2664 = vsel %vm293, %v2658, 0.0
        %2665 = vadd.xlane.f32.xlu0 %v2664
        %v2666 = vpop.xlane.xlu0 %2665
        %v2667 = vmul.f32 %v2663, %v518
        %v2668 = vmul.f32 %v2666, %v518
        %v2669 = vadd.f32 %v2667, 1e-05
        %v2670 = vadd.f32 %v2668, 1e-05
        %v2671 = vrsqrt.pop %v2669
        %v2672 = vrsqrt.pop %v2670
        %v2673 = vmul.f32 %v2649, %v2671
        %v2674 = vmul.f32 %v2650, %v2672
        %v2676 = vlaneseq
        %v2677 = vshrl.u32 %v2676, 7
        %v2678 = vsub.s32 0, %v2677
        %v2679 = vrot.slane %v2630, %v2678
        %2680 = vrot.lane.b32.xlu0 %v2679, 32
        %v2681 = vpop.permute.xlu0 %2680
        %v2683 = vmul.f32 %v2673, %v2681
        %v2684 = vmul.f32 %v2674, %v2681
        %v2686 = vlaneseq
        %v2687 = vshrl.u32 %v2686, 7
        %v2688 = vsub.s32 0, %v2687
        %v2689 = vrot.slane %v2632, %v2688
        %2690 = vrot.lane.b32.xlu0 %v2689, 32
        %v2691 = vpop.permute.xlu0 %2690
        %v2693 = vadd.f32 %v2683, %v2691
        %v2694 = vadd.f32 %v2684, %v2691
        %v2695 = vxor.u32 %v2627, 2147483648
        %v2696 = vxor.u32 %v2628, 2147483648
        %v2697 = vmul.f32 %v2695, 1.442695
        %v2698 = vpow.pop %v2697
        %v2699 = vmul.f32 %v2696, 1.442695
        %v2700 = vpow.pop %v2699
        %v2701 = vadd.f32 %v2698, 1.0
        %v2702 = vadd.f32 %v2700, 1.0
        %v2703 = vrcp.pop %v2701
        %v2704 = vmul.f32 1.0, %v2703
        %v2705 = vrcp.pop %v2702
        %v2706 = vmul.f32 1.0, %v2705
        %2709 = vrot.lane.b32.xlu0 %v2693, 96
        %v2710 = vpop.permute.xlu0 %2709
        %2711 = vrot.lane.b32.xlu0 %v2694, 96
        %v2712 = vpop.permute.xlu0 %2711
        %v2715 = vmul.f32 %v2704, %v2710
        %v2716 = vmul.f32 %v2706, %v2712
        %v2717 = vsub.f32 1.0, %v2704
        %v2718 = vsub.f32 1.0, %v2706
        %v2719 = vmul.f32 %v2717, %v2379
        %v2720 = vmul.f32 %v2718, %v2380
        %v2721 = vadd.f32 %v2715, %v2719
        %v2722 = vadd.f32 %v2716, %v2720
        %2723 = vst.msk [vmem:[#allocation2 + $0x36] sm:$0xff] %vm293, %v2721
        %2724 = vst.msk [vmem:[#allocation2 + $0x3e] sm:$0xff] %vm293, %v2722
        %v2725 = vld [vmem:[#allocation2 + $0x36] sm:$0xff]
        %v2726 = vld [vmem:[#allocation2 + $0x3e] sm:$0xff]
        %v2727 = vld [vmem:[#allocation2] sm:$0xff]
        %v2728 = vld [vmem:[#allocation2 + $0x8] sm:$0xff]
        %v2729 = vpack.c.bf16 %v2728, %v2727
        %s2730 = scalar_lea.vmem [#allocation3], 336
        %v2731 = vld [vmem:[%s2730] sm:$0xf]
        %v2732 = vld [vmem:[%s2730 + $0x4] sm:$0xf]
        %v2733 = vld [vmem:[%s2730 + $0x8] sm:$0xf]
        %v2734 = vld [vmem:[%s2730 + $0xc] sm:$0xf]
        %v2735 = vld [vmem:[#allocation2 + $0x1b] sm:$0xff]
        %v2736 = vld [vmem:[#allocation2 + $0x23] sm:$0xff]
        %v2737 = vpack.c.bf16 %v2736, %v2735
        %s2738 = scalar_lea.vmem [#allocation3], 352
        %v2739 = vld [vmem:[%s2738] sm:$0xf]
        %v2740 = vld [vmem:[%s2738 + $0x4] sm:$0xf]
        %v2741 = vld [vmem:[%s2738 + $0x8] sm:$0xf]
        %v2742 = vld [vmem:[%s2738 + $0xc] sm:$0xf]
        %v2747 = vunpack.c.l.b16 %v2739
        %v2748 = vunpack.c.l.b16 %v2740
        %v2749 = vunpack.c.l.b16 %v2741
        %v2750 = vunpack.c.l.b16 %v2742
        %v2751 = vpack.c.b16 %v2748, %v2747
        %v2752 = vpack.c.b16 %v2750, %v2749
        %v2756 = vsel %vm293, %v2737, 0
        %2758 = vmatprep.subr.bf16.mxu0 0
        %2759 = vmatpush1.bf16.msra.mxu0 %v2751
        %2760 = vmatprep.subr.bf16.mxu0 0
        %2761 = vmatpush1.bf16.msra.mxu0 %v2752
        %2762 = vmatprep.subr.bf16.mxu0 0
        %2763 = vmatpush1.bf16.msra.mxu0 0
        %2764 = vmatprep.subr.bf16.mxu0 0
        %2765 = vmatpush1.bf16.msra.mxu0 0
        %2766 = vmatprep.subr.bf16.mxu0 0
        %2767 = vmatpush1.bf16.msra.mxu0 0
        %2768 = vmatprep.subr.bf16.mxu0 0
        %2769 = vmatpush1.bf16.msra.mxu0 0
        %2770 = vmatprep.subr.bf16.mxu0 0
        %2771 = vmatpush1.bf16.msra.mxu0 0
        %2772 = vmatprep.subr.bf16.mxu0 0
        %2773 = vmatpush1.bf16.msra.mxu0 0
        %2774 = vmatprep.subr.bf16.mxu0 0
        %2775 = vmatpush1.bf16.msra.mxu0 0
        %2776 = vmatprep.subr.bf16.mxu0 0
        %2777 = vmatpush1.bf16.msra.mxu0 0
        %2778 = vmatprep.subr.bf16.mxu0 0
        %2779 = vmatpush1.bf16.msra.mxu0 0
        %2780 = vmatprep.subr.bf16.mxu0 0
        %2781 = vmatpush1.bf16.msra.mxu0 0
        %2782 = vmatprep.subr.bf16.mxu0 0
        %2783 = vmatpush1.bf16.msra.mxu0 0
        %2784 = vmatprep.subr.bf16.mxu0 0
        %2785 = vmatpush1.bf16.msra.mxu0 0
        %2786 = vmatprep.subr.bf16.mxu0 0
        %2787 = vmatpush1.bf16.msra.mxu0 0
        %2788 = vmatprep.subr.bf16.mxu0 0
        %2789 = vmatpush1.bf16.msra.mxu0 0
        %2790 = vmatprep.mubr.bf16.mxu0 0
        %2791 = vmatmul.mubr.bf16.gmra.mrb[0].mxu0 %v2756
        %v2792 = vpop.f32.mrb[0].mxu0
        %v2793 = vadd.f32 0.0, %v2792
        %v2794 = vpop.f32.mrb[0].mxu0
        %v2795 = vpop.f32.mrb[0].mxu0
        %v2796 = vadd.f32 0.0, %v2795
        %v2797 = vpop.f32.mrb[0].mxu0
        %2798 = vdwg.mxu0
        %v2803 = vunpack.c.l.b16 %v2731
        %v2804 = vunpack.c.l.b16 %v2732
        %v2805 = vunpack.c.l.b16 %v2733
        %v2806 = vunpack.c.l.b16 %v2734
        %v2807 = vpack.c.b16 %v2804, %v2803
        %v2808 = vpack.c.b16 %v2806, %v2805
        %v2812 = vsel %vm293, %v2729, 0
        %2814 = vmatprep.subr.bf16.mxu0 0
        %2815 = vmatpush1.bf16.msra.mxu0 %v2807
        %2816 = vmatprep.subr.bf16.mxu0 0
        %2817 = vmatpush1.bf16.msra.mxu0 %v2808
        %2818 = vmatprep.subr.bf16.mxu0 0
        %2819 = vmatpush1.bf16.msra.mxu0 0
        %2820 = vmatprep.subr.bf16.mxu0 0
        %2821 = vmatpush1.bf16.msra.mxu0 0
        %2822 = vmatprep.subr.bf16.mxu0 0
        %2823 = vmatpush1.bf16.msra.mxu0 0
        %2824 = vmatprep.subr.bf16.mxu0 0
        %2825 = vmatpush1.bf16.msra.mxu0 0
        %2826 = vmatprep.subr.bf16.mxu0 0
        %2827 = vmatpush1.bf16.msra.mxu0 0
        %2828 = vmatprep.subr.bf16.mxu0 0
        %2829 = vmatpush1.bf16.msra.mxu0 0
        %2830 = vmatprep.subr.bf16.mxu0 0
        %2831 = vmatpush1.bf16.msra.mxu0 0
        %2832 = vmatprep.subr.bf16.mxu0 0
        %2833 = vmatpush1.bf16.msra.mxu0 0
        %2834 = vmatprep.subr.bf16.mxu0 0
        %2835 = vmatpush1.bf16.msra.mxu0 0
        %2836 = vmatprep.subr.bf16.mxu0 0
        %2837 = vmatpush1.bf16.msra.mxu0 0
        %2838 = vmatprep.subr.bf16.mxu0 0
        %2839 = vmatpush1.bf16.msra.mxu0 0
        %2840 = vmatprep.subr.bf16.mxu0 0
        %2841 = vmatpush1.bf16.msra.mxu0 0
        %2842 = vmatprep.subr.bf16.mxu0 0
        %2843 = vmatpush1.bf16.msra.mxu0 0
        %2844 = vmatprep.subr.bf16.mxu0 0
        %2845 = vmatpush1.bf16.msra.mxu0 0
        %2846 = vmatprep.mubr.bf16.mxu0 0
        %2847 = vmatmul.mubr.bf16.gmra.mrb[0].mxu0 %v2812
        %v2848 = vpop.f32.mrb[0].mxu0
        %v2849 = vadd.f32 %v2793, %v2848
        %v2850 = vpop.f32.mrb[0].mxu0
        %v2851 = vpop.f32.mrb[0].mxu0
        %v2852 = vadd.f32 %v2796, %v2851
        %v2853 = vpop.f32.mrb[0].mxu0
        %2854 = vdwg.mxu0
        %v2855 = vpack.c.bf16 %v2726, %v2725
        %s2856 = scalar_lea.vmem [#allocation3], 368
        %v2857 = vld [vmem:[%s2856] sm:$0xf]
        %v2858 = vld [vmem:[%s2856 + $0x4] sm:$0xf]
        %v2859 = vld [vmem:[%s2856 + $0x8] sm:$0xf]
        %v2860 = vld [vmem:[%s2856 + $0xc] sm:$0xf]
        %v2865 = vunpack.c.l.b16 %v2857
        %v2866 = vunpack.c.l.b16 %v2858
        %v2867 = vunpack.c.l.b16 %v2859
        %v2868 = vunpack.c.l.b16 %v2860
        %v2869 = vpack.c.b16 %v2866, %v2865
        %v2870 = vpack.c.b16 %v2868, %v2867
        %v2874 = vsel %vm293, %v2855, 0
        %2876 = vmatprep.subr.bf16.mxu0 0
        %2877 = vmatpush1.bf16.msra.mxu0 %v2869
        %2878 = vmatprep.subr.bf16.mxu0 0
        %2879 = vmatpush1.bf16.msra.mxu0 %v2870
        %2880 = vmatprep.subr.bf16.mxu0 0
        %2881 = vmatpush1.bf16.msra.mxu0 0
        %2882 = vmatprep.subr.bf16.mxu0 0
        %2883 = vmatpush1.bf16.msra.mxu0 0
        %2884 = vmatprep.subr.bf16.mxu0 0
        %2885 = vmatpush1.bf16.msra.mxu0 0
        %2886 = vmatprep.subr.bf16.mxu0 0
        %2887 = vmatpush1.bf16.msra.mxu0 0
        %2888 = vmatprep.subr.bf16.mxu0 0
        %2889 = vmatpush1.bf16.msra.mxu0 0
        %2890 = vmatprep.subr.bf16.mxu0 0
        %2891 = vmatpush1.bf16.msra.mxu0 0
        %2892 = vmatprep.subr.bf16.mxu0 0
        %2893 = vmatpush1.bf16.msra.mxu0 0
        %2894 = vmatprep.subr.bf16.mxu0 0
        %2895 = vmatpush1.bf16.msra.mxu0 0
        %2896 = vmatprep.subr.bf16.mxu0 0
        %2897 = vmatpush1.bf16.msra.mxu0 0
        %2898 = vmatprep.subr.bf16.mxu0 0
        %2899 = vmatpush1.bf16.msra.mxu0 0
        %2900 = vmatprep.subr.bf16.mxu0 0
        %2901 = vmatpush1.bf16.msra.mxu0 0
        %2902 = vmatprep.subr.bf16.mxu0 0
        %2903 = vmatpush1.bf16.msra.mxu0 0
        %2904 = vmatprep.subr.bf16.mxu0 0
        %2905 = vmatpush1.bf16.msra.mxu0 0
        %2906 = vmatprep.subr.bf16.mxu0 0
        %2907 = vmatpush1.bf16.msra.mxu0 0
        %2908 = vmatprep.mubr.bf16.mxu0 0
        %2909 = vmatmul.mubr.bf16.gmra.mrb[0].mxu0 %v2874
        %v2910 = vpop.f32.mrb[0].mxu0
        %v2911 = vadd.f32 0.0, %v2910
        %v2912 = vpop.f32.mrb[0].mxu0
        %v2913 = vpop.f32.mrb[0].mxu0
        %v2914 = vadd.f32 0.0, %v2913
        %v2915 = vpop.f32.mrb[0].mxu0
        %2916 = vdwg.mxu0
        %v2917 = vadd.f32 %v2849, %v2911
        %v2918 = vadd.f32 %v2852, %v2914
        %s2919 = scalar_lea.vmem %s2, 7
        %v2920 = vld [vmem:[%s2919] sm:$0x1]
        %v2922 = vlaneseq
        %v2923 = vshrl.u32 %v2922, 7
        %v2924 = vsub.s32 0, %v2923
        %v2925 = vrot.slane %v2920, %v2924
        %v2927 = vadd.f32 %v2917, %v2925
        %v2928 = vadd.f32 %v2918, %v2925
        %s2929 = scalar_lea.vmem %s3, 7
        %v2930 = vld [vmem:[%s2929] sm:$0x1]
        %s2931 = scalar_lea.vmem %s4, 7
        %v2932 = vld [vmem:[%s2931] sm:$0x1]
        %v2933 = vsel %vm293, %v2927, 0.0
        %2934 = vadd.xlane.f32.xlu0 %v2933
        %v2935 = vpop.xlane.xlu0 %2934
        %v2936 = vsel %vm293, %v2928, 0.0
        %2937 = vadd.xlane.f32.xlu0 %v2936
        %v2938 = vpop.xlane.xlu0 %2937
        %v2939 = vmul.f32 %v2935, %v518
        %v2940 = vmul.f32 %v2938, %v518
        %v2941 = vsub.f32 %v2927, %v2939
        %v2942 = vsub.f32 %v2928, %v2940
        %v2943 = vmul.f32 %v2941, %v2941
        %v2944 = vmul.f32 %v2942, %v2942
        %v2945 = vsel %vm293, %v2943, 0.0
        %2946 = vadd.xlane.f32.xlu0 %v2945
        %v2947 = vpop.xlane.xlu0 %2946
        %v2948 = vsel %vm293, %v2944, 0.0
        %2949 = vadd.xlane.f32.xlu0 %v2948
        %v2950 = vpop.xlane.xlu0 %2949
        %v2951 = vmul.f32 %v2947, %v518
        %v2952 = vmul.f32 %v2950, %v518
        %v2953 = vadd.f32 %v2951, 1e-05
        %v2954 = vadd.f32 %v2952, 1e-05
        %v2955 = vrsqrt.pop %v2953
        %v2956 = vrsqrt.pop %v2954
        %v2957 = vmul.f32 %v2941, %v2955
        %v2958 = vmul.f32 %v2942, %v2956
        %v2960 = vlaneseq
        %v2961 = vshrl.u32 %v2960, 7
        %v2962 = vsub.s32 0, %v2961
        %v2963 = vrot.slane %v2930, %v2962
        %v2965 = vmul.f32 %v2957, %v2963
        %v2966 = vmul.f32 %v2958, %v2963
        %v2968 = vlaneseq
        %v2969 = vshrl.u32 %v2968, 7
        %v2970 = vsub.s32 0, %v2969
        %v2971 = vrot.slane %v2932, %v2970
        %v2973 = vadd.f32 %v2965, %v2971
        %v2974 = vadd.f32 %v2966, %v2971
        %s2975 = scalar_lea.vmem %s5, 7
        %v2976 = vld [vmem:[%s2975] sm:$0x1]
        %s2977 = scalar_lea.vmem %s6, 7
        %v2978 = vld [vmem:[%s2977] sm:$0x1]
        %2981 = vrot.lane.b32.xlu0 %v2927, 96
        %v2982 = vpop.permute.xlu0 %2981
        %2983 = vrot.lane.b32.xlu0 %v2928, 96
        %v2984 = vpop.permute.xlu0 %2983
        %v2987 = vsel %vm293, %v2982, 0.0
        %2988 = vadd.xlane.f32.xlu0 %v2987
        %v2989 = vpop.xlane.xlu0 %2988
        %v2990 = vsel %vm293, %v2984, 0.0
        %2991 = vadd.xlane.f32.xlu0 %v2990
        %v2992 = vpop.xlane.xlu0 %2991
        %v2993 = vmul.f32 %v2989, %v518
        %v2994 = vmul.f32 %v2992, %v518
        %v2995 = vsub.f32 %v2927, %v2993
        %v2996 = vsub.f32 %v2928, %v2994
        %v2997 = vmul.f32 %v2995, %v2995
        %v2998 = vmul.f32 %v2996, %v2996
        %3001 = vrot.lane.b32.xlu0 %v2997, 96
        %v3002 = vpop.permute.xlu0 %3001
        %3003 = vrot.lane.b32.xlu0 %v2998, 96
        %v3004 = vpop.permute.xlu0 %3003
        %v3007 = vsel %vm293, %v3002, 0.0
        %3008 = vadd.xlane.f32.xlu0 %v3007
        %v3009 = vpop.xlane.xlu0 %3008
        %v3010 = vsel %vm293, %v3004, 0.0
        %3011 = vadd.xlane.f32.xlu0 %v3010
        %v3012 = vpop.xlane.xlu0 %3011
        %v3013 = vmul.f32 %v3009, %v518
        %v3014 = vmul.f32 %v3012, %v518
        %v3015 = vadd.f32 %v3013, 1e-05
        %v3016 = vadd.f32 %v3014, 1e-05
        %v3017 = vrsqrt.pop %v3015
        %v3018 = vrsqrt.pop %v3016
        %v3019 = vmul.f32 %v2995, %v3017
        %v3020 = vmul.f32 %v2996, %v3018
        %v3022 = vlaneseq
        %v3023 = vshrl.u32 %v3022, 7
        %v3024 = vsub.s32 0, %v3023
        %v3025 = vrot.slane %v2976, %v3024
        %3026 = vrot.lane.b32.xlu0 %v3025, 32
        %v3027 = vpop.permute.xlu0 %3026
        %v3029 = vmul.f32 %v3019, %v3027
        %v3030 = vmul.f32 %v3020, %v3027
        %v3032 = vlaneseq
        %v3033 = vshrl.u32 %v3032, 7
        %v3034 = vsub.s32 0, %v3033
        %v3035 = vrot.slane %v2978, %v3034
        %3036 = vrot.lane.b32.xlu0 %v3035, 32
        %v3037 = vpop.permute.xlu0 %3036
        %v3039 = vadd.f32 %v3029, %v3037
        %v3040 = vadd.f32 %v3030, %v3037
        %v3041 = vxor.u32 %v2973, 2147483648
        %v3042 = vxor.u32 %v2974, 2147483648
        %v3043 = vmul.f32 %v3041, 1.442695
        %v3044 = vpow.pop %v3043
        %v3045 = vmul.f32 %v3042, 1.442695
        %v3046 = vpow.pop %v3045
        %v3047 = vadd.f32 %v3044, 1.0
        %v3048 = vadd.f32 %v3046, 1.0
        %v3049 = vrcp.pop %v3047
        %v3050 = vmul.f32 1.0, %v3049
        %v3051 = vrcp.pop %v3048
        %v3052 = vmul.f32 1.0, %v3051
        %3055 = vrot.lane.b32.xlu0 %v3039, 96
        %v3056 = vpop.permute.xlu0 %3055
        %3057 = vrot.lane.b32.xlu0 %v3040, 96
        %v3058 = vpop.permute.xlu0 %3057
        %v3061 = vmul.f32 %v3050, %v3056
        %v3062 = vmul.f32 %v3052, %v3058
        %v3063 = vsub.f32 1.0, %v3050
        %v3064 = vsub.f32 1.0, %v3052
        %v3065 = vmul.f32 %v3063, %v2725
        %v3066 = vmul.f32 %v3064, %v2726
        %v3067 = vadd.f32 %v3061, %v3065
        %v3068 = vadd.f32 %v3062, %v3066
        %3069 = vst.msk [vmem:[#allocation2 + $0x36] sm:$0xff] %vm293, %v3067
        %3070 = vst.msk [vmem:[#allocation2 + $0x3e] sm:$0xff] %vm293, %v3068
        %v3071 = vld [vmem:[#allocation2 + $0x36] sm:$0xff]
        %v3072 = vld [vmem:[#allocation2 + $0x3e] sm:$0xff]
        %v3073 = vld [vmem:[#allocation2 + $0x30] sm:$0xff]
        %v3074 = vld [vmem:[#allocation2 + $0x38] sm:$0xff]
        %v3075 = vpack.c.bf16 %v3074, %v3073
        %s3076 = scalar_lea.vmem [#allocation3], 384
        %v3077 = vld [vmem:[%s3076] sm:$0xf]
        %v3078 = vld [vmem:[%s3076 + $0x4] sm:$0xf]
        %v3079 = vld [vmem:[%s3076 + $0x8] sm:$0xf]
        %v3080 = vld [vmem:[%s3076 + $0xc] sm:$0xf]
        %v3081 = vld [vmem:[#allocation2 + $0x33] sm:$0xff]
        %v3082 = vld [vmem:[#allocation2 + $0x3b] sm:$0xff]
        %v3083 = vpack.c.bf16 %v3082, %v3081
        %s3084 = scalar_lea.vmem [#allocation3], 400
        %v3085 = vld [vmem:[%s3084] sm:$0xf]
        %v3086 = vld [vmem:[%s3084 + $0x4] sm:$0xf]
        %v3087 = vld [vmem:[%s3084 + $0x8] sm:$0xf]
        %v3088 = vld [vmem:[%s3084 + $0xc] sm:$0xf]
        %v3093 = vunpack.c.l.b16 %v3085
        %v3094 = vunpack.c.l.b16 %v3086
        %v3095 = vunpack.c.l.b16 %v3087
        %v3096 = vunpack.c.l.b16 %v3088
        %v3097 = vpack.c.b16 %v3094, %v3093
        %v3098 = vpack.c.b16 %v3096, %v3095
        %v3102 = vsel %vm293, %v3083, 0
        %3104 = vmatprep.subr.bf16.mxu0 0
        %3105 = vmatpush1.bf16.msra.mxu0 %v3097
        %3106 = vmatprep.subr.bf16.mxu0 0
        %3107 = vmatpush1.bf16.msra.mxu0 %v3098
        %3108 = vmatprep.subr.bf16.mxu0 0
        %3109 = vmatpush1.bf16.msra.mxu0 0
        %3110 = vmatprep.subr.bf16.mxu0 0
        %3111 = vmatpush1.bf16.msra.mxu0 0
        %3112 = vmatprep.subr.bf16.mxu0 0
        %3113 = vmatpush1.bf16.msra.mxu0 0
        %3114 = vmatprep.subr.bf16.mxu0 0
        %3115 = vmatpush1.bf16.msra.mxu0 0
        %3116 = vmatprep.subr.bf16.mxu0 0
        %3117 = vmatpush1.bf16.msra.mxu0 0
        %3118 = vmatprep.subr.bf16.mxu0 0
        %3119 = vmatpush1.bf16.msra.mxu0 0
        %3120 = vmatprep.subr.bf16.mxu0 0
        %3121 = vmatpush1.bf16.msra.mxu0 0
        %3122 = vmatprep.subr.bf16.mxu0 0
        %3123 = vmatpush1.bf16.msra.mxu0 0
        %3124 = vmatprep.subr.bf16.mxu0 0
        %3125 = vmatpush1.bf16.msra.mxu0 0
        %3126 = vmatprep.subr.bf16.mxu0 0
        %3127 = vmatpush1.bf16.msra.mxu0 0
        %3128 = vmatprep.subr.bf16.mxu0 0
        %3129 = vmatpush1.bf16.msra.mxu0 0
        %3130 = vmatprep.subr.bf16.mxu0 0
        %3131 = vmatpush1.bf16.msra.mxu0 0
        %3132 = vmatprep.subr.bf16.mxu0 0
        %3133 = vmatpush1.bf16.msra.mxu0 0
        %3134 = vmatprep.subr.bf16.mxu0 0
        %3135 = vmatpush1.bf16.msra.mxu0 0
        %3136 = vmatprep.mubr.bf16.mxu0 0
        %3137 = vmatmul.mubr.bf16.gmra.mrb[0].mxu0 %v3102
        %v3138 = vpop.f32.mrb[0].mxu0
        %v3139 = vadd.f32 0.0, %v3138
        %v3140 = vpop.f32.mrb[0].mxu0
        %v3141 = vpop.f32.mrb[0].mxu0
        %v3142 = vadd.f32 0.0, %v3141
        %v3143 = vpop.f32.mrb[0].mxu0
        %3144 = vdwg.mxu0
        %v3149 = vunpack.c.l.b16 %v3077
        %v3150 = vunpack.c.l.b16 %v3078
        %v3151 = vunpack.c.l.b16 %v3079
        %v3152 = vunpack.c.l.b16 %v3080
        %v3153 = vpack.c.b16 %v3150, %v3149
        %v3154 = vpack.c.b16 %v3152, %v3151
        %v3158 = vsel %vm293, %v3075, 0
        %3160 = vmatprep.subr.bf16.mxu0 0
        %3161 = vmatpush1.bf16.msra.mxu0 %v3153
        %3162 = vmatprep.subr.bf16.mxu0 0
        %3163 = vmatpush1.bf16.msra.mxu0 %v3154
        %3164 = vmatprep.subr.bf16.mxu0 0
        %3165 = vmatpush1.bf16.msra.mxu0 0
        %3166 = vmatprep.subr.bf16.mxu0 0
        %3167 = vmatpush1.bf16.msra.mxu0 0
        %3168 = vmatprep.subr.bf16.mxu0 0
        %3169 = vmatpush1.bf16.msra.mxu0 0
        %3170 = vmatprep.subr.bf16.mxu0 0
        %3171 = vmatpush1.bf16.msra.mxu0 0
        %3172 = vmatprep.subr.bf16.mxu0 0
        %3173 = vmatpush1.bf16.msra.mxu0 0
        %3174 = vmatprep.subr.bf16.mxu0 0
        %3175 = vmatpush1.bf16.msra.mxu0 0
        %3176 = vmatprep.subr.bf16.mxu0 0
        %3177 = vmatpush1.bf16.msra.mxu0 0
        %3178 = vmatprep.subr.bf16.mxu0 0
        %3179 = vmatpush1.bf16.msra.mxu0 0
        %3180 = vmatprep.subr.bf16.mxu0 0
        %3181 = vmatpush1.bf16.msra.mxu0 0
        %3182 = vmatprep.subr.bf16.mxu0 0
        %3183 = vmatpush1.bf16.msra.mxu0 0
        %3184 = vmatprep.subr.bf16.mxu0 0
        %3185 = vmatpush1.bf16.msra.mxu0 0
        %3186 = vmatprep.subr.bf16.mxu0 0
        %3187 = vmatpush1.bf16.msra.mxu0 0
        %3188 = vmatprep.subr.bf16.mxu0 0
        %3189 = vmatpush1.bf16.msra.mxu0 0
        %3190 = vmatprep.subr.bf16.mxu0 0
        %3191 = vmatpush1.bf16.msra.mxu0 0
        %3192 = vmatprep.mubr.bf16.mxu0 0
        %3193 = vmatmul.mubr.bf16.gmra.mrb[0].mxu0 %v3158
        %v3194 = vpop.f32.mrb[0].mxu0
        %v3195 = vadd.f32 %v3139, %v3194
        %v3196 = vpop.f32.mrb[0].mxu0
        %v3197 = vpop.f32.mrb[0].mxu0
        %v3198 = vadd.f32 %v3142, %v3197
        %v3199 = vpop.f32.mrb[0].mxu0
        %3200 = vdwg.mxu0
        %v3201 = vpack.c.bf16 %v3072, %v3071
        %s3202 = scalar_lea.vmem [#allocation3], 416
        %v3203 = vld [vmem:[%s3202] sm:$0xf]
        %v3204 = vld [vmem:[%s3202 + $0x4] sm:$0xf]
        %v3205 = vld [vmem:[%s3202 + $0x8] sm:$0xf]
        %v3206 = vld [vmem:[%s3202 + $0xc] sm:$0xf]
        %v3211 = vunpack.c.l.b16 %v3203
        %v3212 = vunpack.c.l.b16 %v3204
        %v3213 = vunpack.c.l.b16 %v3205
        %v3214 = vunpack.c.l.b16 %v3206
        %v3215 = vpack.c.b16 %v3212, %v3211
        %v3216 = vpack.c.b16 %v3214, %v3213
        %v3220 = vsel %vm293, %v3201, 0
        %3222 = vmatprep.subr.bf16.mxu0 0
        %3223 = vmatpush1.bf16.msra.mxu0 %v3215
        %3224 = vmatprep.subr.bf16.mxu0 0
        %3225 = vmatpush1.bf16.msra.mxu0 %v3216
        %3226 = vmatprep.subr.bf16.mxu0 0
        %3227 = vmatpush1.bf16.msra.mxu0 0
        %3228 = vmatprep.subr.bf16.mxu0 0
        %3229 = vmatpush1.bf16.msra.mxu0 0
        %3230 = vmatprep.subr.bf16.mxu0 0
        %3231 = vmatpush1.bf16.msra.mxu0 0
        %3232 = vmatprep.subr.bf16.mxu0 0
        %3233 = vmatpush1.bf16.msra.mxu0 0
        %3234 = vmatprep.subr.bf16.mxu0 0
        %3235 = vmatpush1.bf16.msra.mxu0 0
        %3236 = vmatprep.subr.bf16.mxu0 0
        %3237 = vmatpush1.bf16.msra.mxu0 0
        %3238 = vmatprep.subr.bf16.mxu0 0
        %3239 = vmatpush1.bf16.msra.mxu0 0
        %3240 = vmatprep.subr.bf16.mxu0 0
        %3241 = vmatpush1.bf16.msra.mxu0 0
        %3242 = vmatprep.subr.bf16.mxu0 0
        %3243 = vmatpush1.bf16.msra.mxu0 0
        %3244 = vmatprep.subr.bf16.mxu0 0
        %3245 = vmatpush1.bf16.msra.mxu0 0
        %3246 = vmatprep.subr.bf16.mxu0 0
        %3247 = vmatpush1.bf16.msra.mxu0 0
        %3248 = vmatprep.subr.bf16.mxu0 0
        %3249 = vmatpush1.bf16.msra.mxu0 0
        %3250 = vmatprep.subr.bf16.mxu0 0
        %3251 = vmatpush1.bf16.msra.mxu0 0
        %3252 = vmatprep.subr.bf16.mxu0 0
        %3253 = vmatpush1.bf16.msra.mxu0 0
        %3254 = vmatprep.mubr.bf16.mxu0 0
        %3255 = vmatmul.mubr.bf16.gmra.mrb[0].mxu0 %v3220
        %v3256 = vpop.f32.mrb[0].mxu0
        %v3257 = vadd.f32 0.0, %v3256
        %v3258 = vpop.f32.mrb[0].mxu0
        %v3259 = vpop.f32.mrb[0].mxu0
        %v3260 = vadd.f32 0.0, %v3259
        %v3261 = vpop.f32.mrb[0].mxu0
        %3262 = vdwg.mxu0
        %v3263 = vadd.f32 %v3195, %v3257
        %v3264 = vadd.f32 %v3198, %v3260
        %s3265 = scalar_lea.vmem %s2, 8
        %v3266 = vld [vmem:[%s3265] sm:$0x1]
        %v3268 = vlaneseq
        %v3269 = vshrl.u32 %v3268, 7
        %v3270 = vsub.s32 0, %v3269
        %v3271 = vrot.slane %v3266, %v3270
        %v3273 = vadd.f32 %v3263, %v3271
        %v3274 = vadd.f32 %v3264, %v3271
        %s3275 = scalar_lea.vmem %s3, 8
        %v3276 = vld [vmem:[%s3275] sm:$0x1]
        %s3277 = scalar_lea.vmem %s4, 8
        %v3278 = vld [vmem:[%s3277] sm:$0x1]
        %v3279 = vsel %vm293, %v3273, 0.0
        %3280 = vadd.xlane.f32.xlu0 %v3279
        %v3281 = vpop.xlane.xlu0 %3280
        %v3282 = vsel %vm293, %v3274, 0.0
        %3283 = vadd.xlane.f32.xlu0 %v3282
        %v3284 = vpop.xlane.xlu0 %3283
        %v3285 = vmul.f32 %v3281, %v518
        %v3286 = vmul.f32 %v3284, %v518
        %v3287 = vsub.f32 %v3273, %v3285
        %v3288 = vsub.f32 %v3274, %v3286
        %v3289 = vmul.f32 %v3287, %v3287
        %v3290 = vmul.f32 %v3288, %v3288
        %v3291 = vsel %vm293, %v3289, 0.0
        %3292 = vadd.xlane.f32.xlu0 %v3291
        %v3293 = vpop.xlane.xlu0 %3292
        %v3294 = vsel %vm293, %v3290, 0.0
        %3295 = vadd.xlane.f32.xlu0 %v3294
        %v3296 = vpop.xlane.xlu0 %3295
        %v3297 = vmul.f32 %v3293, %v518
        %v3298 = vmul.f32 %v3296, %v518
        %v3299 = vadd.f32 %v3297, 1e-05
        %v3300 = vadd.f32 %v3298, 1e-05
        %v3301 = vrsqrt.pop %v3299
        %v3302 = vrsqrt.pop %v3300
        %v3303 = vmul.f32 %v3287, %v3301
        %v3304 = vmul.f32 %v3288, %v3302
        %v3306 = vlaneseq
        %v3307 = vshrl.u32 %v3306, 7
        %v3308 = vsub.s32 0, %v3307
        %v3309 = vrot.slane %v3276, %v3308
        %v3311 = vmul.f32 %v3303, %v3309
        %v3312 = vmul.f32 %v3304, %v3309
        %v3314 = vlaneseq
        %v3315 = vshrl.u32 %v3314, 7
        %v3316 = vsub.s32 0, %v3315
        %v3317 = vrot.slane %v3278, %v3316
        %v3319 = vadd.f32 %v3311, %v3317
        %v3320 = vadd.f32 %v3312, %v3317
        %s3321 = scalar_lea.vmem %s5, 8
        %v3322 = vld [vmem:[%s3321] sm:$0x1]
        %s3323 = scalar_lea.vmem %s6, 8
        %v3324 = vld [vmem:[%s3323] sm:$0x1]
        %3327 = vrot.lane.b32.xlu0 %v3273, 96
        %v3328 = vpop.permute.xlu0 %3327
        %3329 = vrot.lane.b32.xlu0 %v3274, 96
        %v3330 = vpop.permute.xlu0 %3329
        %v3333 = vsel %vm293, %v3328, 0.0
        %3334 = vadd.xlane.f32.xlu0 %v3333
        %v3335 = vpop.xlane.xlu0 %3334
        %v3336 = vsel %vm293, %v3330, 0.0
        %3337 = vadd.xlane.f32.xlu0 %v3336
        %v3338 = vpop.xlane.xlu0 %3337
        %v3339 = vmul.f32 %v3335, %v518
        %v3340 = vmul.f32 %v3338, %v518
        %v3341 = vsub.f32 %v3273, %v3339
        %v3342 = vsub.f32 %v3274, %v3340
        %v3343 = vmul.f32 %v3341, %v3341
        %v3344 = vmul.f32 %v3342, %v3342
        %3347 = vrot.lane.b32.xlu0 %v3343, 96
        %v3348 = vpop.permute.xlu0 %3347
        %3349 = vrot.lane.b32.xlu0 %v3344, 96
        %v3350 = vpop.permute.xlu0 %3349
        %v3353 = vsel %vm293, %v3348, 0.0
        %3354 = vadd.xlane.f32.xlu0 %v3353
        %v3355 = vpop.xlane.xlu0 %3354
        %v3356 = vsel %vm293, %v3350, 0.0
        %3357 = vadd.xlane.f32.xlu0 %v3356
        %v3358 = vpop.xlane.xlu0 %3357
        %v3359 = vmul.f32 %v3355, %v518
        %v3360 = vmul.f32 %v3358, %v518
        %v3361 = vadd.f32 %v3359, 1e-05
        %v3362 = vadd.f32 %v3360, 1e-05
        %v3363 = vrsqrt.pop %v3361
        %v3364 = vrsqrt.pop %v3362
        %v3365 = vmul.f32 %v3341, %v3363
        %v3366 = vmul.f32 %v3342, %v3364
        %v3368 = vlaneseq
        %v3369 = vshrl.u32 %v3368, 7
        %v3370 = vsub.s32 0, %v3369
        %v3371 = vrot.slane %v3322, %v3370
        %3372 = vrot.lane.b32.xlu0 %v3371, 32
        %v3373 = vpop.permute.xlu0 %3372
        %v3375 = vmul.f32 %v3365, %v3373
        %v3376 = vmul.f32 %v3366, %v3373
        %v3378 = vlaneseq
        %v3379 = vshrl.u32 %v3378, 7
        %v3380 = vsub.s32 0, %v3379
        %v3381 = vrot.slane %v3324, %v3380
        %3382 = vrot.lane.b32.xlu0 %v3381, 32
        %v3383 = vpop.permute.xlu0 %3382
        %v3385 = vadd.f32 %v3375, %v3383
        %v3386 = vadd.f32 %v3376, %v3383
        %v3387 = vxor.u32 %v3319, 2147483648
        %v3388 = vxor.u32 %v3320, 2147483648
        %v3389 = vmul.f32 %v3387, 1.442695
        %v3390 = vpow.pop %v3389
        %v3391 = vmul.f32 %v3388, 1.442695
        %v3392 = vpow.pop %v3391
        %v3393 = vadd.f32 %v3390, 1.0
        %v3394 = vadd.f32 %v3392, 1.0
        %v3395 = vrcp.pop %v3393
        %v3396 = vmul.f32 1.0, %v3395
        %v3397 = vrcp.pop %v3394
        %v3398 = vmul.f32 1.0, %v3397
        %3401 = vrot.lane.b32.xlu0 %v3385, 96
        %v3402 = vpop.permute.xlu0 %3401
        %3403 = vrot.lane.b32.xlu0 %v3386, 96
        %v3404 = vpop.permute.xlu0 %3403
        %v3407 = vmul.f32 %v3396, %v3402
        %v3408 = vmul.f32 %v3398, %v3404
        %v3409 = vsub.f32 1.0, %v3396
        %v3410 = vsub.f32 1.0, %v3398
        %v3411 = vmul.f32 %v3409, %v3071
        %v3412 = vmul.f32 %v3410, %v3072
        %v3413 = vadd.f32 %v3407, %v3411
        %v3414 = vadd.f32 %v3408, %v3412
        %3415 = vst.msk [vmem:[#allocation2 + $0x36] sm:$0xff] %vm293, %v3413
        %3416 = vst.msk [vmem:[#allocation2 + $0x3e] sm:$0xff] %vm293, %v3414
        %v3417 = vld [vmem:[#allocation2 + $0x36] sm:$0xff]
        %v3418 = vld [vmem:[#allocation2 + $0x3e] sm:$0xff]
        %v3419 = vld [vmem:[#allocation2 + $0x30] sm:$0xff]
        %v3420 = vld [vmem:[#allocation2 + $0x38] sm:$0xff]
        %v3421 = vpack.c.bf16 %v3420, %v3419
        %s3422 = scalar_lea.vmem [#allocation3], 432
        %v3423 = vld [vmem:[%s3422] sm:$0xf]
        %v3424 = vld [vmem:[%s3422 + $0x4] sm:$0xf]
        %v3425 = vld [vmem:[%s3422 + $0x8] sm:$0xf]
        %v3426 = vld [vmem:[%s3422 + $0xc] sm:$0xf]
        %v3427 = vld [vmem:[#allocation2 + $0x33] sm:$0xff]
        %v3428 = vld [vmem:[#allocation2 + $0x3b] sm:$0xff]
        %v3429 = vpack.c.bf16 %v3428, %v3427
        %s3430 = scalar_lea.vmem [#allocation3], 448
        %v3431 = vld [vmem:[%s3430] sm:$0xf]
        %v3432 = vld [vmem:[%s3430 + $0x4] sm:$0xf]
        %v3433 = vld [vmem:[%s3430 + $0x8] sm:$0xf]
        %v3434 = vld [vmem:[%s3430 + $0xc] sm:$0xf]
        %v3439 = vunpack.c.l.b16 %v3431
        %v3440 = vunpack.c.l.b16 %v3432
        %v3441 = vunpack.c.l.b16 %v3433
        %v3442 = vunpack.c.l.b16 %v3434
        %v3443 = vpack.c.b16 %v3440, %v3439
        %v3444 = vpack.c.b16 %v3442, %v3441
        %v3448 = vsel %vm293, %v3429, 0
        %3450 = vmatprep.subr.bf16.mxu0 0
        %3451 = vmatpush1.bf16.msra.mxu0 %v3443
        %3452 = vmatprep.subr.bf16.mxu0 0
        %3453 = vmatpush1.bf16.msra.mxu0 %v3444
        %3454 = vmatprep.subr.bf16.mxu0 0
        %3455 = vmatpush1.bf16.msra.mxu0 0
        %3456 = vmatprep.subr.bf16.mxu0 0
        %3457 = vmatpush1.bf16.msra.mxu0 0
        %3458 = vmatprep.subr.bf16.mxu0 0
        %3459 = vmatpush1.bf16.msra.mxu0 0
        %3460 = vmatprep.subr.bf16.mxu0 0
        %3461 = vmatpush1.bf16.msra.mxu0 0
        %3462 = vmatprep.subr.bf16.mxu0 0
        %3463 = vmatpush1.bf16.msra.mxu0 0
        %3464 = vmatprep.subr.bf16.mxu0 0
        %3465 = vmatpush1.bf16.msra.mxu0 0
        %3466 = vmatprep.subr.bf16.mxu0 0
        %3467 = vmatpush1.bf16.msra.mxu0 0
        %3468 = vmatprep.subr.bf16.mxu0 0
        %3469 = vmatpush1.bf16.msra.mxu0 0
        %3470 = vmatprep.subr.bf16.mxu0 0
        %3471 = vmatpush1.bf16.msra.mxu0 0
        %3472 = vmatprep.subr.bf16.mxu0 0
        %3473 = vmatpush1.bf16.msra.mxu0 0
        %3474 = vmatprep.subr.bf16.mxu0 0
        %3475 = vmatpush1.bf16.msra.mxu0 0
        %3476 = vmatprep.subr.bf16.mxu0 0
        %3477 = vmatpush1.bf16.msra.mxu0 0
        %3478 = vmatprep.subr.bf16.mxu0 0
        %3479 = vmatpush1.bf16.msra.mxu0 0
        %3480 = vmatprep.subr.bf16.mxu0 0
        %3481 = vmatpush1.bf16.msra.mxu0 0
        %3482 = vmatprep.mubr.bf16.mxu0 0
        %3483 = vmatmul.mubr.bf16.gmra.mrb[0].mxu0 %v3448
        %v3484 = vpop.f32.mrb[0].mxu0
        %v3485 = vadd.f32 0.0, %v3484
        %v3486 = vpop.f32.mrb[0].mxu0
        %v3487 = vpop.f32.mrb[0].mxu0
        %v3488 = vadd.f32 0.0, %v3487
        %v3489 = vpop.f32.mrb[0].mxu0
        %3490 = vdwg.mxu0
        %v3495 = vunpack.c.l.b16 %v3423
        %v3496 = vunpack.c.l.b16 %v3424
        %v3497 = vunpack.c.l.b16 %v3425
        %v3498 = vunpack.c.l.b16 %v3426
        %v3499 = vpack.c.b16 %v3496, %v3495
        %v3500 = vpack.c.b16 %v3498, %v3497
        %v3504 = vsel %vm293, %v3421, 0
        %3506 = vmatprep.subr.bf16.mxu0 0
        %3507 = vmatpush1.bf16.msra.mxu0 %v3499
        %3508 = vmatprep.subr.bf16.mxu0 0
        %3509 = vmatpush1.bf16.msra.mxu0 %v3500
        %3510 = vmatprep.subr.bf16.mxu0 0
        %3511 = vmatpush1.bf16.msra.mxu0 0
        %3512 = vmatprep.subr.bf16.mxu0 0
        %3513 = vmatpush1.bf16.msra.mxu0 0
        %3514 = vmatprep.subr.bf16.mxu0 0
        %3515 = vmatpush1.bf16.msra.mxu0 0
        %3516 = vmatprep.subr.bf16.mxu0 0
        %3517 = vmatpush1.bf16.msra.mxu0 0
        %3518 = vmatprep.subr.bf16.mxu0 0
        %3519 = vmatpush1.bf16.msra.mxu0 0
        %3520 = vmatprep.subr.bf16.mxu0 0
        %3521 = vmatpush1.bf16.msra.mxu0 0
        %3522 = vmatprep.subr.bf16.mxu0 0
        %3523 = vmatpush1.bf16.msra.mxu0 0
        %3524 = vmatprep.subr.bf16.mxu0 0
        %3525 = vmatpush1.bf16.msra.mxu0 0
        %3526 = vmatprep.subr.bf16.mxu0 0
        %3527 = vmatpush1.bf16.msra.mxu0 0
        %3528 = vmatprep.subr.bf16.mxu0 0
        %3529 = vmatpush1.bf16.msra.mxu0 0
        %3530 = vmatprep.subr.bf16.mxu0 0
        %3531 = vmatpush1.bf16.msra.mxu0 0
        %3532 = vmatprep.subr.bf16.mxu0 0
        %3533 = vmatpush1.bf16.msra.mxu0 0
        %3534 = vmatprep.subr.bf16.mxu0 0
        %3535 = vmatpush1.bf16.msra.mxu0 0
        %3536 = vmatprep.subr.bf16.mxu0 0
        %3537 = vmatpush1.bf16.msra.mxu0 0
        %3538 = vmatprep.mubr.bf16.mxu0 0
        %3539 = vmatmul.mubr.bf16.gmra.mrb[0].mxu0 %v3504
        %v3540 = vpop.f32.mrb[0].mxu0
        %v3541 = vadd.f32 %v3485, %v3540
        %v3542 = vpop.f32.mrb[0].mxu0
        %v3543 = vpop.f32.mrb[0].mxu0
        %v3544 = vadd.f32 %v3488, %v3543
        %v3545 = vpop.f32.mrb[0].mxu0
        %3546 = vdwg.mxu0
        %v3547 = vpack.c.bf16 %v3418, %v3417
        %s3548 = scalar_lea.vmem [#allocation3], 464
        %v3549 = vld [vmem:[%s3548] sm:$0xf]
        %v3550 = vld [vmem:[%s3548 + $0x4] sm:$0xf]
        %v3551 = vld [vmem:[%s3548 + $0x8] sm:$0xf]
        %v3552 = vld [vmem:[%s3548 + $0xc] sm:$0xf]
        %v3557 = vunpack.c.l.b16 %v3549
        %v3558 = vunpack.c.l.b16 %v3550
        %v3559 = vunpack.c.l.b16 %v3551
        %v3560 = vunpack.c.l.b16 %v3552
        %v3561 = vpack.c.b16 %v3558, %v3557
        %v3562 = vpack.c.b16 %v3560, %v3559
        %v3566 = vsel %vm293, %v3547, 0
        %3568 = vmatprep.subr.bf16.mxu0 0
        %3569 = vmatpush1.bf16.msra.mxu0 %v3561
        %3570 = vmatprep.subr.bf16.mxu0 0
        %3571 = vmatpush1.bf16.msra.mxu0 %v3562
        %3572 = vmatprep.subr.bf16.mxu0 0
        %3573 = vmatpush1.bf16.msra.mxu0 0
        %3574 = vmatprep.subr.bf16.mxu0 0
        %3575 = vmatpush1.bf16.msra.mxu0 0
        %3576 = vmatprep.subr.bf16.mxu0 0
        %3577 = vmatpush1.bf16.msra.mxu0 0
        %3578 = vmatprep.subr.bf16.mxu0 0
        %3579 = vmatpush1.bf16.msra.mxu0 0
        %3580 = vmatprep.subr.bf16.mxu0 0
        %3581 = vmatpush1.bf16.msra.mxu0 0
        %3582 = vmatprep.subr.bf16.mxu0 0
        %3583 = vmatpush1.bf16.msra.mxu0 0
        %3584 = vmatprep.subr.bf16.mxu0 0
        %3585 = vmatpush1.bf16.msra.mxu0 0
        %3586 = vmatprep.subr.bf16.mxu0 0
        %3587 = vmatpush1.bf16.msra.mxu0 0
        %3588 = vmatprep.subr.bf16.mxu0 0
        %3589 = vmatpush1.bf16.msra.mxu0 0
        %3590 = vmatprep.subr.bf16.mxu0 0
        %3591 = vmatpush1.bf16.msra.mxu0 0
        %3592 = vmatprep.subr.bf16.mxu0 0
        %3593 = vmatpush1.bf16.msra.mxu0 0
        %3594 = vmatprep.subr.bf16.mxu0 0
        %3595 = vmatpush1.bf16.msra.mxu0 0
        %3596 = vmatprep.subr.bf16.mxu0 0
        %3597 = vmatpush1.bf16.msra.mxu0 0
        %3598 = vmatprep.subr.bf16.mxu0 0
        %3599 = vmatpush1.bf16.msra.mxu0 0
        %3600 = vmatprep.mubr.bf16.mxu0 0
        %3601 = vmatmul.mubr.bf16.gmra.mrb[0].mxu0 %v3566
        %v3602 = vpop.f32.mrb[0].mxu0
        %v3603 = vadd.f32 0.0, %v3602
        %v3604 = vpop.f32.mrb[0].mxu0
        %v3605 = vpop.f32.mrb[0].mxu0
        %v3606 = vadd.f32 0.0, %v3605
        %v3607 = vpop.f32.mrb[0].mxu0
        %3608 = vdwg.mxu0
        %v3609 = vadd.f32 %v3541, %v3603
        %v3610 = vadd.f32 %v3544, %v3606
        %s3611 = scalar_lea.vmem %s2, 9
        %v3612 = vld [vmem:[%s3611] sm:$0x1]
        %v3614 = vlaneseq
        %v3615 = vshrl.u32 %v3614, 7
        %v3616 = vsub.s32 0, %v3615
        %v3617 = vrot.slane %v3612, %v3616
        %v3619 = vadd.f32 %v3609, %v3617
        %v3620 = vadd.f32 %v3610, %v3617
        %s3621 = scalar_lea.vmem %s3, 9
        %v3622 = vld [vmem:[%s3621] sm:$0x1]
        %s3623 = scalar_lea.vmem %s4, 9
        %v3624 = vld [vmem:[%s3623] sm:$0x1]
        %v3625 = vsel %vm293, %v3619, 0.0
        %3626 = vadd.xlane.f32.xlu0 %v3625
        %v3627 = vpop.xlane.xlu0 %3626
        %v3628 = vsel %vm293, %v3620, 0.0
        %3629 = vadd.xlane.f32.xlu0 %v3628
        %v3630 = vpop.xlane.xlu0 %3629
        %v3631 = vmul.f32 %v3627, %v518
        %v3632 = vmul.f32 %v3630, %v518
        %v3633 = vsub.f32 %v3619, %v3631
        %v3634 = vsub.f32 %v3620, %v3632
        %v3635 = vmul.f32 %v3633, %v3633
        %v3636 = vmul.f32 %v3634, %v3634
        %v3637 = vsel %vm293, %v3635, 0.0
        %3638 = vadd.xlane.f32.xlu0 %v3637
        %v3639 = vpop.xlane.xlu0 %3638
        %v3640 = vsel %vm293, %v3636, 0.0
        %3641 = vadd.xlane.f32.xlu0 %v3640
        %v3642 = vpop.xlane.xlu0 %3641
        %v3643 = vmul.f32 %v3639, %v518
        %v3644 = vmul.f32 %v3642, %v518
        %v3645 = vadd.f32 %v3643, 1e-05
        %v3646 = vadd.f32 %v3644, 1e-05
        %v3647 = vrsqrt.pop %v3645
        %v3648 = vrsqrt.pop %v3646
        %v3649 = vmul.f32 %v3633, %v3647
        %v3650 = vmul.f32 %v3634, %v3648
        %v3652 = vlaneseq
        %v3653 = vshrl.u32 %v3652, 7
        %v3654 = vsub.s32 0, %v3653
        %v3655 = vrot.slane %v3622, %v3654
        %v3657 = vmul.f32 %v3649, %v3655
        %v3658 = vmul.f32 %v3650, %v3655
        %v3660 = vlaneseq
        %v3661 = vshrl.u32 %v3660, 7
        %v3662 = vsub.s32 0, %v3661
        %v3663 = vrot.slane %v3624, %v3662
        %v3665 = vadd.f32 %v3657, %v3663
        %v3666 = vadd.f32 %v3658, %v3663
        %s3667 = scalar_lea.vmem %s5, 9
        %v3668 = vld [vmem:[%s3667] sm:$0x1]
        %s3669 = scalar_lea.vmem %s6, 9
        %v3670 = vld [vmem:[%s3669] sm:$0x1]
        %3673 = vrot.lane.b32.xlu0 %v3619, 96
        %v3674 = vpop.permute.xlu0 %3673
        %3675 = vrot.lane.b32.xlu0 %v3620, 96
        %v3676 = vpop.permute.xlu0 %3675
        %v3679 = vsel %vm293, %v3674, 0.0
        %3680 = vadd.xlane.f32.xlu0 %v3679
        %v3681 = vpop.xlane.xlu0 %3680
        %v3682 = vsel %vm293, %v3676, 0.0
        %3683 = vadd.xlane.f32.xlu0 %v3682
        %v3684 = vpop.xlane.xlu0 %3683
        %v3685 = vmul.f32 %v3681, %v518
        %v3686 = vmul.f32 %v3684, %v518
        %v3687 = vsub.f32 %v3619, %v3685
        %v3688 = vsub.f32 %v3620, %v3686
        %v3689 = vmul.f32 %v3687, %v3687
        %v3690 = vmul.f32 %v3688, %v3688
        %3693 = vrot.lane.b32.xlu0 %v3689, 96
        %v3694 = vpop.permute.xlu0 %3693
        %3695 = vrot.lane.b32.xlu0 %v3690, 96
        %v3696 = vpop.permute.xlu0 %3695
        %v3699 = vsel %vm293, %v3694, 0.0
        %3700 = vadd.xlane.f32.xlu0 %v3699
        %v3701 = vpop.xlane.xlu0 %3700
        %v3702 = vsel %vm293, %v3696, 0.0
        %3703 = vadd.xlane.f32.xlu0 %v3702
        %v3704 = vpop.xlane.xlu0 %3703
        %v3705 = vmul.f32 %v3701, %v518
        %v3706 = vmul.f32 %v3704, %v518
        %v3707 = vadd.f32 %v3705, 1e-05
        %v3708 = vadd.f32 %v3706, 1e-05
        %v3709 = vrsqrt.pop %v3707
        %v3710 = vrsqrt.pop %v3708
        %v3711 = vmul.f32 %v3687, %v3709
        %v3712 = vmul.f32 %v3688, %v3710
        %v3714 = vlaneseq
        %v3715 = vshrl.u32 %v3714, 7
        %v3716 = vsub.s32 0, %v3715
        %v3717 = vrot.slane %v3668, %v3716
        %3718 = vrot.lane.b32.xlu0 %v3717, 32
        %v3719 = vpop.permute.xlu0 %3718
        %v3721 = vmul.f32 %v3711, %v3719
        %v3722 = vmul.f32 %v3712, %v3719
        %v3724 = vlaneseq
        %v3725 = vshrl.u32 %v3724, 7
        %v3726 = vsub.s32 0, %v3725
        %v3727 = vrot.slane %v3670, %v3726
        %3728 = vrot.lane.b32.xlu0 %v3727, 32
        %v3729 = vpop.permute.xlu0 %3728
        %v3731 = vadd.f32 %v3721, %v3729
        %v3732 = vadd.f32 %v3722, %v3729
        %v3733 = vxor.u32 %v3665, 2147483648
        %v3734 = vxor.u32 %v3666, 2147483648
        %v3735 = vmul.f32 %v3733, 1.442695
        %v3736 = vpow.pop %v3735
        %v3737 = vmul.f32 %v3734, 1.442695
        %v3738 = vpow.pop %v3737
        %v3739 = vadd.f32 %v3736, 1.0
        %v3740 = vadd.f32 %v3738, 1.0
        %v3741 = vrcp.pop %v3739
        %v3742 = vmul.f32 1.0, %v3741
        %v3743 = vrcp.pop %v3740
        %v3744 = vmul.f32 1.0, %v3743
        %3747 = vrot.lane.b32.xlu0 %v3731, 96
        %v3748 = vpop.permute.xlu0 %3747
        %3749 = vrot.lane.b32.xlu0 %v3732, 96
        %v3750 = vpop.permute.xlu0 %3749
        %v3753 = vmul.f32 %v3742, %v3748
        %v3754 = vmul.f32 %v3744, %v3750
        %v3755 = vsub.f32 1.0, %v3742
        %v3756 = vsub.f32 1.0, %v3744
        %v3757 = vmul.f32 %v3755, %v3417
        %v3758 = vmul.f32 %v3756, %v3418
        %v3759 = vadd.f32 %v3753, %v3757
        %v3760 = vadd.f32 %v3754, %v3758
        %3761 = vst.msk [vmem:[#allocation2 + $0x36] sm:$0xff] %vm293, %v3759
        %3762 = vst.msk [vmem:[#allocation2 + $0x3e] sm:$0xff] %vm293, %v3760
        %v3763 = vld [vmem:[#allocation2 + $0x36] sm:$0xff]
        %v3764 = vld [vmem:[#allocation2 + $0x3e] sm:$0xff]
        %3765 = vst.msk [vmem:[%s286] sm:$0xff] %vm293, %v3763
        %3766 = vst.msk [vmem:[%s286 + $0x8] sm:$0xff] %vm293, %v3764
        %s3767 = sand.u32 %s182, 1
        %s3768 = scalar_lea.sflag [#allocation5], %s3767
        %s3769 = sand.u32 %s182, 1
        %s3770 = smul.addr %s3769, 16
        %s3771 = scalar_lea.vmem [#allocation6], %s3770
        // Predicated region
        $region53: #{audio_enc_forward.3} parent=47 // pred_check
          %p3772 = pneg %p192
        $region54: #{audio_enc_forward.3} parent=47 // pred_check_branch
          %3774 = sbr.rel (%p3772) target = $region56
        $region55: #{audio_enc_forward.3} parent=47 // pred_region
          %s3776 = ssub.s32 256, 256
          %3777 = vsyncadd %s3768, %s3776
          %s3778 = smul.addr %s22, 2
          %s3779 = smul.addr %s3778, 128
          %s3780 = scalar_lea.hbm %s7, %s3779
          %s3781 = sshll.u32 %s3771, 4
          %s3782 = int_to_ptr.vmem [resolvable:$true] %s3781
          %3787 = dma.vmem_to_hbm [thread:$0]  %s3782, 256, %s3780, %s3768, 128, 128, 8
        $region56: #{audio_enc_forward.3} parent=47 // pred_fallthru
          _
      $region48: #{audio_enc_forward.3} parent=5 // pred_fallthru
        _
      %p3788 = scmp.le.s32.totalorder 2, %s17
      // Predicated region
      $region57: #{audio_enc_forward.3} parent=5 // pred_check
        %p3789 = pneg %p3788
      $region58: #{audio_enc_forward.3} parent=5 // pred_check_branch
        %3791 = sbr.rel (%p3789) target = $region60
      $region59: #{audio_enc_forward.3} parent=5 // pred_region
        %s3792 = ssub.s32 %s17, 2
        // Predicated region
        $region61: #{audio_enc_forward.3} parent=59 // pred_check
          %p3793 = pneg %p198
        $region62: #{audio_enc_forward.3} parent=59 // pred_check_branch
          %3795 = sbr.rel (%p3793) target = $region64
        $region63: #{audio_enc_forward.3} parent=59 // pred_region
          %s3796 = sand.u32 %s183, 1
          %s3797 = scalar_lea.sflag [#allocation5], %s3796
          %s3798 = sand.u32 %s183, 1
          %s3799 = smul.addr %s3798, 16
          %s3800 = scalar_lea.vmem [#allocation6], %s3799
          %3801 = dma.done %s3797, 256
        $region64: #{audio_enc_forward.3} parent=59 // pred_fallthru
          _
      $region60: #{audio_enc_forward.3} parent=5 // pred_fallthru
        _
    $region6: #{audio_enc_forward.3} parent=1 // loop_footer
      %s21 = sadd.s32 1, %s17
    $region7: #{audio_enc_forward.3} parent=1 // loop_footer_branch
      %16 = sbr.rel target = $region3
    $region8: #{audio_enc_forward.3} parent=1 // loop_exit
      _
    %3802 = vsyncpa [#allocation4], 1
    %s3803 = scalar_lea.sflag [#allocation4], 1
    %3804 = vsyncpa %s3803, 1
    %3805 = vsyncpa [#allocation5], 1
    %s3806 = scalar_lea.sflag [#allocation5], 1
    %3807 = vsyncpa %s3806, 1

</llo_original>
